<compile_context>
chip_gen: v7x
topology: tpu7x:2x2x1
jax: 0.10.0
libtpu: 0.0.40
codegen_flags: <defaults>
</compile_context>

<pallas_src>
import functools
import math

import jax
import jax.numpy as jnp
from jax import lax
from jax.experimental import pallas as pl
from jax.experimental.pallas import tpu as pltpu


_LN_EPS = 1e-5
_MLP_CHUNK_MAX = 2048


def _layer_norm(h, gamma, beta, eps=_LN_EPS):
    # Two-pass statistics (torch.nn.LayerNorm parity; avoids E[x^2]-mean^2
    # cancellation flagged in review).
    mean = jnp.mean(h, axis=-1, keepdims=True)
    centered = h - mean
    var = jnp.mean(centered * centered, axis=-1, keepdims=True)
    return centered * lax.rsqrt(var + eps) * gamma + beta


def _gelu_exact(h):
    # nn.GELU() default = exact erf formulation (PyTorch parity).
    return 0.5 * h * (1.0 + lax.erf(h * (1.0 / math.sqrt(2.0))))


def block_kernel(
    x_ref,
    wqkv_ref, bqkv_ref,      # (C, 3C) bf16 / (1, 3C) f32 ; Q part pre-scaled by 1/sqrt(D)
    wp_ref,                  # (C, C)   bf16
    wf1_ref, bf1_ref,        # (C, 4C)  bf16 / (1, 4C) f32
    wf2_ref,                 # (4C, C)  bf16
    vec_ref,                 # (6, C)   f32: rows = [bp, bf2, g1, be1, g2, be2]
    out_ref,
    *, n_heads, head_dim, seq_len, block_b, mlp_chunk,
):
    BB, T, H, D = block_b, seq_len, n_heads, head_dim
    C = H * D
    N = BB * T

    # Fold the per-step batch block into the matmul M dimension.
    x_f32 = x_ref[...].reshape(N, C).astype(jnp.float32)
    x_bf = x_f32.astype(jnp.bfloat16)

    # ---- fused QKV projection: one (N, C) @ (C, 3C) matmul ----
    qkv = jnp.dot(x_bf, wqkv_ref[...],
                  preferred_element_type=jnp.float32) + bqkv_ref[...]
    qkv_bf = qkv.astype(jnp.bfloat16)            # (N, 3C); Q columns carry 1/sqrt(D)

    # ---- causal mask (lower triangular), shared by all heads ----
    row = lax.broadcasted_iota(jnp.int32, (T, T), 0)
    col = lax.broadcasted_iota(jnp.int32, (T, T), 1)
    causal = (col <= row)[None, :, :]            # (1, T, T), broadcast over BB
    neg_big = jnp.float32(-1e30)

    bp = vec_ref[0:1, :]

    # ---- attention: per-head batched einsums; head outputs go straight into
    #      an accumulated slice of the projection matmul (no lane-dim concat).
    att_acc = jnp.zeros((N, C), jnp.float32)
    for h in range(H):
        q_h = qkv_bf[:, h * D:(h + 1) * D].reshape(BB, T, D)
        k_h = qkv_bf[:, C + h * D:C + (h + 1) * D].reshape(BB, T, D)
        v_h = qkv_bf[:, 2 * C + h * D:2 * C + (h + 1) * D].reshape(BB, T, D)

        s = jnp.einsum('bqd,bkd->bqk', q_h, k_h,
                       preferred_element_type=jnp.float32)           # (BB, T, T)
        s = jnp.where(causal, s, neg_big)
        s = s - jnp.max(s, axis=-1, keepdims=True)
        p = jnp.exp(s)
        den = jnp.sum(p, axis=-1, keepdims=True)                     # (BB, T, 1)
        o_h = jnp.einsum('bqk,bkd->bqd', p.astype(jnp.bfloat16), v_h,
                         preferred_element_type=jnp.float32)         # (BB, T, D)
        o_h = o_h * (1.0 / den)                                      # exact softmax norm

        att_acc = att_acc + jnp.dot(
            o_h.reshape(N, D).astype(jnp.bfloat16),
            wp_ref[h * D:(h + 1) * D, :],
            preferred_element_type=jnp.float32)
    att_acc = att_acc + bp

    # ---- residual + LayerNorm 1 (f32) ----
    h1 = _layer_norm(x_f32 + att_acc, vec_ref[2:3, :], vec_ref[3:4, :])
    h1_bf = h1.astype(jnp.bfloat16)

    # ---- MLP: Linear(C, 4C) -> GELU -> Linear(4C, C), hidden-dim chunked ----
    hidden = 4 * C
    mlp_acc = jnp.zeros((N, C), jnp.float32)
    for c0 in range(0, hidden, mlp_chunk):
        c1 = min(c0 + mlp_chunk, hidden)
        mc = jnp.dot(h1_bf, wf1_ref[:, c0:c1],
                     preferred_element_type=jnp.float32) + bf1_ref[:, c0:c1]
        mc = _gelu_exact(mc)
        mlp_acc = mlp_acc + jnp.dot(mc.astype(jnp.bfloat16), wf2_ref[c0:c1, :],
                                    preferred_element_type=jnp.float32)
    mlp_acc = mlp_acc + vec_ref[1:2, :]

    # ---- residual + LayerNorm 2 ----
    h2 = _layer_norm(h1 + mlp_acc, vec_ref[4:5, :], vec_ref[5:6, :])
    out_ref[...] = h2.reshape(BB, T, C).astype(out_ref.dtype)


# --------------------------------------------------------------------------- #
# Wrapper / tiling heuristics
# --------------------------------------------------------------------------- #

def _pick_vmem_limit():
    """~3/4 of physical VMEM: ≈48 MiB on v7x (64 MiB), ≈96 MiB on v5e/v6e."""
    try:
        cap = int(pltpu.get_tpu_info().vmem_capacity_bytes)
    except Exception:
        cap = 64 * 1024 * 1024   # conservative (v7x-sized) fallback
    return max(32 * 1024 * 1024, min(cap * 3 // 4, cap - 16 * 1024 * 1024))


def _num_tensorcores():
    try:
        kind = jax.devices()[0].device_kind.lower()
        if "v7" in kind:
            return 2
    except Exception:
        pass
    return 1


def _pick_mlp_chunk(hidden, max_chunk=_MLP_CHUNK_MAX):
    if hidden <= max_chunk:
        return hidden
    for c in range(max_chunk, 127, -128):
        if hidden % c == 0:
            return c
    return hidden


def _step_vmem_bytes(BB, T, C, mlp_chunk):
    """Rough per-grid-step activation VMEM estimate (f32 + bf16 copies)."""
    N = BB * T
    b = 0
    b += 2 * 2 * BB * T * C * 4           # x / out blocks, double buffered
    b += N * 3 * C * (4 + 2)              # fused qkv activation (f32 + bf16)
    b += 2 * BB * T * T * 4               # per-head scores + probs
    b += 3 * N * C * 4                    # att acc / h1 / mlp acc
    b += N * mlp_chunk * (4 + 2)          # MLP hidden chunk
    return b


def _pick_block_b(B, T, C, mlp_chunk, act_budget, num_cores):
    divisors = [d for d in range(1, B + 1) if B % d == 0]
    feasible = [d for d in divisors
                if _step_vmem_bytes(d, T, C, mlp_chunk) <= act_budget]
    if not feasible:
        feasible = [1]
    best = max(feasible)                  # largest BB that fits -> best MXU fill
    if num_cores > 1:
        # Prefer an even grid-step count on v7x so both TensorCores stay busy,
        # as long as total parallel rows per "wave" do not shrink.
        even = [d for d in feasible if (B // d) % num_cores == 0]
        if even and max(even) * num_cores >= best:
            best = max(even)
    return best


def _const_spec(shape):
    ndim = len(shape)
    index_map = lambda b: (0,) * ndim
    try:
        # Constant index_map across the grid: the block is never re-fetched, so
        # single-buffering halves its VMEM residency (important on v7x).
        return pl.BlockSpec(shape, index_map, pipeline_mode=pl.Buffered(1))
    except (TypeError, ValueError, AttributeError):
        return pl.BlockSpec(shape, index_map)


def _prep_weights(params, n_heads):
    """Fuse QKV, fold 1/sqrt(D) into Q, cast MXU weights to bf16, pack vectors."""
    C = params["wq"].shape[0]
    D = C // n_heads
    scale = 1.0 / math.sqrt(float(D))
    wqkv = jnp.concatenate(
        [params["wq"] * scale, params["wk"], params["wv"]], axis=1).astype(jnp.bfloat16)
    bqkv = jnp.concatenate(
        [params["bq"] * scale, params["bk"], params["bv"]], axis=1).astype(jnp.float32)
    wp = params["wp"].astype(jnp.bfloat16)
    wf1 = params["wf1"].astype(jnp.bfloat16)
    bf1 = params["bf1"].astype(jnp.float32)
    wf2 = params["wf2"].astype(jnp.bfloat16)
    vec = jnp.concatenate(
        [params["bp"], params["bf2"], params["g1"], params["be1"],
         params["g2"], params["be2"]], axis=0).astype(jnp.float32)   # (6, C)
    return wqkv, bqkv, wp, wf1, bf1, wf2, vec


def block_forward(x, params, n_heads, *, block_b=None, vmem_limit_bytes=None):
    B, T, C = x.shape
    assert C % n_heads == 0
    D = C // n_heads
    hidden = 4 * C

    if vmem_limit_bytes is None:
        vmem_limit_bytes = _pick_vmem_limit()
    mlp_chunk = _pick_mlp_chunk(hidden)

    weight_args = _prep_weights(params, n_heads)
    weight_bytes = sum(int(w.size) * w.dtype.itemsize for w in weight_args)
    act_budget = vmem_limit_bytes - weight_bytes - 4 * 1024 * 1024

    num_cores = _num_tensorcores()
    BB = (_pick_block_b(B, T, C, mlp_chunk, act_budget, num_cores)
          if block_b is None else block_b)
    assert B % BB == 0, "block_b must divide B"

    kernel = functools.partial(
        block_kernel, n_heads=n_heads, head_dim=D, seq_len=T,
        block_b=BB, mlp_chunk=mlp_chunk)

    in_specs = [pl.BlockSpec((BB, T, C), lambda b: (b, 0, 0))]
    in_specs += [_const_spec(w.shape) for w in weight_args]

    out = pl.pallas_call(
        kernel,
        out_shape=jax.ShapeDtypeStruct((B, T, C), x.dtype),
        grid_spec=pltpu.PrefetchScalarGridSpec(
            num_scalar_prefetch=0,
            grid=(B // BB,),
            in_specs=in_specs,
            out_specs=pl.BlockSpec((BB, T, C), lambda b: (b, 0, 0)),
        ),
        compiler_params=pltpu.CompilerParams(
            dimension_semantics=("parallel",),
            vmem_limit_bytes=vmem_limit_bytes,
        ),
    )(x, *weight_args)
    return out


# --------------------------------------------------------------------------- #
# Parameters + pure-JAX reference
# --------------------------------------------------------------------------- #

def init_params(key, h_dim, n_heads):
    """PyTorch-style shapes; Linear weights stored as (in_features, out_features)
    so the kernel computes x @ W + b (== torch x @ W.T + b)."""
    C = h_dim * n_heads
    keys = jax.random.split(key, 12)
    s = 0.02

    def lin(k, fan_in, fan_out):
        return s * jax.random.normal(k, (fan_in, fan_out), jnp.float32)

    return {
        "wq": lin(keys[0], C, C), "bq": s * jax.random.normal(keys[1], (1, C), jnp.float32),
        "wk": lin(keys[2], C, C), "bk": s * jax.random.normal(keys[3], (1, C), jnp.float32),
        "wv": lin(keys[4], C, C), "bv": s * jax.random.normal(keys[5], (1, C), jnp.float32),
        "wp": lin(keys[6], C, C), "bp": s * jax.random.normal(keys[7], (1, C), jnp.float32),
        "g1": jnp.ones((1, C), jnp.float32), "be1": jnp.zeros((1, C), jnp.float32),
        "g2": jnp.ones((1, C), jnp.float32), "be2": jnp.zeros((1, C), jnp.float32),
        "wf1": lin(keys[8], C, 4 * C), "bf1": s * jax.random.normal(keys[9], (1, 4 * C), jnp.float32),
        "wf2": lin(keys[10], 4 * C, C), "bf2": s * jax.random.normal(keys[11], (1, C), jnp.float32),
    }


def block_reference(x, params, n_heads):
    """Pure-JAX f32 reference of the PyTorch Block.forward (eval mode)."""
    B, T, C = x.shape
    D = C // n_heads

    def ln(h, g, b):
        mu = jnp.mean(h, -1, keepdims=True)
        var = jnp.mean((h - mu) ** 2, -1, keepdims=True)
        return (h - mu) / jnp.sqrt(var + _LN_EPS) * g + b

    def split(a):
        return a.reshape(B, T, n_heads, D).transpose(0, 2, 1, 3)

    q = split(x @ params["wq"] + params["bq"])
    k = split(x @ params["wk"] + params["bk"])
    v = split(x @ params["wv"] + params["bv"])
    s = jnp.einsum("bhqd,bhkd->bhqk", q, k) / math.sqrt(float(D))
    mask = jnp.tril(jnp.ones((T, T), bool))
    s = jnp.where(mask[None, None], s, -jnp.inf)
    p = jax.nn.softmax(s, axis=-1)
    o = jnp.einsum("bhqk,bhkd->bhqd", p, v).transpose(0, 2, 1, 3).reshape(B, T, C)
    att = o @ params["wp"] + params["bp"]
    h1 = ln(x + att, params["g1"], params["be1"])
    m = h1 @ params["wf1"] + params["bf1"]
    m = jax.nn.gelu(m, approximate=False)
    m = m @ params["wf2"] + params["bf2"]
    return ln(h1 + m, params["g2"], params["be2"])


if __name__ == "__main__":
    # Block(h_dim, max_T, n_heads, drop_p): h_dim is the per-head dim, so
    # h_dim=128, n_heads=2 -> C=256 (head slices are full 128-lane stripes,
    # lane-dense output).  B=16, T=16 -> N=BB*T up to 256 rows per step.
    h_dim, n_heads = 128, 2
    B, T = 16, 16
    C = h_dim * n_heads

    key = jax.random.PRNGKey(0)
    k_x, k_p = jax.random.split(key)
    x = jax.random.normal(k_x, (B, T, C), jnp.float32)
    params = init_params(k_p, h_dim, n_heads)

    out = block_forward(x, params, n_heads)
    out = jax.block_until_ready(out)

    ref = block_reference(x, params, n_heads)
    err = float(jnp.max(jnp.abs(out - ref)))

    assert out.shape == (B, T, C)
    assert bool(jnp.all(jnp.isfinite(out)))
    assert err < 1e-1, f"max abs error vs reference: {err}"
    print("KERNEL_OK")
</pallas_src>

<mosaic_0001>
module attributes {stable_mosaic.version = 11 : i64} {
  func.func @block_kernel(%arg0: i32, %arg1: memref<16x16x256xf32, #tpu.memory_space<vmem>>, %arg2: memref<256x768xbf16, #tpu.memory_space<vmem>>, %arg3: memref<1x768xf32, #tpu.memory_space<vmem>>, %arg4: memref<256x256xbf16, #tpu.memory_space<vmem>>, %arg5: memref<256x1024xbf16, #tpu.memory_space<vmem>>, %arg6: memref<1x1024xf32, #tpu.memory_space<vmem>>, %arg7: memref<1024x256xbf16, #tpu.memory_space<vmem>>, %arg8: memref<6x256xf32, #tpu.memory_space<vmem>>, %arg9: memref<16x16x256xf32, #tpu.memory_space<vmem>>) attributes {dimension_semantics = [#tpu.dimension_semantics<parallel>], iteration_bounds = array<i64: 1>, scalar_prefetch = 0 : i64, scratch_operands = 0 : i64, tpu.core_type = #tpu.core_type<tc>, window_params = [{transform_indices = @transform_0, window_bounds = array<i64: 16, 16, 256>}, {pipeline_mode = #tpu.pipeline_mode<synchronous>, transform_indices = @transform_1, window_bounds = array<i64: 256, 768>}, {pipeline_mode = #tpu.pipeline_mode<synchronous>, transform_indices = @transform_2, window_bounds = array<i64: 1, 768>}, {pipeline_mode = #tpu.pipeline_mode<synchronous>, transform_indices = @transform_3, window_bounds = array<i64: 256, 256>}, {pipeline_mode = #tpu.pipeline_mode<synchronous>, transform_indices = @transform_4, window_bounds = array<i64: 256, 1024>}, {pipeline_mode = #tpu.pipeline_mode<synchronous>, transform_indices = @transform_5, window_bounds = array<i64: 1, 1024>}, {pipeline_mode = #tpu.pipeline_mode<synchronous>, transform_indices = @transform_6, window_bounds = array<i64: 1024, 256>}, {pipeline_mode = #tpu.pipeline_mode<synchronous>, transform_indices = @transform_7, window_bounds = array<i64: 6, 256>}, {transform_indices = @transform_8, window_bounds = array<i64: 16, 16, 256>}]} {
    %c0 = arith.constant 0 : index
    %c0_0 = arith.constant 0 : index
    %c0_1 = arith.constant 0 : index
    %0 = vector.load %arg1[%c0, %c0_0, %c0_1] : memref<16x16x256xf32, #tpu.memory_space<vmem>>, vector<16x16x256xf32>
    %1 = vector.shape_cast %0 : vector<16x16x256xf32> to vector<256x256xf32>
    %2 = arith.truncf %1 : vector<256x256xf32> to vector<256x256xbf16>
    %c0_2 = arith.constant 0 : index
    %c0_3 = arith.constant 0 : index
    %3 = vector.load %arg2[%c0_2, %c0_3] : memref<256x768xbf16, #tpu.memory_space<vmem>>, vector<256x768xbf16>
    %cst = arith.constant dense<0.000000e+00> : vector<256x768xf32>
    %4 = tpu.matmul %2, %3, %cst {dimension_numbers = #tpu.dot_dimension_numbers<[1], [0], [0], [1], [0, 0, 1, 1], [], []>} : vector<256x256xbf16>, vector<256x768xbf16>, vector<256x768xf32> -> vector<256x768xf32>
    %c0_4 = arith.constant 0 : index
    %c0_5 = arith.constant 0 : index
    %5 = vector.load %arg3[%c0_4, %c0_5] : memref<1x768xf32, #tpu.memory_space<vmem>>, vector<1x768xf32>
    %6 = vector.broadcast %5 : vector<1x768xf32> to vector<256x768xf32>
    %7 = arith.addf %4, %6 : vector<256x768xf32>
    %8 = arith.truncf %7 : vector<256x768xf32> to vector<256x768xbf16>
    %9 = tpu.iota {dimensions = array<i32: 0>} : vector<16x16xi32>
    %10 = tpu.iota {dimensions = array<i32: 1>} : vector<16x16xi32>
    %11 = arith.cmpi sle, %10, %9 : vector<16x16xi32>
    %12 = vector.shape_cast %11 : vector<16x16xi1> to vector<1x16x16xi1>
    %c0_6 = arith.constant 0 : index
    %c0_7 = arith.constant 0 : index
    %13 = vector.load %arg8[%c0_6, %c0_7] : memref<6x256xf32, #tpu.memory_space<vmem>>, vector<1x256xf32>
    %cst_8 = arith.constant 0.000000e+00 : f32
    %14 = vector.broadcast %cst_8 : f32 to vector<256x256xf32>
    %15 = vector.extract_strided_slice %8 {offsets = [0, 0], sizes = [256, 128], strides = [1, 1]} : vector<256x768xbf16> to vector<256x128xbf16>
    %16 = vector.shape_cast %15 : vector<256x128xbf16> to vector<16x16x128xbf16>
    %17 = vector.extract_strided_slice %8 {offsets = [0, 256], sizes = [256, 128], strides = [1, 1]} : vector<256x768xbf16> to vector<256x128xbf16>
    %18 = vector.shape_cast %17 : vector<256x128xbf16> to vector<16x16x128xbf16>
    %19 = vector.extract_strided_slice %8 {offsets = [0, 512], sizes = [256, 128], strides = [1, 1]} : vector<256x768xbf16> to vector<256x128xbf16>
    %20 = vector.shape_cast %19 : vector<256x128xbf16> to vector<16x16x128xbf16>
    "tpu.trace_start"() <{level = 10 : i32, message = "bqd,bkd->bqk"}> : () -> ()
    %cst_9 = arith.constant dense<0.000000e+00> : vector<16x16x16xf32>
    %21 = tpu.matmul %16, %18, %cst_9 {dimension_numbers = #tpu.dot_dimension_numbers<[2], [2], [1], [1], [0, 0, 0, 1, 1, 1], [0], [0]>} : vector<16x16x128xbf16>, vector<16x16x128xbf16>, vector<16x16x16xf32> -> vector<16x16x16xf32>
    %cst_10 = arith.constant -1.000000e+30 : f32
    "tpu.trace_stop"() : () -> ()
    %22 = vector.shape_cast %12 : vector<1x16x16xi1> to vector<1x16x16xi1>
    %23 = vector.broadcast %22 : vector<1x16x16xi1> to vector<16x16x16xi1>
    %24 = vector.broadcast %cst_10 : f32 to vector<16x16x16xf32>
    %25 = arith.select %23, %21, %24 : vector<16x16x16xi1>, vector<16x16x16xf32>
    %cst_11 = arith.constant dense<0xFF800000> : vector<16x16xf32>
    %26 = vector.multi_reduction <maximumf>, %25, %cst_11 [2] : vector<16x16x16xf32> to vector<16x16xf32>
    %27 = vector.shape_cast %26 : vector<16x16xf32> to vector<16x16x1xf32>
    %28 = vector.broadcast %27 : vector<16x16x1xf32> to vector<16x16x16xf32>
    %29 = arith.subf %25, %28 : vector<16x16x16xf32>
    %30 = math.exp %29 : vector<16x16x16xf32>
    %cst_12 = arith.constant dense<0.000000e+00> : vector<16x16xf32>
    %31 = vector.multi_reduction <add>, %30, %cst_12 [2] : vector<16x16x16xf32> to vector<16x16xf32>
    %32 = vector.shape_cast %31 : vector<16x16xf32> to vector<16x16x1xf32>
    %33 = arith.truncf %30 : vector<16x16x16xf32> to vector<16x16x16xbf16>
    "tpu.trace_start"() <{level = 10 : i32, message = "bqk,bkd->bqd"}> : () -> ()
    %cst_13 = arith.constant dense<0.000000e+00> : vector<16x16x128xf32>
    %34 = tpu.matmul %33, %20, %cst_13 {dimension_numbers = #tpu.dot_dimension_numbers<[2], [1], [1], [2], [0, 0, 0, 1, 1, 2], [0], [0]>} : vector<16x16x16xbf16>, vector<16x16x128xbf16>, vector<16x16x128xf32> -> vector<16x16x128xf32>
    "tpu.trace_stop"() : () -> ()
    %cst_14 = arith.constant 1.000000e+00 : f32
    %35 = vector.broadcast %cst_14 : f32 to vector<16x16x1xf32>
    %36 = arith.divf %35, %32 : vector<16x16x1xf32>
    %37 = vector.broadcast %36 : vector<16x16x1xf32> to vector<16x16x128xf32>
    %38 = arith.mulf %34, %37 : vector<16x16x128xf32>
    %39 = vector.shape_cast %38 : vector<16x16x128xf32> to vector<256x128xf32>
    %40 = arith.truncf %39 : vector<256x128xf32> to vector<256x128xbf16>
    %c0_15 = arith.constant 0 : index
    %c0_16 = arith.constant 0 : index
    %41 = vector.load %arg4[%c0_15, %c0_16] : memref<256x256xbf16, #tpu.memory_space<vmem>>, vector<128x256xbf16>
    %cst_17 = arith.constant dense<0.000000e+00> : vector<256x256xf32>
    %42 = tpu.matmul %40, %41, %cst_17 {dimension_numbers = #tpu.dot_dimension_numbers<[1], [0], [0], [1], [0, 0, 1, 1], [], []>} : vector<256x128xbf16>, vector<128x256xbf16>, vector<256x256xf32> -> vector<256x256xf32>
    %43 = arith.addf %14, %42 : vector<256x256xf32>
    %44 = vector.extract_strided_slice %8 {offsets = [0, 128], sizes = [256, 128], strides = [1, 1]} : vector<256x768xbf16> to vector<256x128xbf16>
    %45 = vector.shape_cast %44 : vector<256x128xbf16> to vector<16x16x128xbf16>
    %46 = vector.extract_strided_slice %8 {offsets = [0, 384], sizes = [256, 128], strides = [1, 1]} : vector<256x768xbf16> to vector<256x128xbf16>
    %47 = vector.shape_cast %46 : vector<256x128xbf16> to vector<16x16x128xbf16>
    %48 = vector.extract_strided_slice %8 {offsets = [0, 640], sizes = [256, 128], strides = [1, 1]} : vector<256x768xbf16> to vector<256x128xbf16>
    %49 = vector.shape_cast %48 : vector<256x128xbf16> to vector<16x16x128xbf16>
    "tpu.trace_start"() <{level = 10 : i32, message = "bqd,bkd->bqk"}> : () -> ()
    %cst_18 = arith.constant dense<0.000000e+00> : vector<16x16x16xf32>
    %50 = tpu.matmul %45, %47, %cst_18 {dimension_numbers = #tpu.dot_dimension_numbers<[2], [2], [1], [1], [0, 0, 0, 1, 1, 1], [0], [0]>} : vector<16x16x128xbf16>, vector<16x16x128xbf16>, vector<16x16x16xf32> -> vector<16x16x16xf32>
    %cst_19 = arith.constant -1.000000e+30 : f32
    "tpu.trace_stop"() : () -> ()
    %51 = vector.shape_cast %12 : vector<1x16x16xi1> to vector<1x16x16xi1>
    %52 = vector.broadcast %51 : vector<1x16x16xi1> to vector<16x16x16xi1>
    %53 = vector.broadcast %cst_19 : f32 to vector<16x16x16xf32>
    %54 = arith.select %52, %50, %53 : vector<16x16x16xi1>, vector<16x16x16xf32>
    %cst_20 = arith.constant dense<0xFF800000> : vector<16x16xf32>
    %55 = vector.multi_reduction <maximumf>, %54, %cst_20 [2] : vector<16x16x16xf32> to vector<16x16xf32>
    %56 = vector.shape_cast %55 : vector<16x16xf32> to vector<16x16x1xf32>
    %57 = vector.broadcast %56 : vector<16x16x1xf32> to vector<16x16x16xf32>
    %58 = arith.subf %54, %57 : vector<16x16x16xf32>
    %59 = math.exp %58 : vector<16x16x16xf32>
    %cst_21 = arith.constant dense<0.000000e+00> : vector<16x16xf32>
    %60 = vector.multi_reduction <add>, %59, %cst_21 [2] : vector<16x16x16xf32> to vector<16x16xf32>
    %61 = vector.shape_cast %60 : vector<16x16xf32> to vector<16x16x1xf32>
    %62 = arith.truncf %59 : vector<16x16x16xf32> to vector<16x16x16xbf16>
    "tpu.trace_start"() <{level = 10 : i32, message = "bqk,bkd->bqd"}> : () -> ()
    %cst_22 = arith.constant dense<0.000000e+00> : vector<16x16x128xf32>
    %63 = tpu.matmul %62, %49, %cst_22 {dimension_numbers = #tpu.dot_dimension_numbers<[2], [1], [1], [2], [0, 0, 0, 1, 1, 2], [0], [0]>} : vector<16x16x16xbf16>, vector<16x16x128xbf16>, vector<16x16x128xf32> -> vector<16x16x128xf32>
    "tpu.trace_stop"() : () -> ()
    %cst_23 = arith.constant 1.000000e+00 : f32
    %64 = vector.broadcast %cst_23 : f32 to vector<16x16x1xf32>
    %65 = arith.divf %64, %61 : vector<16x16x1xf32>
    %66 = vector.broadcast %65 : vector<16x16x1xf32> to vector<16x16x128xf32>
    %67 = arith.mulf %63, %66 : vector<16x16x128xf32>
    %68 = vector.shape_cast %67 : vector<16x16x128xf32> to vector<256x128xf32>
    %69 = arith.truncf %68 : vector<256x128xf32> to vector<256x128xbf16>
    %c128 = arith.constant 128 : index
    %c0_24 = arith.constant 0 : index
    %70 = vector.load %arg4[%c128, %c0_24] : memref<256x256xbf16, #tpu.memory_space<vmem>>, vector<128x256xbf16>
    %cst_25 = arith.constant dense<0.000000e+00> : vector<256x256xf32>
    %71 = tpu.matmul %69, %70, %cst_25 {dimension_numbers = #tpu.dot_dimension_numbers<[1], [0], [0], [1], [0, 0, 1, 1], [], []>} : vector<256x128xbf16>, vector<128x256xbf16>, vector<256x256xf32> -> vector<256x256xf32>
    %72 = arith.addf %43, %71 : vector<256x256xf32>
    %73 = vector.broadcast %13 : vector<1x256xf32> to vector<256x256xf32>
    %74 = arith.addf %72, %73 : vector<256x256xf32>
    %75 = arith.addf %1, %74 : vector<256x256xf32>
    %c2 = arith.constant 2 : index
    %c0_26 = arith.constant 0 : index
    %76 = vector.load %arg8[%c2, %c0_26] : memref<6x256xf32, #tpu.memory_space<vmem>>, vector<1x256xf32>
    %c3 = arith.constant 3 : index
    %c0_27 = arith.constant 0 : index
    %77 = vector.load %arg8[%c3, %c0_27] : memref<6x256xf32, #tpu.memory_space<vmem>>, vector<1x256xf32>
    %cst_28 = arith.constant dense<0.000000e+00> : vector<256xf32>
    %78 = vector.multi_reduction <add>, %75, %cst_28 [1] : vector<256x256xf32> to vector<256xf32>
    %79 = vector.shape_cast %78 : vector<256xf32> to vector<256x1xf32>
    %cst_29 = arith.constant 2.560000e+02 : f32
    %80 = vector.broadcast %cst_29 : f32 to vector<256x1xf32>
    %81 = arith.divf %79, %80 : vector<256x1xf32>
    %82 = vector.broadcast %81 : vector<256x1xf32> to vector<256x256xf32>
    %83 = arith.subf %75, %82 : vector<256x256xf32>
    %84 = arith.mulf %83, %83 : vector<256x256xf32>
    %cst_30 = arith.constant dense<0.000000e+00> : vector<256xf32>
    %85 = vector.multi_reduction <add>, %84, %cst_30 [1] : vector<256x256xf32> to vector<256xf32>
    %86 = vector.shape_cast %85 : vector<256xf32> to vector<256x1xf32>
    %cst_31 = arith.constant 2.560000e+02 : f32
    %87 = vector.broadcast %cst_31 : f32 to vector<256x1xf32>
    %88 = arith.divf %86, %87 : vector<256x1xf32>
    %cst_32 = arith.constant 9.99999974E-6 : f32
    %89 = vector.broadcast %cst_32 : f32 to vector<256x1xf32>
    %90 = arith.addf %88, %89 : vector<256x1xf32>
    %91 = math.rsqrt %90 : vector<256x1xf32>
    %92 = vector.broadcast %91 : vector<256x1xf32> to vector<256x256xf32>
    %93 = arith.mulf %83, %92 : vector<256x256xf32>
    %94 = vector.broadcast %76 : vector<1x256xf32> to vector<256x256xf32>
    %95 = arith.mulf %93, %94 : vector<256x256xf32>
    %96 = vector.broadcast %77 : vector<1x256xf32> to vector<256x256xf32>
    %97 = arith.addf %95, %96 : vector<256x256xf32>
    %98 = arith.truncf %97 : vector<256x256xf32> to vector<256x256xbf16>
    %cst_33 = arith.constant 0.000000e+00 : f32
    %99 = vector.broadcast %cst_33 : f32 to vector<256x256xf32>
    %c0_34 = arith.constant 0 : index
    %c0_35 = arith.constant 0 : index
    %100 = vector.load %arg5[%c0_34, %c0_35] : memref<256x1024xbf16, #tpu.memory_space<vmem>>, vector<256x1024xbf16>
    %cst_36 = arith.constant dense<0.000000e+00> : vector<256x1024xf32>
    %101 = tpu.matmul %98, %100, %cst_36 {dimension_numbers = #tpu.dot_dimension_numbers<[1], [0], [0], [1], [0, 0, 1, 1], [], []>} : vector<256x256xbf16>, vector<256x1024xbf16>, vector<256x1024xf32> -> vector<256x1024xf32>
    %c0_37 = arith.constant 0 : index
    %c0_38 = arith.constant 0 : index
    %102 = vector.load %arg6[%c0_37, %c0_38] : memref<1x1024xf32, #tpu.memory_space<vmem>>, vector<1x1024xf32>
    %103 = vector.broadcast %102 : vector<1x1024xf32> to vector<256x1024xf32>
    %104 = arith.addf %101, %103 : vector<256x1024xf32>
    %cst_39 = arith.constant 5.000000e-01 : f32
    %105 = vector.broadcast %cst_39 : f32 to vector<256x1024xf32>
    %106 = arith.mulf %105, %104 : vector<256x1024xf32>
    %cst_40 = arith.constant 0.707106769 : f32
    %107 = vector.broadcast %cst_40 : f32 to vector<256x1024xf32>
    %108 = arith.mulf %104, %107 : vector<256x1024xf32>
    %109 = math.erf %108 : vector<256x1024xf32>
    %cst_41 = arith.constant 1.000000e+00 : f32
    %110 = vector.broadcast %cst_41 : f32 to vector<256x1024xf32>
    %111 = arith.addf %110, %109 : vector<256x1024xf32>
    %112 = arith.mulf %106, %111 : vector<256x1024xf32>
    %113 = arith.truncf %112 : vector<256x1024xf32> to vector<256x1024xbf16>
    %c0_42 = arith.constant 0 : index
    %c0_43 = arith.constant 0 : index
    %114 = vector.load %arg7[%c0_42, %c0_43] : memref<1024x256xbf16, #tpu.memory_space<vmem>>, vector<1024x256xbf16>
    %cst_44 = arith.constant dense<0.000000e+00> : vector<256x256xf32>
    %115 = tpu.matmul %113, %114, %cst_44 {dimension_numbers = #tpu.dot_dimension_numbers<[1], [0], [0], [1], [0, 0, 1, 1], [], []>} : vector<256x1024xbf16>, vector<1024x256xbf16>, vector<256x256xf32> -> vector<256x256xf32>
    %116 = arith.addf %99, %115 : vector<256x256xf32>
    %c1 = arith.constant 1 : index
    %c0_45 = arith.constant 0 : index
    %117 = vector.load %arg8[%c1, %c0_45] : memref<6x256xf32, #tpu.memory_space<vmem>>, vector<1x256xf32>
    %118 = vector.broadcast %117 : vector<1x256xf32> to vector<256x256xf32>
    %119 = arith.addf %116, %118 : vector<256x256xf32>
    %120 = arith.addf %97, %119 : vector<256x256xf32>
    %c4 = arith.constant 4 : index
    %c0_46 = arith.constant 0 : index
    %121 = vector.load %arg8[%c4, %c0_46] : memref<6x256xf32, #tpu.memory_space<vmem>>, vector<1x256xf32>
    %c5 = arith.constant 5 : index
    %c0_47 = arith.constant 0 : index
    %122 = vector.load %arg8[%c5, %c0_47] : memref<6x256xf32, #tpu.memory_space<vmem>>, vector<1x256xf32>
    %cst_48 = arith.constant dense<0.000000e+00> : vector<256xf32>
    %123 = vector.multi_reduction <add>, %120, %cst_48 [1] : vector<256x256xf32> to vector<256xf32>
    %124 = vector.shape_cast %123 : vector<256xf32> to vector<256x1xf32>
    %cst_49 = arith.constant 2.560000e+02 : f32
    %125 = vector.broadcast %cst_49 : f32 to vector<256x1xf32>
    %126 = arith.divf %124, %125 : vector<256x1xf32>
    %127 = vector.broadcast %126 : vector<256x1xf32> to vector<256x256xf32>
    %128 = arith.subf %120, %127 : vector<256x256xf32>
    %129 = arith.mulf %128, %128 : vector<256x256xf32>
    %cst_50 = arith.constant dense<0.000000e+00> : vector<256xf32>
    %130 = vector.multi_reduction <add>, %129, %cst_50 [1] : vector<256x256xf32> to vector<256xf32>
    %131 = vector.shape_cast %130 : vector<256xf32> to vector<256x1xf32>
    %cst_51 = arith.constant 2.560000e+02 : f32
    %132 = vector.broadcast %cst_51 : f32 to vector<256x1xf32>
    %133 = arith.divf %131, %132 : vector<256x1xf32>
    %cst_52 = arith.constant 9.99999974E-6 : f32
    %134 = vector.broadcast %cst_52 : f32 to vector<256x1xf32>
    %135 = arith.addf %133, %134 : vector<256x1xf32>
    %136 = math.rsqrt %135 : vector<256x1xf32>
    %137 = vector.broadcast %136 : vector<256x1xf32> to vector<256x256xf32>
    %138 = arith.mulf %128, %137 : vector<256x256xf32>
    %139 = vector.broadcast %121 : vector<1x256xf32> to vector<256x256xf32>
    %140 = arith.mulf %138, %139 : vector<256x256xf32>
    %141 = vector.broadcast %122 : vector<1x256xf32> to vector<256x256xf32>
    %142 = arith.addf %140, %141 : vector<256x256xf32>
    %143 = vector.shape_cast %142 : vector<256x256xf32> to vector<16x16x256xf32>
    %c0_53 = arith.constant 0 : index
    %c0_54 = arith.constant 0 : index
    %c0_55 = arith.constant 0 : index
    %144 = vector.load %arg9[%c0_53, %c0_54, %c0_55] : memref<16x16x256xf32, #tpu.memory_space<vmem>>, vector<16x16x256xf32>
    tpu.vector_store %arg9[%c0_53, %c0_54, %c0_55], %143 {strides = array<i32>} : memref<16x16x256xf32, #tpu.memory_space<vmem>>, vector<16x16x256xf32>,
    return
  }
  func.func @transform_0(%arg0: i32) -> (i32, i32, i32) {
    %c0_i32 = arith.constant 0 : i32
    %c0_i32_0 = arith.constant 0 : i32
    %c0_i32_1 = arith.constant 0 : i32
    return %arg0, %c0_i32, %c0_i32_0 : i32, i32, i32
  }
  func.func @transform_1(%arg0: i32) -> (i32, i32) {
    %c0_i32 = arith.constant 0 : i32
    %c0_i32_0 = arith.constant 0 : i32
    %c0_i32_1 = arith.constant 0 : i32
    return %c0_i32, %c0_i32_0 : i32, i32
  }
  func.func @transform_2(%arg0: i32) -> (i32, i32) {
    %c0_i32 = arith.constant 0 : i32
    %c0_i32_0 = arith.constant 0 : i32
    %c0_i32_1 = arith.constant 0 : i32
    return %c0_i32, %c0_i32_0 : i32, i32
  }
  func.func @transform_3(%arg0: i32) -> (i32, i32) {
    %c0_i32 = arith.constant 0 : i32
    %c0_i32_0 = arith.constant 0 : i32
    %c0_i32_1 = arith.constant 0 : i32
    return %c0_i32, %c0_i32_0 : i32, i32
  }
  func.func @transform_4(%arg0: i32) -> (i32, i32) {
    %c0_i32 = arith.constant 0 : i32
    %c0_i32_0 = arith.constant 0 : i32
    %c0_i32_1 = arith.constant 0 : i32
    return %c0_i32, %c0_i32_0 : i32, i32
  }
  func.func @transform_5(%arg0: i32) -> (i32, i32) {
    %c0_i32 = arith.constant 0 : i32
    %c0_i32_0 = arith.constant 0 : i32
    %c0_i32_1 = arith.constant 0 : i32
    return %c0_i32, %c0_i32_0 : i32, i32
  }
  func.func @transform_6(%arg0: i32) -> (i32, i32) {
    %c0_i32 = arith.constant 0 : i32
    %c0_i32_0 = arith.constant 0 : i32
    %c0_i32_1 = arith.constant 0 : i32
    return %c0_i32, %c0_i32_0 : i32, i32
  }
  func.func @transform_7(%arg0: i32) -> (i32, i32) {
    %c0_i32 = arith.constant 0 : i32
    %c0_i32_0 = arith.constant 0 : i32
    %c0_i32_1 = arith.constant 0 : i32
    return %c0_i32, %c0_i32_0 : i32, i32
  }
  func.func @transform_8(%arg0: i32) -> (i32, i32, i32) {
    %c0_i32 = arith.constant 0 : i32
    %c0_i32_0 = arith.constant 0 : i32
    %c0_i32_1 = arith.constant 0 : i32
    return %arg0, %c0_i32, %c0_i32_0 : i32, i32, i32
  }
}

</mosaic_0001>

<llo_original>
// kernel: tpu_custom_call.1
$region0: #{tpu_custom_call.1}
  #allocation0 [shape = 'u32[]', space=smem, size = 0x4, offset = 0x4, fixed_abs, tag = 'smem constant byte address 0x4 - core index']
  #allocation1 [shape = 'u32[144,128]{1,0:T(1,128)}', space=vmem, size = 0x12000, scoped, tag = 'internal scratch']
  %s0 = inlined_call_operand.hbm [shape: f32[16,16,256], index: 0, kind: input, shape index: {}]
  %s1 = inlined_call_operand.hbm [shape: bf16[256,768], index: 1, kind: input, shape index: {}]
  %s2 = inlined_call_operand.hbm [shape: f32[1,768], index: 2, kind: input, shape index: {}]
  %s3 = inlined_call_operand.hbm [shape: bf16[256,256], index: 3, kind: input, shape index: {}]
  %s4 = inlined_call_operand.hbm [shape: bf16[256,1024], index: 4, kind: input, shape index: {}]
  %s5 = inlined_call_operand.vmem [shape: f32[1,1024], index: 5, kind: input, shape index: {}]
  %s6 = inlined_call_operand.hbm [shape: bf16[1024,256], index: 6, kind: input, shape index: {}]
  %s7 = inlined_call_operand.vmem [shape: f32[6,256], index: 7, kind: input, shape index: {}]
  %s8 = inlined_call_operand.hbm [shape: f32[16,16,256], index: 8, kind: output, shape index: {}]
  %s9 = sld [smem:[#allocation0]]
  $region66: #{tpu_custom_call.1} parent=0
    _
  %s11 = ssub.s32 1, %s9
  %s12 = scalar_select 0, %s11, %s9
  $region1: #{tpu_custom_call.1} parent=0
    #allocation2 [shape = 'u8[262144]{0}', space=vmem, size = 0x40000, scoped, tag = 'input window, operand 0, single buffered']
    #allocation3 [shape = 's32[1]{0}', space=sflag, size = 0x4, scoped, tag = 'scoped memory for tpu_custom_call.1']
    #allocation4 [shape = 's32[1]{0}', space=sflag, size = 0x4, scoped, tag = 'scoped memory for tpu_custom_call.1']
    #allocation5 [shape = 'u8[393216]{0}', space=vmem, size = 0x60000, scoped, tag = 'input window, operand 1, single buffered']
    #allocation6 [shape = 's32[1]{0}', space=sflag, size = 0x4, scoped, tag = 'scoped memory for tpu_custom_call.1']
    #allocation7 [shape = 'u8[3072]{0}', space=vmem, size = 0xc00, scoped, tag = 'input window, operand 2, single buffered']
    #allocation8 [shape = 'u8[131072]{0}', space=vmem, size = 0x20000, scoped, tag = 'input window, operand 3, single buffered']
    #allocation9 [shape = 's32[1]{0}', space=sflag, size = 0x4, scoped, tag = 'scoped memory for tpu_custom_call.1']
    #allocation10 [shape = 'u8[524288]{0}', space=vmem, size = 0x80000, scoped, tag = 'input window, operand 4, single buffered']
    #allocation11 [shape = 'u8[524288]{0}', space=vmem, size = 0x80000, scoped, tag = 'input window, operand 6, single buffered']
    #allocation12 [shape = 's32[1]{0}', space=sflag, size = 0x4, scoped, tag = 'scoped memory for tpu_custom_call.1']
    #allocation13 [shape = 'u8[262144]{0}', space=vmem, size = 0x40000, scoped, tag = 'output window, operand 0, single buffered']
    %13 = vsyncpa [#allocation3], 0
    %14 = vsyncpa [#allocation6], 0
    %15 = vsyncpa [#allocation9], 0
    %16 = vsyncpa [#allocation12], 0
    %17 = vsyncpa [#allocation4], 0
    // Predicated region
    $region2: #{tpu_custom_call.1} parent=1 // pred_check
      _
    $region3: #{tpu_custom_call.1} parent=1 // pred_check_branch
      %19 = sbr.rel (0) target = $region5
    $region4: #{tpu_custom_call.1} parent=1 // pred_region
      %s21 = ssub.s32 8192, 8192
      %22 = vsyncadd [#allocation3], %s21
      %s23 = sshll.u32 [#allocation2], 4
      %s24 = int_to_ptr.vmem [resolvable:$true] %s23
      %29 = dma.hbm_to_vmem [thread:$0]  %s0, 8192, %s24, [#allocation3], 256, 256, 16
    $region5: #{tpu_custom_call.1} parent=1 // pred_fallthru
      _
    // Predicated region
    $region6: #{tpu_custom_call.1} parent=1 // pred_check
      _
    $region7: #{tpu_custom_call.1} parent=1 // pred_check_branch
      %31 = sbr.rel (0) target = $region9
    $region8: #{tpu_custom_call.1} parent=1 // pred_region
      %s33 = ssub.s32 12288, 12288
      %34 = vsyncadd [#allocation6], %s33
      %s35 = sshll.u32 [#allocation5], 4
      %s36 = int_to_ptr.vmem [resolvable:$true] %s35
      %41 = dma.hbm_to_vmem [thread:$0]  %s1, 12288, %s36, [#allocation6], 384, 384, 24
    $region9: #{tpu_custom_call.1} parent=1 // pred_fallthru
      _
    // Predicated region
    $region10: #{tpu_custom_call.1} parent=1 // pred_check
      _
    $region11: #{tpu_custom_call.1} parent=1 // pred_check_branch
      %43 = sbr.rel (0) target = $region13
    $region12: #{tpu_custom_call.1} parent=1 // pred_region
      %s45 = ssub.s32 96, 96
      %46 = vsyncadd [#allocation6], %s45
      %s48 = sshll.u32 [#allocation7], 4
      %s49 = int_to_ptr.vmem [resolvable:$true] %s48
      %51 = dma.hbm_to_vmem [thread:$0]  %s2, 96, %s49, [#allocation6]
    $region13: #{tpu_custom_call.1} parent=1 // pred_fallthru
      _
    // Predicated region
    $region14: #{tpu_custom_call.1} parent=1 // pred_check
      _
    $region15: #{tpu_custom_call.1} parent=1 // pred_check_branch
      %53 = sbr.rel (0) target = $region17
    $region16: #{tpu_custom_call.1} parent=1 // pred_region
      %s55 = ssub.s32 4096, 4096
      %56 = vsyncadd [#allocation9], %s55
      %s57 = sshll.u32 [#allocation8], 4
      %s58 = int_to_ptr.vmem [resolvable:$true] %s57
      %63 = dma.hbm_to_vmem [thread:$0]  %s3, 4096, %s58, [#allocation9], 128, 128, 8
    $region17: #{tpu_custom_call.1} parent=1 // pred_fallthru
      _
    // Predicated region
    $region18: #{tpu_custom_call.1} parent=1 // pred_check
      _
    $region19: #{tpu_custom_call.1} parent=1 // pred_check_branch
      %65 = sbr.rel (0) target = $region21
    $region20: #{tpu_custom_call.1} parent=1 // pred_region
      %s67 = ssub.s32 16384, 16384
      %68 = vsyncadd [#allocation9], %s67
      %s69 = sshll.u32 [#allocation10], 4
      %s70 = int_to_ptr.vmem [resolvable:$true] %s69
      %75 = dma.hbm_to_vmem [thread:$0]  %s4, 16384, %s70, [#allocation9], 512, 512, 32
    $region21: #{tpu_custom_call.1} parent=1 // pred_fallthru
      _
    // Predicated region
    $region22: #{tpu_custom_call.1} parent=1 // pred_check
      _
    $region23: #{tpu_custom_call.1} parent=1 // pred_check_branch
      %77 = sbr.rel (0) target = $region25
    $region24: #{tpu_custom_call.1} parent=1 // pred_region
      _
    $region25: #{tpu_custom_call.1} parent=1 // pred_fallthru
      _
    // Predicated region
    $region26: #{tpu_custom_call.1} parent=1 // pred_check
      _
    $region27: #{tpu_custom_call.1} parent=1 // pred_check_branch
      %79 = sbr.rel (0) target = $region29
    $region28: #{tpu_custom_call.1} parent=1 // pred_region
      %s81 = ssub.s32 16384, 16384
      %82 = vsyncadd [#allocation12], %s81
      %s83 = sshll.u32 [#allocation11], 4
      %s84 = int_to_ptr.vmem [resolvable:$true] %s83
      %89 = dma.hbm_to_vmem [thread:$0]  %s6, 16384, %s84, [#allocation12], 128, 128, 8
    $region29: #{tpu_custom_call.1} parent=1 // pred_fallthru
      _
    // Predicated region
    $region30: #{tpu_custom_call.1} parent=1 // pred_check
      _
    $region31: #{tpu_custom_call.1} parent=1 // pred_check_branch
      %91 = sbr.rel (0) target = $region33
    $region32: #{tpu_custom_call.1} parent=1 // pred_region
      _
    $region33: #{tpu_custom_call.1} parent=1 // pred_fallthru
      _
    // Predicated region
    $region34: #{tpu_custom_call.1} parent=1 // pred_check
      _
    $region35: #{tpu_custom_call.1} parent=1 // pred_check_branch
      %93 = sbr.rel (0) target = $region37
    $region36: #{tpu_custom_call.1} parent=1 // pred_region
      %94 = dma.done [#allocation3], 8192
    $region37: #{tpu_custom_call.1} parent=1 // pred_fallthru
      _
    // Predicated region
    $region38: #{tpu_custom_call.1} parent=1 // pred_check
      _
    $region39: #{tpu_custom_call.1} parent=1 // pred_check_branch
      %96 = sbr.rel (0) target = $region41
    $region40: #{tpu_custom_call.1} parent=1 // pred_region
      %97 = dma.done [#allocation6], 12288
    $region41: #{tpu_custom_call.1} parent=1 // pred_fallthru
      _
    // Predicated region
    $region42: #{tpu_custom_call.1} parent=1 // pred_check
      _
    $region43: #{tpu_custom_call.1} parent=1 // pred_check_branch
      %99 = sbr.rel (0) target = $region45
    $region44: #{tpu_custom_call.1} parent=1 // pred_region
      %100 = dma.done [#allocation6], 96
    $region45: #{tpu_custom_call.1} parent=1 // pred_fallthru
      _
    // Predicated region
    $region46: #{tpu_custom_call.1} parent=1 // pred_check
      _
    $region47: #{tpu_custom_call.1} parent=1 // pred_check_branch
      %102 = sbr.rel (0) target = $region49
    $region48: #{tpu_custom_call.1} parent=1 // pred_region
      %103 = dma.done [#allocation9], 4096
    $region49: #{tpu_custom_call.1} parent=1 // pred_fallthru
      _
    // Predicated region
    $region50: #{tpu_custom_call.1} parent=1 // pred_check
      _
    $region51: #{tpu_custom_call.1} parent=1 // pred_check_branch
      %105 = sbr.rel (0) target = $region53
    $region52: #{tpu_custom_call.1} parent=1 // pred_region
      %106 = dma.done [#allocation9], 16384
    $region53: #{tpu_custom_call.1} parent=1 // pred_fallthru
      _
    // Predicated region
    $region54: #{tpu_custom_call.1} parent=1 // pred_check
      _
    $region55: #{tpu_custom_call.1} parent=1 // pred_check_branch
      %108 = sbr.rel (0) target = $region57
    $region56: #{tpu_custom_call.1} parent=1 // pred_region
      %109 = dma.done [#allocation12], 16384
    $region57: #{tpu_custom_call.1} parent=1 // pred_fallthru
      _
    %v111 = vld [vmem:[#allocation2] sm:$0xff]
    %v112 = vld [vmem:[#allocation2 + $0x8] sm:$0xff]
    %v113 = vld [vmem:[#allocation2 + $0x10] sm:$0xff]
    %v114 = vld [vmem:[#allocation2 + $0x18] sm:$0xff]
    %v115 = vld [vmem:[#allocation2 + $0x20] sm:$0xff]
    %v116 = vld [vmem:[#allocation2 + $0x28] sm:$0xff]
    %v117 = vld [vmem:[#allocation2 + $0x30] sm:$0xff]
    %v118 = vld [vmem:[#allocation2 + $0x38] sm:$0xff]
    %v119 = vld [vmem:[#allocation2 + $0x40] sm:$0xff]
    %v120 = vld [vmem:[#allocation2 + $0x48] sm:$0xff]
    %v121 = vld [vmem:[#allocation2 + $0x50] sm:$0xff]
    %v122 = vld [vmem:[#allocation2 + $0x58] sm:$0xff]
    %v123 = vld [vmem:[#allocation2 + $0x60] sm:$0xff]
    %v124 = vld [vmem:[#allocation2 + $0x68] sm:$0xff]
    %v125 = vld [vmem:[#allocation2 + $0x70] sm:$0xff]
    %v126 = vld [vmem:[#allocation2 + $0x78] sm:$0xff]
    %v127 = vld [vmem:[#allocation2 + $0x80] sm:$0xff]
    %v128 = vld [vmem:[#allocation2 + $0x88] sm:$0xff]
    %v129 = vld [vmem:[#allocation2 + $0x90] sm:$0xff]
    %v130 = vld [vmem:[#allocation2 + $0x98] sm:$0xff]
    %v131 = vld [vmem:[#allocation2 + $0xa0] sm:$0xff]
    %v132 = vld [vmem:[#allocation2 + $0xa8] sm:$0xff]
    %v133 = vld [vmem:[#allocation2 + $0xb0] sm:$0xff]
    %v134 = vld [vmem:[#allocation2 + $0xb8] sm:$0xff]
    %v135 = vld [vmem:[#allocation2 + $0xc0] sm:$0xff]
    %v136 = vld [vmem:[#allocation2 + $0xc8] sm:$0xff]
    %v137 = vld [vmem:[#allocation2 + $0xd0] sm:$0xff]
    %v138 = vld [vmem:[#allocation2 + $0xd8] sm:$0xff]
    %v139 = vld [vmem:[#allocation2 + $0xe0] sm:$0xff]
    %v140 = vld [vmem:[#allocation2 + $0xe8] sm:$0xff]
    %v141 = vld [vmem:[#allocation2 + $0xf0] sm:$0xff]
    %v142 = vld [vmem:[#allocation2 + $0xf8] sm:$0xff]
    %v143 = vld [vmem:[#allocation2 + $0x100] sm:$0xff]
    %v144 = vld [vmem:[#allocation2 + $0x108] sm:$0xff]
    %v145 = vld [vmem:[#allocation2 + $0x110] sm:$0xff]
    %v146 = vld [vmem:[#allocation2 + $0x118] sm:$0xff]
    %v147 = vld [vmem:[#allocation2 + $0x120] sm:$0xff]
    %v148 = vld [vmem:[#allocation2 + $0x128] sm:$0xff]
    %v149 = vld [vmem:[#allocation2 + $0x130] sm:$0xff]
    %v150 = vld [vmem:[#allocation2 + $0x138] sm:$0xff]
    %v151 = vld [vmem:[#allocation2 + $0x140] sm:$0xff]
    %v152 = vld [vmem:[#allocation2 + $0x148] sm:$0xff]
    %v153 = vld [vmem:[#allocation2 + $0x150] sm:$0xff]
    %v154 = vld [vmem:[#allocation2 + $0x158] sm:$0xff]
    %v155 = vld [vmem:[#allocation2 + $0x160] sm:$0xff]
    %v156 = vld [vmem:[#allocation2 + $0x168] sm:$0xff]
    %v157 = vld [vmem:[#allocation2 + $0x170] sm:$0xff]
    %v158 = vld [vmem:[#allocation2 + $0x178] sm:$0xff]
    %v159 = vld [vmem:[#allocation2 + $0x180] sm:$0xff]
    %v160 = vld [vmem:[#allocation2 + $0x188] sm:$0xff]
    %v161 = vld [vmem:[#allocation2 + $0x190] sm:$0xff]
    %v162 = vld [vmem:[#allocation2 + $0x198] sm:$0xff]
    %v163 = vld [vmem:[#allocation2 + $0x1a0] sm:$0xff]
    %v164 = vld [vmem:[#allocation2 + $0x1a8] sm:$0xff]
    %v165 = vld [vmem:[#allocation2 + $0x1b0] sm:$0xff]
    %v166 = vld [vmem:[#allocation2 + $0x1b8] sm:$0xff]
    %v167 = vld [vmem:[#allocation2 + $0x1c0] sm:$0xff]
    %v168 = vld [vmem:[#allocation2 + $0x1c8] sm:$0xff]
    %v169 = vld [vmem:[#allocation2 + $0x1d0] sm:$0xff]
    %v170 = vld [vmem:[#allocation2 + $0x1d8] sm:$0xff]
    %v171 = vld [vmem:[#allocation2 + $0x1e0] sm:$0xff]
    %v172 = vld [vmem:[#allocation2 + $0x1e8] sm:$0xff]
    %v173 = vld [vmem:[#allocation2 + $0x1f0] sm:$0xff]
    %v174 = vld [vmem:[#allocation2 + $0x1f8] sm:$0xff]
    %v175 = vpack.c.bf16 %v113, %v111
    %v176 = vpack.c.bf16 %v114, %v112
    %v177 = vpack.c.bf16 %v117, %v115
    %v178 = vpack.c.bf16 %v118, %v116
    %v179 = vpack.c.bf16 %v121, %v119
    %v180 = vpack.c.bf16 %v122, %v120
    %v181 = vpack.c.bf16 %v125, %v123
    %v182 = vpack.c.bf16 %v126, %v124
    %v183 = vpack.c.bf16 %v129, %v127
    %v184 = vpack.c.bf16 %v130, %v128
    %v185 = vpack.c.bf16 %v133, %v131
    %v186 = vpack.c.bf16 %v134, %v132
    %v187 = vpack.c.bf16 %v137, %v135
    %v188 = vpack.c.bf16 %v138, %v136
    %v189 = vpack.c.bf16 %v141, %v139
    %v190 = vpack.c.bf16 %v142, %v140
    %v191 = vpack.c.bf16 %v145, %v143
    %v192 = vpack.c.bf16 %v146, %v144
    %v193 = vpack.c.bf16 %v149, %v147
    %v194 = vpack.c.bf16 %v150, %v148
    %v195 = vpack.c.bf16 %v153, %v151
    %v196 = vpack.c.bf16 %v154, %v152
    %v197 = vpack.c.bf16 %v157, %v155
    %v198 = vpack.c.bf16 %v158, %v156
    %v199 = vpack.c.bf16 %v161, %v159
    %v200 = vpack.c.bf16 %v162, %v160
    %v201 = vpack.c.bf16 %v165, %v163
    %v202 = vpack.c.bf16 %v166, %v164
    %v203 = vpack.c.bf16 %v169, %v167
    %v204 = vpack.c.bf16 %v170, %v168
    %v205 = vpack.c.bf16 %v173, %v171
    %v206 = vpack.c.bf16 %v174, %v172
    %v207 = vld [vmem:[#allocation5] sm:$0xff]
    %v208 = vld [vmem:[#allocation5 + $0x8] sm:$0xff]
    %v209 = vld [vmem:[#allocation5 + $0x10] sm:$0xff]
    %v210 = vld [vmem:[#allocation5 + $0x18] sm:$0xff]
    %v211 = vld [vmem:[#allocation5 + $0x20] sm:$0xff]
    %v212 = vld [vmem:[#allocation5 + $0x28] sm:$0xff]
    %v213 = vld [vmem:[#allocation5 + $0x30] sm:$0xff]
    %v214 = vld [vmem:[#allocation5 + $0x38] sm:$0xff]
    %v215 = vld [vmem:[#allocation5 + $0x40] sm:$0xff]
    %v216 = vld [vmem:[#allocation5 + $0x48] sm:$0xff]
    %v217 = vld [vmem:[#allocation5 + $0x50] sm:$0xff]
    %v218 = vld [vmem:[#allocation5 + $0x58] sm:$0xff]
    %v219 = vld [vmem:[#allocation5 + $0x60] sm:$0xff]
    %v220 = vld [vmem:[#allocation5 + $0x68] sm:$0xff]
    %v221 = vld [vmem:[#allocation5 + $0x70] sm:$0xff]
    %v222 = vld [vmem:[#allocation5 + $0x78] sm:$0xff]
    %v223 = vld [vmem:[#allocation5 + $0x80] sm:$0xff]
    %v224 = vld [vmem:[#allocation5 + $0x88] sm:$0xff]
    %v225 = vld [vmem:[#allocation5 + $0x90] sm:$0xff]
    %v226 = vld [vmem:[#allocation5 + $0x98] sm:$0xff]
    %v227 = vld [vmem:[#allocation5 + $0xa0] sm:$0xff]
    %v228 = vld [vmem:[#allocation5 + $0xa8] sm:$0xff]
    %v229 = vld [vmem:[#allocation5 + $0xb0] sm:$0xff]
    %v230 = vld [vmem:[#allocation5 + $0xb8] sm:$0xff]
    %v231 = vld [vmem:[#allocation5 + $0xc0] sm:$0xff]
    %v232 = vld [vmem:[#allocation5 + $0xc8] sm:$0xff]
    %v233 = vld [vmem:[#allocation5 + $0xd0] sm:$0xff]
    %v234 = vld [vmem:[#allocation5 + $0xd8] sm:$0xff]
    %v235 = vld [vmem:[#allocation5 + $0xe0] sm:$0xff]
    %v236 = vld [vmem:[#allocation5 + $0xe8] sm:$0xff]
    %v237 = vld [vmem:[#allocation5 + $0xf0] sm:$0xff]
    %v238 = vld [vmem:[#allocation5 + $0xf8] sm:$0xff]
    %v239 = vld [vmem:[#allocation5 + $0x100] sm:$0xff]
    %v240 = vld [vmem:[#allocation5 + $0x108] sm:$0xff]
    %v241 = vld [vmem:[#allocation5 + $0x110] sm:$0xff]
    %v242 = vld [vmem:[#allocation5 + $0x118] sm:$0xff]
    %v243 = vld [vmem:[#allocation5 + $0x120] sm:$0xff]
    %v244 = vld [vmem:[#allocation5 + $0x128] sm:$0xff]
    %v245 = vld [vmem:[#allocation5 + $0x130] sm:$0xff]
    %v246 = vld [vmem:[#allocation5 + $0x138] sm:$0xff]
    %v247 = vld [vmem:[#allocation5 + $0x140] sm:$0xff]
    %v248 = vld [vmem:[#allocation5 + $0x148] sm:$0xff]
    %v249 = vld [vmem:[#allocation5 + $0x150] sm:$0xff]
    %v250 = vld [vmem:[#allocation5 + $0x158] sm:$0xff]
    %v251 = vld [vmem:[#allocation5 + $0x160] sm:$0xff]
    %v252 = vld [vmem:[#allocation5 + $0x168] sm:$0xff]
    %v253 = vld [vmem:[#allocation5 + $0x170] sm:$0xff]
    %v254 = vld [vmem:[#allocation5 + $0x178] sm:$0xff]
    %v255 = vld [vmem:[#allocation5 + $0x180] sm:$0xff]
    %v256 = vld [vmem:[#allocation5 + $0x188] sm:$0xff]
    %v257 = vld [vmem:[#allocation5 + $0x190] sm:$0xff]
    %v258 = vld [vmem:[#allocation5 + $0x198] sm:$0xff]
    %v259 = vld [vmem:[#allocation5 + $0x1a0] sm:$0xff]
    %v260 = vld [vmem:[#allocation5 + $0x1a8] sm:$0xff]
    %v261 = vld [vmem:[#allocation5 + $0x1b0] sm:$0xff]
    %v262 = vld [vmem:[#allocation5 + $0x1b8] sm:$0xff]
    %v263 = vld [vmem:[#allocation5 + $0x1c0] sm:$0xff]
    %v264 = vld [vmem:[#allocation5 + $0x1c8] sm:$0xff]
    %v265 = vld [vmem:[#allocation5 + $0x1d0] sm:$0xff]
    %v266 = vld [vmem:[#allocation5 + $0x1d8] sm:$0xff]
    %v267 = vld [vmem:[#allocation5 + $0x1e0] sm:$0xff]
    %v268 = vld [vmem:[#allocation5 + $0x1e8] sm:$0xff]
    %v269 = vld [vmem:[#allocation5 + $0x1f0] sm:$0xff]
    %v270 = vld [vmem:[#allocation5 + $0x1f8] sm:$0xff]
    %v271 = vld [vmem:[#allocation5 + $0x200] sm:$0xff]
    %v272 = vld [vmem:[#allocation5 + $0x208] sm:$0xff]
    %v273 = vld [vmem:[#allocation5 + $0x210] sm:$0xff]
    %v274 = vld [vmem:[#allocation5 + $0x218] sm:$0xff]
    %v275 = vld [vmem:[#allocation5 + $0x220] sm:$0xff]
    %v276 = vld [vmem:[#allocation5 + $0x228] sm:$0xff]
    %v277 = vld [vmem:[#allocation5 + $0x230] sm:$0xff]
    %v278 = vld [vmem:[#allocation5 + $0x238] sm:$0xff]
    %v279 = vld [vmem:[#allocation5 + $0x240] sm:$0xff]
    %v280 = vld [vmem:[#allocation5 + $0x248] sm:$0xff]
    %v281 = vld [vmem:[#allocation5 + $0x250] sm:$0xff]
    %v282 = vld [vmem:[#allocation5 + $0x258] sm:$0xff]
    %v283 = vld [vmem:[#allocation5 + $0x260] sm:$0xff]
    %v284 = vld [vmem:[#allocation5 + $0x268] sm:$0xff]
    %v285 = vld [vmem:[#allocation5 + $0x270] sm:$0xff]
    %v286 = vld [vmem:[#allocation5 + $0x278] sm:$0xff]
    %v287 = vld [vmem:[#allocation5 + $0x280] sm:$0xff]
    %v288 = vld [vmem:[#allocation5 + $0x288] sm:$0xff]
    %v289 = vld [vmem:[#allocation5 + $0x290] sm:$0xff]
    %v290 = vld [vmem:[#allocation5 + $0x298] sm:$0xff]
    %v291 = vld [vmem:[#allocation5 + $0x2a0] sm:$0xff]
    %v292 = vld [vmem:[#allocation5 + $0x2a8] sm:$0xff]
    %v293 = vld [vmem:[#allocation5 + $0x2b0] sm:$0xff]
    %v294 = vld [vmem:[#allocation5 + $0x2b8] sm:$0xff]
    %v295 = vld [vmem:[#allocation5 + $0x2c0] sm:$0xff]
    %v296 = vld [vmem:[#allocation5 + $0x2c8] sm:$0xff]
    %v297 = vld [vmem:[#allocation5 + $0x2d0] sm:$0xff]
    %v298 = vld [vmem:[#allocation5 + $0x2d8] sm:$0xff]
    %v299 = vld [vmem:[#allocation5 + $0x2e0] sm:$0xff]
    %v300 = vld [vmem:[#allocation5 + $0x2e8] sm:$0xff]
    %v301 = vld [vmem:[#allocation5 + $0x2f0] sm:$0xff]
    %v302 = vld [vmem:[#allocation5 + $0x2f8] sm:$0xff]
    %v303 = vld [vmem:[#allocation7] sm:$0x3f]
    %v305 = vlaneseq
    %v306 = vshrl.u32 %v305, 7
    %v307 = vsub.s32 0, %v306
    %v308 = vrot.slane %v303, %v307
    %v309 = vlaneseq
    %v310 = vshrl.u32 %v309, 7
    %v311 = vsub.s32 1, %v310
    %v312 = vrot.slane %v303, %v311
    %v313 = vlaneseq
    %v314 = vshrl.u32 %v313, 7
    %v315 = vsub.s32 2, %v314
    %v316 = vrot.slane %v303, %v315
    %v317 = vlaneseq
    %v318 = vshrl.u32 %v317, 7
    %v319 = vsub.s32 3, %v318
    %v320 = vrot.slane %v303, %v319
    %v321 = vlaneseq
    %v322 = vshrl.u32 %v321, 7
    %v323 = vsub.s32 4, %v322
    %v324 = vrot.slane %v303, %v323
    %v325 = vlaneseq
    %v326 = vshrl.u32 %v325, 7
    %v327 = vsub.s32 5, %v326
    %v328 = vrot.slane %v303, %v327
    %v431 = vunpack.c.l.b16 %v207
    %v432 = vunpack.c.h.b16 %v207
    %v433 = vunpack.c.l.b16 %v208
    %v434 = vunpack.c.h.b16 %v208
    %v435 = vunpack.c.l.b16 %v209
    %v436 = vunpack.c.h.b16 %v209
    %v437 = vunpack.c.l.b16 %v210
    %v438 = vunpack.c.h.b16 %v210
    %v439 = vunpack.c.l.b16 %v211
    %v440 = vunpack.c.h.b16 %v211
    %v441 = vunpack.c.l.b16 %v212
    %v442 = vunpack.c.h.b16 %v212
    %v443 = vunpack.c.l.b16 %v213
    %v444 = vunpack.c.h.b16 %v213
    %v445 = vunpack.c.l.b16 %v214
    %v446 = vunpack.c.h.b16 %v214
    %v447 = vunpack.c.l.b16 %v215
    %v448 = vunpack.c.h.b16 %v215
    %v449 = vunpack.c.l.b16 %v216
    %v450 = vunpack.c.h.b16 %v216
    %v451 = vunpack.c.l.b16 %v217
    %v452 = vunpack.c.h.b16 %v217
    %v453 = vunpack.c.l.b16 %v218
    %v454 = vunpack.c.h.b16 %v218
    %v455 = vunpack.c.l.b16 %v219
    %v456 = vunpack.c.h.b16 %v219
    %v457 = vunpack.c.l.b16 %v220
    %v458 = vunpack.c.h.b16 %v220
    %v459 = vunpack.c.l.b16 %v221
    %v460 = vunpack.c.h.b16 %v221
    %v461 = vunpack.c.l.b16 %v222
    %v462 = vunpack.c.h.b16 %v222
    %v463 = vunpack.c.l.b16 %v223
    %v464 = vunpack.c.h.b16 %v223
    %v465 = vunpack.c.l.b16 %v224
    %v466 = vunpack.c.h.b16 %v224
    %v467 = vunpack.c.l.b16 %v225
    %v468 = vunpack.c.h.b16 %v225
    %v469 = vunpack.c.l.b16 %v226
    %v470 = vunpack.c.h.b16 %v226
    %v471 = vunpack.c.l.b16 %v227
    %v472 = vunpack.c.h.b16 %v227
    %v473 = vunpack.c.l.b16 %v228
    %v474 = vunpack.c.h.b16 %v228
    %v475 = vunpack.c.l.b16 %v229
    %v476 = vunpack.c.h.b16 %v229
    %v477 = vunpack.c.l.b16 %v230
    %v478 = vunpack.c.h.b16 %v230
    %v479 = vunpack.c.l.b16 %v231
    %v480 = vunpack.c.h.b16 %v231
    %v481 = vunpack.c.l.b16 %v232
    %v482 = vunpack.c.h.b16 %v232
    %v483 = vunpack.c.l.b16 %v233
    %v484 = vunpack.c.h.b16 %v233
    %v485 = vunpack.c.l.b16 %v234
    %v486 = vunpack.c.h.b16 %v234
    %v487 = vunpack.c.l.b16 %v235
    %v488 = vunpack.c.h.b16 %v235
    %v489 = vunpack.c.l.b16 %v236
    %v490 = vunpack.c.h.b16 %v236
    %v491 = vunpack.c.l.b16 %v237
    %v492 = vunpack.c.h.b16 %v237
    %v493 = vunpack.c.l.b16 %v238
    %v494 = vunpack.c.h.b16 %v238
    %v495 = vunpack.c.l.b16 %v239
    %v496 = vunpack.c.h.b16 %v239
    %v497 = vunpack.c.l.b16 %v240
    %v498 = vunpack.c.h.b16 %v240
    %v499 = vunpack.c.l.b16 %v241
    %v500 = vunpack.c.h.b16 %v241
    %v501 = vunpack.c.l.b16 %v242
    %v502 = vunpack.c.h.b16 %v242
    %v503 = vunpack.c.l.b16 %v243
    %v504 = vunpack.c.h.b16 %v243
    %v505 = vunpack.c.l.b16 %v244
    %v506 = vunpack.c.h.b16 %v244
    %v507 = vunpack.c.l.b16 %v245
    %v508 = vunpack.c.h.b16 %v245
    %v509 = vunpack.c.l.b16 %v246
    %v510 = vunpack.c.h.b16 %v246
    %v511 = vunpack.c.l.b16 %v247
    %v512 = vunpack.c.h.b16 %v247
    %v513 = vunpack.c.l.b16 %v248
    %v514 = vunpack.c.h.b16 %v248
    %v515 = vunpack.c.l.b16 %v249
    %v516 = vunpack.c.h.b16 %v249
    %v517 = vunpack.c.l.b16 %v250
    %v518 = vunpack.c.h.b16 %v250
    %v519 = vunpack.c.l.b16 %v251
    %v520 = vunpack.c.h.b16 %v251
    %v521 = vunpack.c.l.b16 %v252
    %v522 = vunpack.c.h.b16 %v252
    %v523 = vunpack.c.l.b16 %v253
    %v524 = vunpack.c.h.b16 %v253
    %v525 = vunpack.c.l.b16 %v254
    %v526 = vunpack.c.h.b16 %v254
    %v527 = vunpack.c.l.b16 %v255
    %v528 = vunpack.c.h.b16 %v255
    %v529 = vunpack.c.l.b16 %v256
    %v530 = vunpack.c.h.b16 %v256
    %v531 = vunpack.c.l.b16 %v257
    %v532 = vunpack.c.h.b16 %v257
    %v533 = vunpack.c.l.b16 %v258
    %v534 = vunpack.c.h.b16 %v258
    %v535 = vunpack.c.l.b16 %v259
    %v536 = vunpack.c.h.b16 %v259
    %v537 = vunpack.c.l.b16 %v260
    %v538 = vunpack.c.h.b16 %v260
    %v539 = vunpack.c.l.b16 %v261
    %v540 = vunpack.c.h.b16 %v261
    %v541 = vunpack.c.l.b16 %v262
    %v542 = vunpack.c.h.b16 %v262
    %v543 = vunpack.c.l.b16 %v263
    %v544 = vunpack.c.h.b16 %v263
    %v545 = vunpack.c.l.b16 %v264
    %v546 = vunpack.c.h.b16 %v264
    %v547 = vunpack.c.l.b16 %v265
    %v548 = vunpack.c.h.b16 %v265
    %v549 = vunpack.c.l.b16 %v266
    %v550 = vunpack.c.h.b16 %v266
    %v551 = vunpack.c.l.b16 %v267
    %v552 = vunpack.c.h.b16 %v267
    %v553 = vunpack.c.l.b16 %v268
    %v554 = vunpack.c.h.b16 %v268
    %v555 = vunpack.c.l.b16 %v269
    %v556 = vunpack.c.h.b16 %v269
    %v557 = vunpack.c.l.b16 %v270
    %v558 = vunpack.c.h.b16 %v270
    %v559 = vunpack.c.l.b16 %v271
    %v560 = vunpack.c.h.b16 %v271
    %v561 = vunpack.c.l.b16 %v272
    %v562 = vunpack.c.h.b16 %v272
    %v563 = vunpack.c.l.b16 %v273
    %v564 = vunpack.c.h.b16 %v273
    %v565 = vunpack.c.l.b16 %v274
    %v566 = vunpack.c.h.b16 %v274
    %v567 = vunpack.c.l.b16 %v275
    %v568 = vunpack.c.h.b16 %v275
    %v569 = vunpack.c.l.b16 %v276
    %v570 = vunpack.c.h.b16 %v276
    %v571 = vunpack.c.l.b16 %v277
    %v572 = vunpack.c.h.b16 %v277
    %v573 = vunpack.c.l.b16 %v278
    %v574 = vunpack.c.h.b16 %v278
    %v575 = vunpack.c.l.b16 %v279
    %v576 = vunpack.c.h.b16 %v279
    %v577 = vunpack.c.l.b16 %v280
    %v578 = vunpack.c.h.b16 %v280
    %v579 = vunpack.c.l.b16 %v281
    %v580 = vunpack.c.h.b16 %v281
    %v581 = vunpack.c.l.b16 %v282
    %v582 = vunpack.c.h.b16 %v282
    %v583 = vunpack.c.l.b16 %v283
    %v584 = vunpack.c.h.b16 %v283
    %v585 = vunpack.c.l.b16 %v284
    %v586 = vunpack.c.h.b16 %v284
    %v587 = vunpack.c.l.b16 %v285
    %v588 = vunpack.c.h.b16 %v285
    %v589 = vunpack.c.l.b16 %v286
    %v590 = vunpack.c.h.b16 %v286
    %v591 = vunpack.c.l.b16 %v287
    %v592 = vunpack.c.h.b16 %v287
    %v593 = vunpack.c.l.b16 %v288
    %v594 = vunpack.c.h.b16 %v288
    %v595 = vunpack.c.l.b16 %v289
    %v596 = vunpack.c.h.b16 %v289
    %v597 = vunpack.c.l.b16 %v290
    %v598 = vunpack.c.h.b16 %v290
    %v599 = vunpack.c.l.b16 %v291
    %v600 = vunpack.c.h.b16 %v291
    %v601 = vunpack.c.l.b16 %v292
    %v602 = vunpack.c.h.b16 %v292
    %v603 = vunpack.c.l.b16 %v293
    %v604 = vunpack.c.h.b16 %v293
    %v605 = vunpack.c.l.b16 %v294
    %v606 = vunpack.c.h.b16 %v294
    %v607 = vunpack.c.l.b16 %v295
    %v608 = vunpack.c.h.b16 %v295
    %v609 = vunpack.c.l.b16 %v296
    %v610 = vunpack.c.h.b16 %v296
    %v611 = vunpack.c.l.b16 %v297
    %v612 = vunpack.c.h.b16 %v297
    %v613 = vunpack.c.l.b16 %v298
    %v614 = vunpack.c.h.b16 %v298
    %v615 = vunpack.c.l.b16 %v299
    %v616 = vunpack.c.h.b16 %v299
    %v617 = vunpack.c.l.b16 %v300
    %v618 = vunpack.c.h.b16 %v300
    %v619 = vunpack.c.l.b16 %v301
    %v620 = vunpack.c.h.b16 %v301
    %v621 = vunpack.c.l.b16 %v302
    %v622 = vunpack.c.h.b16 %v302
    %v623 = vpack.c.b16 %v437, %v431
    %v624 = vpack.c.b16 %v438, %v432
    %v625 = vpack.c.b16 %v439, %v433
    %v626 = vpack.c.b16 %v440, %v434
    %v627 = vpack.c.b16 %v441, %v435
    %v628 = vpack.c.b16 %v442, %v436
    %v629 = vpack.c.b16 %v449, %v443
    %v630 = vpack.c.b16 %v450, %v444
    %v631 = vpack.c.b16 %v451, %v445
    %v632 = vpack.c.b16 %v452, %v446
    %v633 = vpack.c.b16 %v453, %v447
    %v634 = vpack.c.b16 %v454, %v448
    %v635 = vpack.c.b16 %v461, %v455
    %v636 = vpack.c.b16 %v462, %v456
    %v637 = vpack.c.b16 %v463, %v457
    %v638 = vpack.c.b16 %v464, %v458
    %v639 = vpack.c.b16 %v465, %v459
    %v640 = vpack.c.b16 %v466, %v460
    %v641 = vpack.c.b16 %v473, %v467
    %v642 = vpack.c.b16 %v474, %v468
    %v643 = vpack.c.b16 %v475, %v469
    %v644 = vpack.c.b16 %v476, %v470
    %v645 = vpack.c.b16 %v477, %v471
    %v646 = vpack.c.b16 %v478, %v472
    %v647 = vpack.c.b16 %v485, %v479
    %v648 = vpack.c.b16 %v486, %v480
    %v649 = vpack.c.b16 %v487, %v481
    %v650 = vpack.c.b16 %v488, %v482
    %v651 = vpack.c.b16 %v489, %v483
    %v652 = vpack.c.b16 %v490, %v484
    %v653 = vpack.c.b16 %v497, %v491
    %v654 = vpack.c.b16 %v498, %v492
    %v655 = vpack.c.b16 %v499, %v493
    %v656 = vpack.c.b16 %v500, %v494
    %v657 = vpack.c.b16 %v501, %v495
    %v658 = vpack.c.b16 %v502, %v496
    %v659 = vpack.c.b16 %v509, %v503
    %v660 = vpack.c.b16 %v510, %v504
    %v661 = vpack.c.b16 %v511, %v505
    %v662 = vpack.c.b16 %v512, %v506
    %v663 = vpack.c.b16 %v513, %v507
    %v664 = vpack.c.b16 %v514, %v508
    %v665 = vpack.c.b16 %v521, %v515
    %v666 = vpack.c.b16 %v522, %v516
    %v667 = vpack.c.b16 %v523, %v517
    %v668 = vpack.c.b16 %v524, %v518
    %v669 = vpack.c.b16 %v525, %v519
    %v670 = vpack.c.b16 %v526, %v520
    %v671 = vpack.c.b16 %v533, %v527
    %v672 = vpack.c.b16 %v534, %v528
    %v673 = vpack.c.b16 %v535, %v529
    %v674 = vpack.c.b16 %v536, %v530
    %v675 = vpack.c.b16 %v537, %v531
    %v676 = vpack.c.b16 %v538, %v532
    %v677 = vpack.c.b16 %v545, %v539
    %v678 = vpack.c.b16 %v546, %v540
    %v679 = vpack.c.b16 %v547, %v541
    %v680 = vpack.c.b16 %v548, %v542
    %v681 = vpack.c.b16 %v549, %v543
    %v682 = vpack.c.b16 %v550, %v544
    %v683 = vpack.c.b16 %v557, %v551
    %v684 = vpack.c.b16 %v558, %v552
    %v685 = vpack.c.b16 %v559, %v553
    %v686 = vpack.c.b16 %v560, %v554
    %v687 = vpack.c.b16 %v561, %v555
    %v688 = vpack.c.b16 %v562, %v556
    %v689 = vpack.c.b16 %v569, %v563
    %v690 = vpack.c.b16 %v570, %v564
    %v691 = vpack.c.b16 %v571, %v565
    %v692 = vpack.c.b16 %v572, %v566
    %v693 = vpack.c.b16 %v573, %v567
    %v694 = vpack.c.b16 %v574, %v568
    %v695 = vpack.c.b16 %v581, %v575
    %v696 = vpack.c.b16 %v582, %v576
    %v697 = vpack.c.b16 %v583, %v577
    %v698 = vpack.c.b16 %v584, %v578
    %v699 = vpack.c.b16 %v585, %v579
    %v700 = vpack.c.b16 %v586, %v580
    %v701 = vpack.c.b16 %v593, %v587
    %v702 = vpack.c.b16 %v594, %v588
    %v703 = vpack.c.b16 %v595, %v589
    %v704 = vpack.c.b16 %v596, %v590
    %v705 = vpack.c.b16 %v597, %v591
    %v706 = vpack.c.b16 %v598, %v592
    %v707 = vpack.c.b16 %v605, %v599
    %v708 = vpack.c.b16 %v606, %v600
    %v709 = vpack.c.b16 %v607, %v601
    %v710 = vpack.c.b16 %v608, %v602
    %v711 = vpack.c.b16 %v609, %v603
    %v712 = vpack.c.b16 %v610, %v604
    %v713 = vpack.c.b16 %v617, %v611
    %v714 = vpack.c.b16 %v618, %v612
    %v715 = vpack.c.b16 %v619, %v613
    %v716 = vpack.c.b16 %v620, %v614
    %v717 = vpack.c.b16 %v621, %v615
    %v718 = vpack.c.b16 %v622, %v616
    %815 = vmatprep.subr.bf16.mxu0 %v624
    %816 = vmatpush1.bf16.msra.mxu0 %v623
    %817 = vmatprep.subr.bf16.mxu0 %v630
    %818 = vmatpush1.bf16.msra.mxu0 %v629
    %819 = vmatprep.subr.bf16.mxu0 %v636
    %820 = vmatpush1.bf16.msra.mxu0 %v635
    %821 = vmatprep.subr.bf16.mxu0 %v642
    %822 = vmatpush1.bf16.msra.mxu0 %v641
    %823 = vmatprep.subr.bf16.mxu0 %v648
    %824 = vmatpush1.bf16.msra.mxu0 %v647
    %825 = vmatprep.subr.bf16.mxu0 %v654
    %826 = vmatpush1.bf16.msra.mxu0 %v653
    %827 = vmatprep.subr.bf16.mxu0 %v660
    %828 = vmatpush1.bf16.msra.mxu0 %v659
    %829 = vmatprep.subr.bf16.mxu0 %v666
    %830 = vmatpush1.bf16.msra.mxu0 %v665
    %831 = vmatprep.subr.bf16.mxu0 %v672
    %832 = vmatpush1.bf16.msra.mxu0 %v671
    %833 = vmatprep.subr.bf16.mxu0 %v678
    %834 = vmatpush1.bf16.msra.mxu0 %v677
    %835 = vmatprep.subr.bf16.mxu0 %v684
    %836 = vmatpush1.bf16.msra.mxu0 %v683
    %837 = vmatprep.subr.bf16.mxu0 %v690
    %838 = vmatpush1.bf16.msra.mxu0 %v689
    %839 = vmatprep.subr.bf16.mxu0 %v696
    %840 = vmatpush1.bf16.msra.mxu0 %v695
    %841 = vmatprep.subr.bf16.mxu0 %v702
    %842 = vmatpush1.bf16.msra.mxu0 %v701
    %843 = vmatprep.subr.bf16.mxu0 %v708
    %844 = vmatpush1.bf16.msra.mxu0 %v707
    %845 = vmatprep.subr.bf16.mxu0 %v714
    %846 = vmatpush1.bf16.msra.mxu0 %v713
    %847 = vmatprep.mubr.bf16.mxu0 %v176
    %848 = vmatmul.mubr.bf16.gmra.mrb[0].mxu0 %v175
    %v849 = vpop.f32.mrb[0].mxu0
    %v850 = vadd.f32 %v308, %v849
    %v851 = vpop.f32.mrb[0].mxu0
    %v852 = vadd.f32 %v312, %v851
    %v853 = vpop.f32.mrb[0].mxu0
    %v854 = vadd.f32 %v308, %v853
    %v855 = vpop.f32.mrb[0].mxu0
    %v856 = vadd.f32 %v312, %v855
    %857 = vmatprep.mubr.bf16.mxu0 %v178
    %858 = vmatmul.mubr.bf16.gmra.mrb[0].mxu0 %v177
    %v859 = vpop.f32.mrb[0].mxu0
    %v860 = vadd.f32 %v308, %v859
    %v861 = vpop.f32.mrb[0].mxu0
    %v862 = vadd.f32 %v312, %v861
    %v863 = vpop.f32.mrb[0].mxu0
    %v864 = vadd.f32 %v308, %v863
    %v865 = vpop.f32.mrb[0].mxu0
    %v866 = vadd.f32 %v312, %v865
    %867 = vmatprep.mubr.bf16.mxu0 %v180
    %868 = vmatmul.mubr.bf16.gmra.mrb[0].mxu0 %v179
    %v869 = vpop.f32.mrb[0].mxu0
    %v870 = vadd.f32 %v308, %v869
    %v871 = vpop.f32.mrb[0].mxu0
    %v872 = vadd.f32 %v312, %v871
    %v873 = vpop.f32.mrb[0].mxu0
    %v874 = vadd.f32 %v308, %v873
    %v875 = vpop.f32.mrb[0].mxu0
    %v876 = vadd.f32 %v312, %v875
    %877 = vmatprep.mubr.bf16.mxu0 %v182
    %878 = vmatmul.mubr.bf16.gmra.mrb[0].mxu0 %v181
    %v879 = vpop.f32.mrb[0].mxu0
    %v880 = vadd.f32 %v308, %v879
    %v881 = vpop.f32.mrb[0].mxu0
    %v882 = vadd.f32 %v312, %v881
    %v883 = vpop.f32.mrb[0].mxu0
    %v884 = vadd.f32 %v308, %v883
    %v885 = vpop.f32.mrb[0].mxu0
    %v886 = vadd.f32 %v312, %v885
    %887 = vmatprep.mubr.bf16.mxu0 %v184
    %888 = vmatmul.mubr.bf16.gmra.mrb[0].mxu0 %v183
    %v889 = vpop.f32.mrb[0].mxu0
    %v890 = vadd.f32 %v308, %v889
    %v891 = vpop.f32.mrb[0].mxu0
    %v892 = vadd.f32 %v312, %v891
    %v893 = vpop.f32.mrb[0].mxu0
    %v894 = vadd.f32 %v308, %v893
    %v895 = vpop.f32.mrb[0].mxu0
    %v896 = vadd.f32 %v312, %v895
    %897 = vmatprep.mubr.bf16.mxu0 %v186
    %898 = vmatmul.mubr.bf16.gmra.mrb[0].mxu0 %v185
    %v899 = vpop.f32.mrb[0].mxu0
    %v900 = vadd.f32 %v308, %v899
    %v901 = vpop.f32.mrb[0].mxu0
    %v902 = vadd.f32 %v312, %v901
    %v903 = vpop.f32.mrb[0].mxu0
    %v904 = vadd.f32 %v308, %v903
    %v905 = vpop.f32.mrb[0].mxu0
    %v906 = vadd.f32 %v312, %v905
    %907 = vmatprep.mubr.bf16.mxu0 %v188
    %908 = vmatmul.mubr.bf16.gmra.mrb[0].mxu0 %v187
    %v909 = vpop.f32.mrb[0].mxu0
    %v910 = vadd.f32 %v308, %v909
    %v911 = vpop.f32.mrb[0].mxu0
    %v912 = vadd.f32 %v312, %v911
    %v913 = vpop.f32.mrb[0].mxu0
    %v914 = vadd.f32 %v308, %v913
    %v915 = vpop.f32.mrb[0].mxu0
    %v916 = vadd.f32 %v312, %v915
    %917 = vmatprep.mubr.bf16.mxu0 %v190
    %918 = vmatmul.mubr.bf16.gmra.mrb[0].mxu0 %v189
    %v919 = vpop.f32.mrb[0].mxu0
    %v920 = vadd.f32 %v308, %v919
    %v921 = vpop.f32.mrb[0].mxu0
    %v922 = vadd.f32 %v312, %v921
    %v923 = vpop.f32.mrb[0].mxu0
    %v924 = vadd.f32 %v308, %v923
    %v925 = vpop.f32.mrb[0].mxu0
    %v926 = vadd.f32 %v312, %v925
    %927 = vmatprep.mubr.bf16.mxu0 %v192
    %928 = vmatmul.mubr.bf16.gmra.mrb[0].mxu0 %v191
    %v929 = vpop.f32.mrb[0].mxu0
    %v930 = vadd.f32 %v308, %v929
    %v931 = vpop.f32.mrb[0].mxu0
    %v932 = vadd.f32 %v312, %v931
    %v933 = vpop.f32.mrb[0].mxu0
    %v934 = vadd.f32 %v308, %v933
    %v935 = vpop.f32.mrb[0].mxu0
    %v936 = vadd.f32 %v312, %v935
    %937 = vmatprep.mubr.bf16.mxu0 %v194
    %938 = vmatmul.mubr.bf16.gmra.mrb[0].mxu0 %v193
    %v939 = vpop.f32.mrb[0].mxu0
    %v940 = vadd.f32 %v308, %v939
    %v941 = vpop.f32.mrb[0].mxu0
    %v942 = vadd.f32 %v312, %v941
    %v943 = vpop.f32.mrb[0].mxu0
    %v944 = vadd.f32 %v308, %v943
    %v945 = vpop.f32.mrb[0].mxu0
    %v946 = vadd.f32 %v312, %v945
    %947 = vmatprep.mubr.bf16.mxu0 %v196
    %948 = vmatmul.mubr.bf16.gmra.mrb[0].mxu0 %v195
    %v949 = vpop.f32.mrb[0].mxu0
    %v950 = vadd.f32 %v308, %v949
    %v951 = vpop.f32.mrb[0].mxu0
    %v952 = vadd.f32 %v312, %v951
    %v953 = vpop.f32.mrb[0].mxu0
    %v954 = vadd.f32 %v308, %v953
    %v955 = vpop.f32.mrb[0].mxu0
    %v956 = vadd.f32 %v312, %v955
    %957 = vmatprep.mubr.bf16.mxu0 %v198
    %958 = vmatmul.mubr.bf16.gmra.mrb[0].mxu0 %v197
    %v959 = vpop.f32.mrb[0].mxu0
    %v960 = vadd.f32 %v308, %v959
    %v961 = vpop.f32.mrb[0].mxu0
    %v962 = vadd.f32 %v312, %v961
    %v963 = vpop.f32.mrb[0].mxu0
    %v964 = vadd.f32 %v308, %v963
    %v965 = vpop.f32.mrb[0].mxu0
    %v966 = vadd.f32 %v312, %v965
    %967 = vmatprep.mubr.bf16.mxu0 %v200
    %968 = vmatmul.mubr.bf16.gmra.mrb[0].mxu0 %v199
    %v969 = vpop.f32.mrb[0].mxu0
    %v970 = vadd.f32 %v308, %v969
    %v971 = vpop.f32.mrb[0].mxu0
    %v972 = vadd.f32 %v312, %v971
    %v973 = vpop.f32.mrb[0].mxu0
    %v974 = vadd.f32 %v308, %v973
    %v975 = vpop.f32.mrb[0].mxu0
    %v976 = vadd.f32 %v312, %v975
    %977 = vmatprep.mubr.bf16.mxu0 %v202
    %978 = vmatmul.mubr.bf16.gmra.mrb[0].mxu0 %v201
    %v979 = vpop.f32.mrb[0].mxu0
    %v980 = vadd.f32 %v308, %v979
    %v981 = vpop.f32.mrb[0].mxu0
    %v982 = vadd.f32 %v312, %v981
    %v983 = vpop.f32.mrb[0].mxu0
    %v984 = vadd.f32 %v308, %v983
    %v985 = vpop.f32.mrb[0].mxu0
    %v986 = vadd.f32 %v312, %v985
    %987 = vmatprep.mubr.bf16.mxu0 %v204
    %988 = vmatmul.mubr.bf16.gmra.mrb[0].mxu0 %v203
    %v989 = vpop.f32.mrb[0].mxu0
    %v990 = vadd.f32 %v308, %v989
    %v991 = vpop.f32.mrb[0].mxu0
    %v992 = vadd.f32 %v312, %v991
    %v993 = vpop.f32.mrb[0].mxu0
    %v994 = vadd.f32 %v308, %v993
    %v995 = vpop.f32.mrb[0].mxu0
    %v996 = vadd.f32 %v312, %v995
    %997 = vmatprep.mubr.bf16.mxu0 %v206
    %998 = vmatmul.mubr.bf16.gmra.mrb[0].mxu0 %v205
    %v999 = vpop.f32.mrb[0].mxu0
    %v1000 = vadd.f32 %v308, %v999
    %v1001 = vpop.f32.mrb[0].mxu0
    %v1002 = vadd.f32 %v312, %v1001
    %v1003 = vpop.f32.mrb[0].mxu0
    %v1004 = vadd.f32 %v308, %v1003
    %v1005 = vpop.f32.mrb[0].mxu0
    %v1006 = vadd.f32 %v312, %v1005
    %1007 = vdwg.mxu0
    %1008 = vmatprep.subr.bf16.mxu0 %v626
    %1009 = vmatpush1.bf16.msra.mxu0 %v625
    %1010 = vmatprep.subr.bf16.mxu0 %v632
    %1011 = vmatpush1.bf16.msra.mxu0 %v631
    %1012 = vmatprep.subr.bf16.mxu0 %v638
    %1013 = vmatpush1.bf16.msra.mxu0 %v637
    %1014 = vmatprep.subr.bf16.mxu0 %v644
    %1015 = vmatpush1.bf16.msra.mxu0 %v643
    %1016 = vmatprep.subr.bf16.mxu0 %v650
    %1017 = vmatpush1.bf16.msra.mxu0 %v649
    %1018 = vmatprep.subr.bf16.mxu0 %v656
    %1019 = vmatpush1.bf16.msra.mxu0 %v655
    %1020 = vmatprep.subr.bf16.mxu0 %v662
    %1021 = vmatpush1.bf16.msra.mxu0 %v661
    %1022 = vmatprep.subr.bf16.mxu0 %v668
    %1023 = vmatpush1.bf16.msra.mxu0 %v667
    %1024 = vmatprep.subr.bf16.mxu0 %v674
    %1025 = vmatpush1.bf16.msra.mxu0 %v673
    %1026 = vmatprep.subr.bf16.mxu0 %v680
    %1027 = vmatpush1.bf16.msra.mxu0 %v679
    %1028 = vmatprep.subr.bf16.mxu0 %v686
    %1029 = vmatpush1.bf16.msra.mxu0 %v685
    %1030 = vmatprep.subr.bf16.mxu0 %v692
    %1031 = vmatpush1.bf16.msra.mxu0 %v691
    %1032 = vmatprep.subr.bf16.mxu0 %v698
    %1033 = vmatpush1.bf16.msra.mxu0 %v697
    %1034 = vmatprep.subr.bf16.mxu0 %v704
    %1035 = vmatpush1.bf16.msra.mxu0 %v703
    %1036 = vmatprep.subr.bf16.mxu0 %v710
    %1037 = vmatpush1.bf16.msra.mxu0 %v709
    %1038 = vmatprep.subr.bf16.mxu0 %v716
    %1039 = vmatpush1.bf16.msra.mxu0 %v715
    %1040 = vmatprep.mubr.bf16.mxu0 %v176
    %1041 = vmatmul.mubr.bf16.gmra.mrb[0].mxu0 %v175
    %v1042 = vpop.f32.mrb[0].mxu0
    %v1043 = vadd.f32 %v316, %v1042
    %v1044 = vpop.f32.mrb[0].mxu0
    %v1045 = vadd.f32 %v320, %v1044
    %v1046 = vpop.f32.mrb[0].mxu0
    %v1047 = vadd.f32 %v316, %v1046
    %v1048 = vpop.f32.mrb[0].mxu0
    %v1049 = vadd.f32 %v320, %v1048
    %1050 = vmatprep.mubr.bf16.mxu0 %v178
    %1051 = vmatmul.mubr.bf16.gmra.mrb[0].mxu0 %v177
    %v1052 = vpop.f32.mrb[0].mxu0
    %v1053 = vadd.f32 %v316, %v1052
    %v1054 = vpop.f32.mrb[0].mxu0
    %v1055 = vadd.f32 %v320, %v1054
    %v1056 = vpop.f32.mrb[0].mxu0
    %v1057 = vadd.f32 %v316, %v1056
    %v1058 = vpop.f32.mrb[0].mxu0
    %v1059 = vadd.f32 %v320, %v1058
    %1060 = vmatprep.mubr.bf16.mxu0 %v180
    %1061 = vmatmul.mubr.bf16.gmra.mrb[0].mxu0 %v179
    %v1062 = vpop.f32.mrb[0].mxu0
    %v1063 = vadd.f32 %v316, %v1062
    %v1064 = vpop.f32.mrb[0].mxu0
    %v1065 = vadd.f32 %v320, %v1064
    %v1066 = vpop.f32.mrb[0].mxu0
    %v1067 = vadd.f32 %v316, %v1066
    %v1068 = vpop.f32.mrb[0].mxu0
    %v1069 = vadd.f32 %v320, %v1068
    %1070 = vmatprep.mubr.bf16.mxu0 %v182
    %1071 = vmatmul.mubr.bf16.gmra.mrb[0].mxu0 %v181
    %v1072 = vpop.f32.mrb[0].mxu0
    %v1073 = vadd.f32 %v316, %v1072
    %v1074 = vpop.f32.mrb[0].mxu0
    %v1075 = vadd.f32 %v320, %v1074
    %v1076 = vpop.f32.mrb[0].mxu0
    %v1077 = vadd.f32 %v316, %v1076
    %v1078 = vpop.f32.mrb[0].mxu0
    %v1079 = vadd.f32 %v320, %v1078
    %1080 = vmatprep.mubr.bf16.mxu0 %v184
    %1081 = vmatmul.mubr.bf16.gmra.mrb[0].mxu0 %v183
    %v1082 = vpop.f32.mrb[0].mxu0
    %v1083 = vadd.f32 %v316, %v1082
    %v1084 = vpop.f32.mrb[0].mxu0
    %v1085 = vadd.f32 %v320, %v1084
    %v1086 = vpop.f32.mrb[0].mxu0
    %v1087 = vadd.f32 %v316, %v1086
    %v1088 = vpop.f32.mrb[0].mxu0
    %v1089 = vadd.f32 %v320, %v1088
    %1090 = vmatprep.mubr.bf16.mxu0 %v186
    %1091 = vmatmul.mubr.bf16.gmra.mrb[0].mxu0 %v185
    %v1092 = vpop.f32.mrb[0].mxu0
    %v1093 = vadd.f32 %v316, %v1092
    %v1094 = vpop.f32.mrb[0].mxu0
    %v1095 = vadd.f32 %v320, %v1094
    %v1096 = vpop.f32.mrb[0].mxu0
    %v1097 = vadd.f32 %v316, %v1096
    %v1098 = vpop.f32.mrb[0].mxu0
    %v1099 = vadd.f32 %v320, %v1098
    %1100 = vmatprep.mubr.bf16.mxu0 %v188
    %1101 = vmatmul.mubr.bf16.gmra.mrb[0].mxu0 %v187
    %v1102 = vpop.f32.mrb[0].mxu0
    %v1103 = vadd.f32 %v316, %v1102
    %v1104 = vpop.f32.mrb[0].mxu0
    %v1105 = vadd.f32 %v320, %v1104
    %v1106 = vpop.f32.mrb[0].mxu0
    %v1107 = vadd.f32 %v316, %v1106
    %v1108 = vpop.f32.mrb[0].mxu0
    %v1109 = vadd.f32 %v320, %v1108
    %1110 = vmatprep.mubr.bf16.mxu0 %v190
    %1111 = vmatmul.mubr.bf16.gmra.mrb[0].mxu0 %v189
    %v1112 = vpop.f32.mrb[0].mxu0
    %v1113 = vadd.f32 %v316, %v1112
    %v1114 = vpop.f32.mrb[0].mxu0
    %v1115 = vadd.f32 %v320, %v1114
    %v1116 = vpop.f32.mrb[0].mxu0
    %v1117 = vadd.f32 %v316, %v1116
    %v1118 = vpop.f32.mrb[0].mxu0
    %v1119 = vadd.f32 %v320, %v1118
    %1120 = vmatprep.mubr.bf16.mxu0 %v192
    %1121 = vmatmul.mubr.bf16.gmra.mrb[0].mxu0 %v191
    %v1122 = vpop.f32.mrb[0].mxu0
    %v1123 = vadd.f32 %v316, %v1122
    %v1124 = vpop.f32.mrb[0].mxu0
    %v1125 = vadd.f32 %v320, %v1124
    %v1126 = vpop.f32.mrb[0].mxu0
    %v1127 = vadd.f32 %v316, %v1126
    %v1128 = vpop.f32.mrb[0].mxu0
    %v1129 = vadd.f32 %v320, %v1128
    %1130 = vmatprep.mubr.bf16.mxu0 %v194
    %1131 = vmatmul.mubr.bf16.gmra.mrb[0].mxu0 %v193
    %v1132 = vpop.f32.mrb[0].mxu0
    %v1133 = vadd.f32 %v316, %v1132
    %v1134 = vpop.f32.mrb[0].mxu0
    %v1135 = vadd.f32 %v320, %v1134
    %v1136 = vpop.f32.mrb[0].mxu0
    %v1137 = vadd.f32 %v316, %v1136
    %v1138 = vpop.f32.mrb[0].mxu0
    %v1139 = vadd.f32 %v320, %v1138
    %1140 = vmatprep.mubr.bf16.mxu0 %v196
    %1141 = vmatmul.mubr.bf16.gmra.mrb[0].mxu0 %v195
    %v1142 = vpop.f32.mrb[0].mxu0
    %v1143 = vadd.f32 %v316, %v1142
    %v1144 = vpop.f32.mrb[0].mxu0
    %v1145 = vadd.f32 %v320, %v1144
    %v1146 = vpop.f32.mrb[0].mxu0
    %v1147 = vadd.f32 %v316, %v1146
    %v1148 = vpop.f32.mrb[0].mxu0
    %v1149 = vadd.f32 %v320, %v1148
    %1150 = vmatprep.mubr.bf16.mxu0 %v198
    %1151 = vmatmul.mubr.bf16.gmra.mrb[0].mxu0 %v197
    %v1152 = vpop.f32.mrb[0].mxu0
    %v1153 = vadd.f32 %v316, %v1152
    %v1154 = vpop.f32.mrb[0].mxu0
    %v1155 = vadd.f32 %v320, %v1154
    %v1156 = vpop.f32.mrb[0].mxu0
    %v1157 = vadd.f32 %v316, %v1156
    %v1158 = vpop.f32.mrb[0].mxu0
    %v1159 = vadd.f32 %v320, %v1158
    %1160 = vmatprep.mubr.bf16.mxu0 %v200
    %1161 = vmatmul.mubr.bf16.gmra.mrb[0].mxu0 %v199
    %v1162 = vpop.f32.mrb[0].mxu0
    %v1163 = vadd.f32 %v316, %v1162
    %v1164 = vpop.f32.mrb[0].mxu0
    %v1165 = vadd.f32 %v320, %v1164
    %v1166 = vpop.f32.mrb[0].mxu0
    %v1167 = vadd.f32 %v316, %v1166
    %v1168 = vpop.f32.mrb[0].mxu0
    %v1169 = vadd.f32 %v320, %v1168
    %1170 = vmatprep.mubr.bf16.mxu0 %v202
    %1171 = vmatmul.mubr.bf16.gmra.mrb[0].mxu0 %v201
    %v1172 = vpop.f32.mrb[0].mxu0
    %v1173 = vadd.f32 %v316, %v1172
    %v1174 = vpop.f32.mrb[0].mxu0
    %v1175 = vadd.f32 %v320, %v1174
    %v1176 = vpop.f32.mrb[0].mxu0
    %v1177 = vadd.f32 %v316, %v1176
    %v1178 = vpop.f32.mrb[0].mxu0
    %v1179 = vadd.f32 %v320, %v1178
    %1180 = vmatprep.mubr.bf16.mxu0 %v204
    %1181 = vmatmul.mubr.bf16.gmra.mrb[0].mxu0 %v203
    %v1182 = vpop.f32.mrb[0].mxu0
    %v1183 = vadd.f32 %v316, %v1182
    %v1184 = vpop.f32.mrb[0].mxu0
    %v1185 = vadd.f32 %v320, %v1184
    %v1186 = vpop.f32.mrb[0].mxu0
    %v1187 = vadd.f32 %v316, %v1186
    %v1188 = vpop.f32.mrb[0].mxu0
    %v1189 = vadd.f32 %v320, %v1188
    %1190 = vmatprep.mubr.bf16.mxu0 %v206
    %1191 = vmatmul.mubr.bf16.gmra.mrb[0].mxu0 %v205
    %v1192 = vpop.f32.mrb[0].mxu0
    %v1193 = vadd.f32 %v316, %v1192
    %v1194 = vpop.f32.mrb[0].mxu0
    %v1195 = vadd.f32 %v320, %v1194
    %v1196 = vpop.f32.mrb[0].mxu0
    %v1197 = vadd.f32 %v316, %v1196
    %v1198 = vpop.f32.mrb[0].mxu0
    %v1199 = vadd.f32 %v320, %v1198
    %1200 = vdwg.mxu0
    %1201 = vmatprep.subr.bf16.mxu0 %v628
    %1202 = vmatpush1.bf16.msra.mxu0 %v627
    %1203 = vmatprep.subr.bf16.mxu0 %v634
    %1204 = vmatpush1.bf16.msra.mxu0 %v633
    %1205 = vmatprep.subr.bf16.mxu0 %v640
    %1206 = vmatpush1.bf16.msra.mxu0 %v639
    %1207 = vmatprep.subr.bf16.mxu0 %v646
    %1208 = vmatpush1.bf16.msra.mxu0 %v645
    %1209 = vmatprep.subr.bf16.mxu0 %v652
    %1210 = vmatpush1.bf16.msra.mxu0 %v651
    %1211 = vmatprep.subr.bf16.mxu0 %v658
    %1212 = vmatpush1.bf16.msra.mxu0 %v657
    %1213 = vmatprep.subr.bf16.mxu0 %v664
    %1214 = vmatpush1.bf16.msra.mxu0 %v663
    %1215 = vmatprep.subr.bf16.mxu0 %v670
    %1216 = vmatpush1.bf16.msra.mxu0 %v669
    %1217 = vmatprep.subr.bf16.mxu0 %v676
    %1218 = vmatpush1.bf16.msra.mxu0 %v675
    %1219 = vmatprep.subr.bf16.mxu0 %v682
    %1220 = vmatpush1.bf16.msra.mxu0 %v681
    %1221 = vmatprep.subr.bf16.mxu0 %v688
    %1222 = vmatpush1.bf16.msra.mxu0 %v687
    %1223 = vmatprep.subr.bf16.mxu0 %v694
    %1224 = vmatpush1.bf16.msra.mxu0 %v693
    %1225 = vmatprep.subr.bf16.mxu0 %v700
    %1226 = vmatpush1.bf16.msra.mxu0 %v699
    %1227 = vmatprep.subr.bf16.mxu0 %v706
    %1228 = vmatpush1.bf16.msra.mxu0 %v705
    %1229 = vmatprep.subr.bf16.mxu0 %v712
    %1230 = vmatpush1.bf16.msra.mxu0 %v711
    %1231 = vmatprep.subr.bf16.mxu0 %v718
    %1232 = vmatpush1.bf16.msra.mxu0 %v717
    %1233 = vmatprep.mubr.bf16.mxu0 %v176
    %1234 = vmatmul.mubr.bf16.gmra.mrb[0].mxu0 %v175
    %v1235 = vpop.f32.mrb[0].mxu0
    %v1236 = vadd.f32 %v324, %v1235
    %v1237 = vpop.f32.mrb[0].mxu0
    %v1238 = vadd.f32 %v328, %v1237
    %v1239 = vpop.f32.mrb[0].mxu0
    %v1240 = vadd.f32 %v324, %v1239
    %v1241 = vpop.f32.mrb[0].mxu0
    %v1242 = vadd.f32 %v328, %v1241
    %1243 = vmatprep.mubr.bf16.mxu0 %v178
    %1244 = vmatmul.mubr.bf16.gmra.mrb[0].mxu0 %v177
    %v1245 = vpop.f32.mrb[0].mxu0
    %v1246 = vadd.f32 %v324, %v1245
    %v1247 = vpop.f32.mrb[0].mxu0
    %v1248 = vadd.f32 %v328, %v1247
    %v1249 = vpop.f32.mrb[0].mxu0
    %v1250 = vadd.f32 %v324, %v1249
    %v1251 = vpop.f32.mrb[0].mxu0
    %v1252 = vadd.f32 %v328, %v1251
    %1253 = vmatprep.mubr.bf16.mxu0 %v180
    %1254 = vmatmul.mubr.bf16.gmra.mrb[0].mxu0 %v179
    %v1255 = vpop.f32.mrb[0].mxu0
    %v1256 = vadd.f32 %v324, %v1255
    %v1257 = vpop.f32.mrb[0].mxu0
    %v1258 = vadd.f32 %v328, %v1257
    %v1259 = vpop.f32.mrb[0].mxu0
    %v1260 = vadd.f32 %v324, %v1259
    %v1261 = vpop.f32.mrb[0].mxu0
    %v1262 = vadd.f32 %v328, %v1261
    %1263 = vmatprep.mubr.bf16.mxu0 %v182
    %1264 = vmatmul.mubr.bf16.gmra.mrb[0].mxu0 %v181
    %v1265 = vpop.f32.mrb[0].mxu0
    %v1266 = vadd.f32 %v324, %v1265
    %v1267 = vpop.f32.mrb[0].mxu0
    %v1268 = vadd.f32 %v328, %v1267
    %v1269 = vpop.f32.mrb[0].mxu0
    %v1270 = vadd.f32 %v324, %v1269
    %v1271 = vpop.f32.mrb[0].mxu0
    %v1272 = vadd.f32 %v328, %v1271
    %1273 = vmatprep.mubr.bf16.mxu0 %v184
    %1274 = vmatmul.mubr.bf16.gmra.mrb[0].mxu0 %v183
    %v1275 = vpop.f32.mrb[0].mxu0
    %v1276 = vadd.f32 %v324, %v1275
    %v1277 = vpop.f32.mrb[0].mxu0
    %v1278 = vadd.f32 %v328, %v1277
    %v1279 = vpop.f32.mrb[0].mxu0
    %v1280 = vadd.f32 %v324, %v1279
    %v1281 = vpop.f32.mrb[0].mxu0
    %v1282 = vadd.f32 %v328, %v1281
    %1283 = vmatprep.mubr.bf16.mxu0 %v186
    %1284 = vmatmul.mubr.bf16.gmra.mrb[0].mxu0 %v185
    %v1285 = vpop.f32.mrb[0].mxu0
    %v1286 = vadd.f32 %v324, %v1285
    %v1287 = vpop.f32.mrb[0].mxu0
    %v1288 = vadd.f32 %v328, %v1287
    %v1289 = vpop.f32.mrb[0].mxu0
    %v1290 = vadd.f32 %v324, %v1289
    %v1291 = vpop.f32.mrb[0].mxu0
    %v1292 = vadd.f32 %v328, %v1291
    %1293 = vmatprep.mubr.bf16.mxu0 %v188
    %1294 = vmatmul.mubr.bf16.gmra.mrb[0].mxu0 %v187
    %v1295 = vpop.f32.mrb[0].mxu0
    %v1296 = vadd.f32 %v324, %v1295
    %v1297 = vpop.f32.mrb[0].mxu0
    %v1298 = vadd.f32 %v328, %v1297
    %v1299 = vpop.f32.mrb[0].mxu0
    %v1300 = vadd.f32 %v324, %v1299
    %v1301 = vpop.f32.mrb[0].mxu0
    %v1302 = vadd.f32 %v328, %v1301
    %1303 = vmatprep.mubr.bf16.mxu0 %v190
    %1304 = vmatmul.mubr.bf16.gmra.mrb[0].mxu0 %v189
    %v1305 = vpop.f32.mrb[0].mxu0
    %v1306 = vadd.f32 %v324, %v1305
    %v1307 = vpop.f32.mrb[0].mxu0
    %v1308 = vadd.f32 %v328, %v1307
    %v1309 = vpop.f32.mrb[0].mxu0
    %v1310 = vadd.f32 %v324, %v1309
    %v1311 = vpop.f32.mrb[0].mxu0
    %v1312 = vadd.f32 %v328, %v1311
    %1313 = vmatprep.mubr.bf16.mxu0 %v192
    %1314 = vmatmul.mubr.bf16.gmra.mrb[0].mxu0 %v191
    %v1315 = vpop.f32.mrb[0].mxu0
    %v1316 = vadd.f32 %v324, %v1315
    %v1317 = vpop.f32.mrb[0].mxu0
    %v1318 = vadd.f32 %v328, %v1317
    %v1319 = vpop.f32.mrb[0].mxu0
    %v1320 = vadd.f32 %v324, %v1319
    %v1321 = vpop.f32.mrb[0].mxu0
    %v1322 = vadd.f32 %v328, %v1321
    %1323 = vmatprep.mubr.bf16.mxu0 %v194
    %1324 = vmatmul.mubr.bf16.gmra.mrb[0].mxu0 %v193
    %v1325 = vpop.f32.mrb[0].mxu0
    %v1326 = vadd.f32 %v324, %v1325
    %v1327 = vpop.f32.mrb[0].mxu0
    %v1328 = vadd.f32 %v328, %v1327
    %v1329 = vpop.f32.mrb[0].mxu0
    %v1330 = vadd.f32 %v324, %v1329
    %v1331 = vpop.f32.mrb[0].mxu0
    %v1332 = vadd.f32 %v328, %v1331
    %1333 = vmatprep.mubr.bf16.mxu0 %v196
    %1334 = vmatmul.mubr.bf16.gmra.mrb[0].mxu0 %v195
    %v1335 = vpop.f32.mrb[0].mxu0
    %v1336 = vadd.f32 %v324, %v1335
    %v1337 = vpop.f32.mrb[0].mxu0
    %v1338 = vadd.f32 %v328, %v1337
    %v1339 = vpop.f32.mrb[0].mxu0
    %v1340 = vadd.f32 %v324, %v1339
    %v1341 = vpop.f32.mrb[0].mxu0
    %v1342 = vadd.f32 %v328, %v1341
    %1343 = vmatprep.mubr.bf16.mxu0 %v198
    %1344 = vmatmul.mubr.bf16.gmra.mrb[0].mxu0 %v197
    %v1345 = vpop.f32.mrb[0].mxu0
    %v1346 = vadd.f32 %v324, %v1345
    %v1347 = vpop.f32.mrb[0].mxu0
    %v1348 = vadd.f32 %v328, %v1347
    %v1349 = vpop.f32.mrb[0].mxu0
    %v1350 = vadd.f32 %v324, %v1349
    %v1351 = vpop.f32.mrb[0].mxu0
    %v1352 = vadd.f32 %v328, %v1351
    %1353 = vmatprep.mubr.bf16.mxu0 %v200
    %1354 = vmatmul.mubr.bf16.gmra.mrb[0].mxu0 %v199
    %v1355 = vpop.f32.mrb[0].mxu0
    %v1356 = vadd.f32 %v324, %v1355
    %v1357 = vpop.f32.mrb[0].mxu0
    %v1358 = vadd.f32 %v328, %v1357
    %v1359 = vpop.f32.mrb[0].mxu0
    %v1360 = vadd.f32 %v324, %v1359
    %v1361 = vpop.f32.mrb[0].mxu0
    %v1362 = vadd.f32 %v328, %v1361
    %1363 = vmatprep.mubr.bf16.mxu0 %v202
    %1364 = vmatmul.mubr.bf16.gmra.mrb[0].mxu0 %v201
    %v1365 = vpop.f32.mrb[0].mxu0
    %v1366 = vadd.f32 %v324, %v1365
    %v1367 = vpop.f32.mrb[0].mxu0
    %v1368 = vadd.f32 %v328, %v1367
    %v1369 = vpop.f32.mrb[0].mxu0
    %v1370 = vadd.f32 %v324, %v1369
    %v1371 = vpop.f32.mrb[0].mxu0
    %v1372 = vadd.f32 %v328, %v1371
    %1373 = vmatprep.mubr.bf16.mxu0 %v204
    %1374 = vmatmul.mubr.bf16.gmra.mrb[0].mxu0 %v203
    %v1375 = vpop.f32.mrb[0].mxu0
    %v1376 = vadd.f32 %v324, %v1375
    %v1377 = vpop.f32.mrb[0].mxu0
    %v1378 = vadd.f32 %v328, %v1377
    %v1379 = vpop.f32.mrb[0].mxu0
    %v1380 = vadd.f32 %v324, %v1379
    %v1381 = vpop.f32.mrb[0].mxu0
    %v1382 = vadd.f32 %v328, %v1381
    %1383 = vmatprep.mubr.bf16.mxu0 %v206
    %1384 = vmatmul.mubr.bf16.gmra.mrb[0].mxu0 %v205
    %v1385 = vpop.f32.mrb[0].mxu0
    %v1386 = vadd.f32 %v324, %v1385
    %v1387 = vpop.f32.mrb[0].mxu0
    %v1388 = vadd.f32 %v328, %v1387
    %v1389 = vpop.f32.mrb[0].mxu0
    %v1390 = vadd.f32 %v324, %v1389
    %v1391 = vpop.f32.mrb[0].mxu0
    %v1392 = vadd.f32 %v328, %v1391
    %1393 = vdwg.mxu0
    %v1394 = vpack.c.bf16 %v854, %v850
    %v1395 = vpack.c.bf16 %v856, %v852
    %v1396 = vpack.c.bf16 %v1047, %v1043
    %v1397 = vpack.c.bf16 %v1049, %v1045
    %v1398 = vpack.c.bf16 %v1240, %v1236
    %v1399 = vpack.c.bf16 %v1242, %v1238
    %v1400 = vpack.c.bf16 %v864, %v860
    %v1401 = vpack.c.bf16 %v866, %v862
    %v1402 = vpack.c.bf16 %v1057, %v1053
    %v1403 = vpack.c.bf16 %v1059, %v1055
    %v1404 = vpack.c.bf16 %v1250, %v1246
    %v1405 = vpack.c.bf16 %v1252, %v1248
    %v1406 = vpack.c.bf16 %v874, %v870
    %v1407 = vpack.c.bf16 %v876, %v872
    %v1408 = vpack.c.bf16 %v1067, %v1063
    %v1409 = vpack.c.bf16 %v1069, %v1065
    %v1410 = vpack.c.bf16 %v1260, %v1256
    %v1411 = vpack.c.bf16 %v1262, %v1258
    %v1412 = vpack.c.bf16 %v884, %v880
    %v1413 = vpack.c.bf16 %v886, %v882
    %v1414 = vpack.c.bf16 %v1077, %v1073
    %v1415 = vpack.c.bf16 %v1079, %v1075
    %v1416 = vpack.c.bf16 %v1270, %v1266
    %v1417 = vpack.c.bf16 %v1272, %v1268
    %v1418 = vpack.c.bf16 %v894, %v890
    %v1419 = vpack.c.bf16 %v896, %v892
    %v1420 = vpack.c.bf16 %v1087, %v1083
    %v1421 = vpack.c.bf16 %v1089, %v1085
    %v1422 = vpack.c.bf16 %v1280, %v1276
    %v1423 = vpack.c.bf16 %v1282, %v1278
    %v1424 = vpack.c.bf16 %v904, %v900
    %v1425 = vpack.c.bf16 %v906, %v902
    %v1426 = vpack.c.bf16 %v1097, %v1093
    %v1427 = vpack.c.bf16 %v1099, %v1095
    %v1428 = vpack.c.bf16 %v1290, %v1286
    %v1429 = vpack.c.bf16 %v1292, %v1288
    %v1430 = vpack.c.bf16 %v914, %v910
    %v1431 = vpack.c.bf16 %v916, %v912
    %v1432 = vpack.c.bf16 %v1107, %v1103
    %v1433 = vpack.c.bf16 %v1109, %v1105
    %v1434 = vpack.c.bf16 %v1300, %v1296
    %v1435 = vpack.c.bf16 %v1302, %v1298
    %v1436 = vpack.c.bf16 %v924, %v920
    %v1437 = vpack.c.bf16 %v926, %v922
    %v1438 = vpack.c.bf16 %v1117, %v1113
    %v1439 = vpack.c.bf16 %v1119, %v1115
    %v1440 = vpack.c.bf16 %v1310, %v1306
    %v1441 = vpack.c.bf16 %v1312, %v1308
    %v1442 = vpack.c.bf16 %v934, %v930
    %v1443 = vpack.c.bf16 %v936, %v932
    %v1444 = vpack.c.bf16 %v1127, %v1123
    %v1445 = vpack.c.bf16 %v1129, %v1125
    %v1446 = vpack.c.bf16 %v1320, %v1316
    %v1447 = vpack.c.bf16 %v1322, %v1318
    %v1448 = vpack.c.bf16 %v944, %v940
    %v1449 = vpack.c.bf16 %v946, %v942
    %v1450 = vpack.c.bf16 %v1137, %v1133
    %v1451 = vpack.c.bf16 %v1139, %v1135
    %v1452 = vpack.c.bf16 %v1330, %v1326
    %v1453 = vpack.c.bf16 %v1332, %v1328
    %v1454 = vpack.c.bf16 %v954, %v950
    %v1455 = vpack.c.bf16 %v956, %v952
    %v1456 = vpack.c.bf16 %v1147, %v1143
    %v1457 = vpack.c.bf16 %v1149, %v1145
    %v1458 = vpack.c.bf16 %v1340, %v1336
    %v1459 = vpack.c.bf16 %v1342, %v1338
    %v1460 = vpack.c.bf16 %v964, %v960
    %v1461 = vpack.c.bf16 %v966, %v962
    %v1462 = vpack.c.bf16 %v1157, %v1153
    %v1463 = vpack.c.bf16 %v1159, %v1155
    %v1464 = vpack.c.bf16 %v1350, %v1346
    %v1465 = vpack.c.bf16 %v1352, %v1348
    %v1466 = vpack.c.bf16 %v974, %v970
    %v1467 = vpack.c.bf16 %v976, %v972
    %v1468 = vpack.c.bf16 %v1167, %v1163
    %v1469 = vpack.c.bf16 %v1169, %v1165
    %v1470 = vpack.c.bf16 %v1360, %v1356
    %v1471 = vpack.c.bf16 %v1362, %v1358
    %v1472 = vpack.c.bf16 %v984, %v980
    %v1473 = vpack.c.bf16 %v986, %v982
    %v1474 = vpack.c.bf16 %v1177, %v1173
    %v1475 = vpack.c.bf16 %v1179, %v1175
    %v1476 = vpack.c.bf16 %v1370, %v1366
    %v1477 = vpack.c.bf16 %v1372, %v1368
    %v1478 = vpack.c.bf16 %v994, %v990
    %v1479 = vpack.c.bf16 %v996, %v992
    %v1480 = vpack.c.bf16 %v1187, %v1183
    %v1481 = vpack.c.bf16 %v1189, %v1185
    %v1482 = vpack.c.bf16 %v1380, %v1376
    %v1483 = vpack.c.bf16 %v1382, %v1378
    %v1484 = vpack.c.bf16 %v1004, %v1000
    %v1485 = vpack.c.bf16 %v1006, %v1002
    %v1486 = vpack.c.bf16 %v1197, %v1193
    %v1487 = vpack.c.bf16 %v1199, %v1195
    %v1488 = vpack.c.bf16 %v1390, %v1386
    %v1489 = vpack.c.bf16 %v1392, %v1388
    %v1490 = vlaneseq
    %v1491 = vshrl.u32 %v1490, 7
    %v1492 = vadd.s32 %v1491, 8
    %v1493 = vlaneseq
    %v1494 = vand.u32 %v1493, 127
    %vm1495 = vcmp.le.s32.totalorder %v1494, %v1491
    %vm1496 = vcmp.le.s32.totalorder %v1494, %v1492
    %v1497 = vld [vmem:[%s7] ss:$8 sm:$0x3]
    %1498 = vmatprep.subr.bf16.mxu0 0
    %1499 = vmatpush1.bf16.xpose.msra.mxu0 %v1396
    %1500 = vmatprep.subr.bf16.mxu0 0
    %1501 = vmatpush1.bf16.xpose.msra.mxu0 0
    %1502 = vmatprep.subr.bf16.mxu0 0
    %1503 = vmatpush1.bf16.xpose.msra.mxu0 0
    %1504 = vmatprep.subr.bf16.mxu0 0
    %1505 = vmatpush1.bf16.xpose.msra.mxu0 0
    %1506 = vmatprep.subr.bf16.mxu0 0
    %1507 = vmatpush1.bf16.xpose.msra.mxu0 0
    %1508 = vmatprep.subr.bf16.mxu0 0
    %1509 = vmatpush1.bf16.xpose.msra.mxu0 0
    %1510 = vmatprep.subr.bf16.mxu0 0
    %1511 = vmatpush1.bf16.xpose.msra.mxu0 0
    %1512 = vmatprep.subr.bf16.mxu0 0
    %1513 = vmatpush1.bf16.xpose.msra.mxu0 0
    %1514 = vmatprep.subr.bf16.mxu0 0
    %1515 = vmatpush1.bf16.xpose.msra.mxu0 0
    %1516 = vmatprep.subr.bf16.mxu0 0
    %1517 = vmatpush1.bf16.xpose.msra.mxu0 0
    %1518 = vmatprep.subr.bf16.mxu0 0
    %1519 = vmatpush1.bf16.xpose.msra.mxu0 0
    %1520 = vmatprep.subr.bf16.mxu0 0
    %1521 = vmatpush1.bf16.xpose.msra.mxu0 0
    %1522 = vmatprep.subr.bf16.mxu0 0
    %1523 = vmatpush1.bf16.xpose.msra.mxu0 0
    %1524 = vmatprep.subr.bf16.mxu0 0
    %1525 = vmatpush1.bf16.xpose.msra.mxu0 0
    %1526 = vmatprep.subr.bf16.mxu0 0
    %1527 = vmatpush1.bf16.xpose.msra.mxu0 0
    %1528 = vmatprep.subr.bf16.mxu0 0
    %1529 = vmatpush1.bf16.xpose.msra.mxu0 0
    %1530 = vmatprep.mubr.bf16.mxu0 0
    %1531 = vmatmul.mubr.bf16.gmra.mrb[0].mxu0 %v1394
    %v1532 = vpop.f32.mrb[0].mxu0
    %v1533 = vadd.f32 0.0, %v1532
    %v1534 = vpop.f32.mrb[0].mxu0
    %v1535 = vpop.f32.mrb[0].mxu0
    %v1536 = vadd.f32 0.0, %v1535
    %v1537 = vpop.f32.mrb[0].mxu0
    %1538 = vdwg.mxu0
    %1539 = vmatprep.subr.bf16.mxu0 0
    %1540 = vmatpush1.bf16.xpose.msra.mxu0 %v1402
    %1541 = vmatprep.subr.bf16.mxu0 0
    %1542 = vmatpush1.bf16.xpose.msra.mxu0 0
    %1543 = vmatprep.subr.bf16.mxu0 0
    %1544 = vmatpush1.bf16.xpose.msra.mxu0 0
    %1545 = vmatprep.subr.bf16.mxu0 0
    %1546 = vmatpush1.bf16.xpose.msra.mxu0 0
    %1547 = vmatprep.subr.bf16.mxu0 0
    %1548 = vmatpush1.bf16.xpose.msra.mxu0 0
    %1549 = vmatprep.subr.bf16.mxu0 0
    %1550 = vmatpush1.bf16.xpose.msra.mxu0 0
    %1551 = vmatprep.subr.bf16.mxu0 0
    %1552 = vmatpush1.bf16.xpose.msra.mxu0 0
    %1553 = vmatprep.subr.bf16.mxu0 0
    %1554 = vmatpush1.bf16.xpose.msra.mxu0 0
    %1555 = vmatprep.subr.bf16.mxu0 0
    %1556 = vmatpush1.bf16.xpose.msra.mxu0 0
    %1557 = vmatprep.subr.bf16.mxu0 0
    %1558 = vmatpush1.bf16.xpose.msra.mxu0 0
    %1559 = vmatprep.subr.bf16.mxu0 0
    %1560 = vmatpush1.bf16.xpose.msra.mxu0 0
    %1561 = vmatprep.subr.bf16.mxu0 0
    %1562 = vmatpush1.bf16.xpose.msra.mxu0 0
    %1563 = vmatprep.subr.bf16.mxu0 0
    %1564 = vmatpush1.bf16.xpose.msra.mxu0 0
    %1565 = vmatprep.subr.bf16.mxu0 0
    %1566 = vmatpush1.bf16.xpose.msra.mxu0 0
    %1567 = vmatprep.subr.bf16.mxu0 0
    %1568 = vmatpush1.bf16.xpose.msra.mxu0 0
    %1569 = vmatprep.subr.bf16.mxu0 0
    %1570 = vmatpush1.bf16.xpose.msra.mxu0 0
    %1571 = vmatprep.mubr.bf16.mxu0 0
    %1572 = vmatmul.mubr.bf16.gmra.mrb[0].mxu0 %v1400
    %v1573 = vpop.f32.mrb[0].mxu0
    %v1574 = vadd.f32 0.0, %v1573
    %v1575 = vpop.f32.mrb[0].mxu0
    %v1576 = vpop.f32.mrb[0].mxu0
    %v1577 = vadd.f32 0.0, %v1576
    %v1578 = vpop.f32.mrb[0].mxu0
    %1579 = vdwg.mxu0
    %1580 = vmatprep.subr.bf16.mxu0 0
    %1581 = vmatpush1.bf16.xpose.msra.mxu0 %v1408
    %1582 = vmatprep.subr.bf16.mxu0 0
    %1583 = vmatpush1.bf16.xpose.msra.mxu0 0
    %1584 = vmatprep.subr.bf16.mxu0 0
    %1585 = vmatpush1.bf16.xpose.msra.mxu0 0
    %1586 = vmatprep.subr.bf16.mxu0 0
    %1587 = vmatpush1.bf16.xpose.msra.mxu0 0
    %1588 = vmatprep.subr.bf16.mxu0 0
    %1589 = vmatpush1.bf16.xpose.msra.mxu0 0
    %1590 = vmatprep.subr.bf16.mxu0 0
    %1591 = vmatpush1.bf16.xpose.msra.mxu0 0
    %1592 = vmatprep.subr.bf16.mxu0 0
    %1593 = vmatpush1.bf16.xpose.msra.mxu0 0
    %1594 = vmatprep.subr.bf16.mxu0 0
    %1595 = vmatpush1.bf16.xpose.msra.mxu0 0
    %1596 = vmatprep.subr.bf16.mxu0 0
    %1597 = vmatpush1.bf16.xpose.msra.mxu0 0
    %1598 = vmatprep.subr.bf16.mxu0 0
    %1599 = vmatpush1.bf16.xpose.msra.mxu0 0
    %1600 = vmatprep.subr.bf16.mxu0 0
    %1601 = vmatpush1.bf16.xpose.msra.mxu0 0
    %1602 = vmatprep.subr.bf16.mxu0 0
    %1603 = vmatpush1.bf16.xpose.msra.mxu0 0
    %1604 = vmatprep.subr.bf16.mxu0 0
    %1605 = vmatpush1.bf16.xpose.msra.mxu0 0
    %1606 = vmatprep.subr.bf16.mxu0 0
    %1607 = vmatpush1.bf16.xpose.msra.mxu0 0
    %1608 = vmatprep.subr.bf16.mxu0 0
    %1609 = vmatpush1.bf16.xpose.msra.mxu0 0
    %1610 = vmatprep.subr.bf16.mxu0 0
    %1611 = vmatpush1.bf16.xpose.msra.mxu0 0
    %1612 = vmatprep.mubr.bf16.mxu0 0
    %1613 = vmatmul.mubr.bf16.gmra.mrb[0].mxu0 %v1406
    %v1614 = vpop.f32.mrb[0].mxu0
    %v1615 = vadd.f32 0.0, %v1614
    %v1616 = vpop.f32.mrb[0].mxu0
    %v1617 = vpop.f32.mrb[0].mxu0
    %v1618 = vadd.f32 0.0, %v1617
    %v1619 = vpop.f32.mrb[0].mxu0
    %1620 = vdwg.mxu0
    %1621 = vmatprep.subr.bf16.mxu0 0
    %1622 = vmatpush1.bf16.xpose.msra.mxu0 %v1414
    %1623 = vmatprep.subr.bf16.mxu0 0
    %1624 = vmatpush1.bf16.xpose.msra.mxu0 0
    %1625 = vmatprep.subr.bf16.mxu0 0
    %1626 = vmatpush1.bf16.xpose.msra.mxu0 0
    %1627 = vmatprep.subr.bf16.mxu0 0
    %1628 = vmatpush1.bf16.xpose.msra.mxu0 0
    %1629 = vmatprep.subr.bf16.mxu0 0
    %1630 = vmatpush1.bf16.xpose.msra.mxu0 0
    %1631 = vmatprep.subr.bf16.mxu0 0
    %1632 = vmatpush1.bf16.xpose.msra.mxu0 0
    %1633 = vmatprep.subr.bf16.mxu0 0
    %1634 = vmatpush1.bf16.xpose.msra.mxu0 0
    %1635 = vmatprep.subr.bf16.mxu0 0
    %1636 = vmatpush1.bf16.xpose.msra.mxu0 0
    %1637 = vmatprep.subr.bf16.mxu0 0
    %1638 = vmatpush1.bf16.xpose.msra.mxu0 0
    %1639 = vmatprep.subr.bf16.mxu0 0
    %1640 = vmatpush1.bf16.xpose.msra.mxu0 0
    %1641 = vmatprep.subr.bf16.mxu0 0
    %1642 = vmatpush1.bf16.xpose.msra.mxu0 0
    %1643 = vmatprep.subr.bf16.mxu0 0
    %1644 = vmatpush1.bf16.xpose.msra.mxu0 0
    %1645 = vmatprep.subr.bf16.mxu0 0
    %1646 = vmatpush1.bf16.xpose.msra.mxu0 0
    %1647 = vmatprep.subr.bf16.mxu0 0
    %1648 = vmatpush1.bf16.xpose.msra.mxu0 0
    %1649 = vmatprep.subr.bf16.mxu0 0
    %1650 = vmatpush1.bf16.xpose.msra.mxu0 0
    %1651 = vmatprep.subr.bf16.mxu0 0
    %1652 = vmatpush1.bf16.xpose.msra.mxu0 0
    %1653 = vmatprep.mubr.bf16.mxu0 0
    %1654 = vmatmul.mubr.bf16.gmra.mrb[0].mxu0 %v1412
    %v1655 = vpop.f32.mrb[0].mxu0
    %v1656 = vadd.f32 0.0, %v1655
    %v1657 = vpop.f32.mrb[0].mxu0
    %v1658 = vpop.f32.mrb[0].mxu0
    %v1659 = vadd.f32 0.0, %v1658
    %v1660 = vpop.f32.mrb[0].mxu0
    %1661 = vdwg.mxu0
    %1662 = vmatprep.subr.bf16.mxu0 0
    %1663 = vmatpush1.bf16.xpose.msra.mxu0 %v1420
    %1664 = vmatprep.subr.bf16.mxu0 0
    %1665 = vmatpush1.bf16.xpose.msra.mxu0 0
    %1666 = vmatprep.subr.bf16.mxu0 0
    %1667 = vmatpush1.bf16.xpose.msra.mxu0 0
    %1668 = vmatprep.subr.bf16.mxu0 0
    %1669 = vmatpush1.bf16.xpose.msra.mxu0 0
    %1670 = vmatprep.subr.bf16.mxu0 0
    %1671 = vmatpush1.bf16.xpose.msra.mxu0 0
    %1672 = vmatprep.subr.bf16.mxu0 0
    %1673 = vmatpush1.bf16.xpose.msra.mxu0 0
    %1674 = vmatprep.subr.bf16.mxu0 0
    %1675 = vmatpush1.bf16.xpose.msra.mxu0 0
    %1676 = vmatprep.subr.bf16.mxu0 0
    %1677 = vmatpush1.bf16.xpose.msra.mxu0 0
    %1678 = vmatprep.subr.bf16.mxu0 0
    %1679 = vmatpush1.bf16.xpose.msra.mxu0 0
    %1680 = vmatprep.subr.bf16.mxu0 0
    %1681 = vmatpush1.bf16.xpose.msra.mxu0 0
    %1682 = vmatprep.subr.bf16.mxu0 0
    %1683 = vmatpush1.bf16.xpose.msra.mxu0 0
    %1684 = vmatprep.subr.bf16.mxu0 0
    %1685 = vmatpush1.bf16.xpose.msra.mxu0 0
    %1686 = vmatprep.subr.bf16.mxu0 0
    %1687 = vmatpush1.bf16.xpose.msra.mxu0 0
    %1688 = vmatprep.subr.bf16.mxu0 0
    %1689 = vmatpush1.bf16.xpose.msra.mxu0 0
    %1690 = vmatprep.subr.bf16.mxu0 0
    %1691 = vmatpush1.bf16.xpose.msra.mxu0 0
    %1692 = vmatprep.subr.bf16.mxu0 0
    %1693 = vmatpush1.bf16.xpose.msra.mxu0 0
    %1694 = vmatprep.mubr.bf16.mxu0 0
    %1695 = vmatmul.mubr.bf16.gmra.mrb[0].mxu0 %v1418
    %v1696 = vpop.f32.mrb[0].mxu0
    %v1697 = vadd.f32 0.0, %v1696
    %v1698 = vpop.f32.mrb[0].mxu0
    %v1699 = vpop.f32.mrb[0].mxu0
    %v1700 = vadd.f32 0.0, %v1699
    %v1701 = vpop.f32.mrb[0].mxu0
    %1702 = vdwg.mxu0
    %1703 = vmatprep.subr.bf16.mxu0 0
    %1704 = vmatpush1.bf16.xpose.msra.mxu0 %v1426
    %1705 = vmatprep.subr.bf16.mxu0 0
    %1706 = vmatpush1.bf16.xpose.msra.mxu0 0
    %1707 = vmatprep.subr.bf16.mxu0 0
    %1708 = vmatpush1.bf16.xpose.msra.mxu0 0
    %1709 = vmatprep.subr.bf16.mxu0 0
    %1710 = vmatpush1.bf16.xpose.msra.mxu0 0
    %1711 = vmatprep.subr.bf16.mxu0 0
    %1712 = vmatpush1.bf16.xpose.msra.mxu0 0
    %1713 = vmatprep.subr.bf16.mxu0 0
    %1714 = vmatpush1.bf16.xpose.msra.mxu0 0
    %1715 = vmatprep.subr.bf16.mxu0 0
    %1716 = vmatpush1.bf16.xpose.msra.mxu0 0
    %1717 = vmatprep.subr.bf16.mxu0 0
    %1718 = vmatpush1.bf16.xpose.msra.mxu0 0
    %1719 = vmatprep.subr.bf16.mxu0 0
    %1720 = vmatpush1.bf16.xpose.msra.mxu0 0
    %1721 = vmatprep.subr.bf16.mxu0 0
    %1722 = vmatpush1.bf16.xpose.msra.mxu0 0
    %1723 = vmatprep.subr.bf16.mxu0 0
    %1724 = vmatpush1.bf16.xpose.msra.mxu0 0
    %1725 = vmatprep.subr.bf16.mxu0 0
    %1726 = vmatpush1.bf16.xpose.msra.mxu0 0
    %1727 = vmatprep.subr.bf16.mxu0 0
    %1728 = vmatpush1.bf16.xpose.msra.mxu0 0
    %1729 = vmatprep.subr.bf16.mxu0 0
    %1730 = vmatpush1.bf16.xpose.msra.mxu0 0
    %1731 = vmatprep.subr.bf16.mxu0 0
    %1732 = vmatpush1.bf16.xpose.msra.mxu0 0
    %1733 = vmatprep.subr.bf16.mxu0 0
    %1734 = vmatpush1.bf16.xpose.msra.mxu0 0
    %1735 = vmatprep.mubr.bf16.mxu0 0
    %1736 = vmatmul.mubr.bf16.gmra.mrb[0].mxu0 %v1424
    %v1737 = vpop.f32.mrb[0].mxu0
    %v1738 = vadd.f32 0.0, %v1737
    %v1739 = vpop.f32.mrb[0].mxu0
    %v1740 = vpop.f32.mrb[0].mxu0
    %v1741 = vadd.f32 0.0, %v1740
    %v1742 = vpop.f32.mrb[0].mxu0
    %1743 = vdwg.mxu0
    %1744 = vmatprep.subr.bf16.mxu0 0
    %1745 = vmatpush1.bf16.xpose.msra.mxu0 %v1432
    %1746 = vmatprep.subr.bf16.mxu0 0
    %1747 = vmatpush1.bf16.xpose.msra.mxu0 0
    %1748 = vmatprep.subr.bf16.mxu0 0
    %1749 = vmatpush1.bf16.xpose.msra.mxu0 0
    %1750 = vmatprep.subr.bf16.mxu0 0
    %1751 = vmatpush1.bf16.xpose.msra.mxu0 0
    %1752 = vmatprep.subr.bf16.mxu0 0
    %1753 = vmatpush1.bf16.xpose.msra.mxu0 0
    %1754 = vmatprep.subr.bf16.mxu0 0
    %1755 = vmatpush1.bf16.xpose.msra.mxu0 0
    %1756 = vmatprep.subr.bf16.mxu0 0
    %1757 = vmatpush1.bf16.xpose.msra.mxu0 0
    %1758 = vmatprep.subr.bf16.mxu0 0
    %1759 = vmatpush1.bf16.xpose.msra.mxu0 0
    %1760 = vmatprep.subr.bf16.mxu0 0
    %1761 = vmatpush1.bf16.xpose.msra.mxu0 0
    %1762 = vmatprep.subr.bf16.mxu0 0
    %1763 = vmatpush1.bf16.xpose.msra.mxu0 0
    %1764 = vmatprep.subr.bf16.mxu0 0
    %1765 = vmatpush1.bf16.xpose.msra.mxu0 0
    %1766 = vmatprep.subr.bf16.mxu0 0
    %1767 = vmatpush1.bf16.xpose.msra.mxu0 0
    %1768 = vmatprep.subr.bf16.mxu0 0
    %1769 = vmatpush1.bf16.xpose.msra.mxu0 0
    %1770 = vmatprep.subr.bf16.mxu0 0
    %1771 = vmatpush1.bf16.xpose.msra.mxu0 0
    %1772 = vmatprep.subr.bf16.mxu0 0
    %1773 = vmatpush1.bf16.xpose.msra.mxu0 0
    %1774 = vmatprep.subr.bf16.mxu0 0
    %1775 = vmatpush1.bf16.xpose.msra.mxu0 0
    %1776 = vmatprep.mubr.bf16.mxu0 0
    %1777 = vmatmul.mubr.bf16.gmra.mrb[0].mxu0 %v1430
    %v1778 = vpop.f32.mrb[0].mxu0
    %v1779 = vadd.f32 0.0, %v1778
    %v1780 = vpop.f32.mrb[0].mxu0
    %v1781 = vpop.f32.mrb[0].mxu0
    %v1782 = vadd.f32 0.0, %v1781
    %v1783 = vpop.f32.mrb[0].mxu0
    %1784 = vdwg.mxu0
    %1785 = vmatprep.subr.bf16.mxu0 0
    %1786 = vmatpush1.bf16.xpose.msra.mxu0 %v1438
    %1787 = vmatprep.subr.bf16.mxu0 0
    %1788 = vmatpush1.bf16.xpose.msra.mxu0 0
    %1789 = vmatprep.subr.bf16.mxu0 0
    %1790 = vmatpush1.bf16.xpose.msra.mxu0 0
    %1791 = vmatprep.subr.bf16.mxu0 0
    %1792 = vmatpush1.bf16.xpose.msra.mxu0 0
    %1793 = vmatprep.subr.bf16.mxu0 0
    %1794 = vmatpush1.bf16.xpose.msra.mxu0 0
    %1795 = vmatprep.subr.bf16.mxu0 0
    %1796 = vmatpush1.bf16.xpose.msra.mxu0 0
    %1797 = vmatprep.subr.bf16.mxu0 0
    %1798 = vmatpush1.bf16.xpose.msra.mxu0 0
    %1799 = vmatprep.subr.bf16.mxu0 0
    %1800 = vmatpush1.bf16.xpose.msra.mxu0 0
    %1801 = vmatprep.subr.bf16.mxu0 0
    %1802 = vmatpush1.bf16.xpose.msra.mxu0 0
    %1803 = vmatprep.subr.bf16.mxu0 0
    %1804 = vmatpush1.bf16.xpose.msra.mxu0 0
    %1805 = vmatprep.subr.bf16.mxu0 0
    %1806 = vmatpush1.bf16.xpose.msra.mxu0 0
    %1807 = vmatprep.subr.bf16.mxu0 0
    %1808 = vmatpush1.bf16.xpose.msra.mxu0 0
    %1809 = vmatprep.subr.bf16.mxu0 0
    %1810 = vmatpush1.bf16.xpose.msra.mxu0 0
    %1811 = vmatprep.subr.bf16.mxu0 0
    %1812 = vmatpush1.bf16.xpose.msra.mxu0 0
    %1813 = vmatprep.subr.bf16.mxu0 0
    %1814 = vmatpush1.bf16.xpose.msra.mxu0 0
    %1815 = vmatprep.subr.bf16.mxu0 0
    %1816 = vmatpush1.bf16.xpose.msra.mxu0 0
    %1817 = vmatprep.mubr.bf16.mxu0 0
    %1818 = vmatmul.mubr.bf16.gmra.mrb[0].mxu0 %v1436
    %v1819 = vpop.f32.mrb[0].mxu0
    %v1820 = vadd.f32 0.0, %v1819
    %v1821 = vpop.f32.mrb[0].mxu0
    %v1822 = vpop.f32.mrb[0].mxu0
    %v1823 = vadd.f32 0.0, %v1822
    %v1824 = vpop.f32.mrb[0].mxu0
    %1825 = vdwg.mxu0
    %1826 = vmatprep.subr.bf16.mxu0 0
    %1827 = vmatpush1.bf16.xpose.msra.mxu0 %v1444
    %1828 = vmatprep.subr.bf16.mxu0 0
    %1829 = vmatpush1.bf16.xpose.msra.mxu0 0
    %1830 = vmatprep.subr.bf16.mxu0 0
    %1831 = vmatpush1.bf16.xpose.msra.mxu0 0
    %1832 = vmatprep.subr.bf16.mxu0 0
    %1833 = vmatpush1.bf16.xpose.msra.mxu0 0
    %1834 = vmatprep.subr.bf16.mxu0 0
    %1835 = vmatpush1.bf16.xpose.msra.mxu0 0
    %1836 = vmatprep.subr.bf16.mxu0 0
    %1837 = vmatpush1.bf16.xpose.msra.mxu0 0
    %1838 = vmatprep.subr.bf16.mxu0 0
    %1839 = vmatpush1.bf16.xpose.msra.mxu0 0
    %1840 = vmatprep.subr.bf16.mxu0 0
    %1841 = vmatpush1.bf16.xpose.msra.mxu0 0
    %1842 = vmatprep.subr.bf16.mxu0 0
    %1843 = vmatpush1.bf16.xpose.msra.mxu0 0
    %1844 = vmatprep.subr.bf16.mxu0 0
    %1845 = vmatpush1.bf16.xpose.msra.mxu0 0
    %1846 = vmatprep.subr.bf16.mxu0 0
    %1847 = vmatpush1.bf16.xpose.msra.mxu0 0
    %1848 = vmatprep.subr.bf16.mxu0 0
    %1849 = vmatpush1.bf16.xpose.msra.mxu0 0
    %1850 = vmatprep.subr.bf16.mxu0 0
    %1851 = vmatpush1.bf16.xpose.msra.mxu0 0
    %1852 = vmatprep.subr.bf16.mxu0 0
    %1853 = vmatpush1.bf16.xpose.msra.mxu0 0
    %1854 = vmatprep.subr.bf16.mxu0 0
    %1855 = vmatpush1.bf16.xpose.msra.mxu0 0
    %1856 = vmatprep.subr.bf16.mxu0 0
    %1857 = vmatpush1.bf16.xpose.msra.mxu0 0
    %1858 = vmatprep.mubr.bf16.mxu0 0
    %1859 = vmatmul.mubr.bf16.gmra.mrb[0].mxu0 %v1442
    %v1860 = vpop.f32.mrb[0].mxu0
    %v1861 = vadd.f32 0.0, %v1860
    %v1862 = vpop.f32.mrb[0].mxu0
    %v1863 = vpop.f32.mrb[0].mxu0
    %v1864 = vadd.f32 0.0, %v1863
    %v1865 = vpop.f32.mrb[0].mxu0
    %1866 = vdwg.mxu0
    %1867 = vmatprep.subr.bf16.mxu0 0
    %1868 = vmatpush1.bf16.xpose.msra.mxu0 %v1450
    %1869 = vmatprep.subr.bf16.mxu0 0
    %1870 = vmatpush1.bf16.xpose.msra.mxu0 0
    %1871 = vmatprep.subr.bf16.mxu0 0
    %1872 = vmatpush1.bf16.xpose.msra.mxu0 0
    %1873 = vmatprep.subr.bf16.mxu0 0
    %1874 = vmatpush1.bf16.xpose.msra.mxu0 0
    %1875 = vmatprep.subr.bf16.mxu0 0
    %1876 = vmatpush1.bf16.xpose.msra.mxu0 0
    %1877 = vmatprep.subr.bf16.mxu0 0
    %1878 = vmatpush1.bf16.xpose.msra.mxu0 0
    %1879 = vmatprep.subr.bf16.mxu0 0
    %1880 = vmatpush1.bf16.xpose.msra.mxu0 0
    %1881 = vmatprep.subr.bf16.mxu0 0
    %1882 = vmatpush1.bf16.xpose.msra.mxu0 0
    %1883 = vmatprep.subr.bf16.mxu0 0
    %1884 = vmatpush1.bf16.xpose.msra.mxu0 0
    %1885 = vmatprep.subr.bf16.mxu0 0
    %1886 = vmatpush1.bf16.xpose.msra.mxu0 0
    %1887 = vmatprep.subr.bf16.mxu0 0
    %1888 = vmatpush1.bf16.xpose.msra.mxu0 0
    %1889 = vmatprep.subr.bf16.mxu0 0
    %1890 = vmatpush1.bf16.xpose.msra.mxu0 0
    %1891 = vmatprep.subr.bf16.mxu0 0
    %1892 = vmatpush1.bf16.xpose.msra.mxu0 0
    %1893 = vmatprep.subr.bf16.mxu0 0
    %1894 = vmatpush1.bf16.xpose.msra.mxu0 0
    %1895 = vmatprep.subr.bf16.mxu0 0
    %1896 = vmatpush1.bf16.xpose.msra.mxu0 0
    %1897 = vmatprep.subr.bf16.mxu0 0
    %1898 = vmatpush1.bf16.xpose.msra.mxu0 0
    %1899 = vmatprep.mubr.bf16.mxu0 0
    %1900 = vmatmul.mubr.bf16.gmra.mrb[0].mxu0 %v1448
    %v1901 = vpop.f32.mrb[0].mxu0
    %v1902 = vadd.f32 0.0, %v1901
    %v1903 = vpop.f32.mrb[0].mxu0
    %v1904 = vpop.f32.mrb[0].mxu0
    %v1905 = vadd.f32 0.0, %v1904
    %v1906 = vpop.f32.mrb[0].mxu0
    %1907 = vdwg.mxu0
    %1908 = vmatprep.subr.bf16.mxu0 0
    %1909 = vmatpush1.bf16.xpose.msra.mxu0 %v1456
    %1910 = vmatprep.subr.bf16.mxu0 0
    %1911 = vmatpush1.bf16.xpose.msra.mxu0 0
    %1912 = vmatprep.subr.bf16.mxu0 0
    %1913 = vmatpush1.bf16.xpose.msra.mxu0 0
    %1914 = vmatprep.subr.bf16.mxu0 0
    %1915 = vmatpush1.bf16.xpose.msra.mxu0 0
    %1916 = vmatprep.subr.bf16.mxu0 0
    %1917 = vmatpush1.bf16.xpose.msra.mxu0 0
    %1918 = vmatprep.subr.bf16.mxu0 0
    %1919 = vmatpush1.bf16.xpose.msra.mxu0 0
    %1920 = vmatprep.subr.bf16.mxu0 0
    %1921 = vmatpush1.bf16.xpose.msra.mxu0 0
    %1922 = vmatprep.subr.bf16.mxu0 0
    %1923 = vmatpush1.bf16.xpose.msra.mxu0 0
    %1924 = vmatprep.subr.bf16.mxu0 0
    %1925 = vmatpush1.bf16.xpose.msra.mxu0 0
    %1926 = vmatprep.subr.bf16.mxu0 0
    %1927 = vmatpush1.bf16.xpose.msra.mxu0 0
    %1928 = vmatprep.subr.bf16.mxu0 0
    %1929 = vmatpush1.bf16.xpose.msra.mxu0 0
    %1930 = vmatprep.subr.bf16.mxu0 0
    %1931 = vmatpush1.bf16.xpose.msra.mxu0 0
    %1932 = vmatprep.subr.bf16.mxu0 0
    %1933 = vmatpush1.bf16.xpose.msra.mxu0 0
    %1934 = vmatprep.subr.bf16.mxu0 0
    %1935 = vmatpush1.bf16.xpose.msra.mxu0 0
    %1936 = vmatprep.subr.bf16.mxu0 0
    %1937 = vmatpush1.bf16.xpose.msra.mxu0 0
    %1938 = vmatprep.subr.bf16.mxu0 0
    %1939 = vmatpush1.bf16.xpose.msra.mxu0 0
    %1940 = vmatprep.mubr.bf16.mxu0 0
    %1941 = vmatmul.mubr.bf16.gmra.mrb[0].mxu0 %v1454
    %v1942 = vpop.f32.mrb[0].mxu0
    %v1943 = vadd.f32 0.0, %v1942
    %v1944 = vpop.f32.mrb[0].mxu0
    %v1945 = vpop.f32.mrb[0].mxu0
    %v1946 = vadd.f32 0.0, %v1945
    %v1947 = vpop.f32.mrb[0].mxu0
    %1948 = vdwg.mxu0
    %1949 = vmatprep.subr.bf16.mxu0 0
    %1950 = vmatpush1.bf16.xpose.msra.mxu0 %v1462
    %1951 = vmatprep.subr.bf16.mxu0 0
    %1952 = vmatpush1.bf16.xpose.msra.mxu0 0
    %1953 = vmatprep.subr.bf16.mxu0 0
    %1954 = vmatpush1.bf16.xpose.msra.mxu0 0
    %1955 = vmatprep.subr.bf16.mxu0 0
    %1956 = vmatpush1.bf16.xpose.msra.mxu0 0
    %1957 = vmatprep.subr.bf16.mxu0 0
    %1958 = vmatpush1.bf16.xpose.msra.mxu0 0
    %1959 = vmatprep.subr.bf16.mxu0 0
    %1960 = vmatpush1.bf16.xpose.msra.mxu0 0
    %1961 = vmatprep.subr.bf16.mxu0 0
    %1962 = vmatpush1.bf16.xpose.msra.mxu0 0
    %1963 = vmatprep.subr.bf16.mxu0 0
    %1964 = vmatpush1.bf16.xpose.msra.mxu0 0
    %1965 = vmatprep.subr.bf16.mxu0 0
    %1966 = vmatpush1.bf16.xpose.msra.mxu0 0
    %1967 = vmatprep.subr.bf16.mxu0 0
    %1968 = vmatpush1.bf16.xpose.msra.mxu0 0
    %1969 = vmatprep.subr.bf16.mxu0 0
    %1970 = vmatpush1.bf16.xpose.msra.mxu0 0
    %1971 = vmatprep.subr.bf16.mxu0 0
    %1972 = vmatpush1.bf16.xpose.msra.mxu0 0
    %1973 = vmatprep.subr.bf16.mxu0 0
    %1974 = vmatpush1.bf16.xpose.msra.mxu0 0
    %1975 = vmatprep.subr.bf16.mxu0 0
    %1976 = vmatpush1.bf16.xpose.msra.mxu0 0
    %1977 = vmatprep.subr.bf16.mxu0 0
    %1978 = vmatpush1.bf16.xpose.msra.mxu0 0
    %1979 = vmatprep.subr.bf16.mxu0 0
    %1980 = vmatpush1.bf16.xpose.msra.mxu0 0
    %1981 = vmatprep.mubr.bf16.mxu0 0
    %1982 = vmatmul.mubr.bf16.gmra.mrb[0].mxu0 %v1460
    %v1983 = vpop.f32.mrb[0].mxu0
    %v1984 = vadd.f32 0.0, %v1983
    %v1985 = vpop.f32.mrb[0].mxu0
    %v1986 = vpop.f32.mrb[0].mxu0
    %v1987 = vadd.f32 0.0, %v1986
    %v1988 = vpop.f32.mrb[0].mxu0
    %1989 = vdwg.mxu0
    %1990 = vmatprep.subr.bf16.mxu0 0
    %1991 = vmatpush1.bf16.xpose.msra.mxu0 %v1468
    %1992 = vmatprep.subr.bf16.mxu0 0
    %1993 = vmatpush1.bf16.xpose.msra.mxu0 0
    %1994 = vmatprep.subr.bf16.mxu0 0
    %1995 = vmatpush1.bf16.xpose.msra.mxu0 0
    %1996 = vmatprep.subr.bf16.mxu0 0
    %1997 = vmatpush1.bf16.xpose.msra.mxu0 0
    %1998 = vmatprep.subr.bf16.mxu0 0
    %1999 = vmatpush1.bf16.xpose.msra.mxu0 0
    %2000 = vmatprep.subr.bf16.mxu0 0
    %2001 = vmatpush1.bf16.xpose.msra.mxu0 0
    %2002 = vmatprep.subr.bf16.mxu0 0
    %2003 = vmatpush1.bf16.xpose.msra.mxu0 0
    %2004 = vmatprep.subr.bf16.mxu0 0
    %2005 = vmatpush1.bf16.xpose.msra.mxu0 0
    %2006 = vmatprep.subr.bf16.mxu0 0
    %2007 = vmatpush1.bf16.xpose.msra.mxu0 0
    %2008 = vmatprep.subr.bf16.mxu0 0
    %2009 = vmatpush1.bf16.xpose.msra.mxu0 0
    %2010 = vmatprep.subr.bf16.mxu0 0
    %2011 = vmatpush1.bf16.xpose.msra.mxu0 0
    %2012 = vmatprep.subr.bf16.mxu0 0
    %2013 = vmatpush1.bf16.xpose.msra.mxu0 0
    %2014 = vmatprep.subr.bf16.mxu0 0
    %2015 = vmatpush1.bf16.xpose.msra.mxu0 0
    %2016 = vmatprep.subr.bf16.mxu0 0
    %2017 = vmatpush1.bf16.xpose.msra.mxu0 0
    %2018 = vmatprep.subr.bf16.mxu0 0
    %2019 = vmatpush1.bf16.xpose.msra.mxu0 0
    %2020 = vmatprep.subr.bf16.mxu0 0
    %2021 = vmatpush1.bf16.xpose.msra.mxu0 0
    %2022 = vmatprep.mubr.bf16.mxu0 0
    %2023 = vmatmul.mubr.bf16.gmra.mrb[0].mxu0 %v1466
    %v2024 = vpop.f32.mrb[0].mxu0
    %v2025 = vadd.f32 0.0, %v2024
    %v2026 = vpop.f32.mrb[0].mxu0
    %v2027 = vpop.f32.mrb[0].mxu0
    %v2028 = vadd.f32 0.0, %v2027
    %v2029 = vpop.f32.mrb[0].mxu0
    %2030 = vdwg.mxu0
    %2031 = vmatprep.subr.bf16.mxu0 0
    %2032 = vmatpush1.bf16.xpose.msra.mxu0 %v1474
    %2033 = vmatprep.subr.bf16.mxu0 0
    %2034 = vmatpush1.bf16.xpose.msra.mxu0 0
    %2035 = vmatprep.subr.bf16.mxu0 0
    %2036 = vmatpush1.bf16.xpose.msra.mxu0 0
    %2037 = vmatprep.subr.bf16.mxu0 0
    %2038 = vmatpush1.bf16.xpose.msra.mxu0 0
    %2039 = vmatprep.subr.bf16.mxu0 0
    %2040 = vmatpush1.bf16.xpose.msra.mxu0 0
    %2041 = vmatprep.subr.bf16.mxu0 0
    %2042 = vmatpush1.bf16.xpose.msra.mxu0 0
    %2043 = vmatprep.subr.bf16.mxu0 0
    %2044 = vmatpush1.bf16.xpose.msra.mxu0 0
    %2045 = vmatprep.subr.bf16.mxu0 0
    %2046 = vmatpush1.bf16.xpose.msra.mxu0 0
    %2047 = vmatprep.subr.bf16.mxu0 0
    %2048 = vmatpush1.bf16.xpose.msra.mxu0 0
    %2049 = vmatprep.subr.bf16.mxu0 0
    %2050 = vmatpush1.bf16.xpose.msra.mxu0 0
    %2051 = vmatprep.subr.bf16.mxu0 0
    %2052 = vmatpush1.bf16.xpose.msra.mxu0 0
    %2053 = vmatprep.subr.bf16.mxu0 0
    %2054 = vmatpush1.bf16.xpose.msra.mxu0 0
    %2055 = vmatprep.subr.bf16.mxu0 0
    %2056 = vmatpush1.bf16.xpose.msra.mxu0 0
    %2057 = vmatprep.subr.bf16.mxu0 0
    %2058 = vmatpush1.bf16.xpose.msra.mxu0 0
    %2059 = vmatprep.subr.bf16.mxu0 0
    %2060 = vmatpush1.bf16.xpose.msra.mxu0 0
    %2061 = vmatprep.subr.bf16.mxu0 0
    %2062 = vmatpush1.bf16.xpose.msra.mxu0 0
    %2063 = vmatprep.mubr.bf16.mxu0 0
    %2064 = vmatmul.mubr.bf16.gmra.mrb[0].mxu0 %v1472
    %v2065 = vpop.f32.mrb[0].mxu0
    %v2066 = vadd.f32 0.0, %v2065
    %v2067 = vpop.f32.mrb[0].mxu0
    %v2068 = vpop.f32.mrb[0].mxu0
    %v2069 = vadd.f32 0.0, %v2068
    %v2070 = vpop.f32.mrb[0].mxu0
    %2071 = vdwg.mxu0
    %2072 = vmatprep.subr.bf16.mxu0 0
    %2073 = vmatpush1.bf16.xpose.msra.mxu0 %v1480
    %2074 = vmatprep.subr.bf16.mxu0 0
    %2075 = vmatpush1.bf16.xpose.msra.mxu0 0
    %2076 = vmatprep.subr.bf16.mxu0 0
    %2077 = vmatpush1.bf16.xpose.msra.mxu0 0
    %2078 = vmatprep.subr.bf16.mxu0 0
    %2079 = vmatpush1.bf16.xpose.msra.mxu0 0
    %2080 = vmatprep.subr.bf16.mxu0 0
    %2081 = vmatpush1.bf16.xpose.msra.mxu0 0
    %2082 = vmatprep.subr.bf16.mxu0 0
    %2083 = vmatpush1.bf16.xpose.msra.mxu0 0
    %2084 = vmatprep.subr.bf16.mxu0 0
    %2085 = vmatpush1.bf16.xpose.msra.mxu0 0
    %2086 = vmatprep.subr.bf16.mxu0 0
    %2087 = vmatpush1.bf16.xpose.msra.mxu0 0
    %2088 = vmatprep.subr.bf16.mxu0 0
    %2089 = vmatpush1.bf16.xpose.msra.mxu0 0
    %2090 = vmatprep.subr.bf16.mxu0 0
    %2091 = vmatpush1.bf16.xpose.msra.mxu0 0
    %2092 = vmatprep.subr.bf16.mxu0 0
    %2093 = vmatpush1.bf16.xpose.msra.mxu0 0
    %2094 = vmatprep.subr.bf16.mxu0 0
    %2095 = vmatpush1.bf16.xpose.msra.mxu0 0
    %2096 = vmatprep.subr.bf16.mxu0 0
    %2097 = vmatpush1.bf16.xpose.msra.mxu0 0
    %2098 = vmatprep.subr.bf16.mxu0 0
    %2099 = vmatpush1.bf16.xpose.msra.mxu0 0
    %2100 = vmatprep.subr.bf16.mxu0 0
    %2101 = vmatpush1.bf16.xpose.msra.mxu0 0
    %2102 = vmatprep.subr.bf16.mxu0 0
    %2103 = vmatpush1.bf16.xpose.msra.mxu0 0
    %2104 = vmatprep.mubr.bf16.mxu0 0
    %2105 = vmatmul.mubr.bf16.gmra.mrb[0].mxu0 %v1478
    %v2106 = vpop.f32.mrb[0].mxu0
    %v2107 = vadd.f32 0.0, %v2106
    %v2108 = vpop.f32.mrb[0].mxu0
    %v2109 = vpop.f32.mrb[0].mxu0
    %v2110 = vadd.f32 0.0, %v2109
    %v2111 = vpop.f32.mrb[0].mxu0
    %2112 = vdwg.mxu0
    %2113 = vmatprep.subr.bf16.mxu0 0
    %2114 = vmatpush1.bf16.xpose.msra.mxu0 %v1486
    %2115 = vmatprep.subr.bf16.mxu0 0
    %2116 = vmatpush1.bf16.xpose.msra.mxu0 0
    %2117 = vmatprep.subr.bf16.mxu0 0
    %2118 = vmatpush1.bf16.xpose.msra.mxu0 0
    %2119 = vmatprep.subr.bf16.mxu0 0
    %2120 = vmatpush1.bf16.xpose.msra.mxu0 0
    %2121 = vmatprep.subr.bf16.mxu0 0
    %2122 = vmatpush1.bf16.xpose.msra.mxu0 0
    %2123 = vmatprep.subr.bf16.mxu0 0
    %2124 = vmatpush1.bf16.xpose.msra.mxu0 0
    %2125 = vmatprep.subr.bf16.mxu0 0
    %2126 = vmatpush1.bf16.xpose.msra.mxu0 0
    %2127 = vmatprep.subr.bf16.mxu0 0
    %2128 = vmatpush1.bf16.xpose.msra.mxu0 0
    %2129 = vmatprep.subr.bf16.mxu0 0
    %2130 = vmatpush1.bf16.xpose.msra.mxu0 0
    %2131 = vmatprep.subr.bf16.mxu0 0
    %2132 = vmatpush1.bf16.xpose.msra.mxu0 0
    %2133 = vmatprep.subr.bf16.mxu0 0
    %2134 = vmatpush1.bf16.xpose.msra.mxu0 0
    %2135 = vmatprep.subr.bf16.mxu0 0
    %2136 = vmatpush1.bf16.xpose.msra.mxu0 0
    %2137 = vmatprep.subr.bf16.mxu0 0
    %2138 = vmatpush1.bf16.xpose.msra.mxu0 0
    %2139 = vmatprep.subr.bf16.mxu0 0
    %2140 = vmatpush1.bf16.xpose.msra.mxu0 0
    %2141 = vmatprep.subr.bf16.mxu0 0
    %2142 = vmatpush1.bf16.xpose.msra.mxu0 0
    %2143 = vmatprep.subr.bf16.mxu0 0
    %2144 = vmatpush1.bf16.xpose.msra.mxu0 0
    %2145 = vmatprep.mubr.bf16.mxu0 0
    %2146 = vmatmul.mubr.bf16.gmra.mrb[0].mxu0 %v1484
    %v2147 = vpop.f32.mrb[0].mxu0
    %v2148 = vadd.f32 0.0, %v2147
    %v2149 = vpop.f32.mrb[0].mxu0
    %v2150 = vpop.f32.mrb[0].mxu0
    %v2151 = vadd.f32 0.0, %v2150
    %v2152 = vpop.f32.mrb[0].mxu0
    %2153 = vdwg.mxu0
    %v2154 = vsel %vm1495, 1, 0
    %v2155 = vsel %vm1496, 1, 0
    %vm2156 = vcmp.eq.s32.totalorder %v2154, 1
    %vm2157 = vcmp.eq.s32.totalorder %v2155, 1
    %v2158 = vsel %vm2156, %v1533, -1e+30
    %v2159 = vsel %vm2157, %v1536, -1e+30
    %v2160 = vsel %vm2156, %v1574, -1e+30
    %v2161 = vsel %vm2157, %v1577, -1e+30
    %v2162 = vsel %vm2156, %v1615, -1e+30
    %v2163 = vsel %vm2157, %v1618, -1e+30
    %v2164 = vsel %vm2156, %v1656, -1e+30
    %v2165 = vsel %vm2157, %v1659, -1e+30
    %v2166 = vsel %vm2156, %v1697, -1e+30
    %v2167 = vsel %vm2157, %v1700, -1e+30
    %v2168 = vsel %vm2156, %v1738, -1e+30
    %v2169 = vsel %vm2157, %v1741, -1e+30
    %v2170 = vsel %vm2156, %v1779, -1e+30
    %v2171 = vsel %vm2157, %v1782, -1e+30
    %v2172 = vsel %vm2156, %v1820, -1e+30
    %v2173 = vsel %vm2157, %v1823, -1e+30
    %v2174 = vsel %vm2156, %v1861, -1e+30
    %v2175 = vsel %vm2157, %v1864, -1e+30
    %v2176 = vsel %vm2156, %v1902, -1e+30
    %v2177 = vsel %vm2157, %v1905, -1e+30
    %v2178 = vsel %vm2156, %v1943, -1e+30
    %v2179 = vsel %vm2157, %v1946, -1e+30
    %v2180 = vsel %vm2156, %v1984, -1e+30
    %v2181 = vsel %vm2157, %v1987, -1e+30
    %v2182 = vsel %vm2156, %v2025, -1e+30
    %v2183 = vsel %vm2157, %v2028, -1e+30
    %v2184 = vsel %vm2156, %v2066, -1e+30
    %v2185 = vsel %vm2157, %v2069, -1e+30
    %v2186 = vsel %vm2156, %v2107, -1e+30
    %v2187 = vsel %vm2157, %v2110, -1e+30
    %v2188 = vsel %vm2156, %v2148, -1e+30
    %v2189 = vsel %vm2157, %v2151, -1e+30
    %vm2190 = vcmask 130048
    %v2191 = vsel %vm2190, %v2158, -inf
    %2192 = vmax.xlane.f32.xlu0 %v2191
    %v2193 = vpop.xlane.xlu0 %2192
    %v2194 = vsel %vm2190, %v2159, -inf
    %2195 = vmax.xlane.f32.xlu0 %v2194
    %v2196 = vpop.xlane.xlu0 %2195
    %v2197 = vsel %vm2190, %v2160, -inf
    %2198 = vmax.xlane.f32.xlu0 %v2197
    %v2199 = vpop.xlane.xlu0 %2198
    %v2200 = vsel %vm2190, %v2161, -inf
    %2201 = vmax.xlane.f32.xlu0 %v2200
    %v2202 = vpop.xlane.xlu0 %2201
    %v2203 = vsel %vm2190, %v2162, -inf
    %2204 = vmax.xlane.f32.xlu0 %v2203
    %v2205 = vpop.xlane.xlu0 %2204
    %v2206 = vsel %vm2190, %v2163, -inf
    %2207 = vmax.xlane.f32.xlu0 %v2206
    %v2208 = vpop.xlane.xlu0 %2207
    %v2209 = vsel %vm2190, %v2164, -inf
    %2210 = vmax.xlane.f32.xlu0 %v2209
    %v2211 = vpop.xlane.xlu0 %2210
    %v2212 = vsel %vm2190, %v2165, -inf
    %2213 = vmax.xlane.f32.xlu0 %v2212
    %v2214 = vpop.xlane.xlu0 %2213
    %v2215 = vsel %vm2190, %v2166, -inf
    %2216 = vmax.xlane.f32.xlu0 %v2215
    %v2217 = vpop.xlane.xlu0 %2216
    %v2218 = vsel %vm2190, %v2167, -inf
    %2219 = vmax.xlane.f32.xlu0 %v2218
    %v2220 = vpop.xlane.xlu0 %2219
    %v2221 = vsel %vm2190, %v2168, -inf
    %2222 = vmax.xlane.f32.xlu0 %v2221
    %v2223 = vpop.xlane.xlu0 %2222
    %v2224 = vsel %vm2190, %v2169, -inf
    %2225 = vmax.xlane.f32.xlu0 %v2224
    %v2226 = vpop.xlane.xlu0 %2225
    %v2227 = vsel %vm2190, %v2170, -inf
    %2228 = vmax.xlane.f32.xlu0 %v2227
    %v2229 = vpop.xlane.xlu0 %2228
    %v2230 = vsel %vm2190, %v2171, -inf
    %2231 = vmax.xlane.f32.xlu0 %v2230
    %v2232 = vpop.xlane.xlu0 %2231
    %v2233 = vsel %vm2190, %v2172, -inf
    %2234 = vmax.xlane.f32.xlu0 %v2233
    %v2235 = vpop.xlane.xlu0 %2234
    %v2236 = vsel %vm2190, %v2173, -inf
    %2237 = vmax.xlane.f32.xlu0 %v2236
    %v2238 = vpop.xlane.xlu0 %2237
    %v2239 = vsel %vm2190, %v2174, -inf
    %2240 = vmax.xlane.f32.xlu0 %v2239
    %v2241 = vpop.xlane.xlu0 %2240
    %v2242 = vsel %vm2190, %v2175, -inf
    %2243 = vmax.xlane.f32.xlu0 %v2242
    %v2244 = vpop.xlane.xlu0 %2243
    %v2245 = vsel %vm2190, %v2176, -inf
    %2246 = vmax.xlane.f32.xlu0 %v2245
    %v2247 = vpop.xlane.xlu0 %2246
    %v2248 = vsel %vm2190, %v2177, -inf
    %2249 = vmax.xlane.f32.xlu0 %v2248
    %v2250 = vpop.xlane.xlu0 %2249
    %v2251 = vsel %vm2190, %v2178, -inf
    %2252 = vmax.xlane.f32.xlu0 %v2251
    %v2253 = vpop.xlane.xlu0 %2252
    %v2254 = vsel %vm2190, %v2179, -inf
    %2255 = vmax.xlane.f32.xlu0 %v2254
    %v2256 = vpop.xlane.xlu0 %2255
    %v2257 = vsel %vm2190, %v2180, -inf
    %2258 = vmax.xlane.f32.xlu0 %v2257
    %v2259 = vpop.xlane.xlu0 %2258
    %v2260 = vsel %vm2190, %v2181, -inf
    %2261 = vmax.xlane.f32.xlu0 %v2260
    %v2262 = vpop.xlane.xlu0 %2261
    %v2263 = vsel %vm2190, %v2182, -inf
    %2264 = vmax.xlane.f32.xlu0 %v2263
    %v2265 = vpop.xlane.xlu0 %2264
    %v2266 = vsel %vm2190, %v2183, -inf
    %2267 = vmax.xlane.f32.xlu0 %v2266
    %v2268 = vpop.xlane.xlu0 %2267
    %v2269 = vsel %vm2190, %v2184, -inf
    %2270 = vmax.xlane.f32.xlu0 %v2269
    %v2271 = vpop.xlane.xlu0 %2270
    %v2272 = vsel %vm2190, %v2185, -inf
    %2273 = vmax.xlane.f32.xlu0 %v2272
    %v2274 = vpop.xlane.xlu0 %2273
    %v2275 = vsel %vm2190, %v2186, -inf
    %2276 = vmax.xlane.f32.xlu0 %v2275
    %v2277 = vpop.xlane.xlu0 %2276
    %v2278 = vsel %vm2190, %v2187, -inf
    %2279 = vmax.xlane.f32.xlu0 %v2278
    %v2280 = vpop.xlane.xlu0 %2279
    %v2281 = vsel %vm2190, %v2188, -inf
    %2282 = vmax.xlane.f32.xlu0 %v2281
    %v2283 = vpop.xlane.xlu0 %2282
    %v2284 = vsel %vm2190, %v2189, -inf
    %2285 = vmax.xlane.f32.xlu0 %v2284
    %v2286 = vpop.xlane.xlu0 %2285
    %v2287 = vsub.f32 %v2158, %v2193
    %v2288 = vsub.f32 %v2159, %v2196
    %v2289 = vsub.f32 %v2160, %v2199
    %v2290 = vsub.f32 %v2161, %v2202
    %v2291 = vsub.f32 %v2162, %v2205
    %v2292 = vsub.f32 %v2163, %v2208
    %v2293 = vsub.f32 %v2164, %v2211
    %v2294 = vsub.f32 %v2165, %v2214
    %v2295 = vsub.f32 %v2166, %v2217
    %v2296 = vsub.f32 %v2167, %v2220
    %v2297 = vsub.f32 %v2168, %v2223
    %v2298 = vsub.f32 %v2169, %v2226
    %v2299 = vsub.f32 %v2170, %v2229
    %v2300 = vsub.f32 %v2171, %v2232
    %v2301 = vsub.f32 %v2172, %v2235
    %v2302 = vsub.f32 %v2173, %v2238
    %v2303 = vsub.f32 %v2174, %v2241
    %v2304 = vsub.f32 %v2175, %v2244
    %v2305 = vsub.f32 %v2176, %v2247
    %v2306 = vsub.f32 %v2177, %v2250
    %v2307 = vsub.f32 %v2178, %v2253
    %v2308 = vsub.f32 %v2179, %v2256
    %v2309 = vsub.f32 %v2180, %v2259
    %v2310 = vsub.f32 %v2181, %v2262
    %v2311 = vsub.f32 %v2182, %v2265
    %v2312 = vsub.f32 %v2183, %v2268
    %v2313 = vsub.f32 %v2184, %v2271
    %v2314 = vsub.f32 %v2185, %v2274
    %v2315 = vsub.f32 %v2186, %v2277
    %v2316 = vsub.f32 %v2187, %v2280
    %v2317 = vsub.f32 %v2188, %v2283
    %v2318 = vsub.f32 %v2189, %v2286
    %v2319 = vmul.f32 %v2287, 1.442695
    %v2320 = vpow.pop %v2319
    %v2321 = vmul.f32 %v2288, 1.442695
    %v2322 = vpow.pop %v2321
    %v2323 = vmul.f32 %v2289, 1.442695
    %v2324 = vpow.pop %v2323
    %v2325 = vmul.f32 %v2290, 1.442695
    %v2326 = vpow.pop %v2325
    %v2327 = vmul.f32 %v2291, 1.442695
    %v2328 = vpow.pop %v2327
    %v2329 = vmul.f32 %v2292, 1.442695
    %v2330 = vpow.pop %v2329
    %v2331 = vmul.f32 %v2293, 1.442695
    %v2332 = vpow.pop %v2331
    %v2333 = vmul.f32 %v2294, 1.442695
    %v2334 = vpow.pop %v2333
    %v2335 = vmul.f32 %v2295, 1.442695
    %v2336 = vpow.pop %v2335
    %v2337 = vmul.f32 %v2296, 1.442695
    %v2338 = vpow.pop %v2337
    %v2339 = vmul.f32 %v2297, 1.442695
    %v2340 = vpow.pop %v2339
    %v2341 = vmul.f32 %v2298, 1.442695
    %v2342 = vpow.pop %v2341
    %v2343 = vmul.f32 %v2299, 1.442695
    %v2344 = vpow.pop %v2343
    %v2345 = vmul.f32 %v2300, 1.442695
    %v2346 = vpow.pop %v2345
    %v2347 = vmul.f32 %v2301, 1.442695
    %v2348 = vpow.pop %v2347
    %v2349 = vmul.f32 %v2302, 1.442695
    %v2350 = vpow.pop %v2349
    %v2351 = vmul.f32 %v2303, 1.442695
    %v2352 = vpow.pop %v2351
    %v2353 = vmul.f32 %v2304, 1.442695
    %v2354 = vpow.pop %v2353
    %v2355 = vmul.f32 %v2305, 1.442695
    %v2356 = vpow.pop %v2355
    %v2357 = vmul.f32 %v2306, 1.442695
    %v2358 = vpow.pop %v2357
    %v2359 = vmul.f32 %v2307, 1.442695
    %v2360 = vpow.pop %v2359
    %v2361 = vmul.f32 %v2308, 1.442695
    %v2362 = vpow.pop %v2361
    %v2363 = vmul.f32 %v2309, 1.442695
    %v2364 = vpow.pop %v2363
    %v2365 = vmul.f32 %v2310, 1.442695
    %v2366 = vpow.pop %v2365
    %v2367 = vmul.f32 %v2311, 1.442695
    %v2368 = vpow.pop %v2367
    %v2369 = vmul.f32 %v2312, 1.442695
    %v2370 = vpow.pop %v2369
    %v2371 = vmul.f32 %v2313, 1.442695
    %v2372 = vpow.pop %v2371
    %v2373 = vmul.f32 %v2314, 1.442695
    %v2374 = vpow.pop %v2373
    %v2375 = vmul.f32 %v2315, 1.442695
    %v2376 = vpow.pop %v2375
    %v2377 = vmul.f32 %v2316, 1.442695
    %v2378 = vpow.pop %v2377
    %v2379 = vmul.f32 %v2317, 1.442695
    %v2380 = vpow.pop %v2379
    %v2381 = vmul.f32 %v2318, 1.442695
    %v2382 = vpow.pop %v2381
    %v2383 = vsel %vm2190, %v2320, 0.0
    %2384 = vadd.xlane.f32.xlu0 %v2383
    %v2385 = vpop.xlane.xlu0 %2384
    %v2386 = vsel %vm2190, %v2322, 0.0
    %2387 = vadd.xlane.f32.xlu0 %v2386
    %v2388 = vpop.xlane.xlu0 %2387
    %v2389 = vsel %vm2190, %v2324, 0.0
    %2390 = vadd.xlane.f32.xlu0 %v2389
    %v2391 = vpop.xlane.xlu0 %2390
    %v2392 = vsel %vm2190, %v2326, 0.0
    %2393 = vadd.xlane.f32.xlu0 %v2392
    %v2394 = vpop.xlane.xlu0 %2393
    %v2395 = vsel %vm2190, %v2328, 0.0
    %2396 = vadd.xlane.f32.xlu0 %v2395
    %v2397 = vpop.xlane.xlu0 %2396
    %v2398 = vsel %vm2190, %v2330, 0.0
    %2399 = vadd.xlane.f32.xlu0 %v2398
    %v2400 = vpop.xlane.xlu0 %2399
    %v2401 = vsel %vm2190, %v2332, 0.0
    %2402 = vadd.xlane.f32.xlu0 %v2401
    %v2403 = vpop.xlane.xlu0 %2402
    %v2404 = vsel %vm2190, %v2334, 0.0
    %2405 = vadd.xlane.f32.xlu0 %v2404
    %v2406 = vpop.xlane.xlu0 %2405
    %v2407 = vsel %vm2190, %v2336, 0.0
    %2408 = vadd.xlane.f32.xlu0 %v2407
    %v2409 = vpop.xlane.xlu0 %2408
    %v2410 = vsel %vm2190, %v2338, 0.0
    %2411 = vadd.xlane.f32.xlu0 %v2410
    %v2412 = vpop.xlane.xlu0 %2411
    %v2413 = vsel %vm2190, %v2340, 0.0
    %2414 = vadd.xlane.f32.xlu0 %v2413
    %v2415 = vpop.xlane.xlu0 %2414
    %v2416 = vsel %vm2190, %v2342, 0.0
    %2417 = vadd.xlane.f32.xlu0 %v2416
    %v2418 = vpop.xlane.xlu0 %2417
    %v2419 = vsel %vm2190, %v2344, 0.0
    %2420 = vadd.xlane.f32.xlu0 %v2419
    %v2421 = vpop.xlane.xlu0 %2420
    %v2422 = vsel %vm2190, %v2346, 0.0
    %2423 = vadd.xlane.f32.xlu0 %v2422
    %v2424 = vpop.xlane.xlu0 %2423
    %v2425 = vsel %vm2190, %v2348, 0.0
    %2426 = vadd.xlane.f32.xlu0 %v2425
    %v2427 = vpop.xlane.xlu0 %2426
    %v2428 = vsel %vm2190, %v2350, 0.0
    %2429 = vadd.xlane.f32.xlu0 %v2428
    %v2430 = vpop.xlane.xlu0 %2429
    %v2431 = vsel %vm2190, %v2352, 0.0
    %2432 = vadd.xlane.f32.xlu0 %v2431
    %v2433 = vpop.xlane.xlu0 %2432
    %v2434 = vsel %vm2190, %v2354, 0.0
    %2435 = vadd.xlane.f32.xlu0 %v2434
    %v2436 = vpop.xlane.xlu0 %2435
    %v2437 = vsel %vm2190, %v2356, 0.0
    %2438 = vadd.xlane.f32.xlu0 %v2437
    %v2439 = vpop.xlane.xlu0 %2438
    %v2440 = vsel %vm2190, %v2358, 0.0
    %2441 = vadd.xlane.f32.xlu0 %v2440
    %v2442 = vpop.xlane.xlu0 %2441
    %v2443 = vsel %vm2190, %v2360, 0.0
    %2444 = vadd.xlane.f32.xlu0 %v2443
    %v2445 = vpop.xlane.xlu0 %2444
    %v2446 = vsel %vm2190, %v2362, 0.0
    %2447 = vadd.xlane.f32.xlu0 %v2446
    %v2448 = vpop.xlane.xlu0 %2447
    %v2449 = vsel %vm2190, %v2364, 0.0
    %2450 = vadd.xlane.f32.xlu0 %v2449
    %v2451 = vpop.xlane.xlu0 %2450
    %v2452 = vsel %vm2190, %v2366, 0.0
    %2453 = vadd.xlane.f32.xlu0 %v2452
    %v2454 = vpop.xlane.xlu0 %2453
    %v2455 = vsel %vm2190, %v2368, 0.0
    %2456 = vadd.xlane.f32.xlu0 %v2455
    %v2457 = vpop.xlane.xlu0 %2456
    %v2458 = vsel %vm2190, %v2370, 0.0
    %2459 = vadd.xlane.f32.xlu0 %v2458
    %v2460 = vpop.xlane.xlu0 %2459
    %v2461 = vsel %vm2190, %v2372, 0.0
    %2462 = vadd.xlane.f32.xlu0 %v2461
    %v2463 = vpop.xlane.xlu0 %2462
    %v2464 = vsel %vm2190, %v2374, 0.0
    %2465 = vadd.xlane.f32.xlu0 %v2464
    %v2466 = vpop.xlane.xlu0 %2465
    %v2467 = vsel %vm2190, %v2376, 0.0
    %2468 = vadd.xlane.f32.xlu0 %v2467
    %v2469 = vpop.xlane.xlu0 %2468
    %v2470 = vsel %vm2190, %v2378, 0.0
    %2471 = vadd.xlane.f32.xlu0 %v2470
    %v2472 = vpop.xlane.xlu0 %2471
    %v2473 = vsel %vm2190, %v2380, 0.0
    %2474 = vadd.xlane.f32.xlu0 %v2473
    %v2475 = vpop.xlane.xlu0 %2474
    %v2476 = vsel %vm2190, %v2382, 0.0
    %2477 = vadd.xlane.f32.xlu0 %v2476
    %v2478 = vpop.xlane.xlu0 %2477
    %v2479 = vpack.c.bf16 %v2322, %v2320
    %v2480 = vpack.c.bf16 %v2326, %v2324
    %v2481 = vpack.c.bf16 %v2330, %v2328
    %v2482 = vpack.c.bf16 %v2334, %v2332
    %v2483 = vpack.c.bf16 %v2338, %v2336
    %v2484 = vpack.c.bf16 %v2342, %v2340
    %v2485 = vpack.c.bf16 %v2346, %v2344
    %v2486 = vpack.c.bf16 %v2350, %v2348
    %v2487 = vpack.c.bf16 %v2354, %v2352
    %v2488 = vpack.c.bf16 %v2358, %v2356
    %v2489 = vpack.c.bf16 %v2362, %v2360
    %v2490 = vpack.c.bf16 %v2366, %v2364
    %v2491 = vpack.c.bf16 %v2370, %v2368
    %v2492 = vpack.c.bf16 %v2374, %v2372
    %v2493 = vpack.c.bf16 %v2378, %v2376
    %v2494 = vpack.c.bf16 %v2382, %v2380
    %v2496 = vsel %vm2190, %v2479, 0
    %2498 = vmatprep.subr.bf16.mxu0 0
    %2499 = vmatpush1.bf16.msra.mxu0 %v1398
    %2500 = vmatprep.subr.bf16.mxu0 0
    %2501 = vmatpush1.bf16.msra.mxu0 0
    %2502 = vmatprep.subr.bf16.mxu0 0
    %2503 = vmatpush1.bf16.msra.mxu0 0
    %2504 = vmatprep.subr.bf16.mxu0 0
    %2505 = vmatpush1.bf16.msra.mxu0 0
    %2506 = vmatprep.subr.bf16.mxu0 0
    %2507 = vmatpush1.bf16.msra.mxu0 0
    %2508 = vmatprep.subr.bf16.mxu0 0
    %2509 = vmatpush1.bf16.msra.mxu0 0
    %2510 = vmatprep.subr.bf16.mxu0 0
    %2511 = vmatpush1.bf16.msra.mxu0 0
    %2512 = vmatprep.subr.bf16.mxu0 0
    %2513 = vmatpush1.bf16.msra.mxu0 0
    %2514 = vmatprep.subr.bf16.mxu0 0
    %2515 = vmatpush1.bf16.msra.mxu0 0
    %2516 = vmatprep.subr.bf16.mxu0 0
    %2517 = vmatpush1.bf16.msra.mxu0 0
    %2518 = vmatprep.subr.bf16.mxu0 0
    %2519 = vmatpush1.bf16.msra.mxu0 0
    %2520 = vmatprep.subr.bf16.mxu0 0
    %2521 = vmatpush1.bf16.msra.mxu0 0
    %2522 = vmatprep.subr.bf16.mxu0 0
    %2523 = vmatpush1.bf16.msra.mxu0 0
    %2524 = vmatprep.subr.bf16.mxu0 0
    %2525 = vmatpush1.bf16.msra.mxu0 0
    %2526 = vmatprep.subr.bf16.mxu0 0
    %2527 = vmatpush1.bf16.msra.mxu0 0
    %2528 = vmatprep.subr.bf16.mxu0 0
    %2529 = vmatpush1.bf16.msra.mxu0 0
    %2530 = vmatprep.mubr.bf16.mxu0 0
    %2531 = vmatmul.mubr.bf16.gmra.mrb[0].mxu0 %v2496
    %v2532 = vpop.f32.mrb[0].mxu0
    %v2533 = vadd.f32 0.0, %v2532
    %v2534 = vpop.f32.mrb[0].mxu0
    %v2535 = vpop.f32.mrb[0].mxu0
    %v2536 = vadd.f32 0.0, %v2535
    %v2537 = vpop.f32.mrb[0].mxu0
    %2538 = vdwg.mxu0
    %v2540 = vsel %vm2190, %v2480, 0
    %2542 = vmatprep.subr.bf16.mxu0 0
    %2543 = vmatpush1.bf16.msra.mxu0 %v1404
    %2544 = vmatprep.subr.bf16.mxu0 0
    %2545 = vmatpush1.bf16.msra.mxu0 0
    %2546 = vmatprep.subr.bf16.mxu0 0
    %2547 = vmatpush1.bf16.msra.mxu0 0
    %2548 = vmatprep.subr.bf16.mxu0 0
    %2549 = vmatpush1.bf16.msra.mxu0 0
    %2550 = vmatprep.subr.bf16.mxu0 0
    %2551 = vmatpush1.bf16.msra.mxu0 0
    %2552 = vmatprep.subr.bf16.mxu0 0
    %2553 = vmatpush1.bf16.msra.mxu0 0
    %2554 = vmatprep.subr.bf16.mxu0 0
    %2555 = vmatpush1.bf16.msra.mxu0 0
    %2556 = vmatprep.subr.bf16.mxu0 0
    %2557 = vmatpush1.bf16.msra.mxu0 0
    %2558 = vmatprep.subr.bf16.mxu0 0
    %2559 = vmatpush1.bf16.msra.mxu0 0
    %2560 = vmatprep.subr.bf16.mxu0 0
    %2561 = vmatpush1.bf16.msra.mxu0 0
    %2562 = vmatprep.subr.bf16.mxu0 0
    %2563 = vmatpush1.bf16.msra.mxu0 0
    %2564 = vmatprep.subr.bf16.mxu0 0
    %2565 = vmatpush1.bf16.msra.mxu0 0
    %2566 = vmatprep.subr.bf16.mxu0 0
    %2567 = vmatpush1.bf16.msra.mxu0 0
    %2568 = vmatprep.subr.bf16.mxu0 0
    %2569 = vmatpush1.bf16.msra.mxu0 0
    %2570 = vmatprep.subr.bf16.mxu0 0
    %2571 = vmatpush1.bf16.msra.mxu0 0
    %2572 = vmatprep.subr.bf16.mxu0 0
    %2573 = vmatpush1.bf16.msra.mxu0 0
    %2574 = vmatprep.mubr.bf16.mxu0 0
    %2575 = vmatmul.mubr.bf16.gmra.mrb[0].mxu0 %v2540
    %v2576 = vpop.f32.mrb[0].mxu0
    %v2577 = vadd.f32 0.0, %v2576
    %v2578 = vpop.f32.mrb[0].mxu0
    %v2579 = vpop.f32.mrb[0].mxu0
    %v2580 = vadd.f32 0.0, %v2579
    %v2581 = vpop.f32.mrb[0].mxu0
    %2582 = vdwg.mxu0
    %v2584 = vsel %vm2190, %v2481, 0
    %2586 = vmatprep.subr.bf16.mxu0 0
    %2587 = vmatpush1.bf16.msra.mxu0 %v1410
    %2588 = vmatprep.subr.bf16.mxu0 0
    %2589 = vmatpush1.bf16.msra.mxu0 0
    %2590 = vmatprep.subr.bf16.mxu0 0
    %2591 = vmatpush1.bf16.msra.mxu0 0
    %2592 = vmatprep.subr.bf16.mxu0 0
    %2593 = vmatpush1.bf16.msra.mxu0 0
    %2594 = vmatprep.subr.bf16.mxu0 0
    %2595 = vmatpush1.bf16.msra.mxu0 0
    %2596 = vmatprep.subr.bf16.mxu0 0
    %2597 = vmatpush1.bf16.msra.mxu0 0
    %2598 = vmatprep.subr.bf16.mxu0 0
    %2599 = vmatpush1.bf16.msra.mxu0 0
    %2600 = vmatprep.subr.bf16.mxu0 0
    %2601 = vmatpush1.bf16.msra.mxu0 0
    %2602 = vmatprep.subr.bf16.mxu0 0
    %2603 = vmatpush1.bf16.msra.mxu0 0
    %2604 = vmatprep.subr.bf16.mxu0 0
    %2605 = vmatpush1.bf16.msra.mxu0 0
    %2606 = vmatprep.subr.bf16.mxu0 0
    %2607 = vmatpush1.bf16.msra.mxu0 0
    %2608 = vmatprep.subr.bf16.mxu0 0
    %2609 = vmatpush1.bf16.msra.mxu0 0
    %2610 = vmatprep.subr.bf16.mxu0 0
    %2611 = vmatpush1.bf16.msra.mxu0 0
    %2612 = vmatprep.subr.bf16.mxu0 0
    %2613 = vmatpush1.bf16.msra.mxu0 0
    %2614 = vmatprep.subr.bf16.mxu0 0
    %2615 = vmatpush1.bf16.msra.mxu0 0
    %2616 = vmatprep.subr.bf16.mxu0 0
    %2617 = vmatpush1.bf16.msra.mxu0 0
    %2618 = vmatprep.mubr.bf16.mxu0 0
    %2619 = vmatmul.mubr.bf16.gmra.mrb[0].mxu0 %v2584
    %v2620 = vpop.f32.mrb[0].mxu0
    %v2621 = vadd.f32 0.0, %v2620
    %v2622 = vpop.f32.mrb[0].mxu0
    %v2623 = vpop.f32.mrb[0].mxu0
    %v2624 = vadd.f32 0.0, %v2623
    %v2625 = vpop.f32.mrb[0].mxu0
    %2626 = vdwg.mxu0
    %v2628 = vsel %vm2190, %v2482, 0
    %2630 = vmatprep.subr.bf16.mxu0 0
    %2631 = vmatpush1.bf16.msra.mxu0 %v1416
    %2632 = vmatprep.subr.bf16.mxu0 0
    %2633 = vmatpush1.bf16.msra.mxu0 0
    %2634 = vmatprep.subr.bf16.mxu0 0
    %2635 = vmatpush1.bf16.msra.mxu0 0
    %2636 = vmatprep.subr.bf16.mxu0 0
    %2637 = vmatpush1.bf16.msra.mxu0 0
    %2638 = vmatprep.subr.bf16.mxu0 0
    %2639 = vmatpush1.bf16.msra.mxu0 0
    %2640 = vmatprep.subr.bf16.mxu0 0
    %2641 = vmatpush1.bf16.msra.mxu0 0
    %2642 = vmatprep.subr.bf16.mxu0 0
    %2643 = vmatpush1.bf16.msra.mxu0 0
    %2644 = vmatprep.subr.bf16.mxu0 0
    %2645 = vmatpush1.bf16.msra.mxu0 0
    %2646 = vmatprep.subr.bf16.mxu0 0
    %2647 = vmatpush1.bf16.msra.mxu0 0
    %2648 = vmatprep.subr.bf16.mxu0 0
    %2649 = vmatpush1.bf16.msra.mxu0 0
    %2650 = vmatprep.subr.bf16.mxu0 0
    %2651 = vmatpush1.bf16.msra.mxu0 0
    %2652 = vmatprep.subr.bf16.mxu0 0
    %2653 = vmatpush1.bf16.msra.mxu0 0
    %2654 = vmatprep.subr.bf16.mxu0 0
    %2655 = vmatpush1.bf16.msra.mxu0 0
    %2656 = vmatprep.subr.bf16.mxu0 0
    %2657 = vmatpush1.bf16.msra.mxu0 0
    %2658 = vmatprep.subr.bf16.mxu0 0
    %2659 = vmatpush1.bf16.msra.mxu0 0
    %2660 = vmatprep.subr.bf16.mxu0 0
    %2661 = vmatpush1.bf16.msra.mxu0 0
    %2662 = vmatprep.mubr.bf16.mxu0 0
    %2663 = vmatmul.mubr.bf16.gmra.mrb[0].mxu0 %v2628
    %v2664 = vpop.f32.mrb[0].mxu0
    %v2665 = vadd.f32 0.0, %v2664
    %v2666 = vpop.f32.mrb[0].mxu0
    %v2667 = vpop.f32.mrb[0].mxu0
    %v2668 = vadd.f32 0.0, %v2667
    %v2669 = vpop.f32.mrb[0].mxu0
    %2670 = vdwg.mxu0
    %v2672 = vsel %vm2190, %v2483, 0
    %2674 = vmatprep.subr.bf16.mxu0 0
    %2675 = vmatpush1.bf16.msra.mxu0 %v1422
    %2676 = vmatprep.subr.bf16.mxu0 0
    %2677 = vmatpush1.bf16.msra.mxu0 0
    %2678 = vmatprep.subr.bf16.mxu0 0
    %2679 = vmatpush1.bf16.msra.mxu0 0
    %2680 = vmatprep.subr.bf16.mxu0 0
    %2681 = vmatpush1.bf16.msra.mxu0 0
    %2682 = vmatprep.subr.bf16.mxu0 0
    %2683 = vmatpush1.bf16.msra.mxu0 0
    %2684 = vmatprep.subr.bf16.mxu0 0
    %2685 = vmatpush1.bf16.msra.mxu0 0
    %2686 = vmatprep.subr.bf16.mxu0 0
    %2687 = vmatpush1.bf16.msra.mxu0 0
    %2688 = vmatprep.subr.bf16.mxu0 0
    %2689 = vmatpush1.bf16.msra.mxu0 0
    %2690 = vmatprep.subr.bf16.mxu0 0
    %2691 = vmatpush1.bf16.msra.mxu0 0
    %2692 = vmatprep.subr.bf16.mxu0 0
    %2693 = vmatpush1.bf16.msra.mxu0 0
    %2694 = vmatprep.subr.bf16.mxu0 0
    %2695 = vmatpush1.bf16.msra.mxu0 0
    %2696 = vmatprep.subr.bf16.mxu0 0
    %2697 = vmatpush1.bf16.msra.mxu0 0
    %2698 = vmatprep.subr.bf16.mxu0 0
    %2699 = vmatpush1.bf16.msra.mxu0 0
    %2700 = vmatprep.subr.bf16.mxu0 0
    %2701 = vmatpush1.bf16.msra.mxu0 0
    %2702 = vmatprep.subr.bf16.mxu0 0
    %2703 = vmatpush1.bf16.msra.mxu0 0
    %2704 = vmatprep.subr.bf16.mxu0 0
    %2705 = vmatpush1.bf16.msra.mxu0 0
    %2706 = vmatprep.mubr.bf16.mxu0 0
    %2707 = vmatmul.mubr.bf16.gmra.mrb[0].mxu0 %v2672
    %v2708 = vpop.f32.mrb[0].mxu0
    %v2709 = vadd.f32 0.0, %v2708
    %v2710 = vpop.f32.mrb[0].mxu0
    %v2711 = vpop.f32.mrb[0].mxu0
    %v2712 = vadd.f32 0.0, %v2711
    %v2713 = vpop.f32.mrb[0].mxu0
    %2714 = vdwg.mxu0
    %v2716 = vsel %vm2190, %v2484, 0
    %2718 = vmatprep.subr.bf16.mxu0 0
    %2719 = vmatpush1.bf16.msra.mxu0 %v1428
    %2720 = vmatprep.subr.bf16.mxu0 0
    %2721 = vmatpush1.bf16.msra.mxu0 0
    %2722 = vmatprep.subr.bf16.mxu0 0
    %2723 = vmatpush1.bf16.msra.mxu0 0
    %2724 = vmatprep.subr.bf16.mxu0 0
    %2725 = vmatpush1.bf16.msra.mxu0 0
    %2726 = vmatprep.subr.bf16.mxu0 0
    %2727 = vmatpush1.bf16.msra.mxu0 0
    %2728 = vmatprep.subr.bf16.mxu0 0
    %2729 = vmatpush1.bf16.msra.mxu0 0
    %2730 = vmatprep.subr.bf16.mxu0 0
    %2731 = vmatpush1.bf16.msra.mxu0 0
    %2732 = vmatprep.subr.bf16.mxu0 0
    %2733 = vmatpush1.bf16.msra.mxu0 0
    %2734 = vmatprep.subr.bf16.mxu0 0
    %2735 = vmatpush1.bf16.msra.mxu0 0
    %2736 = vmatprep.subr.bf16.mxu0 0
    %2737 = vmatpush1.bf16.msra.mxu0 0
    %2738 = vmatprep.subr.bf16.mxu0 0
    %2739 = vmatpush1.bf16.msra.mxu0 0
    %2740 = vmatprep.subr.bf16.mxu0 0
    %2741 = vmatpush1.bf16.msra.mxu0 0
    %2742 = vmatprep.subr.bf16.mxu0 0
    %2743 = vmatpush1.bf16.msra.mxu0 0
    %2744 = vmatprep.subr.bf16.mxu0 0
    %2745 = vmatpush1.bf16.msra.mxu0 0
    %2746 = vmatprep.subr.bf16.mxu0 0
    %2747 = vmatpush1.bf16.msra.mxu0 0
    %2748 = vmatprep.subr.bf16.mxu0 0
    %2749 = vmatpush1.bf16.msra.mxu0 0
    %2750 = vmatprep.mubr.bf16.mxu0 0
    %2751 = vmatmul.mubr.bf16.gmra.mrb[0].mxu0 %v2716
    %v2752 = vpop.f32.mrb[0].mxu0
    %v2753 = vadd.f32 0.0, %v2752
    %v2754 = vpop.f32.mrb[0].mxu0
    %v2755 = vpop.f32.mrb[0].mxu0
    %v2756 = vadd.f32 0.0, %v2755
    %v2757 = vpop.f32.mrb[0].mxu0
    %2758 = vdwg.mxu0
    %v2760 = vsel %vm2190, %v2485, 0
    %2762 = vmatprep.subr.bf16.mxu0 0
    %2763 = vmatpush1.bf16.msra.mxu0 %v1434
    %2764 = vmatprep.subr.bf16.mxu0 0
    %2765 = vmatpush1.bf16.msra.mxu0 0
    %2766 = vmatprep.subr.bf16.mxu0 0
    %2767 = vmatpush1.bf16.msra.mxu0 0
    %2768 = vmatprep.subr.bf16.mxu0 0
    %2769 = vmatpush1.bf16.msra.mxu0 0
    %2770 = vmatprep.subr.bf16.mxu0 0
    %2771 = vmatpush1.bf16.msra.mxu0 0
    %2772 = vmatprep.subr.bf16.mxu0 0
    %2773 = vmatpush1.bf16.msra.mxu0 0
    %2774 = vmatprep.subr.bf16.mxu0 0
    %2775 = vmatpush1.bf16.msra.mxu0 0
    %2776 = vmatprep.subr.bf16.mxu0 0
    %2777 = vmatpush1.bf16.msra.mxu0 0
    %2778 = vmatprep.subr.bf16.mxu0 0
    %2779 = vmatpush1.bf16.msra.mxu0 0
    %2780 = vmatprep.subr.bf16.mxu0 0
    %2781 = vmatpush1.bf16.msra.mxu0 0
    %2782 = vmatprep.subr.bf16.mxu0 0
    %2783 = vmatpush1.bf16.msra.mxu0 0
    %2784 = vmatprep.subr.bf16.mxu0 0
    %2785 = vmatpush1.bf16.msra.mxu0 0
    %2786 = vmatprep.subr.bf16.mxu0 0
    %2787 = vmatpush1.bf16.msra.mxu0 0
    %2788 = vmatprep.subr.bf16.mxu0 0
    %2789 = vmatpush1.bf16.msra.mxu0 0
    %2790 = vmatprep.subr.bf16.mxu0 0
    %2791 = vmatpush1.bf16.msra.mxu0 0
    %2792 = vmatprep.subr.bf16.mxu0 0
    %2793 = vmatpush1.bf16.msra.mxu0 0
    %2794 = vmatprep.mubr.bf16.mxu0 0
    %2795 = vmatmul.mubr.bf16.gmra.mrb[0].mxu0 %v2760
    %v2796 = vpop.f32.mrb[0].mxu0
    %v2797 = vadd.f32 0.0, %v2796
    %v2798 = vpop.f32.mrb[0].mxu0
    %v2799 = vpop.f32.mrb[0].mxu0
    %v2800 = vadd.f32 0.0, %v2799
    %v2801 = vpop.f32.mrb[0].mxu0
    %2802 = vdwg.mxu0
    %v2804 = vsel %vm2190, %v2486, 0
    %2806 = vmatprep.subr.bf16.mxu0 0
    %2807 = vmatpush1.bf16.msra.mxu0 %v1440
    %2808 = vmatprep.subr.bf16.mxu0 0
    %2809 = vmatpush1.bf16.msra.mxu0 0
    %2810 = vmatprep.subr.bf16.mxu0 0
    %2811 = vmatpush1.bf16.msra.mxu0 0
    %2812 = vmatprep.subr.bf16.mxu0 0
    %2813 = vmatpush1.bf16.msra.mxu0 0
    %2814 = vmatprep.subr.bf16.mxu0 0
    %2815 = vmatpush1.bf16.msra.mxu0 0
    %2816 = vmatprep.subr.bf16.mxu0 0
    %2817 = vmatpush1.bf16.msra.mxu0 0
    %2818 = vmatprep.subr.bf16.mxu0 0
    %2819 = vmatpush1.bf16.msra.mxu0 0
    %2820 = vmatprep.subr.bf16.mxu0 0
    %2821 = vmatpush1.bf16.msra.mxu0 0
    %2822 = vmatprep.subr.bf16.mxu0 0
    %2823 = vmatpush1.bf16.msra.mxu0 0
    %2824 = vmatprep.subr.bf16.mxu0 0
    %2825 = vmatpush1.bf16.msra.mxu0 0
    %2826 = vmatprep.subr.bf16.mxu0 0
    %2827 = vmatpush1.bf16.msra.mxu0 0
    %2828 = vmatprep.subr.bf16.mxu0 0
    %2829 = vmatpush1.bf16.msra.mxu0 0
    %2830 = vmatprep.subr.bf16.mxu0 0
    %2831 = vmatpush1.bf16.msra.mxu0 0
    %2832 = vmatprep.subr.bf16.mxu0 0
    %2833 = vmatpush1.bf16.msra.mxu0 0
    %2834 = vmatprep.subr.bf16.mxu0 0
    %2835 = vmatpush1.bf16.msra.mxu0 0
    %2836 = vmatprep.subr.bf16.mxu0 0
    %2837 = vmatpush1.bf16.msra.mxu0 0
    %2838 = vmatprep.mubr.bf16.mxu0 0
    %2839 = vmatmul.mubr.bf16.gmra.mrb[0].mxu0 %v2804
    %v2840 = vpop.f32.mrb[0].mxu0
    %v2841 = vadd.f32 0.0, %v2840
    %v2842 = vpop.f32.mrb[0].mxu0
    %v2843 = vpop.f32.mrb[0].mxu0
    %v2844 = vadd.f32 0.0, %v2843
    %v2845 = vpop.f32.mrb[0].mxu0
    %2846 = vdwg.mxu0
    %v2848 = vsel %vm2190, %v2487, 0
    %2850 = vmatprep.subr.bf16.mxu0 0
    %2851 = vmatpush1.bf16.msra.mxu0 %v1446
    %2852 = vmatprep.subr.bf16.mxu0 0
    %2853 = vmatpush1.bf16.msra.mxu0 0
    %2854 = vmatprep.subr.bf16.mxu0 0
    %2855 = vmatpush1.bf16.msra.mxu0 0
    %2856 = vmatprep.subr.bf16.mxu0 0
    %2857 = vmatpush1.bf16.msra.mxu0 0
    %2858 = vmatprep.subr.bf16.mxu0 0
    %2859 = vmatpush1.bf16.msra.mxu0 0
    %2860 = vmatprep.subr.bf16.mxu0 0
    %2861 = vmatpush1.bf16.msra.mxu0 0
    %2862 = vmatprep.subr.bf16.mxu0 0
    %2863 = vmatpush1.bf16.msra.mxu0 0
    %2864 = vmatprep.subr.bf16.mxu0 0
    %2865 = vmatpush1.bf16.msra.mxu0 0
    %2866 = vmatprep.subr.bf16.mxu0 0
    %2867 = vmatpush1.bf16.msra.mxu0 0
    %2868 = vmatprep.subr.bf16.mxu0 0
    %2869 = vmatpush1.bf16.msra.mxu0 0
    %2870 = vmatprep.subr.bf16.mxu0 0
    %2871 = vmatpush1.bf16.msra.mxu0 0
    %2872 = vmatprep.subr.bf16.mxu0 0
    %2873 = vmatpush1.bf16.msra.mxu0 0
    %2874 = vmatprep.subr.bf16.mxu0 0
    %2875 = vmatpush1.bf16.msra.mxu0 0
    %2876 = vmatprep.subr.bf16.mxu0 0
    %2877 = vmatpush1.bf16.msra.mxu0 0
    %2878 = vmatprep.subr.bf16.mxu0 0
    %2879 = vmatpush1.bf16.msra.mxu0 0
    %2880 = vmatprep.subr.bf16.mxu0 0
    %2881 = vmatpush1.bf16.msra.mxu0 0
    %2882 = vmatprep.mubr.bf16.mxu0 0
    %2883 = vmatmul.mubr.bf16.gmra.mrb[0].mxu0 %v2848
    %v2884 = vpop.f32.mrb[0].mxu0
    %v2885 = vadd.f32 0.0, %v2884
    %v2886 = vpop.f32.mrb[0].mxu0
    %v2887 = vpop.f32.mrb[0].mxu0
    %v2888 = vadd.f32 0.0, %v2887
    %v2889 = vpop.f32.mrb[0].mxu0
    %2890 = vdwg.mxu0
    %v2892 = vsel %vm2190, %v2488, 0
    %2894 = vmatprep.subr.bf16.mxu0 0
    %2895 = vmatpush1.bf16.msra.mxu0 %v1452
    %2896 = vmatprep.subr.bf16.mxu0 0
    %2897 = vmatpush1.bf16.msra.mxu0 0
    %2898 = vmatprep.subr.bf16.mxu0 0
    %2899 = vmatpush1.bf16.msra.mxu0 0
    %2900 = vmatprep.subr.bf16.mxu0 0
    %2901 = vmatpush1.bf16.msra.mxu0 0
    %2902 = vmatprep.subr.bf16.mxu0 0
    %2903 = vmatpush1.bf16.msra.mxu0 0
    %2904 = vmatprep.subr.bf16.mxu0 0
    %2905 = vmatpush1.bf16.msra.mxu0 0
    %2906 = vmatprep.subr.bf16.mxu0 0
    %2907 = vmatpush1.bf16.msra.mxu0 0
    %2908 = vmatprep.subr.bf16.mxu0 0
    %2909 = vmatpush1.bf16.msra.mxu0 0
    %2910 = vmatprep.subr.bf16.mxu0 0
    %2911 = vmatpush1.bf16.msra.mxu0 0
    %2912 = vmatprep.subr.bf16.mxu0 0
    %2913 = vmatpush1.bf16.msra.mxu0 0
    %2914 = vmatprep.subr.bf16.mxu0 0
    %2915 = vmatpush1.bf16.msra.mxu0 0
    %2916 = vmatprep.subr.bf16.mxu0 0
    %2917 = vmatpush1.bf16.msra.mxu0 0
    %2918 = vmatprep.subr.bf16.mxu0 0
    %2919 = vmatpush1.bf16.msra.mxu0 0
    %2920 = vmatprep.subr.bf16.mxu0 0
    %2921 = vmatpush1.bf16.msra.mxu0 0
    %2922 = vmatprep.subr.bf16.mxu0 0
    %2923 = vmatpush1.bf16.msra.mxu0 0
    %2924 = vmatprep.subr.bf16.mxu0 0
    %2925 = vmatpush1.bf16.msra.mxu0 0
    %2926 = vmatprep.mubr.bf16.mxu0 0
    %2927 = vmatmul.mubr.bf16.gmra.mrb[0].mxu0 %v2892
    %v2928 = vpop.f32.mrb[0].mxu0
    %v2929 = vadd.f32 0.0, %v2928
    %v2930 = vpop.f32.mrb[0].mxu0
    %v2931 = vpop.f32.mrb[0].mxu0
    %v2932 = vadd.f32 0.0, %v2931
    %v2933 = vpop.f32.mrb[0].mxu0
    %2934 = vdwg.mxu0
    %v2936 = vsel %vm2190, %v2489, 0
    %2938 = vmatprep.subr.bf16.mxu0 0
    %2939 = vmatpush1.bf16.msra.mxu0 %v1458
    %2940 = vmatprep.subr.bf16.mxu0 0
    %2941 = vmatpush1.bf16.msra.mxu0 0
    %2942 = vmatprep.subr.bf16.mxu0 0
    %2943 = vmatpush1.bf16.msra.mxu0 0
    %2944 = vmatprep.subr.bf16.mxu0 0
    %2945 = vmatpush1.bf16.msra.mxu0 0
    %2946 = vmatprep.subr.bf16.mxu0 0
    %2947 = vmatpush1.bf16.msra.mxu0 0
    %2948 = vmatprep.subr.bf16.mxu0 0
    %2949 = vmatpush1.bf16.msra.mxu0 0
    %2950 = vmatprep.subr.bf16.mxu0 0
    %2951 = vmatpush1.bf16.msra.mxu0 0
    %2952 = vmatprep.subr.bf16.mxu0 0
    %2953 = vmatpush1.bf16.msra.mxu0 0
    %2954 = vmatprep.subr.bf16.mxu0 0
    %2955 = vmatpush1.bf16.msra.mxu0 0
    %2956 = vmatprep.subr.bf16.mxu0 0
    %2957 = vmatpush1.bf16.msra.mxu0 0
    %2958 = vmatprep.subr.bf16.mxu0 0
    %2959 = vmatpush1.bf16.msra.mxu0 0
    %2960 = vmatprep.subr.bf16.mxu0 0
    %2961 = vmatpush1.bf16.msra.mxu0 0
    %2962 = vmatprep.subr.bf16.mxu0 0
    %2963 = vmatpush1.bf16.msra.mxu0 0
    %2964 = vmatprep.subr.bf16.mxu0 0
    %2965 = vmatpush1.bf16.msra.mxu0 0
    %2966 = vmatprep.subr.bf16.mxu0 0
    %2967 = vmatpush1.bf16.msra.mxu0 0
    %2968 = vmatprep.subr.bf16.mxu0 0
    %2969 = vmatpush1.bf16.msra.mxu0 0
    %2970 = vmatprep.mubr.bf16.mxu0 0
    %2971 = vmatmul.mubr.bf16.gmra.mrb[0].mxu0 %v2936
    %v2972 = vpop.f32.mrb[0].mxu0
    %v2973 = vadd.f32 0.0, %v2972
    %v2974 = vpop.f32.mrb[0].mxu0
    %v2975 = vpop.f32.mrb[0].mxu0
    %v2976 = vadd.f32 0.0, %v2975
    %v2977 = vpop.f32.mrb[0].mxu0
    %2978 = vdwg.mxu0
    %v2980 = vsel %vm2190, %v2490, 0
    %2982 = vmatprep.subr.bf16.mxu0 0
    %2983 = vmatpush1.bf16.msra.mxu0 %v1464
    %2984 = vmatprep.subr.bf16.mxu0 0
    %2985 = vmatpush1.bf16.msra.mxu0 0
    %2986 = vmatprep.subr.bf16.mxu0 0
    %2987 = vmatpush1.bf16.msra.mxu0 0
    %2988 = vmatprep.subr.bf16.mxu0 0
    %2989 = vmatpush1.bf16.msra.mxu0 0
    %2990 = vmatprep.subr.bf16.mxu0 0
    %2991 = vmatpush1.bf16.msra.mxu0 0
    %2992 = vmatprep.subr.bf16.mxu0 0
    %2993 = vmatpush1.bf16.msra.mxu0 0
    %2994 = vmatprep.subr.bf16.mxu0 0
    %2995 = vmatpush1.bf16.msra.mxu0 0
    %2996 = vmatprep.subr.bf16.mxu0 0
    %2997 = vmatpush1.bf16.msra.mxu0 0
    %2998 = vmatprep.subr.bf16.mxu0 0
    %2999 = vmatpush1.bf16.msra.mxu0 0
    %3000 = vmatprep.subr.bf16.mxu0 0
    %3001 = vmatpush1.bf16.msra.mxu0 0
    %3002 = vmatprep.subr.bf16.mxu0 0
    %3003 = vmatpush1.bf16.msra.mxu0 0
    %3004 = vmatprep.subr.bf16.mxu0 0
    %3005 = vmatpush1.bf16.msra.mxu0 0
    %3006 = vmatprep.subr.bf16.mxu0 0
    %3007 = vmatpush1.bf16.msra.mxu0 0
    %3008 = vmatprep.subr.bf16.mxu0 0
    %3009 = vmatpush1.bf16.msra.mxu0 0
    %3010 = vmatprep.subr.bf16.mxu0 0
    %3011 = vmatpush1.bf16.msra.mxu0 0
    %3012 = vmatprep.subr.bf16.mxu0 0
    %3013 = vmatpush1.bf16.msra.mxu0 0
    %3014 = vmatprep.mubr.bf16.mxu0 0
    %3015 = vmatmul.mubr.bf16.gmra.mrb[0].mxu0 %v2980
    %v3016 = vpop.f32.mrb[0].mxu0
    %v3017 = vadd.f32 0.0, %v3016
    %v3018 = vpop.f32.mrb[0].mxu0
    %v3019 = vpop.f32.mrb[0].mxu0
    %v3020 = vadd.f32 0.0, %v3019
    %v3021 = vpop.f32.mrb[0].mxu0
    %3022 = vdwg.mxu0
    %v3024 = vsel %vm2190, %v2491, 0
    %3026 = vmatprep.subr.bf16.mxu0 0
    %3027 = vmatpush1.bf16.msra.mxu0 %v1470
    %3028 = vmatprep.subr.bf16.mxu0 0
    %3029 = vmatpush1.bf16.msra.mxu0 0
    %3030 = vmatprep.subr.bf16.mxu0 0
    %3031 = vmatpush1.bf16.msra.mxu0 0
    %3032 = vmatprep.subr.bf16.mxu0 0
    %3033 = vmatpush1.bf16.msra.mxu0 0
    %3034 = vmatprep.subr.bf16.mxu0 0
    %3035 = vmatpush1.bf16.msra.mxu0 0
    %3036 = vmatprep.subr.bf16.mxu0 0
    %3037 = vmatpush1.bf16.msra.mxu0 0
    %3038 = vmatprep.subr.bf16.mxu0 0
    %3039 = vmatpush1.bf16.msra.mxu0 0
    %3040 = vmatprep.subr.bf16.mxu0 0
    %3041 = vmatpush1.bf16.msra.mxu0 0
    %3042 = vmatprep.subr.bf16.mxu0 0
    %3043 = vmatpush1.bf16.msra.mxu0 0
    %3044 = vmatprep.subr.bf16.mxu0 0
    %3045 = vmatpush1.bf16.msra.mxu0 0
    %3046 = vmatprep.subr.bf16.mxu0 0
    %3047 = vmatpush1.bf16.msra.mxu0 0
    %3048 = vmatprep.subr.bf16.mxu0 0
    %3049 = vmatpush1.bf16.msra.mxu0 0
    %3050 = vmatprep.subr.bf16.mxu0 0
    %3051 = vmatpush1.bf16.msra.mxu0 0
    %3052 = vmatprep.subr.bf16.mxu0 0
    %3053 = vmatpush1.bf16.msra.mxu0 0
    %3054 = vmatprep.subr.bf16.mxu0 0
    %3055 = vmatpush1.bf16.msra.mxu0 0
    %3056 = vmatprep.subr.bf16.mxu0 0
    %3057 = vmatpush1.bf16.msra.mxu0 0
    %3058 = vmatprep.mubr.bf16.mxu0 0
    %3059 = vmatmul.mubr.bf16.gmra.mrb[0].mxu0 %v3024
    %v3060 = vpop.f32.mrb[0].mxu0
    %v3061 = vadd.f32 0.0, %v3060
    %v3062 = vpop.f32.mrb[0].mxu0
    %v3063 = vpop.f32.mrb[0].mxu0
    %v3064 = vadd.f32 0.0, %v3063
    %v3065 = vpop.f32.mrb[0].mxu0
    %3066 = vdwg.mxu0
    %v3068 = vsel %vm2190, %v2492, 0
    %3070 = vmatprep.subr.bf16.mxu0 0
    %3071 = vmatpush1.bf16.msra.mxu0 %v1476
    %3072 = vmatprep.subr.bf16.mxu0 0
    %3073 = vmatpush1.bf16.msra.mxu0 0
    %3074 = vmatprep.subr.bf16.mxu0 0
    %3075 = vmatpush1.bf16.msra.mxu0 0
    %3076 = vmatprep.subr.bf16.mxu0 0
    %3077 = vmatpush1.bf16.msra.mxu0 0
    %3078 = vmatprep.subr.bf16.mxu0 0
    %3079 = vmatpush1.bf16.msra.mxu0 0
    %3080 = vmatprep.subr.bf16.mxu0 0
    %3081 = vmatpush1.bf16.msra.mxu0 0
    %3082 = vmatprep.subr.bf16.mxu0 0
    %3083 = vmatpush1.bf16.msra.mxu0 0
    %3084 = vmatprep.subr.bf16.mxu0 0
    %3085 = vmatpush1.bf16.msra.mxu0 0
    %3086 = vmatprep.subr.bf16.mxu0 0
    %3087 = vmatpush1.bf16.msra.mxu0 0
    %3088 = vmatprep.subr.bf16.mxu0 0
    %3089 = vmatpush1.bf16.msra.mxu0 0
    %3090 = vmatprep.subr.bf16.mxu0 0
    %3091 = vmatpush1.bf16.msra.mxu0 0
    %3092 = vmatprep.subr.bf16.mxu0 0
    %3093 = vmatpush1.bf16.msra.mxu0 0
    %3094 = vmatprep.subr.bf16.mxu0 0
    %3095 = vmatpush1.bf16.msra.mxu0 0
    %3096 = vmatprep.subr.bf16.mxu0 0
    %3097 = vmatpush1.bf16.msra.mxu0 0
    %3098 = vmatprep.subr.bf16.mxu0 0
    %3099 = vmatpush1.bf16.msra.mxu0 0
    %3100 = vmatprep.subr.bf16.mxu0 0
    %3101 = vmatpush1.bf16.msra.mxu0 0
    %3102 = vmatprep.mubr.bf16.mxu0 0
    %3103 = vmatmul.mubr.bf16.gmra.mrb[0].mxu0 %v3068
    %v3104 = vpop.f32.mrb[0].mxu0
    %v3105 = vadd.f32 0.0, %v3104
    %v3106 = vpop.f32.mrb[0].mxu0
    %v3107 = vpop.f32.mrb[0].mxu0
    %v3108 = vadd.f32 0.0, %v3107
    %v3109 = vpop.f32.mrb[0].mxu0
    %3110 = vdwg.mxu0
    %v3112 = vsel %vm2190, %v2493, 0
    %3114 = vmatprep.subr.bf16.mxu0 0
    %3115 = vmatpush1.bf16.msra.mxu0 %v1482
    %3116 = vmatprep.subr.bf16.mxu0 0
    %3117 = vmatpush1.bf16.msra.mxu0 0
    %3118 = vmatprep.subr.bf16.mxu0 0
    %3119 = vmatpush1.bf16.msra.mxu0 0
    %3120 = vmatprep.subr.bf16.mxu0 0
    %3121 = vmatpush1.bf16.msra.mxu0 0
    %3122 = vmatprep.subr.bf16.mxu0 0
    %3123 = vmatpush1.bf16.msra.mxu0 0
    %3124 = vmatprep.subr.bf16.mxu0 0
    %3125 = vmatpush1.bf16.msra.mxu0 0
    %3126 = vmatprep.subr.bf16.mxu0 0
    %3127 = vmatpush1.bf16.msra.mxu0 0
    %3128 = vmatprep.subr.bf16.mxu0 0
    %3129 = vmatpush1.bf16.msra.mxu0 0
    %3130 = vmatprep.subr.bf16.mxu0 0
    %3131 = vmatpush1.bf16.msra.mxu0 0
    %3132 = vmatprep.subr.bf16.mxu0 0
    %3133 = vmatpush1.bf16.msra.mxu0 0
    %3134 = vmatprep.subr.bf16.mxu0 0
    %3135 = vmatpush1.bf16.msra.mxu0 0
    %3136 = vmatprep.subr.bf16.mxu0 0
    %3137 = vmatpush1.bf16.msra.mxu0 0
    %3138 = vmatprep.subr.bf16.mxu0 0
    %3139 = vmatpush1.bf16.msra.mxu0 0
    %3140 = vmatprep.subr.bf16.mxu0 0
    %3141 = vmatpush1.bf16.msra.mxu0 0
    %3142 = vmatprep.subr.bf16.mxu0 0
    %3143 = vmatpush1.bf16.msra.mxu0 0
    %3144 = vmatprep.subr.bf16.mxu0 0
    %3145 = vmatpush1.bf16.msra.mxu0 0
    %3146 = vmatprep.mubr.bf16.mxu0 0
    %3147 = vmatmul.mubr.bf16.gmra.mrb[0].mxu0 %v3112
    %v3148 = vpop.f32.mrb[0].mxu0
    %v3149 = vadd.f32 0.0, %v3148
    %v3150 = vpop.f32.mrb[0].mxu0
    %v3151 = vpop.f32.mrb[0].mxu0
    %v3152 = vadd.f32 0.0, %v3151
    %v3153 = vpop.f32.mrb[0].mxu0
    %3154 = vdwg.mxu0
    %v3156 = vsel %vm2190, %v2494, 0
    %3158 = vmatprep.subr.bf16.mxu0 0
    %3159 = vmatpush1.bf16.msra.mxu0 %v1488
    %3160 = vmatprep.subr.bf16.mxu0 0
    %3161 = vmatpush1.bf16.msra.mxu0 0
    %3162 = vmatprep.subr.bf16.mxu0 0
    %3163 = vmatpush1.bf16.msra.mxu0 0
    %3164 = vmatprep.subr.bf16.mxu0 0
    %3165 = vmatpush1.bf16.msra.mxu0 0
    %3166 = vmatprep.subr.bf16.mxu0 0
    %3167 = vmatpush1.bf16.msra.mxu0 0
    %3168 = vmatprep.subr.bf16.mxu0 0
    %3169 = vmatpush1.bf16.msra.mxu0 0
    %3170 = vmatprep.subr.bf16.mxu0 0
    %3171 = vmatpush1.bf16.msra.mxu0 0
    %3172 = vmatprep.subr.bf16.mxu0 0
    %3173 = vmatpush1.bf16.msra.mxu0 0
    %3174 = vmatprep.subr.bf16.mxu0 0
    %3175 = vmatpush1.bf16.msra.mxu0 0
    %3176 = vmatprep.subr.bf16.mxu0 0
    %3177 = vmatpush1.bf16.msra.mxu0 0
    %3178 = vmatprep.subr.bf16.mxu0 0
    %3179 = vmatpush1.bf16.msra.mxu0 0
    %3180 = vmatprep.subr.bf16.mxu0 0
    %3181 = vmatpush1.bf16.msra.mxu0 0
    %3182 = vmatprep.subr.bf16.mxu0 0
    %3183 = vmatpush1.bf16.msra.mxu0 0
    %3184 = vmatprep.subr.bf16.mxu0 0
    %3185 = vmatpush1.bf16.msra.mxu0 0
    %3186 = vmatprep.subr.bf16.mxu0 0
    %3187 = vmatpush1.bf16.msra.mxu0 0
    %3188 = vmatprep.subr.bf16.mxu0 0
    %3189 = vmatpush1.bf16.msra.mxu0 0
    %3190 = vmatprep.mubr.bf16.mxu0 0
    %3191 = vmatmul.mubr.bf16.gmra.mrb[0].mxu0 %v3156
    %v3192 = vpop.f32.mrb[0].mxu0
    %v3193 = vadd.f32 0.0, %v3192
    %v3194 = vpop.f32.mrb[0].mxu0
    %v3195 = vpop.f32.mrb[0].mxu0
    %v3196 = vadd.f32 0.0, %v3195
    %v3197 = vpop.f32.mrb[0].mxu0
    %3198 = vdwg.mxu0
    %v3199 = vrcp.pop %v2385
    %v3200 = vmul.f32 1.0, %v3199
    %v3201 = vrcp.pop %v2388
    %v3202 = vmul.f32 1.0, %v3201
    %v3203 = vrcp.pop %v2391
    %v3204 = vmul.f32 1.0, %v3203
    %v3205 = vrcp.pop %v2394
    %v3206 = vmul.f32 1.0, %v3205
    %v3207 = vrcp.pop %v2397
    %v3208 = vmul.f32 1.0, %v3207
    %v3209 = vrcp.pop %v2400
    %v3210 = vmul.f32 1.0, %v3209
    %v3211 = vrcp.pop %v2403
    %v3212 = vmul.f32 1.0, %v3211
    %v3213 = vrcp.pop %v2406
    %v3214 = vmul.f32 1.0, %v3213
    %v3215 = vrcp.pop %v2409
    %v3216 = vmul.f32 1.0, %v3215
    %v3217 = vrcp.pop %v2412
    %v3218 = vmul.f32 1.0, %v3217
    %v3219 = vrcp.pop %v2415
    %v3220 = vmul.f32 1.0, %v3219
    %v3221 = vrcp.pop %v2418
    %v3222 = vmul.f32 1.0, %v3221
    %v3223 = vrcp.pop %v2421
    %v3224 = vmul.f32 1.0, %v3223
    %v3225 = vrcp.pop %v2424
    %v3226 = vmul.f32 1.0, %v3225
    %v3227 = vrcp.pop %v2427
    %v3228 = vmul.f32 1.0, %v3227
    %v3229 = vrcp.pop %v2430
    %v3230 = vmul.f32 1.0, %v3229
    %v3231 = vrcp.pop %v2433
    %v3232 = vmul.f32 1.0, %v3231
    %v3233 = vrcp.pop %v2436
    %v3234 = vmul.f32 1.0, %v3233
    %v3235 = vrcp.pop %v2439
    %v3236 = vmul.f32 1.0, %v3235
    %v3237 = vrcp.pop %v2442
    %v3238 = vmul.f32 1.0, %v3237
    %v3239 = vrcp.pop %v2445
    %v3240 = vmul.f32 1.0, %v3239
    %v3241 = vrcp.pop %v2448
    %v3242 = vmul.f32 1.0, %v3241
    %v3243 = vrcp.pop %v2451
    %v3244 = vmul.f32 1.0, %v3243
    %v3245 = vrcp.pop %v2454
    %v3246 = vmul.f32 1.0, %v3245
    %v3247 = vrcp.pop %v2457
    %v3248 = vmul.f32 1.0, %v3247
    %v3249 = vrcp.pop %v2460
    %v3250 = vmul.f32 1.0, %v3249
    %v3251 = vrcp.pop %v2463
    %v3252 = vmul.f32 1.0, %v3251
    %v3253 = vrcp.pop %v2466
    %v3254 = vmul.f32 1.0, %v3253
    %v3255 = vrcp.pop %v2469
    %v3256 = vmul.f32 1.0, %v3255
    %v3257 = vrcp.pop %v2472
    %v3258 = vmul.f32 1.0, %v3257
    %v3259 = vrcp.pop %v2475
    %v3260 = vmul.f32 1.0, %v3259
    %v3261 = vrcp.pop %v2478
    %v3262 = vmul.f32 1.0, %v3261
    %v3263 = vmul.f32 %v2533, %v3200
    %v3264 = vmul.f32 %v2536, %v3202
    %v3265 = vmul.f32 %v2577, %v3204
    %v3266 = vmul.f32 %v2580, %v3206
    %v3267 = vmul.f32 %v2621, %v3208
    %v3268 = vmul.f32 %v2624, %v3210
    %v3269 = vmul.f32 %v2665, %v3212
    %v3270 = vmul.f32 %v2668, %v3214
    %v3271 = vmul.f32 %v2709, %v3216
    %v3272 = vmul.f32 %v2712, %v3218
    %v3273 = vmul.f32 %v2753, %v3220
    %v3274 = vmul.f32 %v2756, %v3222
    %v3275 = vmul.f32 %v2797, %v3224
    %v3276 = vmul.f32 %v2800, %v3226
    %v3277 = vmul.f32 %v2841, %v3228
    %v3278 = vmul.f32 %v2844, %v3230
    %v3279 = vmul.f32 %v2885, %v3232
    %v3280 = vmul.f32 %v2888, %v3234
    %v3281 = vmul.f32 %v2929, %v3236
    %v3282 = vmul.f32 %v2932, %v3238
    %v3283 = vmul.f32 %v2973, %v3240
    %v3284 = vmul.f32 %v2976, %v3242
    %v3285 = vmul.f32 %v3017, %v3244
    %v3286 = vmul.f32 %v3020, %v3246
    %v3287 = vmul.f32 %v3061, %v3248
    %v3288 = vmul.f32 %v3064, %v3250
    %v3289 = vmul.f32 %v3105, %v3252
    %v3290 = vmul.f32 %v3108, %v3254
    %v3291 = vmul.f32 %v3149, %v3256
    %v3292 = vmul.f32 %v3152, %v3258
    %v3293 = vmul.f32 %v3193, %v3260
    %v3294 = vmul.f32 %v3196, %v3262
    %v3295 = vpack.c.bf16 %v3264, %v3263
    %v3296 = vpack.c.bf16 %v3266, %v3265
    %v3297 = vpack.c.bf16 %v3268, %v3267
    %v3298 = vpack.c.bf16 %v3270, %v3269
    %v3299 = vpack.c.bf16 %v3272, %v3271
    %v3300 = vpack.c.bf16 %v3274, %v3273
    %v3301 = vpack.c.bf16 %v3276, %v3275
    %v3302 = vpack.c.bf16 %v3278, %v3277
    %v3303 = vpack.c.bf16 %v3280, %v3279
    %v3304 = vpack.c.bf16 %v3282, %v3281
    %v3305 = vpack.c.bf16 %v3284, %v3283
    %v3306 = vpack.c.bf16 %v3286, %v3285
    %v3307 = vpack.c.bf16 %v3288, %v3287
    %v3308 = vpack.c.bf16 %v3290, %v3289
    %v3309 = vpack.c.bf16 %v3292, %v3291
    %v3310 = vpack.c.bf16 %v3294, %v3293
    %v3311 = vld [vmem:[#allocation8] sm:$0xff]
    %v3312 = vld [vmem:[#allocation8 + $0x8] sm:$0xff]
    %v3313 = vld [vmem:[#allocation8 + $0x10] sm:$0xff]
    %v3314 = vld [vmem:[#allocation8 + $0x18] sm:$0xff]
    %v3315 = vld [vmem:[#allocation8 + $0x20] sm:$0xff]
    %v3316 = vld [vmem:[#allocation8 + $0x28] sm:$0xff]
    %v3317 = vld [vmem:[#allocation8 + $0x30] sm:$0xff]
    %v3318 = vld [vmem:[#allocation8 + $0x38] sm:$0xff]
    %v3319 = vld [vmem:[#allocation8 + $0x40] sm:$0xff]
    %v3320 = vld [vmem:[#allocation8 + $0x48] sm:$0xff]
    %v3321 = vld [vmem:[#allocation8 + $0x50] sm:$0xff]
    %v3322 = vld [vmem:[#allocation8 + $0x58] sm:$0xff]
    %v3323 = vld [vmem:[#allocation8 + $0x60] sm:$0xff]
    %v3324 = vld [vmem:[#allocation8 + $0x68] sm:$0xff]
    %v3325 = vld [vmem:[#allocation8 + $0x70] sm:$0xff]
    %v3326 = vld [vmem:[#allocation8 + $0x78] sm:$0xff]
    %3327 = vmatprep.subr.bf16.mxu0 0
    %3328 = vmatpush1.bf16.xpose.msra.mxu0 %v1397
    %3329 = vmatprep.subr.bf16.mxu0 0
    %3330 = vmatpush1.bf16.xpose.msra.mxu0 0
    %3331 = vmatprep.subr.bf16.mxu0 0
    %3332 = vmatpush1.bf16.xpose.msra.mxu0 0
    %3333 = vmatprep.subr.bf16.mxu0 0
    %3334 = vmatpush1.bf16.xpose.msra.mxu0 0
    %3335 = vmatprep.subr.bf16.mxu0 0
    %3336 = vmatpush1.bf16.xpose.msra.mxu0 0
    %3337 = vmatprep.subr.bf16.mxu0 0
    %3338 = vmatpush1.bf16.xpose.msra.mxu0 0
    %3339 = vmatprep.subr.bf16.mxu0 0
    %3340 = vmatpush1.bf16.xpose.msra.mxu0 0
    %3341 = vmatprep.subr.bf16.mxu0 0
    %3342 = vmatpush1.bf16.xpose.msra.mxu0 0
    %3343 = vmatprep.subr.bf16.mxu0 0
    %3344 = vmatpush1.bf16.xpose.msra.mxu0 0
    %3345 = vmatprep.subr.bf16.mxu0 0
    %3346 = vmatpush1.bf16.xpose.msra.mxu0 0
    %3347 = vmatprep.subr.bf16.mxu0 0
    %3348 = vmatpush1.bf16.xpose.msra.mxu0 0
    %3349 = vmatprep.subr.bf16.mxu0 0
    %3350 = vmatpush1.bf16.xpose.msra.mxu0 0
    %3351 = vmatprep.subr.bf16.mxu0 0
    %3352 = vmatpush1.bf16.xpose.msra.mxu0 0
    %3353 = vmatprep.subr.bf16.mxu0 0
    %3354 = vmatpush1.bf16.xpose.msra.mxu0 0
    %3355 = vmatprep.subr.bf16.mxu0 0
    %3356 = vmatpush1.bf16.xpose.msra.mxu0 0
    %3357 = vmatprep.subr.bf16.mxu0 0
    %3358 = vmatpush1.bf16.xpose.msra.mxu0 0
    %3359 = vmatprep.mubr.bf16.mxu0 0
    %3360 = vmatmul.mubr.bf16.gmra.mrb[0].mxu0 %v1395
    %v3361 = vpop.f32.mrb[0].mxu0
    %v3362 = vadd.f32 0.0, %v3361
    %v3363 = vpop.f32.mrb[0].mxu0
    %v3364 = vpop.f32.mrb[0].mxu0
    %v3365 = vadd.f32 0.0, %v3364
    %v3366 = vpop.f32.mrb[0].mxu0
    %3367 = vdwg.mxu0
    %3368 = vmatprep.subr.bf16.mxu0 0
    %3369 = vmatpush1.bf16.xpose.msra.mxu0 %v1403
    %3370 = vmatprep.subr.bf16.mxu0 0
    %3371 = vmatpush1.bf16.xpose.msra.mxu0 0
    %3372 = vmatprep.subr.bf16.mxu0 0
    %3373 = vmatpush1.bf16.xpose.msra.mxu0 0
    %3374 = vmatprep.subr.bf16.mxu0 0
    %3375 = vmatpush1.bf16.xpose.msra.mxu0 0
    %3376 = vmatprep.subr.bf16.mxu0 0
    %3377 = vmatpush1.bf16.xpose.msra.mxu0 0
    %3378 = vmatprep.subr.bf16.mxu0 0
    %3379 = vmatpush1.bf16.xpose.msra.mxu0 0
    %3380 = vmatprep.subr.bf16.mxu0 0
    %3381 = vmatpush1.bf16.xpose.msra.mxu0 0
    %3382 = vmatprep.subr.bf16.mxu0 0
    %3383 = vmatpush1.bf16.xpose.msra.mxu0 0
    %3384 = vmatprep.subr.bf16.mxu0 0
    %3385 = vmatpush1.bf16.xpose.msra.mxu0 0
    %3386 = vmatprep.subr.bf16.mxu0 0
    %3387 = vmatpush1.bf16.xpose.msra.mxu0 0
    %3388 = vmatprep.subr.bf16.mxu0 0
    %3389 = vmatpush1.bf16.xpose.msra.mxu0 0
    %3390 = vmatprep.subr.bf16.mxu0 0
    %3391 = vmatpush1.bf16.xpose.msra.mxu0 0
    %3392 = vmatprep.subr.bf16.mxu0 0
    %3393 = vmatpush1.bf16.xpose.msra.mxu0 0
    %3394 = vmatprep.subr.bf16.mxu0 0
    %3395 = vmatpush1.bf16.xpose.msra.mxu0 0
    %3396 = vmatprep.subr.bf16.mxu0 0
    %3397 = vmatpush1.bf16.xpose.msra.mxu0 0
    %3398 = vmatprep.subr.bf16.mxu0 0
    %3399 = vmatpush1.bf16.xpose.msra.mxu0 0
    %3400 = vmatprep.mubr.bf16.mxu0 0
    %3401 = vmatmul.mubr.bf16.gmra.mrb[0].mxu0 %v1401
    %v3402 = vpop.f32.mrb[0].mxu0
    %v3403 = vadd.f32 0.0, %v3402
    %v3404 = vpop.f32.mrb[0].mxu0
    %v3405 = vpop.f32.mrb[0].mxu0
    %v3406 = vadd.f32 0.0, %v3405
    %v3407 = vpop.f32.mrb[0].mxu0
    %3408 = vdwg.mxu0
    %3409 = vmatprep.subr.bf16.mxu0 0
    %3410 = vmatpush1.bf16.xpose.msra.mxu0 %v1409
    %3411 = vmatprep.subr.bf16.mxu0 0
    %3412 = vmatpush1.bf16.xpose.msra.mxu0 0
    %3413 = vmatprep.subr.bf16.mxu0 0
    %3414 = vmatpush1.bf16.xpose.msra.mxu0 0
    %3415 = vmatprep.subr.bf16.mxu0 0
    %3416 = vmatpush1.bf16.xpose.msra.mxu0 0
    %3417 = vmatprep.subr.bf16.mxu0 0
    %3418 = vmatpush1.bf16.xpose.msra.mxu0 0
    %3419 = vmatprep.subr.bf16.mxu0 0
    %3420 = vmatpush1.bf16.xpose.msra.mxu0 0
    %3421 = vmatprep.subr.bf16.mxu0 0
    %3422 = vmatpush1.bf16.xpose.msra.mxu0 0
    %3423 = vmatprep.subr.bf16.mxu0 0
    %3424 = vmatpush1.bf16.xpose.msra.mxu0 0
    %3425 = vmatprep.subr.bf16.mxu0 0
    %3426 = vmatpush1.bf16.xpose.msra.mxu0 0
    %3427 = vmatprep.subr.bf16.mxu0 0
    %3428 = vmatpush1.bf16.xpose.msra.mxu0 0
    %3429 = vmatprep.subr.bf16.mxu0 0
    %3430 = vmatpush1.bf16.xpose.msra.mxu0 0
    %3431 = vmatprep.subr.bf16.mxu0 0
    %3432 = vmatpush1.bf16.xpose.msra.mxu0 0
    %3433 = vmatprep.subr.bf16.mxu0 0
    %3434 = vmatpush1.bf16.xpose.msra.mxu0 0
    %3435 = vmatprep.subr.bf16.mxu0 0
    %3436 = vmatpush1.bf16.xpose.msra.mxu0 0
    %3437 = vmatprep.subr.bf16.mxu0 0
    %3438 = vmatpush1.bf16.xpose.msra.mxu0 0
    %3439 = vmatprep.subr.bf16.mxu0 0
    %3440 = vmatpush1.bf16.xpose.msra.mxu0 0
    %3441 = vmatprep.mubr.bf16.mxu0 0
    %3442 = vmatmul.mubr.bf16.gmra.mrb[0].mxu0 %v1407
    %v3443 = vpop.f32.mrb[0].mxu0
    %v3444 = vadd.f32 0.0, %v3443
    %v3445 = vpop.f32.mrb[0].mxu0
    %v3446 = vpop.f32.mrb[0].mxu0
    %v3447 = vadd.f32 0.0, %v3446
    %v3448 = vpop.f32.mrb[0].mxu0
    %3449 = vdwg.mxu0
    %3450 = vmatprep.subr.bf16.mxu0 0
    %3451 = vmatpush1.bf16.xpose.msra.mxu0 %v1415
    %3452 = vmatprep.subr.bf16.mxu0 0
    %3453 = vmatpush1.bf16.xpose.msra.mxu0 0
    %3454 = vmatprep.subr.bf16.mxu0 0
    %3455 = vmatpush1.bf16.xpose.msra.mxu0 0
    %3456 = vmatprep.subr.bf16.mxu0 0
    %3457 = vmatpush1.bf16.xpose.msra.mxu0 0
    %3458 = vmatprep.subr.bf16.mxu0 0
    %3459 = vmatpush1.bf16.xpose.msra.mxu0 0
    %3460 = vmatprep.subr.bf16.mxu0 0
    %3461 = vmatpush1.bf16.xpose.msra.mxu0 0
    %3462 = vmatprep.subr.bf16.mxu0 0
    %3463 = vmatpush1.bf16.xpose.msra.mxu0 0
    %3464 = vmatprep.subr.bf16.mxu0 0
    %3465 = vmatpush1.bf16.xpose.msra.mxu0 0
    %3466 = vmatprep.subr.bf16.mxu0 0
    %3467 = vmatpush1.bf16.xpose.msra.mxu0 0
    %3468 = vmatprep.subr.bf16.mxu0 0
    %3469 = vmatpush1.bf16.xpose.msra.mxu0 0
    %3470 = vmatprep.subr.bf16.mxu0 0
    %3471 = vmatpush1.bf16.xpose.msra.mxu0 0
    %3472 = vmatprep.subr.bf16.mxu0 0
    %3473 = vmatpush1.bf16.xpose.msra.mxu0 0
    %3474 = vmatprep.subr.bf16.mxu0 0
    %3475 = vmatpush1.bf16.xpose.msra.mxu0 0
    %3476 = vmatprep.subr.bf16.mxu0 0
    %3477 = vmatpush1.bf16.xpose.msra.mxu0 0
    %3478 = vmatprep.subr.bf16.mxu0 0
    %3479 = vmatpush1.bf16.xpose.msra.mxu0 0
    %3480 = vmatprep.subr.bf16.mxu0 0
    %3481 = vmatpush1.bf16.xpose.msra.mxu0 0
    %3482 = vmatprep.mubr.bf16.mxu0 0
    %3483 = vmatmul.mubr.bf16.gmra.mrb[0].mxu0 %v1413
    %v3484 = vpop.f32.mrb[0].mxu0
    %v3485 = vadd.f32 0.0, %v3484
    %v3486 = vpop.f32.mrb[0].mxu0
    %v3487 = vpop.f32.mrb[0].mxu0
    %v3488 = vadd.f32 0.0, %v3487
    %v3489 = vpop.f32.mrb[0].mxu0
    %3490 = vdwg.mxu0
    %3491 = vmatprep.subr.bf16.mxu0 0
    %3492 = vmatpush1.bf16.xpose.msra.mxu0 %v1421
    %3493 = vmatprep.subr.bf16.mxu0 0
    %3494 = vmatpush1.bf16.xpose.msra.mxu0 0
    %3495 = vmatprep.subr.bf16.mxu0 0
    %3496 = vmatpush1.bf16.xpose.msra.mxu0 0
    %3497 = vmatprep.subr.bf16.mxu0 0
    %3498 = vmatpush1.bf16.xpose.msra.mxu0 0
    %3499 = vmatprep.subr.bf16.mxu0 0
    %3500 = vmatpush1.bf16.xpose.msra.mxu0 0
    %3501 = vmatprep.subr.bf16.mxu0 0
    %3502 = vmatpush1.bf16.xpose.msra.mxu0 0
    %3503 = vmatprep.subr.bf16.mxu0 0
    %3504 = vmatpush1.bf16.xpose.msra.mxu0 0
    %3505 = vmatprep.subr.bf16.mxu0 0
    %3506 = vmatpush1.bf16.xpose.msra.mxu0 0
    %3507 = vmatprep.subr.bf16.mxu0 0
    %3508 = vmatpush1.bf16.xpose.msra.mxu0 0
    %3509 = vmatprep.subr.bf16.mxu0 0
    %3510 = vmatpush1.bf16.xpose.msra.mxu0 0
    %3511 = vmatprep.subr.bf16.mxu0 0
    %3512 = vmatpush1.bf16.xpose.msra.mxu0 0
    %3513 = vmatprep.subr.bf16.mxu0 0
    %3514 = vmatpush1.bf16.xpose.msra.mxu0 0
    %3515 = vmatprep.subr.bf16.mxu0 0
    %3516 = vmatpush1.bf16.xpose.msra.mxu0 0
    %3517 = vmatprep.subr.bf16.mxu0 0
    %3518 = vmatpush1.bf16.xpose.msra.mxu0 0
    %3519 = vmatprep.subr.bf16.mxu0 0
    %3520 = vmatpush1.bf16.xpose.msra.mxu0 0
    %3521 = vmatprep.subr.bf16.mxu0 0
    %3522 = vmatpush1.bf16.xpose.msra.mxu0 0
    %3523 = vmatprep.mubr.bf16.mxu0 0
    %3524 = vmatmul.mubr.bf16.gmra.mrb[0].mxu0 %v1419
    %v3525 = vpop.f32.mrb[0].mxu0
    %v3526 = vadd.f32 0.0, %v3525
    %v3527 = vpop.f32.mrb[0].mxu0
    %v3528 = vpop.f32.mrb[0].mxu0
    %v3529 = vadd.f32 0.0, %v3528
    %v3530 = vpop.f32.mrb[0].mxu0
    %3531 = vdwg.mxu0
    %3532 = vmatprep.subr.bf16.mxu0 0
    %3533 = vmatpush1.bf16.xpose.msra.mxu0 %v1427
    %3534 = vmatprep.subr.bf16.mxu0 0
    %3535 = vmatpush1.bf16.xpose.msra.mxu0 0
    %3536 = vmatprep.subr.bf16.mxu0 0
    %3537 = vmatpush1.bf16.xpose.msra.mxu0 0
    %3538 = vmatprep.subr.bf16.mxu0 0
    %3539 = vmatpush1.bf16.xpose.msra.mxu0 0
    %3540 = vmatprep.subr.bf16.mxu0 0
    %3541 = vmatpush1.bf16.xpose.msra.mxu0 0
    %3542 = vmatprep.subr.bf16.mxu0 0
    %3543 = vmatpush1.bf16.xpose.msra.mxu0 0
    %3544 = vmatprep.subr.bf16.mxu0 0
    %3545 = vmatpush1.bf16.xpose.msra.mxu0 0
    %3546 = vmatprep.subr.bf16.mxu0 0
    %3547 = vmatpush1.bf16.xpose.msra.mxu0 0
    %3548 = vmatprep.subr.bf16.mxu0 0
    %3549 = vmatpush1.bf16.xpose.msra.mxu0 0
    %3550 = vmatprep.subr.bf16.mxu0 0
    %3551 = vmatpush1.bf16.xpose.msra.mxu0 0
    %3552 = vmatprep.subr.bf16.mxu0 0
    %3553 = vmatpush1.bf16.xpose.msra.mxu0 0
    %3554 = vmatprep.subr.bf16.mxu0 0
    %3555 = vmatpush1.bf16.xpose.msra.mxu0 0
    %3556 = vmatprep.subr.bf16.mxu0 0
    %3557 = vmatpush1.bf16.xpose.msra.mxu0 0
    %3558 = vmatprep.subr.bf16.mxu0 0
    %3559 = vmatpush1.bf16.xpose.msra.mxu0 0
    %3560 = vmatprep.subr.bf16.mxu0 0
    %3561 = vmatpush1.bf16.xpose.msra.mxu0 0
    %3562 = vmatprep.subr.bf16.mxu0 0
    %3563 = vmatpush1.bf16.xpose.msra.mxu0 0
    %3564 = vmatprep.mubr.bf16.mxu0 0
    %3565 = vmatmul.mubr.bf16.gmra.mrb[0].mxu0 %v1425
    %v3566 = vpop.f32.mrb[0].mxu0
    %v3567 = vadd.f32 0.0, %v3566
    %v3568 = vpop.f32.mrb[0].mxu0
    %v3569 = vpop.f32.mrb[0].mxu0
    %v3570 = vadd.f32 0.0, %v3569
    %v3571 = vpop.f32.mrb[0].mxu0
    %3572 = vdwg.mxu0
    %3573 = vmatprep.subr.bf16.mxu0 0
    %3574 = vmatpush1.bf16.xpose.msra.mxu0 %v1433
    %3575 = vmatprep.subr.bf16.mxu0 0
    %3576 = vmatpush1.bf16.xpose.msra.mxu0 0
    %3577 = vmatprep.subr.bf16.mxu0 0
    %3578 = vmatpush1.bf16.xpose.msra.mxu0 0
    %3579 = vmatprep.subr.bf16.mxu0 0
    %3580 = vmatpush1.bf16.xpose.msra.mxu0 0
    %3581 = vmatprep.subr.bf16.mxu0 0
    %3582 = vmatpush1.bf16.xpose.msra.mxu0 0
    %3583 = vmatprep.subr.bf16.mxu0 0
    %3584 = vmatpush1.bf16.xpose.msra.mxu0 0
    %3585 = vmatprep.subr.bf16.mxu0 0
    %3586 = vmatpush1.bf16.xpose.msra.mxu0 0
    %3587 = vmatprep.subr.bf16.mxu0 0
    %3588 = vmatpush1.bf16.xpose.msra.mxu0 0
    %3589 = vmatprep.subr.bf16.mxu0 0
    %3590 = vmatpush1.bf16.xpose.msra.mxu0 0
    %3591 = vmatprep.subr.bf16.mxu0 0
    %3592 = vmatpush1.bf16.xpose.msra.mxu0 0
    %3593 = vmatprep.subr.bf16.mxu0 0
    %3594 = vmatpush1.bf16.xpose.msra.mxu0 0
    %3595 = vmatprep.subr.bf16.mxu0 0
    %3596 = vmatpush1.bf16.xpose.msra.mxu0 0
    %3597 = vmatprep.subr.bf16.mxu0 0
    %3598 = vmatpush1.bf16.xpose.msra.mxu0 0
    %3599 = vmatprep.subr.bf16.mxu0 0
    %3600 = vmatpush1.bf16.xpose.msra.mxu0 0
    %3601 = vmatprep.subr.bf16.mxu0 0
    %3602 = vmatpush1.bf16.xpose.msra.mxu0 0
    %3603 = vmatprep.subr.bf16.mxu0 0
    %3604 = vmatpush1.bf16.xpose.msra.mxu0 0
    %3605 = vmatprep.mubr.bf16.mxu0 0
    %3606 = vmatmul.mubr.bf16.gmra.mrb[0].mxu0 %v1431
    %v3607 = vpop.f32.mrb[0].mxu0
    %v3608 = vadd.f32 0.0, %v3607
    %v3609 = vpop.f32.mrb[0].mxu0
    %v3610 = vpop.f32.mrb[0].mxu0
    %v3611 = vadd.f32 0.0, %v3610
    %v3612 = vpop.f32.mrb[0].mxu0
    %3613 = vdwg.mxu0
    %3614 = vmatprep.subr.bf16.mxu0 0
    %3615 = vmatpush1.bf16.xpose.msra.mxu0 %v1439
    %3616 = vmatprep.subr.bf16.mxu0 0
    %3617 = vmatpush1.bf16.xpose.msra.mxu0 0
    %3618 = vmatprep.subr.bf16.mxu0 0
    %3619 = vmatpush1.bf16.xpose.msra.mxu0 0
    %3620 = vmatprep.subr.bf16.mxu0 0
    %3621 = vmatpush1.bf16.xpose.msra.mxu0 0
    %3622 = vmatprep.subr.bf16.mxu0 0
    %3623 = vmatpush1.bf16.xpose.msra.mxu0 0
    %3624 = vmatprep.subr.bf16.mxu0 0
    %3625 = vmatpush1.bf16.xpose.msra.mxu0 0
    %3626 = vmatprep.subr.bf16.mxu0 0
    %3627 = vmatpush1.bf16.xpose.msra.mxu0 0
    %3628 = vmatprep.subr.bf16.mxu0 0
    %3629 = vmatpush1.bf16.xpose.msra.mxu0 0
    %3630 = vmatprep.subr.bf16.mxu0 0
    %3631 = vmatpush1.bf16.xpose.msra.mxu0 0
    %3632 = vmatprep.subr.bf16.mxu0 0
    %3633 = vmatpush1.bf16.xpose.msra.mxu0 0
    %3634 = vmatprep.subr.bf16.mxu0 0
    %3635 = vmatpush1.bf16.xpose.msra.mxu0 0
    %3636 = vmatprep.subr.bf16.mxu0 0
    %3637 = vmatpush1.bf16.xpose.msra.mxu0 0
    %3638 = vmatprep.subr.bf16.mxu0 0
    %3639 = vmatpush1.bf16.xpose.msra.mxu0 0
    %3640 = vmatprep.subr.bf16.mxu0 0
    %3641 = vmatpush1.bf16.xpose.msra.mxu0 0
    %3642 = vmatprep.subr.bf16.mxu0 0
    %3643 = vmatpush1.bf16.xpose.msra.mxu0 0
    %3644 = vmatprep.subr.bf16.mxu0 0
    %3645 = vmatpush1.bf16.xpose.msra.mxu0 0
    %3646 = vmatprep.mubr.bf16.mxu0 0
    %3647 = vmatmul.mubr.bf16.gmra.mrb[0].mxu0 %v1437
    %v3648 = vpop.f32.mrb[0].mxu0
    %v3649 = vadd.f32 0.0, %v3648
    %v3650 = vpop.f32.mrb[0].mxu0
    %v3651 = vpop.f32.mrb[0].mxu0
    %v3652 = vadd.f32 0.0, %v3651
    %v3653 = vpop.f32.mrb[0].mxu0
    %3654 = vdwg.mxu0
    %3655 = vmatprep.subr.bf16.mxu0 0
    %3656 = vmatpush1.bf16.xpose.msra.mxu0 %v1445
    %3657 = vmatprep.subr.bf16.mxu0 0
    %3658 = vmatpush1.bf16.xpose.msra.mxu0 0
    %3659 = vmatprep.subr.bf16.mxu0 0
    %3660 = vmatpush1.bf16.xpose.msra.mxu0 0
    %3661 = vmatprep.subr.bf16.mxu0 0
    %3662 = vmatpush1.bf16.xpose.msra.mxu0 0
    %3663 = vmatprep.subr.bf16.mxu0 0
    %3664 = vmatpush1.bf16.xpose.msra.mxu0 0
    %3665 = vmatprep.subr.bf16.mxu0 0
    %3666 = vmatpush1.bf16.xpose.msra.mxu0 0
    %3667 = vmatprep.subr.bf16.mxu0 0
    %3668 = vmatpush1.bf16.xpose.msra.mxu0 0
    %3669 = vmatprep.subr.bf16.mxu0 0
    %3670 = vmatpush1.bf16.xpose.msra.mxu0 0
    %3671 = vmatprep.subr.bf16.mxu0 0
    %3672 = vmatpush1.bf16.xpose.msra.mxu0 0
    %3673 = vmatprep.subr.bf16.mxu0 0
    %3674 = vmatpush1.bf16.xpose.msra.mxu0 0
    %3675 = vmatprep.subr.bf16.mxu0 0
    %3676 = vmatpush1.bf16.xpose.msra.mxu0 0
    %3677 = vmatprep.subr.bf16.mxu0 0
    %3678 = vmatpush1.bf16.xpose.msra.mxu0 0
    %3679 = vmatprep.subr.bf16.mxu0 0
    %3680 = vmatpush1.bf16.xpose.msra.mxu0 0
    %3681 = vmatprep.subr.bf16.mxu0 0
    %3682 = vmatpush1.bf16.xpose.msra.mxu0 0
    %3683 = vmatprep.subr.bf16.mxu0 0
    %3684 = vmatpush1.bf16.xpose.msra.mxu0 0
    %3685 = vmatprep.subr.bf16.mxu0 0
    %3686 = vmatpush1.bf16.xpose.msra.mxu0 0
    %3687 = vmatprep.mubr.bf16.mxu0 0
    %3688 = vmatmul.mubr.bf16.gmra.mrb[0].mxu0 %v1443
    %v3689 = vpop.f32.mrb[0].mxu0
    %v3690 = vadd.f32 0.0, %v3689
    %v3691 = vpop.f32.mrb[0].mxu0
    %v3692 = vpop.f32.mrb[0].mxu0
    %v3693 = vadd.f32 0.0, %v3692
    %v3694 = vpop.f32.mrb[0].mxu0
    %3695 = vdwg.mxu0
    %3696 = vmatprep.subr.bf16.mxu0 0
    %3697 = vmatpush1.bf16.xpose.msra.mxu0 %v1451
    %3698 = vmatprep.subr.bf16.mxu0 0
    %3699 = vmatpush1.bf16.xpose.msra.mxu0 0
    %3700 = vmatprep.subr.bf16.mxu0 0
    %3701 = vmatpush1.bf16.xpose.msra.mxu0 0
    %3702 = vmatprep.subr.bf16.mxu0 0
    %3703 = vmatpush1.bf16.xpose.msra.mxu0 0
    %3704 = vmatprep.subr.bf16.mxu0 0
    %3705 = vmatpush1.bf16.xpose.msra.mxu0 0
    %3706 = vmatprep.subr.bf16.mxu0 0
    %3707 = vmatpush1.bf16.xpose.msra.mxu0 0
    %3708 = vmatprep.subr.bf16.mxu0 0
    %3709 = vmatpush1.bf16.xpose.msra.mxu0 0
    %3710 = vmatprep.subr.bf16.mxu0 0
    %3711 = vmatpush1.bf16.xpose.msra.mxu0 0
    %3712 = vmatprep.subr.bf16.mxu0 0
    %3713 = vmatpush1.bf16.xpose.msra.mxu0 0
    %3714 = vmatprep.subr.bf16.mxu0 0
    %3715 = vmatpush1.bf16.xpose.msra.mxu0 0
    %3716 = vmatprep.subr.bf16.mxu0 0
    %3717 = vmatpush1.bf16.xpose.msra.mxu0 0
    %3718 = vmatprep.subr.bf16.mxu0 0
    %3719 = vmatpush1.bf16.xpose.msra.mxu0 0
    %3720 = vmatprep.subr.bf16.mxu0 0
    %3721 = vmatpush1.bf16.xpose.msra.mxu0 0
    %3722 = vmatprep.subr.bf16.mxu0 0
    %3723 = vmatpush1.bf16.xpose.msra.mxu0 0
    %3724 = vmatprep.subr.bf16.mxu0 0
    %3725 = vmatpush1.bf16.xpose.msra.mxu0 0
    %3726 = vmatprep.subr.bf16.mxu0 0
    %3727 = vmatpush1.bf16.xpose.msra.mxu0 0
    %3728 = vmatprep.mubr.bf16.mxu0 0
    %3729 = vmatmul.mubr.bf16.gmra.mrb[0].mxu0 %v1449
    %v3730 = vpop.f32.mrb[0].mxu0
    %v3731 = vadd.f32 0.0, %v3730
    %v3732 = vpop.f32.mrb[0].mxu0
    %v3733 = vpop.f32.mrb[0].mxu0
    %v3734 = vadd.f32 0.0, %v3733
    %v3735 = vpop.f32.mrb[0].mxu0
    %3736 = vdwg.mxu0
    %3737 = vmatprep.subr.bf16.mxu0 0
    %3738 = vmatpush1.bf16.xpose.msra.mxu0 %v1457
    %3739 = vmatprep.subr.bf16.mxu0 0
    %3740 = vmatpush1.bf16.xpose.msra.mxu0 0
    %3741 = vmatprep.subr.bf16.mxu0 0
    %3742 = vmatpush1.bf16.xpose.msra.mxu0 0
    %3743 = vmatprep.subr.bf16.mxu0 0
    %3744 = vmatpush1.bf16.xpose.msra.mxu0 0
    %3745 = vmatprep.subr.bf16.mxu0 0
    %3746 = vmatpush1.bf16.xpose.msra.mxu0 0
    %3747 = vmatprep.subr.bf16.mxu0 0
    %3748 = vmatpush1.bf16.xpose.msra.mxu0 0
    %3749 = vmatprep.subr.bf16.mxu0 0
    %3750 = vmatpush1.bf16.xpose.msra.mxu0 0
    %3751 = vmatprep.subr.bf16.mxu0 0
    %3752 = vmatpush1.bf16.xpose.msra.mxu0 0
    %3753 = vmatprep.subr.bf16.mxu0 0
    %3754 = vmatpush1.bf16.xpose.msra.mxu0 0
    %3755 = vmatprep.subr.bf16.mxu0 0
    %3756 = vmatpush1.bf16.xpose.msra.mxu0 0
    %3757 = vmatprep.subr.bf16.mxu0 0
    %3758 = vmatpush1.bf16.xpose.msra.mxu0 0
    %3759 = vmatprep.subr.bf16.mxu0 0
    %3760 = vmatpush1.bf16.xpose.msra.mxu0 0
    %3761 = vmatprep.subr.bf16.mxu0 0
    %3762 = vmatpush1.bf16.xpose.msra.mxu0 0
    %3763 = vmatprep.subr.bf16.mxu0 0
    %3764 = vmatpush1.bf16.xpose.msra.mxu0 0
    %3765 = vmatprep.subr.bf16.mxu0 0
    %3766 = vmatpush1.bf16.xpose.msra.mxu0 0
    %3767 = vmatprep.subr.bf16.mxu0 0
    %3768 = vmatpush1.bf16.xpose.msra.mxu0 0
    %3769 = vmatprep.mubr.bf16.mxu0 0
    %3770 = vmatmul.mubr.bf16.gmra.mrb[0].mxu0 %v1455
    %v3771 = vpop.f32.mrb[0].mxu0
    %v3772 = vadd.f32 0.0, %v3771
    %v3773 = vpop.f32.mrb[0].mxu0
    %v3774 = vpop.f32.mrb[0].mxu0
    %v3775 = vadd.f32 0.0, %v3774
    %v3776 = vpop.f32.mrb[0].mxu0
    %3777 = vdwg.mxu0
    %3778 = vmatprep.subr.bf16.mxu0 0
    %3779 = vmatpush1.bf16.xpose.msra.mxu0 %v1463
    %3780 = vmatprep.subr.bf16.mxu0 0
    %3781 = vmatpush1.bf16.xpose.msra.mxu0 0
    %3782 = vmatprep.subr.bf16.mxu0 0
    %3783 = vmatpush1.bf16.xpose.msra.mxu0 0
    %3784 = vmatprep.subr.bf16.mxu0 0
    %3785 = vmatpush1.bf16.xpose.msra.mxu0 0
    %3786 = vmatprep.subr.bf16.mxu0 0
    %3787 = vmatpush1.bf16.xpose.msra.mxu0 0
    %3788 = vmatprep.subr.bf16.mxu0 0
    %3789 = vmatpush1.bf16.xpose.msra.mxu0 0
    %3790 = vmatprep.subr.bf16.mxu0 0
    %3791 = vmatpush1.bf16.xpose.msra.mxu0 0
    %3792 = vmatprep.subr.bf16.mxu0 0
    %3793 = vmatpush1.bf16.xpose.msra.mxu0 0
    %3794 = vmatprep.subr.bf16.mxu0 0
    %3795 = vmatpush1.bf16.xpose.msra.mxu0 0
    %3796 = vmatprep.subr.bf16.mxu0 0
    %3797 = vmatpush1.bf16.xpose.msra.mxu0 0
    %3798 = vmatprep.subr.bf16.mxu0 0
    %3799 = vmatpush1.bf16.xpose.msra.mxu0 0
    %3800 = vmatprep.subr.bf16.mxu0 0
    %3801 = vmatpush1.bf16.xpose.msra.mxu0 0
    %3802 = vmatprep.subr.bf16.mxu0 0
    %3803 = vmatpush1.bf16.xpose.msra.mxu0 0
    %3804 = vmatprep.subr.bf16.mxu0 0
    %3805 = vmatpush1.bf16.xpose.msra.mxu0 0
    %3806 = vmatprep.subr.bf16.mxu0 0
    %3807 = vmatpush1.bf16.xpose.msra.mxu0 0
    %3808 = vmatprep.subr.bf16.mxu0 0
    %3809 = vmatpush1.bf16.xpose.msra.mxu0 0
    %3810 = vmatprep.mubr.bf16.mxu0 0
    %3811 = vmatmul.mubr.bf16.gmra.mrb[0].mxu0 %v1461
    %v3812 = vpop.f32.mrb[0].mxu0
    %v3813 = vadd.f32 0.0, %v3812
    %v3814 = vpop.f32.mrb[0].mxu0
    %v3815 = vpop.f32.mrb[0].mxu0
    %v3816 = vadd.f32 0.0, %v3815
    %v3817 = vpop.f32.mrb[0].mxu0
    %3818 = vdwg.mxu0
    %3819 = vmatprep.subr.bf16.mxu0 0
    %3820 = vmatpush1.bf16.xpose.msra.mxu0 %v1469
    %3821 = vmatprep.subr.bf16.mxu0 0
    %3822 = vmatpush1.bf16.xpose.msra.mxu0 0
    %3823 = vmatprep.subr.bf16.mxu0 0
    %3824 = vmatpush1.bf16.xpose.msra.mxu0 0
    %3825 = vmatprep.subr.bf16.mxu0 0
    %3826 = vmatpush1.bf16.xpose.msra.mxu0 0
    %3827 = vmatprep.subr.bf16.mxu0 0
    %3828 = vmatpush1.bf16.xpose.msra.mxu0 0
    %3829 = vmatprep.subr.bf16.mxu0 0
    %3830 = vmatpush1.bf16.xpose.msra.mxu0 0
    %3831 = vmatprep.subr.bf16.mxu0 0
    %3832 = vmatpush1.bf16.xpose.msra.mxu0 0
    %3833 = vmatprep.subr.bf16.mxu0 0
    %3834 = vmatpush1.bf16.xpose.msra.mxu0 0
    %3835 = vmatprep.subr.bf16.mxu0 0
    %3836 = vmatpush1.bf16.xpose.msra.mxu0 0
    %3837 = vmatprep.subr.bf16.mxu0 0
    %3838 = vmatpush1.bf16.xpose.msra.mxu0 0
    %3839 = vmatprep.subr.bf16.mxu0 0
    %3840 = vmatpush1.bf16.xpose.msra.mxu0 0
    %3841 = vmatprep.subr.bf16.mxu0 0
    %3842 = vmatpush1.bf16.xpose.msra.mxu0 0
    %3843 = vmatprep.subr.bf16.mxu0 0
    %3844 = vmatpush1.bf16.xpose.msra.mxu0 0
    %3845 = vmatprep.subr.bf16.mxu0 0
    %3846 = vmatpush1.bf16.xpose.msra.mxu0 0
    %3847 = vmatprep.subr.bf16.mxu0 0
    %3848 = vmatpush1.bf16.xpose.msra.mxu0 0
    %3849 = vmatprep.subr.bf16.mxu0 0
    %3850 = vmatpush1.bf16.xpose.msra.mxu0 0
    %3851 = vmatprep.mubr.bf16.mxu0 0
    %3852 = vmatmul.mubr.bf16.gmra.mrb[0].mxu0 %v1467
    %v3853 = vpop.f32.mrb[0].mxu0
    %v3854 = vadd.f32 0.0, %v3853
    %v3855 = vpop.f32.mrb[0].mxu0
    %v3856 = vpop.f32.mrb[0].mxu0
    %v3857 = vadd.f32 0.0, %v3856
    %v3858 = vpop.f32.mrb[0].mxu0
    %3859 = vdwg.mxu0
    %3860 = vmatprep.subr.bf16.mxu0 0
    %3861 = vmatpush1.bf16.xpose.msra.mxu0 %v1475
    %3862 = vmatprep.subr.bf16.mxu0 0
    %3863 = vmatpush1.bf16.xpose.msra.mxu0 0
    %3864 = vmatprep.subr.bf16.mxu0 0
    %3865 = vmatpush1.bf16.xpose.msra.mxu0 0
    %3866 = vmatprep.subr.bf16.mxu0 0
    %3867 = vmatpush1.bf16.xpose.msra.mxu0 0
    %3868 = vmatprep.subr.bf16.mxu0 0
    %3869 = vmatpush1.bf16.xpose.msra.mxu0 0
    %3870 = vmatprep.subr.bf16.mxu0 0
    %3871 = vmatpush1.bf16.xpose.msra.mxu0 0
    %3872 = vmatprep.subr.bf16.mxu0 0
    %3873 = vmatpush1.bf16.xpose.msra.mxu0 0
    %3874 = vmatprep.subr.bf16.mxu0 0
    %3875 = vmatpush1.bf16.xpose.msra.mxu0 0
    %3876 = vmatprep.subr.bf16.mxu0 0
    %3877 = vmatpush1.bf16.xpose.msra.mxu0 0
    %3878 = vmatprep.subr.bf16.mxu0 0
    %3879 = vmatpush1.bf16.xpose.msra.mxu0 0
    %3880 = vmatprep.subr.bf16.mxu0 0
    %3881 = vmatpush1.bf16.xpose.msra.mxu0 0
    %3882 = vmatprep.subr.bf16.mxu0 0
    %3883 = vmatpush1.bf16.xpose.msra.mxu0 0
    %3884 = vmatprep.subr.bf16.mxu0 0
    %3885 = vmatpush1.bf16.xpose.msra.mxu0 0
    %3886 = vmatprep.subr.bf16.mxu0 0
    %3887 = vmatpush1.bf16.xpose.msra.mxu0 0
    %3888 = vmatprep.subr.bf16.mxu0 0
    %3889 = vmatpush1.bf16.xpose.msra.mxu0 0
    %3890 = vmatprep.subr.bf16.mxu0 0
    %3891 = vmatpush1.bf16.xpose.msra.mxu0 0
    %3892 = vmatprep.mubr.bf16.mxu0 0
    %3893 = vmatmul.mubr.bf16.gmra.mrb[0].mxu0 %v1473
    %v3894 = vpop.f32.mrb[0].mxu0
    %v3895 = vadd.f32 0.0, %v3894
    %v3896 = vpop.f32.mrb[0].mxu0
    %v3897 = vpop.f32.mrb[0].mxu0
    %v3898 = vadd.f32 0.0, %v3897
    %v3899 = vpop.f32.mrb[0].mxu0
    %3900 = vdwg.mxu0
    %3901 = vmatprep.subr.bf16.mxu0 0
    %3902 = vmatpush1.bf16.xpose.msra.mxu0 %v1481
    %3903 = vmatprep.subr.bf16.mxu0 0
    %3904 = vmatpush1.bf16.xpose.msra.mxu0 0
    %3905 = vmatprep.subr.bf16.mxu0 0
    %3906 = vmatpush1.bf16.xpose.msra.mxu0 0
    %3907 = vmatprep.subr.bf16.mxu0 0
    %3908 = vmatpush1.bf16.xpose.msra.mxu0 0
    %3909 = vmatprep.subr.bf16.mxu0 0
    %3910 = vmatpush1.bf16.xpose.msra.mxu0 0
    %3911 = vmatprep.subr.bf16.mxu0 0
    %3912 = vmatpush1.bf16.xpose.msra.mxu0 0
    %3913 = vmatprep.subr.bf16.mxu0 0
    %3914 = vmatpush1.bf16.xpose.msra.mxu0 0
    %3915 = vmatprep.subr.bf16.mxu0 0
    %3916 = vmatpush1.bf16.xpose.msra.mxu0 0
    %3917 = vmatprep.subr.bf16.mxu0 0
    %3918 = vmatpush1.bf16.xpose.msra.mxu0 0
    %3919 = vmatprep.subr.bf16.mxu0 0
    %3920 = vmatpush1.bf16.xpose.msra.mxu0 0
    %3921 = vmatprep.subr.bf16.mxu0 0
    %3922 = vmatpush1.bf16.xpose.msra.mxu0 0
    %3923 = vmatprep.subr.bf16.mxu0 0
    %3924 = vmatpush1.bf16.xpose.msra.mxu0 0
    %3925 = vmatprep.subr.bf16.mxu0 0
    %3926 = vmatpush1.bf16.xpose.msra.mxu0 0
    %3927 = vmatprep.subr.bf16.mxu0 0
    %3928 = vmatpush1.bf16.xpose.msra.mxu0 0
    %3929 = vmatprep.subr.bf16.mxu0 0
    %3930 = vmatpush1.bf16.xpose.msra.mxu0 0
    %3931 = vmatprep.subr.bf16.mxu0 0
    %3932 = vmatpush1.bf16.xpose.msra.mxu0 0
    %3933 = vmatprep.mubr.bf16.mxu0 0
    %3934 = vmatmul.mubr.bf16.gmra.mrb[0].mxu0 %v1479
    %v3935 = vpop.f32.mrb[0].mxu0
    %v3936 = vadd.f32 0.0, %v3935
    %v3937 = vpop.f32.mrb[0].mxu0
    %v3938 = vpop.f32.mrb[0].mxu0
    %v3939 = vadd.f32 0.0, %v3938
    %v3940 = vpop.f32.mrb[0].mxu0
    %3941 = vdwg.mxu0
    %3942 = vmatprep.subr.bf16.mxu0 0
    %3943 = vmatpush1.bf16.xpose.msra.mxu0 %v1487
    %3944 = vmatprep.subr.bf16.mxu0 0
    %3945 = vmatpush1.bf16.xpose.msra.mxu0 0
    %3946 = vmatprep.subr.bf16.mxu0 0
    %3947 = vmatpush1.bf16.xpose.msra.mxu0 0
    %3948 = vmatprep.subr.bf16.mxu0 0
    %3949 = vmatpush1.bf16.xpose.msra.mxu0 0
    %3950 = vmatprep.subr.bf16.mxu0 0
    %3951 = vmatpush1.bf16.xpose.msra.mxu0 0
    %3952 = vmatprep.subr.bf16.mxu0 0
    %3953 = vmatpush1.bf16.xpose.msra.mxu0 0
    %3954 = vmatprep.subr.bf16.mxu0 0
    %3955 = vmatpush1.bf16.xpose.msra.mxu0 0
    %3956 = vmatprep.subr.bf16.mxu0 0
    %3957 = vmatpush1.bf16.xpose.msra.mxu0 0
    %3958 = vmatprep.subr.bf16.mxu0 0
    %3959 = vmatpush1.bf16.xpose.msra.mxu0 0
    %3960 = vmatprep.subr.bf16.mxu0 0
    %3961 = vmatpush1.bf16.xpose.msra.mxu0 0
    %3962 = vmatprep.subr.bf16.mxu0 0
    %3963 = vmatpush1.bf16.xpose.msra.mxu0 0
    %3964 = vmatprep.subr.bf16.mxu0 0
    %3965 = vmatpush1.bf16.xpose.msra.mxu0 0
    %3966 = vmatprep.subr.bf16.mxu0 0
    %3967 = vmatpush1.bf16.xpose.msra.mxu0 0
    %3968 = vmatprep.subr.bf16.mxu0 0
    %3969 = vmatpush1.bf16.xpose.msra.mxu0 0
    %3970 = vmatprep.subr.bf16.mxu0 0
    %3971 = vmatpush1.bf16.xpose.msra.mxu0 0
    %3972 = vmatprep.subr.bf16.mxu0 0
    %3973 = vmatpush1.bf16.xpose.msra.mxu0 0
    %3974 = vmatprep.mubr.bf16.mxu0 0
    %3975 = vmatmul.mubr.bf16.gmra.mrb[0].mxu0 %v1485
    %v3976 = vpop.f32.mrb[0].mxu0
    %v3977 = vadd.f32 0.0, %v3976
    %v3978 = vpop.f32.mrb[0].mxu0
    %v3979 = vpop.f32.mrb[0].mxu0
    %v3980 = vadd.f32 0.0, %v3979
    %v3981 = vpop.f32.mrb[0].mxu0
    %3982 = vdwg.mxu0
    %v3983 = vsel %vm2156, %v3362, -1e+30
    %v3984 = vsel %vm2157, %v3365, -1e+30
    %v3985 = vsel %vm2156, %v3403, -1e+30
    %v3986 = vsel %vm2157, %v3406, -1e+30
    %v3987 = vsel %vm2156, %v3444, -1e+30
    %v3988 = vsel %vm2157, %v3447, -1e+30
    %v3989 = vsel %vm2156, %v3485, -1e+30
    %v3990 = vsel %vm2157, %v3488, -1e+30
    %v3991 = vsel %vm2156, %v3526, -1e+30
    %v3992 = vsel %vm2157, %v3529, -1e+30
    %v3993 = vsel %vm2156, %v3567, -1e+30
    %v3994 = vsel %vm2157, %v3570, -1e+30
    %v3995 = vsel %vm2156, %v3608, -1e+30
    %v3996 = vsel %vm2157, %v3611, -1e+30
    %v3997 = vsel %vm2156, %v3649, -1e+30
    %v3998 = vsel %vm2157, %v3652, -1e+30
    %v3999 = vsel %vm2156, %v3690, -1e+30
    %v4000 = vsel %vm2157, %v3693, -1e+30
    %v4001 = vsel %vm2156, %v3731, -1e+30
    %v4002 = vsel %vm2157, %v3734, -1e+30
    %v4003 = vsel %vm2156, %v3772, -1e+30
    %v4004 = vsel %vm2157, %v3775, -1e+30
    %v4005 = vsel %vm2156, %v3813, -1e+30
    %v4006 = vsel %vm2157, %v3816, -1e+30
    %v4007 = vsel %vm2156, %v3854, -1e+30
    %v4008 = vsel %vm2157, %v3857, -1e+30
    %v4009 = vsel %vm2156, %v3895, -1e+30
    %v4010 = vsel %vm2157, %v3898, -1e+30
    %v4011 = vsel %vm2156, %v3936, -1e+30
    %v4012 = vsel %vm2157, %v3939, -1e+30
    %v4013 = vsel %vm2156, %v3977, -1e+30
    %v4014 = vsel %vm2157, %v3980, -1e+30
    %v4015 = vsel %vm2190, %v3983, -inf
    %4016 = vmax.xlane.f32.xlu0 %v4015
    %v4017 = vpop.xlane.xlu0 %4016
    %v4018 = vsel %vm2190, %v3984, -inf
    %4019 = vmax.xlane.f32.xlu0 %v4018
    %v4020 = vpop.xlane.xlu0 %4019
    %v4021 = vsel %vm2190, %v3985, -inf
    %4022 = vmax.xlane.f32.xlu0 %v4021
    %v4023 = vpop.xlane.xlu0 %4022
    %v4024 = vsel %vm2190, %v3986, -inf
    %4025 = vmax.xlane.f32.xlu0 %v4024
    %v4026 = vpop.xlane.xlu0 %4025
    %v4027 = vsel %vm2190, %v3987, -inf
    %4028 = vmax.xlane.f32.xlu0 %v4027
    %v4029 = vpop.xlane.xlu0 %4028
    %v4030 = vsel %vm2190, %v3988, -inf
    %4031 = vmax.xlane.f32.xlu0 %v4030
    %v4032 = vpop.xlane.xlu0 %4031
    %v4033 = vsel %vm2190, %v3989, -inf
    %4034 = vmax.xlane.f32.xlu0 %v4033
    %v4035 = vpop.xlane.xlu0 %4034
    %v4036 = vsel %vm2190, %v3990, -inf
    %4037 = vmax.xlane.f32.xlu0 %v4036
    %v4038 = vpop.xlane.xlu0 %4037
    %v4039 = vsel %vm2190, %v3991, -inf
    %4040 = vmax.xlane.f32.xlu0 %v4039
    %v4041 = vpop.xlane.xlu0 %4040
    %v4042 = vsel %vm2190, %v3992, -inf
    %4043 = vmax.xlane.f32.xlu0 %v4042
    %v4044 = vpop.xlane.xlu0 %4043
    %v4045 = vsel %vm2190, %v3993, -inf
    %4046 = vmax.xlane.f32.xlu0 %v4045
    %v4047 = vpop.xlane.xlu0 %4046
    %v4048 = vsel %vm2190, %v3994, -inf
    %4049 = vmax.xlane.f32.xlu0 %v4048
    %v4050 = vpop.xlane.xlu0 %4049
    %v4051 = vsel %vm2190, %v3995, -inf
    %4052 = vmax.xlane.f32.xlu0 %v4051
    %v4053 = vpop.xlane.xlu0 %4052
    %v4054 = vsel %vm2190, %v3996, -inf
    %4055 = vmax.xlane.f32.xlu0 %v4054
    %v4056 = vpop.xlane.xlu0 %4055
    %v4057 = vsel %vm2190, %v3997, -inf
    %4058 = vmax.xlane.f32.xlu0 %v4057
    %v4059 = vpop.xlane.xlu0 %4058
    %v4060 = vsel %vm2190, %v3998, -inf
    %4061 = vmax.xlane.f32.xlu0 %v4060
    %v4062 = vpop.xlane.xlu0 %4061
    %v4063 = vsel %vm2190, %v3999, -inf
    %4064 = vmax.xlane.f32.xlu0 %v4063
    %v4065 = vpop.xlane.xlu0 %4064
    %v4066 = vsel %vm2190, %v4000, -inf
    %4067 = vmax.xlane.f32.xlu0 %v4066
    %v4068 = vpop.xlane.xlu0 %4067
    %v4069 = vsel %vm2190, %v4001, -inf
    %4070 = vmax.xlane.f32.xlu0 %v4069
    %v4071 = vpop.xlane.xlu0 %4070
    %v4072 = vsel %vm2190, %v4002, -inf
    %4073 = vmax.xlane.f32.xlu0 %v4072
    %v4074 = vpop.xlane.xlu0 %4073
    %v4075 = vsel %vm2190, %v4003, -inf
    %4076 = vmax.xlane.f32.xlu0 %v4075
    %v4077 = vpop.xlane.xlu0 %4076
    %v4078 = vsel %vm2190, %v4004, -inf
    %4079 = vmax.xlane.f32.xlu0 %v4078
    %v4080 = vpop.xlane.xlu0 %4079
    %v4081 = vsel %vm2190, %v4005, -inf
    %4082 = vmax.xlane.f32.xlu0 %v4081
    %v4083 = vpop.xlane.xlu0 %4082
    %v4084 = vsel %vm2190, %v4006, -inf
    %4085 = vmax.xlane.f32.xlu0 %v4084
    %v4086 = vpop.xlane.xlu0 %4085
    %v4087 = vsel %vm2190, %v4007, -inf
    %4088 = vmax.xlane.f32.xlu0 %v4087
    %v4089 = vpop.xlane.xlu0 %4088
    %v4090 = vsel %vm2190, %v4008, -inf
    %4091 = vmax.xlane.f32.xlu0 %v4090
    %v4092 = vpop.xlane.xlu0 %4091
    %v4093 = vsel %vm2190, %v4009, -inf
    %4094 = vmax.xlane.f32.xlu0 %v4093
    %v4095 = vpop.xlane.xlu0 %4094
    %v4096 = vsel %vm2190, %v4010, -inf
    %4097 = vmax.xlane.f32.xlu0 %v4096
    %v4098 = vpop.xlane.xlu0 %4097
    %v4099 = vsel %vm2190, %v4011, -inf
    %4100 = vmax.xlane.f32.xlu0 %v4099
    %v4101 = vpop.xlane.xlu0 %4100
    %v4102 = vsel %vm2190, %v4012, -inf
    %4103 = vmax.xlane.f32.xlu0 %v4102
    %v4104 = vpop.xlane.xlu0 %4103
    %v4105 = vsel %vm2190, %v4013, -inf
    %4106 = vmax.xlane.f32.xlu0 %v4105
    %v4107 = vpop.xlane.xlu0 %4106
    %v4108 = vsel %vm2190, %v4014, -inf
    %4109 = vmax.xlane.f32.xlu0 %v4108
    %v4110 = vpop.xlane.xlu0 %4109
    %v4111 = vsub.f32 %v3983, %v4017
    %v4112 = vsub.f32 %v3984, %v4020
    %v4113 = vsub.f32 %v3985, %v4023
    %v4114 = vsub.f32 %v3986, %v4026
    %v4115 = vsub.f32 %v3987, %v4029
    %v4116 = vsub.f32 %v3988, %v4032
    %v4117 = vsub.f32 %v3989, %v4035
    %v4118 = vsub.f32 %v3990, %v4038
    %v4119 = vsub.f32 %v3991, %v4041
    %v4120 = vsub.f32 %v3992, %v4044
    %v4121 = vsub.f32 %v3993, %v4047
    %v4122 = vsub.f32 %v3994, %v4050
    %v4123 = vsub.f32 %v3995, %v4053
    %v4124 = vsub.f32 %v3996, %v4056
    %v4125 = vsub.f32 %v3997, %v4059
    %v4126 = vsub.f32 %v3998, %v4062
    %v4127 = vsub.f32 %v3999, %v4065
    %v4128 = vsub.f32 %v4000, %v4068
    %v4129 = vsub.f32 %v4001, %v4071
    %v4130 = vsub.f32 %v4002, %v4074
    %v4131 = vsub.f32 %v4003, %v4077
    %v4132 = vsub.f32 %v4004, %v4080
    %v4133 = vsub.f32 %v4005, %v4083
    %v4134 = vsub.f32 %v4006, %v4086
    %v4135 = vsub.f32 %v4007, %v4089
    %v4136 = vsub.f32 %v4008, %v4092
    %v4137 = vsub.f32 %v4009, %v4095
    %v4138 = vsub.f32 %v4010, %v4098
    %v4139 = vsub.f32 %v4011, %v4101
    %v4140 = vsub.f32 %v4012, %v4104
    %v4141 = vsub.f32 %v4013, %v4107
    %v4142 = vsub.f32 %v4014, %v4110
    %v4143 = vmul.f32 %v4111, 1.442695
    %v4144 = vpow.pop %v4143
    %v4145 = vmul.f32 %v4112, 1.442695
    %v4146 = vpow.pop %v4145
    %v4147 = vmul.f32 %v4113, 1.442695
    %v4148 = vpow.pop %v4147
    %v4149 = vmul.f32 %v4114, 1.442695
    %v4150 = vpow.pop %v4149
    %v4151 = vmul.f32 %v4115, 1.442695
    %v4152 = vpow.pop %v4151
    %v4153 = vmul.f32 %v4116, 1.442695
    %v4154 = vpow.pop %v4153
    %v4155 = vmul.f32 %v4117, 1.442695
    %v4156 = vpow.pop %v4155
    %v4157 = vmul.f32 %v4118, 1.442695
    %v4158 = vpow.pop %v4157
    %v4159 = vmul.f32 %v4119, 1.442695
    %v4160 = vpow.pop %v4159
    %v4161 = vmul.f32 %v4120, 1.442695
    %v4162 = vpow.pop %v4161
    %v4163 = vmul.f32 %v4121, 1.442695
    %v4164 = vpow.pop %v4163
    %v4165 = vmul.f32 %v4122, 1.442695
    %v4166 = vpow.pop %v4165
    %v4167 = vmul.f32 %v4123, 1.442695
    %v4168 = vpow.pop %v4167
    %v4169 = vmul.f32 %v4124, 1.442695
    %v4170 = vpow.pop %v4169
    %v4171 = vmul.f32 %v4125, 1.442695
    %v4172 = vpow.pop %v4171
    %v4173 = vmul.f32 %v4126, 1.442695
    %v4174 = vpow.pop %v4173
    %v4175 = vmul.f32 %v4127, 1.442695
    %v4176 = vpow.pop %v4175
    %v4177 = vmul.f32 %v4128, 1.442695
    %v4178 = vpow.pop %v4177
    %v4179 = vmul.f32 %v4129, 1.442695
    %v4180 = vpow.pop %v4179
    %v4181 = vmul.f32 %v4130, 1.442695
    %v4182 = vpow.pop %v4181
    %v4183 = vmul.f32 %v4131, 1.442695
    %v4184 = vpow.pop %v4183
    %v4185 = vmul.f32 %v4132, 1.442695
    %v4186 = vpow.pop %v4185
    %v4187 = vmul.f32 %v4133, 1.442695
    %v4188 = vpow.pop %v4187
    %v4189 = vmul.f32 %v4134, 1.442695
    %v4190 = vpow.pop %v4189
    %v4191 = vmul.f32 %v4135, 1.442695
    %v4192 = vpow.pop %v4191
    %v4193 = vmul.f32 %v4136, 1.442695
    %v4194 = vpow.pop %v4193
    %v4195 = vmul.f32 %v4137, 1.442695
    %v4196 = vpow.pop %v4195
    %v4197 = vmul.f32 %v4138, 1.442695
    %v4198 = vpow.pop %v4197
    %v4199 = vmul.f32 %v4139, 1.442695
    %v4200 = vpow.pop %v4199
    %v4201 = vmul.f32 %v4140, 1.442695
    %v4202 = vpow.pop %v4201
    %v4203 = vmul.f32 %v4141, 1.442695
    %v4204 = vpow.pop %v4203
    %v4205 = vmul.f32 %v4142, 1.442695
    %v4206 = vpow.pop %v4205
    %v4207 = vsel %vm2190, %v4144, 0.0
    %4208 = vadd.xlane.f32.xlu0 %v4207
    %v4209 = vpop.xlane.xlu0 %4208
    %v4210 = vsel %vm2190, %v4146, 0.0
    %4211 = vadd.xlane.f32.xlu0 %v4210
    %v4212 = vpop.xlane.xlu0 %4211
    %v4213 = vsel %vm2190, %v4148, 0.0
    %4214 = vadd.xlane.f32.xlu0 %v4213
    %v4215 = vpop.xlane.xlu0 %4214
    %v4216 = vsel %vm2190, %v4150, 0.0
    %4217 = vadd.xlane.f32.xlu0 %v4216
    %v4218 = vpop.xlane.xlu0 %4217
    %v4219 = vsel %vm2190, %v4152, 0.0
    %4220 = vadd.xlane.f32.xlu0 %v4219
    %v4221 = vpop.xlane.xlu0 %4220
    %v4222 = vsel %vm2190, %v4154, 0.0
    %4223 = vadd.xlane.f32.xlu0 %v4222
    %v4224 = vpop.xlane.xlu0 %4223
    %v4225 = vsel %vm2190, %v4156, 0.0
    %4226 = vadd.xlane.f32.xlu0 %v4225
    %v4227 = vpop.xlane.xlu0 %4226
    %v4228 = vsel %vm2190, %v4158, 0.0
    %4229 = vadd.xlane.f32.xlu0 %v4228
    %v4230 = vpop.xlane.xlu0 %4229
    %v4231 = vsel %vm2190, %v4160, 0.0
    %4232 = vadd.xlane.f32.xlu0 %v4231
    %v4233 = vpop.xlane.xlu0 %4232
    %v4234 = vsel %vm2190, %v4162, 0.0
    %4235 = vadd.xlane.f32.xlu0 %v4234
    %v4236 = vpop.xlane.xlu0 %4235
    %v4237 = vsel %vm2190, %v4164, 0.0
    %4238 = vadd.xlane.f32.xlu0 %v4237
    %v4239 = vpop.xlane.xlu0 %4238
    %v4240 = vsel %vm2190, %v4166, 0.0
    %4241 = vadd.xlane.f32.xlu0 %v4240
    %v4242 = vpop.xlane.xlu0 %4241
    %v4243 = vsel %vm2190, %v4168, 0.0
    %4244 = vadd.xlane.f32.xlu0 %v4243
    %v4245 = vpop.xlane.xlu0 %4244
    %v4246 = vsel %vm2190, %v4170, 0.0
    %4247 = vadd.xlane.f32.xlu0 %v4246
    %v4248 = vpop.xlane.xlu0 %4247
    %v4249 = vsel %vm2190, %v4172, 0.0
    %4250 = vadd.xlane.f32.xlu0 %v4249
    %v4251 = vpop.xlane.xlu0 %4250
    %v4252 = vsel %vm2190, %v4174, 0.0
    %4253 = vadd.xlane.f32.xlu0 %v4252
    %v4254 = vpop.xlane.xlu0 %4253
    %v4255 = vsel %vm2190, %v4176, 0.0
    %4256 = vadd.xlane.f32.xlu0 %v4255
    %v4257 = vpop.xlane.xlu0 %4256
    %v4258 = vsel %vm2190, %v4178, 0.0
    %4259 = vadd.xlane.f32.xlu0 %v4258
    %v4260 = vpop.xlane.xlu0 %4259
    %v4261 = vsel %vm2190, %v4180, 0.0
    %4262 = vadd.xlane.f32.xlu0 %v4261
    %v4263 = vpop.xlane.xlu0 %4262
    %v4264 = vsel %vm2190, %v4182, 0.0
    %4265 = vadd.xlane.f32.xlu0 %v4264
    %v4266 = vpop.xlane.xlu0 %4265
    %v4267 = vsel %vm2190, %v4184, 0.0
    %4268 = vadd.xlane.f32.xlu0 %v4267
    %v4269 = vpop.xlane.xlu0 %4268
    %v4270 = vsel %vm2190, %v4186, 0.0
    %4271 = vadd.xlane.f32.xlu0 %v4270
    %v4272 = vpop.xlane.xlu0 %4271
    %v4273 = vsel %vm2190, %v4188, 0.0
    %4274 = vadd.xlane.f32.xlu0 %v4273
    %v4275 = vpop.xlane.xlu0 %4274
    %v4276 = vsel %vm2190, %v4190, 0.0
    %4277 = vadd.xlane.f32.xlu0 %v4276
    %v4278 = vpop.xlane.xlu0 %4277
    %v4279 = vsel %vm2190, %v4192, 0.0
    %4280 = vadd.xlane.f32.xlu0 %v4279
    %v4281 = vpop.xlane.xlu0 %4280
    %v4282 = vsel %vm2190, %v4194, 0.0
    %4283 = vadd.xlane.f32.xlu0 %v4282
    %v4284 = vpop.xlane.xlu0 %4283
    %v4285 = vsel %vm2190, %v4196, 0.0
    %4286 = vadd.xlane.f32.xlu0 %v4285
    %v4287 = vpop.xlane.xlu0 %4286
    %v4288 = vsel %vm2190, %v4198, 0.0
    %4289 = vadd.xlane.f32.xlu0 %v4288
    %v4290 = vpop.xlane.xlu0 %4289
    %v4291 = vsel %vm2190, %v4200, 0.0
    %4292 = vadd.xlane.f32.xlu0 %v4291
    %v4293 = vpop.xlane.xlu0 %4292
    %v4294 = vsel %vm2190, %v4202, 0.0
    %4295 = vadd.xlane.f32.xlu0 %v4294
    %v4296 = vpop.xlane.xlu0 %4295
    %v4297 = vsel %vm2190, %v4204, 0.0
    %4298 = vadd.xlane.f32.xlu0 %v4297
    %v4299 = vpop.xlane.xlu0 %4298
    %v4300 = vsel %vm2190, %v4206, 0.0
    %4301 = vadd.xlane.f32.xlu0 %v4300
    %v4302 = vpop.xlane.xlu0 %4301
    %v4303 = vpack.c.bf16 %v4146, %v4144
    %v4304 = vpack.c.bf16 %v4150, %v4148
    %v4305 = vpack.c.bf16 %v4154, %v4152
    %v4306 = vpack.c.bf16 %v4158, %v4156
    %v4307 = vpack.c.bf16 %v4162, %v4160
    %v4308 = vpack.c.bf16 %v4166, %v4164
    %v4309 = vpack.c.bf16 %v4170, %v4168
    %v4310 = vpack.c.bf16 %v4174, %v4172
    %v4311 = vpack.c.bf16 %v4178, %v4176
    %v4312 = vpack.c.bf16 %v4182, %v4180
    %v4313 = vpack.c.bf16 %v4186, %v4184
    %v4314 = vpack.c.bf16 %v4190, %v4188
    %v4315 = vpack.c.bf16 %v4194, %v4192
    %v4316 = vpack.c.bf16 %v4198, %v4196
    %v4317 = vpack.c.bf16 %v4202, %v4200
    %v4318 = vpack.c.bf16 %v4206, %v4204
    %v4320 = vsel %vm2190, %v4303, 0
    %4322 = vmatprep.subr.bf16.mxu0 0
    %4323 = vmatpush1.bf16.msra.mxu0 %v1399
    %4324 = vmatprep.subr.bf16.mxu0 0
    %4325 = vmatpush1.bf16.msra.mxu0 0
    %4326 = vmatprep.subr.bf16.mxu0 0
    %4327 = vmatpush1.bf16.msra.mxu0 0
    %4328 = vmatprep.subr.bf16.mxu0 0
    %4329 = vmatpush1.bf16.msra.mxu0 0
    %4330 = vmatprep.subr.bf16.mxu0 0
    %4331 = vmatpush1.bf16.msra.mxu0 0
    %4332 = vmatprep.subr.bf16.mxu0 0
    %4333 = vmatpush1.bf16.msra.mxu0 0
    %4334 = vmatprep.subr.bf16.mxu0 0
    %4335 = vmatpush1.bf16.msra.mxu0 0
    %4336 = vmatprep.subr.bf16.mxu0 0
    %4337 = vmatpush1.bf16.msra.mxu0 0
    %4338 = vmatprep.subr.bf16.mxu0 0
    %4339 = vmatpush1.bf16.msra.mxu0 0
    %4340 = vmatprep.subr.bf16.mxu0 0
    %4341 = vmatpush1.bf16.msra.mxu0 0
    %4342 = vmatprep.subr.bf16.mxu0 0
    %4343 = vmatpush1.bf16.msra.mxu0 0
    %4344 = vmatprep.subr.bf16.mxu0 0
    %4345 = vmatpush1.bf16.msra.mxu0 0
    %4346 = vmatprep.subr.bf16.mxu0 0
    %4347 = vmatpush1.bf16.msra.mxu0 0
    %4348 = vmatprep.subr.bf16.mxu0 0
    %4349 = vmatpush1.bf16.msra.mxu0 0
    %4350 = vmatprep.subr.bf16.mxu0 0
    %4351 = vmatpush1.bf16.msra.mxu0 0
    %4352 = vmatprep.subr.bf16.mxu0 0
    %4353 = vmatpush1.bf16.msra.mxu0 0
    %4354 = vmatprep.mubr.bf16.mxu0 0
    %4355 = vmatmul.mubr.bf16.gmra.mrb[0].mxu0 %v4320
    %v4356 = vpop.f32.mrb[0].mxu0
    %v4357 = vadd.f32 0.0, %v4356
    %v4358 = vpop.f32.mrb[0].mxu0
    %v4359 = vpop.f32.mrb[0].mxu0
    %v4360 = vadd.f32 0.0, %v4359
    %v4361 = vpop.f32.mrb[0].mxu0
    %4362 = vdwg.mxu0
    %v4364 = vsel %vm2190, %v4304, 0
    %4366 = vmatprep.subr.bf16.mxu0 0
    %4367 = vmatpush1.bf16.msra.mxu0 %v1405
    %4368 = vmatprep.subr.bf16.mxu0 0
    %4369 = vmatpush1.bf16.msra.mxu0 0
    %4370 = vmatprep.subr.bf16.mxu0 0
    %4371 = vmatpush1.bf16.msra.mxu0 0
    %4372 = vmatprep.subr.bf16.mxu0 0
    %4373 = vmatpush1.bf16.msra.mxu0 0
    %4374 = vmatprep.subr.bf16.mxu0 0
    %4375 = vmatpush1.bf16.msra.mxu0 0
    %4376 = vmatprep.subr.bf16.mxu0 0
    %4377 = vmatpush1.bf16.msra.mxu0 0
    %4378 = vmatprep.subr.bf16.mxu0 0
    %4379 = vmatpush1.bf16.msra.mxu0 0
    %4380 = vmatprep.subr.bf16.mxu0 0
    %4381 = vmatpush1.bf16.msra.mxu0 0
    %4382 = vmatprep.subr.bf16.mxu0 0
    %4383 = vmatpush1.bf16.msra.mxu0 0
    %4384 = vmatprep.subr.bf16.mxu0 0
    %4385 = vmatpush1.bf16.msra.mxu0 0
    %4386 = vmatprep.subr.bf16.mxu0 0
    %4387 = vmatpush1.bf16.msra.mxu0 0
    %4388 = vmatprep.subr.bf16.mxu0 0
    %4389 = vmatpush1.bf16.msra.mxu0 0
    %4390 = vmatprep.subr.bf16.mxu0 0
    %4391 = vmatpush1.bf16.msra.mxu0 0
    %4392 = vmatprep.subr.bf16.mxu0 0
    %4393 = vmatpush1.bf16.msra.mxu0 0
    %4394 = vmatprep.subr.bf16.mxu0 0
    %4395 = vmatpush1.bf16.msra.mxu0 0
    %4396 = vmatprep.subr.bf16.mxu0 0
    %4397 = vmatpush1.bf16.msra.mxu0 0
    %4398 = vmatprep.mubr.bf16.mxu0 0
    %4399 = vmatmul.mubr.bf16.gmra.mrb[0].mxu0 %v4364
    %v4400 = vpop.f32.mrb[0].mxu0
    %v4401 = vadd.f32 0.0, %v4400
    %v4402 = vpop.f32.mrb[0].mxu0
    %v4403 = vpop.f32.mrb[0].mxu0
    %v4404 = vadd.f32 0.0, %v4403
    %v4405 = vpop.f32.mrb[0].mxu0
    %4406 = vdwg.mxu0
    %v4408 = vsel %vm2190, %v4305, 0
    %4410 = vmatprep.subr.bf16.mxu0 0
    %4411 = vmatpush1.bf16.msra.mxu0 %v1411
    %4412 = vmatprep.subr.bf16.mxu0 0
    %4413 = vmatpush1.bf16.msra.mxu0 0
    %4414 = vmatprep.subr.bf16.mxu0 0
    %4415 = vmatpush1.bf16.msra.mxu0 0
    %4416 = vmatprep.subr.bf16.mxu0 0
    %4417 = vmatpush1.bf16.msra.mxu0 0
    %4418 = vmatprep.subr.bf16.mxu0 0
    %4419 = vmatpush1.bf16.msra.mxu0 0
    %4420 = vmatprep.subr.bf16.mxu0 0
    %4421 = vmatpush1.bf16.msra.mxu0 0
    %4422 = vmatprep.subr.bf16.mxu0 0
    %4423 = vmatpush1.bf16.msra.mxu0 0
    %4424 = vmatprep.subr.bf16.mxu0 0
    %4425 = vmatpush1.bf16.msra.mxu0 0
    %4426 = vmatprep.subr.bf16.mxu0 0
    %4427 = vmatpush1.bf16.msra.mxu0 0
    %4428 = vmatprep.subr.bf16.mxu0 0
    %4429 = vmatpush1.bf16.msra.mxu0 0
    %4430 = vmatprep.subr.bf16.mxu0 0
    %4431 = vmatpush1.bf16.msra.mxu0 0
    %4432 = vmatprep.subr.bf16.mxu0 0
    %4433 = vmatpush1.bf16.msra.mxu0 0
    %4434 = vmatprep.subr.bf16.mxu0 0
    %4435 = vmatpush1.bf16.msra.mxu0 0
    %4436 = vmatprep.subr.bf16.mxu0 0
    %4437 = vmatpush1.bf16.msra.mxu0 0
    %4438 = vmatprep.subr.bf16.mxu0 0
    %4439 = vmatpush1.bf16.msra.mxu0 0
    %4440 = vmatprep.subr.bf16.mxu0 0
    %4441 = vmatpush1.bf16.msra.mxu0 0
    %4442 = vmatprep.mubr.bf16.mxu0 0
    %4443 = vmatmul.mubr.bf16.gmra.mrb[0].mxu0 %v4408
    %v4444 = vpop.f32.mrb[0].mxu0
    %v4445 = vadd.f32 0.0, %v4444
    %v4446 = vpop.f32.mrb[0].mxu0
    %v4447 = vpop.f32.mrb[0].mxu0
    %v4448 = vadd.f32 0.0, %v4447
    %v4449 = vpop.f32.mrb[0].mxu0
    %4450 = vdwg.mxu0
    %v4452 = vsel %vm2190, %v4306, 0
    %4454 = vmatprep.subr.bf16.mxu0 0
    %4455 = vmatpush1.bf16.msra.mxu0 %v1417
    %4456 = vmatprep.subr.bf16.mxu0 0
    %4457 = vmatpush1.bf16.msra.mxu0 0
    %4458 = vmatprep.subr.bf16.mxu0 0
    %4459 = vmatpush1.bf16.msra.mxu0 0
    %4460 = vmatprep.subr.bf16.mxu0 0
    %4461 = vmatpush1.bf16.msra.mxu0 0
    %4462 = vmatprep.subr.bf16.mxu0 0
    %4463 = vmatpush1.bf16.msra.mxu0 0
    %4464 = vmatprep.subr.bf16.mxu0 0
    %4465 = vmatpush1.bf16.msra.mxu0 0
    %4466 = vmatprep.subr.bf16.mxu0 0
    %4467 = vmatpush1.bf16.msra.mxu0 0
    %4468 = vmatprep.subr.bf16.mxu0 0
    %4469 = vmatpush1.bf16.msra.mxu0 0
    %4470 = vmatprep.subr.bf16.mxu0 0
    %4471 = vmatpush1.bf16.msra.mxu0 0
    %4472 = vmatprep.subr.bf16.mxu0 0
    %4473 = vmatpush1.bf16.msra.mxu0 0
    %4474 = vmatprep.subr.bf16.mxu0 0
    %4475 = vmatpush1.bf16.msra.mxu0 0
    %4476 = vmatprep.subr.bf16.mxu0 0
    %4477 = vmatpush1.bf16.msra.mxu0 0
    %4478 = vmatprep.subr.bf16.mxu0 0
    %4479 = vmatpush1.bf16.msra.mxu0 0
    %4480 = vmatprep.subr.bf16.mxu0 0
    %4481 = vmatpush1.bf16.msra.mxu0 0
    %4482 = vmatprep.subr.bf16.mxu0 0
    %4483 = vmatpush1.bf16.msra.mxu0 0
    %4484 = vmatprep.subr.bf16.mxu0 0
    %4485 = vmatpush1.bf16.msra.mxu0 0
    %4486 = vmatprep.mubr.bf16.mxu0 0
    %4487 = vmatmul.mubr.bf16.gmra.mrb[0].mxu0 %v4452
    %v4488 = vpop.f32.mrb[0].mxu0
    %v4489 = vadd.f32 0.0, %v4488
    %v4490 = vpop.f32.mrb[0].mxu0
    %v4491 = vpop.f32.mrb[0].mxu0
    %v4492 = vadd.f32 0.0, %v4491
    %v4493 = vpop.f32.mrb[0].mxu0
    %4494 = vdwg.mxu0
    %v4496 = vsel %vm2190, %v4307, 0
    %4498 = vmatprep.subr.bf16.mxu0 0
    %4499 = vmatpush1.bf16.msra.mxu0 %v1423
    %4500 = vmatprep.subr.bf16.mxu0 0
    %4501 = vmatpush1.bf16.msra.mxu0 0
    %4502 = vmatprep.subr.bf16.mxu0 0
    %4503 = vmatpush1.bf16.msra.mxu0 0
    %4504 = vmatprep.subr.bf16.mxu0 0
    %4505 = vmatpush1.bf16.msra.mxu0 0
    %4506 = vmatprep.subr.bf16.mxu0 0
    %4507 = vmatpush1.bf16.msra.mxu0 0
    %4508 = vmatprep.subr.bf16.mxu0 0
    %4509 = vmatpush1.bf16.msra.mxu0 0
    %4510 = vmatprep.subr.bf16.mxu0 0
    %4511 = vmatpush1.bf16.msra.mxu0 0
    %4512 = vmatprep.subr.bf16.mxu0 0
    %4513 = vmatpush1.bf16.msra.mxu0 0
    %4514 = vmatprep.subr.bf16.mxu0 0
    %4515 = vmatpush1.bf16.msra.mxu0 0
    %4516 = vmatprep.subr.bf16.mxu0 0
    %4517 = vmatpush1.bf16.msra.mxu0 0
    %4518 = vmatprep.subr.bf16.mxu0 0
    %4519 = vmatpush1.bf16.msra.mxu0 0
    %4520 = vmatprep.subr.bf16.mxu0 0
    %4521 = vmatpush1.bf16.msra.mxu0 0
    %4522 = vmatprep.subr.bf16.mxu0 0
    %4523 = vmatpush1.bf16.msra.mxu0 0
    %4524 = vmatprep.subr.bf16.mxu0 0
    %4525 = vmatpush1.bf16.msra.mxu0 0
    %4526 = vmatprep.subr.bf16.mxu0 0
    %4527 = vmatpush1.bf16.msra.mxu0 0
    %4528 = vmatprep.subr.bf16.mxu0 0
    %4529 = vmatpush1.bf16.msra.mxu0 0
    %4530 = vmatprep.mubr.bf16.mxu0 0
    %4531 = vmatmul.mubr.bf16.gmra.mrb[0].mxu0 %v4496
    %v4532 = vpop.f32.mrb[0].mxu0
    %v4533 = vadd.f32 0.0, %v4532
    %v4534 = vpop.f32.mrb[0].mxu0
    %v4535 = vpop.f32.mrb[0].mxu0
    %v4536 = vadd.f32 0.0, %v4535
    %v4537 = vpop.f32.mrb[0].mxu0
    %4538 = vdwg.mxu0
    %v4540 = vsel %vm2190, %v4308, 0
    %4542 = vmatprep.subr.bf16.mxu0 0
    %4543 = vmatpush1.bf16.msra.mxu0 %v1429
    %4544 = vmatprep.subr.bf16.mxu0 0
    %4545 = vmatpush1.bf16.msra.mxu0 0
    %4546 = vmatprep.subr.bf16.mxu0 0
    %4547 = vmatpush1.bf16.msra.mxu0 0
    %4548 = vmatprep.subr.bf16.mxu0 0
    %4549 = vmatpush1.bf16.msra.mxu0 0
    %4550 = vmatprep.subr.bf16.mxu0 0
    %4551 = vmatpush1.bf16.msra.mxu0 0
    %4552 = vmatprep.subr.bf16.mxu0 0
    %4553 = vmatpush1.bf16.msra.mxu0 0
    %4554 = vmatprep.subr.bf16.mxu0 0
    %4555 = vmatpush1.bf16.msra.mxu0 0
    %4556 = vmatprep.subr.bf16.mxu0 0
    %4557 = vmatpush1.bf16.msra.mxu0 0
    %4558 = vmatprep.subr.bf16.mxu0 0
    %4559 = vmatpush1.bf16.msra.mxu0 0
    %4560 = vmatprep.subr.bf16.mxu0 0
    %4561 = vmatpush1.bf16.msra.mxu0 0
    %4562 = vmatprep.subr.bf16.mxu0 0
    %4563 = vmatpush1.bf16.msra.mxu0 0
    %4564 = vmatprep.subr.bf16.mxu0 0
    %4565 = vmatpush1.bf16.msra.mxu0 0
    %4566 = vmatprep.subr.bf16.mxu0 0
    %4567 = vmatpush1.bf16.msra.mxu0 0
    %4568 = vmatprep.subr.bf16.mxu0 0
    %4569 = vmatpush1.bf16.msra.mxu0 0
    %4570 = vmatprep.subr.bf16.mxu0 0
    %4571 = vmatpush1.bf16.msra.mxu0 0
    %4572 = vmatprep.subr.bf16.mxu0 0
    %4573 = vmatpush1.bf16.msra.mxu0 0
    %4574 = vmatprep.mubr.bf16.mxu0 0
    %4575 = vmatmul.mubr.bf16.gmra.mrb[0].mxu0 %v4540
    %v4576 = vpop.f32.mrb[0].mxu0
    %v4577 = vadd.f32 0.0, %v4576
    %v4578 = vpop.f32.mrb[0].mxu0
    %v4579 = vpop.f32.mrb[0].mxu0
    %v4580 = vadd.f32 0.0, %v4579
    %v4581 = vpop.f32.mrb[0].mxu0
    %4582 = vdwg.mxu0
    %v4584 = vsel %vm2190, %v4309, 0
    %4586 = vmatprep.subr.bf16.mxu0 0
    %4587 = vmatpush1.bf16.msra.mxu0 %v1435
    %4588 = vmatprep.subr.bf16.mxu0 0
    %4589 = vmatpush1.bf16.msra.mxu0 0
    %4590 = vmatprep.subr.bf16.mxu0 0
    %4591 = vmatpush1.bf16.msra.mxu0 0
    %4592 = vmatprep.subr.bf16.mxu0 0
    %4593 = vmatpush1.bf16.msra.mxu0 0
    %4594 = vmatprep.subr.bf16.mxu0 0
    %4595 = vmatpush1.bf16.msra.mxu0 0
    %4596 = vmatprep.subr.bf16.mxu0 0
    %4597 = vmatpush1.bf16.msra.mxu0 0
    %4598 = vmatprep.subr.bf16.mxu0 0
    %4599 = vmatpush1.bf16.msra.mxu0 0
    %4600 = vmatprep.subr.bf16.mxu0 0
    %4601 = vmatpush1.bf16.msra.mxu0 0
    %4602 = vmatprep.subr.bf16.mxu0 0
    %4603 = vmatpush1.bf16.msra.mxu0 0
    %4604 = vmatprep.subr.bf16.mxu0 0
    %4605 = vmatpush1.bf16.msra.mxu0 0
    %4606 = vmatprep.subr.bf16.mxu0 0
    %4607 = vmatpush1.bf16.msra.mxu0 0
    %4608 = vmatprep.subr.bf16.mxu0 0
    %4609 = vmatpush1.bf16.msra.mxu0 0
    %4610 = vmatprep.subr.bf16.mxu0 0
    %4611 = vmatpush1.bf16.msra.mxu0 0
    %4612 = vmatprep.subr.bf16.mxu0 0
    %4613 = vmatpush1.bf16.msra.mxu0 0
    %4614 = vmatprep.subr.bf16.mxu0 0
    %4615 = vmatpush1.bf16.msra.mxu0 0
    %4616 = vmatprep.subr.bf16.mxu0 0
    %4617 = vmatpush1.bf16.msra.mxu0 0
    %4618 = vmatprep.mubr.bf16.mxu0 0
    %4619 = vmatmul.mubr.bf16.gmra.mrb[0].mxu0 %v4584
    %v4620 = vpop.f32.mrb[0].mxu0
    %v4621 = vadd.f32 0.0, %v4620
    %v4622 = vpop.f32.mrb[0].mxu0
    %v4623 = vpop.f32.mrb[0].mxu0
    %v4624 = vadd.f32 0.0, %v4623
    %v4625 = vpop.f32.mrb[0].mxu0
    %4626 = vdwg.mxu0
    %v4628 = vsel %vm2190, %v4310, 0
    %4630 = vmatprep.subr.bf16.mxu0 0
    %4631 = vmatpush1.bf16.msra.mxu0 %v1441
    %4632 = vmatprep.subr.bf16.mxu0 0
    %4633 = vmatpush1.bf16.msra.mxu0 0
    %4634 = vmatprep.subr.bf16.mxu0 0
    %4635 = vmatpush1.bf16.msra.mxu0 0
    %4636 = vmatprep.subr.bf16.mxu0 0
    %4637 = vmatpush1.bf16.msra.mxu0 0
    %4638 = vmatprep.subr.bf16.mxu0 0
    %4639 = vmatpush1.bf16.msra.mxu0 0
    %4640 = vmatprep.subr.bf16.mxu0 0
    %4641 = vmatpush1.bf16.msra.mxu0 0
    %4642 = vmatprep.subr.bf16.mxu0 0
    %4643 = vmatpush1.bf16.msra.mxu0 0
    %4644 = vmatprep.subr.bf16.mxu0 0
    %4645 = vmatpush1.bf16.msra.mxu0 0
    %4646 = vmatprep.subr.bf16.mxu0 0
    %4647 = vmatpush1.bf16.msra.mxu0 0
    %4648 = vmatprep.subr.bf16.mxu0 0
    %4649 = vmatpush1.bf16.msra.mxu0 0
    %4650 = vmatprep.subr.bf16.mxu0 0
    %4651 = vmatpush1.bf16.msra.mxu0 0
    %4652 = vmatprep.subr.bf16.mxu0 0
    %4653 = vmatpush1.bf16.msra.mxu0 0
    %4654 = vmatprep.subr.bf16.mxu0 0
    %4655 = vmatpush1.bf16.msra.mxu0 0
    %4656 = vmatprep.subr.bf16.mxu0 0
    %4657 = vmatpush1.bf16.msra.mxu0 0
    %4658 = vmatprep.subr.bf16.mxu0 0
    %4659 = vmatpush1.bf16.msra.mxu0 0
    %4660 = vmatprep.subr.bf16.mxu0 0
    %4661 = vmatpush1.bf16.msra.mxu0 0
    %4662 = vmatprep.mubr.bf16.mxu0 0
    %4663 = vmatmul.mubr.bf16.gmra.mrb[0].mxu0 %v4628
    %v4664 = vpop.f32.mrb[0].mxu0
    %v4665 = vadd.f32 0.0, %v4664
    %v4666 = vpop.f32.mrb[0].mxu0
    %v4667 = vpop.f32.mrb[0].mxu0
    %v4668 = vadd.f32 0.0, %v4667
    %v4669 = vpop.f32.mrb[0].mxu0
    %4670 = vdwg.mxu0
    %v4672 = vsel %vm2190, %v4311, 0
    %4674 = vmatprep.subr.bf16.mxu0 0
    %4675 = vmatpush1.bf16.msra.mxu0 %v1447
    %4676 = vmatprep.subr.bf16.mxu0 0
    %4677 = vmatpush1.bf16.msra.mxu0 0
    %4678 = vmatprep.subr.bf16.mxu0 0
    %4679 = vmatpush1.bf16.msra.mxu0 0
    %4680 = vmatprep.subr.bf16.mxu0 0
    %4681 = vmatpush1.bf16.msra.mxu0 0
    %4682 = vmatprep.subr.bf16.mxu0 0
    %4683 = vmatpush1.bf16.msra.mxu0 0
    %4684 = vmatprep.subr.bf16.mxu0 0
    %4685 = vmatpush1.bf16.msra.mxu0 0
    %4686 = vmatprep.subr.bf16.mxu0 0
    %4687 = vmatpush1.bf16.msra.mxu0 0
    %4688 = vmatprep.subr.bf16.mxu0 0
    %4689 = vmatpush1.bf16.msra.mxu0 0
    %4690 = vmatprep.subr.bf16.mxu0 0
    %4691 = vmatpush1.bf16.msra.mxu0 0
    %4692 = vmatprep.subr.bf16.mxu0 0
    %4693 = vmatpush1.bf16.msra.mxu0 0
    %4694 = vmatprep.subr.bf16.mxu0 0
    %4695 = vmatpush1.bf16.msra.mxu0 0
    %4696 = vmatprep.subr.bf16.mxu0 0
    %4697 = vmatpush1.bf16.msra.mxu0 0
    %4698 = vmatprep.subr.bf16.mxu0 0
    %4699 = vmatpush1.bf16.msra.mxu0 0
    %4700 = vmatprep.subr.bf16.mxu0 0
    %4701 = vmatpush1.bf16.msra.mxu0 0
    %4702 = vmatprep.subr.bf16.mxu0 0
    %4703 = vmatpush1.bf16.msra.mxu0 0
    %4704 = vmatprep.subr.bf16.mxu0 0
    %4705 = vmatpush1.bf16.msra.mxu0 0
    %4706 = vmatprep.mubr.bf16.mxu0 0
    %4707 = vmatmul.mubr.bf16.gmra.mrb[0].mxu0 %v4672
    %v4708 = vpop.f32.mrb[0].mxu0
    %v4709 = vadd.f32 0.0, %v4708
    %v4710 = vpop.f32.mrb[0].mxu0
    %v4711 = vpop.f32.mrb[0].mxu0
    %v4712 = vadd.f32 0.0, %v4711
    %v4713 = vpop.f32.mrb[0].mxu0
    %4714 = vdwg.mxu0
    %v4716 = vsel %vm2190, %v4312, 0
    %4718 = vmatprep.subr.bf16.mxu0 0
    %4719 = vmatpush1.bf16.msra.mxu0 %v1453
    %4720 = vmatprep.subr.bf16.mxu0 0
    %4721 = vmatpush1.bf16.msra.mxu0 0
    %4722 = vmatprep.subr.bf16.mxu0 0
    %4723 = vmatpush1.bf16.msra.mxu0 0
    %4724 = vmatprep.subr.bf16.mxu0 0
    %4725 = vmatpush1.bf16.msra.mxu0 0
    %4726 = vmatprep.subr.bf16.mxu0 0
    %4727 = vmatpush1.bf16.msra.mxu0 0
    %4728 = vmatprep.subr.bf16.mxu0 0
    %4729 = vmatpush1.bf16.msra.mxu0 0
    %4730 = vmatprep.subr.bf16.mxu0 0
    %4731 = vmatpush1.bf16.msra.mxu0 0
    %4732 = vmatprep.subr.bf16.mxu0 0
    %4733 = vmatpush1.bf16.msra.mxu0 0
    %4734 = vmatprep.subr.bf16.mxu0 0
    %4735 = vmatpush1.bf16.msra.mxu0 0
    %4736 = vmatprep.subr.bf16.mxu0 0
    %4737 = vmatpush1.bf16.msra.mxu0 0
    %4738 = vmatprep.subr.bf16.mxu0 0
    %4739 = vmatpush1.bf16.msra.mxu0 0
    %4740 = vmatprep.subr.bf16.mxu0 0
    %4741 = vmatpush1.bf16.msra.mxu0 0
    %4742 = vmatprep.subr.bf16.mxu0 0
    %4743 = vmatpush1.bf16.msra.mxu0 0
    %4744 = vmatprep.subr.bf16.mxu0 0
    %4745 = vmatpush1.bf16.msra.mxu0 0
    %4746 = vmatprep.subr.bf16.mxu0 0
    %4747 = vmatpush1.bf16.msra.mxu0 0
    %4748 = vmatprep.subr.bf16.mxu0 0
    %4749 = vmatpush1.bf16.msra.mxu0 0
    %4750 = vmatprep.mubr.bf16.mxu0 0
    %4751 = vmatmul.mubr.bf16.gmra.mrb[0].mxu0 %v4716
    %v4752 = vpop.f32.mrb[0].mxu0
    %v4753 = vadd.f32 0.0, %v4752
    %v4754 = vpop.f32.mrb[0].mxu0
    %v4755 = vpop.f32.mrb[0].mxu0
    %v4756 = vadd.f32 0.0, %v4755
    %v4757 = vpop.f32.mrb[0].mxu0
    %4758 = vdwg.mxu0
    %v4760 = vsel %vm2190, %v4313, 0
    %4762 = vmatprep.subr.bf16.mxu0 0
    %4763 = vmatpush1.bf16.msra.mxu0 %v1459
    %4764 = vmatprep.subr.bf16.mxu0 0
    %4765 = vmatpush1.bf16.msra.mxu0 0
    %4766 = vmatprep.subr.bf16.mxu0 0
    %4767 = vmatpush1.bf16.msra.mxu0 0
    %4768 = vmatprep.subr.bf16.mxu0 0
    %4769 = vmatpush1.bf16.msra.mxu0 0
    %4770 = vmatprep.subr.bf16.mxu0 0
    %4771 = vmatpush1.bf16.msra.mxu0 0
    %4772 = vmatprep.subr.bf16.mxu0 0
    %4773 = vmatpush1.bf16.msra.mxu0 0
    %4774 = vmatprep.subr.bf16.mxu0 0
    %4775 = vmatpush1.bf16.msra.mxu0 0
    %4776 = vmatprep.subr.bf16.mxu0 0
    %4777 = vmatpush1.bf16.msra.mxu0 0
    %4778 = vmatprep.subr.bf16.mxu0 0
    %4779 = vmatpush1.bf16.msra.mxu0 0
    %4780 = vmatprep.subr.bf16.mxu0 0
    %4781 = vmatpush1.bf16.msra.mxu0 0
    %4782 = vmatprep.subr.bf16.mxu0 0
    %4783 = vmatpush1.bf16.msra.mxu0 0
    %4784 = vmatprep.subr.bf16.mxu0 0
    %4785 = vmatpush1.bf16.msra.mxu0 0
    %4786 = vmatprep.subr.bf16.mxu0 0
    %4787 = vmatpush1.bf16.msra.mxu0 0
    %4788 = vmatprep.subr.bf16.mxu0 0
    %4789 = vmatpush1.bf16.msra.mxu0 0
    %4790 = vmatprep.subr.bf16.mxu0 0
    %4791 = vmatpush1.bf16.msra.mxu0 0
    %4792 = vmatprep.subr.bf16.mxu0 0
    %4793 = vmatpush1.bf16.msra.mxu0 0
    %4794 = vmatprep.mubr.bf16.mxu0 0
    %4795 = vmatmul.mubr.bf16.gmra.mrb[0].mxu0 %v4760
    %v4796 = vpop.f32.mrb[0].mxu0
    %v4797 = vadd.f32 0.0, %v4796
    %v4798 = vpop.f32.mrb[0].mxu0
    %v4799 = vpop.f32.mrb[0].mxu0
    %v4800 = vadd.f32 0.0, %v4799
    %v4801 = vpop.f32.mrb[0].mxu0
    %4802 = vdwg.mxu0
    %v4804 = vsel %vm2190, %v4314, 0
    %4806 = vmatprep.subr.bf16.mxu0 0
    %4807 = vmatpush1.bf16.msra.mxu0 %v1465
    %4808 = vmatprep.subr.bf16.mxu0 0
    %4809 = vmatpush1.bf16.msra.mxu0 0
    %4810 = vmatprep.subr.bf16.mxu0 0
    %4811 = vmatpush1.bf16.msra.mxu0 0
    %4812 = vmatprep.subr.bf16.mxu0 0
    %4813 = vmatpush1.bf16.msra.mxu0 0
    %4814 = vmatprep.subr.bf16.mxu0 0
    %4815 = vmatpush1.bf16.msra.mxu0 0
    %4816 = vmatprep.subr.bf16.mxu0 0
    %4817 = vmatpush1.bf16.msra.mxu0 0
    %4818 = vmatprep.subr.bf16.mxu0 0
    %4819 = vmatpush1.bf16.msra.mxu0 0
    %4820 = vmatprep.subr.bf16.mxu0 0
    %4821 = vmatpush1.bf16.msra.mxu0 0
    %4822 = vmatprep.subr.bf16.mxu0 0
    %4823 = vmatpush1.bf16.msra.mxu0 0
    %4824 = vmatprep.subr.bf16.mxu0 0
    %4825 = vmatpush1.bf16.msra.mxu0 0
    %4826 = vmatprep.subr.bf16.mxu0 0
    %4827 = vmatpush1.bf16.msra.mxu0 0
    %4828 = vmatprep.subr.bf16.mxu0 0
    %4829 = vmatpush1.bf16.msra.mxu0 0
    %4830 = vmatprep.subr.bf16.mxu0 0
    %4831 = vmatpush1.bf16.msra.mxu0 0
    %4832 = vmatprep.subr.bf16.mxu0 0
    %4833 = vmatpush1.bf16.msra.mxu0 0
    %4834 = vmatprep.subr.bf16.mxu0 0
    %4835 = vmatpush1.bf16.msra.mxu0 0
    %4836 = vmatprep.subr.bf16.mxu0 0
    %4837 = vmatpush1.bf16.msra.mxu0 0
    %4838 = vmatprep.mubr.bf16.mxu0 0
    %4839 = vmatmul.mubr.bf16.gmra.mrb[0].mxu0 %v4804
    %v4840 = vpop.f32.mrb[0].mxu0
    %v4841 = vadd.f32 0.0, %v4840
    %v4842 = vpop.f32.mrb[0].mxu0
    %v4843 = vpop.f32.mrb[0].mxu0
    %v4844 = vadd.f32 0.0, %v4843
    %v4845 = vpop.f32.mrb[0].mxu0
    %4846 = vdwg.mxu0
    %v4848 = vsel %vm2190, %v4315, 0
    %4850 = vmatprep.subr.bf16.mxu0 0
    %4851 = vmatpush1.bf16.msra.mxu0 %v1471
    %4852 = vmatprep.subr.bf16.mxu0 0
    %4853 = vmatpush1.bf16.msra.mxu0 0
    %4854 = vmatprep.subr.bf16.mxu0 0
    %4855 = vmatpush1.bf16.msra.mxu0 0
    %4856 = vmatprep.subr.bf16.mxu0 0
    %4857 = vmatpush1.bf16.msra.mxu0 0
    %4858 = vmatprep.subr.bf16.mxu0 0
    %4859 = vmatpush1.bf16.msra.mxu0 0
    %4860 = vmatprep.subr.bf16.mxu0 0
    %4861 = vmatpush1.bf16.msra.mxu0 0
    %4862 = vmatprep.subr.bf16.mxu0 0
    %4863 = vmatpush1.bf16.msra.mxu0 0
    %4864 = vmatprep.subr.bf16.mxu0 0
    %4865 = vmatpush1.bf16.msra.mxu0 0
    %4866 = vmatprep.subr.bf16.mxu0 0
    %4867 = vmatpush1.bf16.msra.mxu0 0
    %4868 = vmatprep.subr.bf16.mxu0 0
    %4869 = vmatpush1.bf16.msra.mxu0 0
    %4870 = vmatprep.subr.bf16.mxu0 0
    %4871 = vmatpush1.bf16.msra.mxu0 0
    %4872 = vmatprep.subr.bf16.mxu0 0
    %4873 = vmatpush1.bf16.msra.mxu0 0
    %4874 = vmatprep.subr.bf16.mxu0 0
    %4875 = vmatpush1.bf16.msra.mxu0 0
    %4876 = vmatprep.subr.bf16.mxu0 0
    %4877 = vmatpush1.bf16.msra.mxu0 0
    %4878 = vmatprep.subr.bf16.mxu0 0
    %4879 = vmatpush1.bf16.msra.mxu0 0
    %4880 = vmatprep.subr.bf16.mxu0 0
    %4881 = vmatpush1.bf16.msra.mxu0 0
    %4882 = vmatprep.mubr.bf16.mxu0 0
    %4883 = vmatmul.mubr.bf16.gmra.mrb[0].mxu0 %v4848
    %v4884 = vpop.f32.mrb[0].mxu0
    %v4885 = vadd.f32 0.0, %v4884
    %v4886 = vpop.f32.mrb[0].mxu0
    %v4887 = vpop.f32.mrb[0].mxu0
    %v4888 = vadd.f32 0.0, %v4887
    %v4889 = vpop.f32.mrb[0].mxu0
    %4890 = vdwg.mxu0
    %v4892 = vsel %vm2190, %v4316, 0
    %4894 = vmatprep.subr.bf16.mxu0 0
    %4895 = vmatpush1.bf16.msra.mxu0 %v1477
    %4896 = vmatprep.subr.bf16.mxu0 0
    %4897 = vmatpush1.bf16.msra.mxu0 0
    %4898 = vmatprep.subr.bf16.mxu0 0
    %4899 = vmatpush1.bf16.msra.mxu0 0
    %4900 = vmatprep.subr.bf16.mxu0 0
    %4901 = vmatpush1.bf16.msra.mxu0 0
    %4902 = vmatprep.subr.bf16.mxu0 0
    %4903 = vmatpush1.bf16.msra.mxu0 0
    %4904 = vmatprep.subr.bf16.mxu0 0
    %4905 = vmatpush1.bf16.msra.mxu0 0
    %4906 = vmatprep.subr.bf16.mxu0 0
    %4907 = vmatpush1.bf16.msra.mxu0 0
    %4908 = vmatprep.subr.bf16.mxu0 0
    %4909 = vmatpush1.bf16.msra.mxu0 0
    %4910 = vmatprep.subr.bf16.mxu0 0
    %4911 = vmatpush1.bf16.msra.mxu0 0
    %4912 = vmatprep.subr.bf16.mxu0 0
    %4913 = vmatpush1.bf16.msra.mxu0 0
    %4914 = vmatprep.subr.bf16.mxu0 0
    %4915 = vmatpush1.bf16.msra.mxu0 0
    %4916 = vmatprep.subr.bf16.mxu0 0
    %4917 = vmatpush1.bf16.msra.mxu0 0
    %4918 = vmatprep.subr.bf16.mxu0 0
    %4919 = vmatpush1.bf16.msra.mxu0 0
    %4920 = vmatprep.subr.bf16.mxu0 0
    %4921 = vmatpush1.bf16.msra.mxu0 0
    %4922 = vmatprep.subr.bf16.mxu0 0
    %4923 = vmatpush1.bf16.msra.mxu0 0
    %4924 = vmatprep.subr.bf16.mxu0 0
    %4925 = vmatpush1.bf16.msra.mxu0 0
    %4926 = vmatprep.mubr.bf16.mxu0 0
    %4927 = vmatmul.mubr.bf16.gmra.mrb[0].mxu0 %v4892
    %v4928 = vpop.f32.mrb[0].mxu0
    %v4929 = vadd.f32 0.0, %v4928
    %v4930 = vpop.f32.mrb[0].mxu0
    %v4931 = vpop.f32.mrb[0].mxu0
    %v4932 = vadd.f32 0.0, %v4931
    %v4933 = vpop.f32.mrb[0].mxu0
    %4934 = vdwg.mxu0
    %v4936 = vsel %vm2190, %v4317, 0
    %4938 = vmatprep.subr.bf16.mxu0 0
    %4939 = vmatpush1.bf16.msra.mxu0 %v1483
    %4940 = vmatprep.subr.bf16.mxu0 0
    %4941 = vmatpush1.bf16.msra.mxu0 0
    %4942 = vmatprep.subr.bf16.mxu0 0
    %4943 = vmatpush1.bf16.msra.mxu0 0
    %4944 = vmatprep.subr.bf16.mxu0 0
    %4945 = vmatpush1.bf16.msra.mxu0 0
    %4946 = vmatprep.subr.bf16.mxu0 0
    %4947 = vmatpush1.bf16.msra.mxu0 0
    %4948 = vmatprep.subr.bf16.mxu0 0
    %4949 = vmatpush1.bf16.msra.mxu0 0
    %4950 = vmatprep.subr.bf16.mxu0 0
    %4951 = vmatpush1.bf16.msra.mxu0 0
    %4952 = vmatprep.subr.bf16.mxu0 0
    %4953 = vmatpush1.bf16.msra.mxu0 0
    %4954 = vmatprep.subr.bf16.mxu0 0
    %4955 = vmatpush1.bf16.msra.mxu0 0
    %4956 = vmatprep.subr.bf16.mxu0 0
    %4957 = vmatpush1.bf16.msra.mxu0 0
    %4958 = vmatprep.subr.bf16.mxu0 0
    %4959 = vmatpush1.bf16.msra.mxu0 0
    %4960 = vmatprep.subr.bf16.mxu0 0
    %4961 = vmatpush1.bf16.msra.mxu0 0
    %4962 = vmatprep.subr.bf16.mxu0 0
    %4963 = vmatpush1.bf16.msra.mxu0 0
    %4964 = vmatprep.subr.bf16.mxu0 0
    %4965 = vmatpush1.bf16.msra.mxu0 0
    %4966 = vmatprep.subr.bf16.mxu0 0
    %4967 = vmatpush1.bf16.msra.mxu0 0
    %4968 = vmatprep.subr.bf16.mxu0 0
    %4969 = vmatpush1.bf16.msra.mxu0 0
    %4970 = vmatprep.mubr.bf16.mxu0 0
    %4971 = vmatmul.mubr.bf16.gmra.mrb[0].mxu0 %v4936
    %v4972 = vpop.f32.mrb[0].mxu0
    %v4973 = vadd.f32 0.0, %v4972
    %v4974 = vpop.f32.mrb[0].mxu0
    %v4975 = vpop.f32.mrb[0].mxu0
    %v4976 = vadd.f32 0.0, %v4975
    %v4977 = vpop.f32.mrb[0].mxu0
    %4978 = vdwg.mxu0
    %v4980 = vsel %vm2190, %v4318, 0
    %4982 = vmatprep.subr.bf16.mxu0 0
    %4983 = vmatpush1.bf16.msra.mxu0 %v1489
    %4984 = vmatprep.subr.bf16.mxu0 0
    %4985 = vmatpush1.bf16.msra.mxu0 0
    %4986 = vmatprep.subr.bf16.mxu0 0
    %4987 = vmatpush1.bf16.msra.mxu0 0
    %4988 = vmatprep.subr.bf16.mxu0 0
    %4989 = vmatpush1.bf16.msra.mxu0 0
    %4990 = vmatprep.subr.bf16.mxu0 0
    %4991 = vmatpush1.bf16.msra.mxu0 0
    %4992 = vmatprep.subr.bf16.mxu0 0
    %4993 = vmatpush1.bf16.msra.mxu0 0
    %4994 = vmatprep.subr.bf16.mxu0 0
    %4995 = vmatpush1.bf16.msra.mxu0 0
    %4996 = vmatprep.subr.bf16.mxu0 0
    %4997 = vmatpush1.bf16.msra.mxu0 0
    %4998 = vmatprep.subr.bf16.mxu0 0
    %4999 = vmatpush1.bf16.msra.mxu0 0
    %5000 = vmatprep.subr.bf16.mxu0 0
    %5001 = vmatpush1.bf16.msra.mxu0 0
    %5002 = vmatprep.subr.bf16.mxu0 0
    %5003 = vmatpush1.bf16.msra.mxu0 0
    %5004 = vmatprep.subr.bf16.mxu0 0
    %5005 = vmatpush1.bf16.msra.mxu0 0
    %5006 = vmatprep.subr.bf16.mxu0 0
    %5007 = vmatpush1.bf16.msra.mxu0 0
    %5008 = vmatprep.subr.bf16.mxu0 0
    %5009 = vmatpush1.bf16.msra.mxu0 0
    %5010 = vmatprep.subr.bf16.mxu0 0
    %5011 = vmatpush1.bf16.msra.mxu0 0
    %5012 = vmatprep.subr.bf16.mxu0 0
    %5013 = vmatpush1.bf16.msra.mxu0 0
    %5014 = vmatprep.mubr.bf16.mxu0 0
    %5015 = vmatmul.mubr.bf16.gmra.mrb[0].mxu0 %v4980
    %v5016 = vpop.f32.mrb[0].mxu0
    %v5017 = vadd.f32 0.0, %v5016
    %v5018 = vpop.f32.mrb[0].mxu0
    %v5019 = vpop.f32.mrb[0].mxu0
    %v5020 = vadd.f32 0.0, %v5019
    %v5021 = vpop.f32.mrb[0].mxu0
    %5022 = vdwg.mxu0
    %v5023 = vrcp.pop %v4209
    %v5024 = vmul.f32 1.0, %v5023
    %v5025 = vrcp.pop %v4212
    %v5026 = vmul.f32 1.0, %v5025
    %v5027 = vrcp.pop %v4215
    %v5028 = vmul.f32 1.0, %v5027
    %v5029 = vrcp.pop %v4218
    %v5030 = vmul.f32 1.0, %v5029
    %v5031 = vrcp.pop %v4221
    %v5032 = vmul.f32 1.0, %v5031
    %v5033 = vrcp.pop %v4224
    %v5034 = vmul.f32 1.0, %v5033
    %v5035 = vrcp.pop %v4227
    %v5036 = vmul.f32 1.0, %v5035
    %v5037 = vrcp.pop %v4230
    %v5038 = vmul.f32 1.0, %v5037
    %v5039 = vrcp.pop %v4233
    %v5040 = vmul.f32 1.0, %v5039
    %v5041 = vrcp.pop %v4236
    %v5042 = vmul.f32 1.0, %v5041
    %v5043 = vrcp.pop %v4239
    %v5044 = vmul.f32 1.0, %v5043
    %v5045 = vrcp.pop %v4242
    %v5046 = vmul.f32 1.0, %v5045
    %v5047 = vrcp.pop %v4245
    %v5048 = vmul.f32 1.0, %v5047
    %v5049 = vrcp.pop %v4248
    %v5050 = vmul.f32 1.0, %v5049
    %v5051 = vrcp.pop %v4251
    %v5052 = vmul.f32 1.0, %v5051
    %v5053 = vrcp.pop %v4254
    %v5054 = vmul.f32 1.0, %v5053
    %v5055 = vrcp.pop %v4257
    %v5056 = vmul.f32 1.0, %v5055
    %v5057 = vrcp.pop %v4260
    %v5058 = vmul.f32 1.0, %v5057
    %v5059 = vrcp.pop %v4263
    %v5060 = vmul.f32 1.0, %v5059
    %v5061 = vrcp.pop %v4266
    %v5062 = vmul.f32 1.0, %v5061
    %v5063 = vrcp.pop %v4269
    %v5064 = vmul.f32 1.0, %v5063
    %v5065 = vrcp.pop %v4272
    %v5066 = vmul.f32 1.0, %v5065
    %v5067 = vrcp.pop %v4275
    %v5068 = vmul.f32 1.0, %v5067
    %v5069 = vrcp.pop %v4278
    %v5070 = vmul.f32 1.0, %v5069
    %v5071 = vrcp.pop %v4281
    %v5072 = vmul.f32 1.0, %v5071
    %v5073 = vrcp.pop %v4284
    %v5074 = vmul.f32 1.0, %v5073
    %v5075 = vrcp.pop %v4287
    %v5076 = vmul.f32 1.0, %v5075
    %v5077 = vrcp.pop %v4290
    %v5078 = vmul.f32 1.0, %v5077
    %v5079 = vrcp.pop %v4293
    %v5080 = vmul.f32 1.0, %v5079
    %v5081 = vrcp.pop %v4296
    %v5082 = vmul.f32 1.0, %v5081
    %v5083 = vrcp.pop %v4299
    %v5084 = vmul.f32 1.0, %v5083
    %v5085 = vrcp.pop %v4302
    %v5086 = vmul.f32 1.0, %v5085
    %v5087 = vmul.f32 %v4357, %v5024
    %v5088 = vmul.f32 %v4360, %v5026
    %v5089 = vmul.f32 %v4401, %v5028
    %v5090 = vmul.f32 %v4404, %v5030
    %v5091 = vmul.f32 %v4445, %v5032
    %v5092 = vmul.f32 %v4448, %v5034
    %v5093 = vmul.f32 %v4489, %v5036
    %v5094 = vmul.f32 %v4492, %v5038
    %v5095 = vmul.f32 %v4533, %v5040
    %v5096 = vmul.f32 %v4536, %v5042
    %v5097 = vmul.f32 %v4577, %v5044
    %v5098 = vmul.f32 %v4580, %v5046
    %v5099 = vmul.f32 %v4621, %v5048
    %v5100 = vmul.f32 %v4624, %v5050
    %v5101 = vmul.f32 %v4665, %v5052
    %v5102 = vmul.f32 %v4668, %v5054
    %v5103 = vmul.f32 %v4709, %v5056
    %v5104 = vmul.f32 %v4712, %v5058
    %v5105 = vmul.f32 %v4753, %v5060
    %v5106 = vmul.f32 %v4756, %v5062
    %v5107 = vmul.f32 %v4797, %v5064
    %v5108 = vmul.f32 %v4800, %v5066
    %v5109 = vmul.f32 %v4841, %v5068
    %v5110 = vmul.f32 %v4844, %v5070
    %v5111 = vmul.f32 %v4885, %v5072
    %v5112 = vmul.f32 %v4888, %v5074
    %v5113 = vmul.f32 %v4929, %v5076
    %v5114 = vmul.f32 %v4932, %v5078
    %v5115 = vmul.f32 %v4973, %v5080
    %v5116 = vmul.f32 %v4976, %v5082
    %v5117 = vmul.f32 %v5017, %v5084
    %v5118 = vmul.f32 %v5020, %v5086
    %v5119 = vpack.c.bf16 %v5088, %v5087
    %v5120 = vpack.c.bf16 %v5090, %v5089
    %v5121 = vpack.c.bf16 %v5092, %v5091
    %v5122 = vpack.c.bf16 %v5094, %v5093
    %v5123 = vpack.c.bf16 %v5096, %v5095
    %v5124 = vpack.c.bf16 %v5098, %v5097
    %v5125 = vpack.c.bf16 %v5100, %v5099
    %v5126 = vpack.c.bf16 %v5102, %v5101
    %v5127 = vpack.c.bf16 %v5104, %v5103
    %v5128 = vpack.c.bf16 %v5106, %v5105
    %v5129 = vpack.c.bf16 %v5108, %v5107
    %v5130 = vpack.c.bf16 %v5110, %v5109
    %v5131 = vpack.c.bf16 %v5112, %v5111
    %v5132 = vpack.c.bf16 %v5114, %v5113
    %v5133 = vpack.c.bf16 %v5116, %v5115
    %v5134 = vpack.c.bf16 %v5118, %v5117
    %v5135 = vld [vmem:[#allocation8 + $0x80] sm:$0xff]
    %v5136 = vld [vmem:[#allocation8 + $0x88] sm:$0xff]
    %v5137 = vld [vmem:[#allocation8 + $0x90] sm:$0xff]
    %v5138 = vld [vmem:[#allocation8 + $0x98] sm:$0xff]
    %v5139 = vld [vmem:[#allocation8 + $0xa0] sm:$0xff]
    %v5140 = vld [vmem:[#allocation8 + $0xa8] sm:$0xff]
    %v5141 = vld [vmem:[#allocation8 + $0xb0] sm:$0xff]
    %v5142 = vld [vmem:[#allocation8 + $0xb8] sm:$0xff]
    %v5143 = vld [vmem:[#allocation8 + $0xc0] sm:$0xff]
    %v5144 = vld [vmem:[#allocation8 + $0xc8] sm:$0xff]
    %v5145 = vld [vmem:[#allocation8 + $0xd0] sm:$0xff]
    %v5146 = vld [vmem:[#allocation8 + $0xd8] sm:$0xff]
    %v5147 = vld [vmem:[#allocation8 + $0xe0] sm:$0xff]
    %v5148 = vld [vmem:[#allocation8 + $0xe8] sm:$0xff]
    %v5149 = vld [vmem:[#allocation8 + $0xf0] sm:$0xff]
    %v5150 = vld [vmem:[#allocation8 + $0xf8] sm:$0xff]
    %v5167 = vunpack.c.l.b16 %v5135
    %v5168 = vunpack.c.h.b16 %v5135
    %v5169 = vunpack.c.l.b16 %v5136
    %v5170 = vunpack.c.h.b16 %v5136
    %v5171 = vunpack.c.l.b16 %v5137
    %v5172 = vunpack.c.h.b16 %v5137
    %v5173 = vunpack.c.l.b16 %v5138
    %v5174 = vunpack.c.h.b16 %v5138
    %v5175 = vunpack.c.l.b16 %v5139
    %v5176 = vunpack.c.h.b16 %v5139
    %v5177 = vunpack.c.l.b16 %v5140
    %v5178 = vunpack.c.h.b16 %v5140
    %v5179 = vunpack.c.l.b16 %v5141
    %v5180 = vunpack.c.h.b16 %v5141
    %v5181 = vunpack.c.l.b16 %v5142
    %v5182 = vunpack.c.h.b16 %v5142
    %v5183 = vunpack.c.l.b16 %v5143
    %v5184 = vunpack.c.h.b16 %v5143
    %v5185 = vunpack.c.l.b16 %v5144
    %v5186 = vunpack.c.h.b16 %v5144
    %v5187 = vunpack.c.l.b16 %v5145
    %v5188 = vunpack.c.h.b16 %v5145
    %v5189 = vunpack.c.l.b16 %v5146
    %v5190 = vunpack.c.h.b16 %v5146
    %v5191 = vunpack.c.l.b16 %v5147
    %v5192 = vunpack.c.h.b16 %v5147
    %v5193 = vunpack.c.l.b16 %v5148
    %v5194 = vunpack.c.h.b16 %v5148
    %v5195 = vunpack.c.l.b16 %v5149
    %v5196 = vunpack.c.h.b16 %v5149
    %v5197 = vunpack.c.l.b16 %v5150
    %v5198 = vunpack.c.h.b16 %v5150
    %v5199 = vpack.c.b16 %v5169, %v5167
    %v5200 = vpack.c.b16 %v5170, %v5168
    %v5201 = vpack.c.b16 %v5173, %v5171
    %v5202 = vpack.c.b16 %v5174, %v5172
    %v5203 = vpack.c.b16 %v5177, %v5175
    %v5204 = vpack.c.b16 %v5178, %v5176
    %v5205 = vpack.c.b16 %v5181, %v5179
    %v5206 = vpack.c.b16 %v5182, %v5180
    %v5207 = vpack.c.b16 %v5185, %v5183
    %v5208 = vpack.c.b16 %v5186, %v5184
    %v5209 = vpack.c.b16 %v5189, %v5187
    %v5210 = vpack.c.b16 %v5190, %v5188
    %v5211 = vpack.c.b16 %v5193, %v5191
    %v5212 = vpack.c.b16 %v5194, %v5192
    %v5213 = vpack.c.b16 %v5197, %v5195
    %v5214 = vpack.c.b16 %v5198, %v5196
    %5231 = vmatprep.subr.bf16.mxu0 %v5200
    %5232 = vmatpush1.bf16.msra.mxu0 %v5199
    %5233 = vmatprep.subr.bf16.mxu0 %v5202
    %5234 = vmatpush1.bf16.msra.mxu0 %v5201
    %5235 = vmatprep.subr.bf16.mxu0 %v5204
    %5236 = vmatpush1.bf16.msra.mxu0 %v5203
    %5237 = vmatprep.subr.bf16.mxu0 %v5206
    %5238 = vmatpush1.bf16.msra.mxu0 %v5205
    %5239 = vmatprep.subr.bf16.mxu0 %v5208
    %5240 = vmatpush1.bf16.msra.mxu0 %v5207
    %5241 = vmatprep.subr.bf16.mxu0 %v5210
    %5242 = vmatpush1.bf16.msra.mxu0 %v5209
    %5243 = vmatprep.subr.bf16.mxu0 %v5212
    %5244 = vmatpush1.bf16.msra.mxu0 %v5211
    %5245 = vmatprep.subr.bf16.mxu0 %v5214
    %5246 = vmatpush1.bf16.msra.mxu0 %v5213
    %5247 = vmatprep.subr.bf16.mxu0 0
    %5248 = vmatpush1.bf16.msra.mxu0 0
    %5249 = vmatprep.subr.bf16.mxu0 0
    %5250 = vmatpush1.bf16.msra.mxu0 0
    %5251 = vmatprep.subr.bf16.mxu0 0
    %5252 = vmatpush1.bf16.msra.mxu0 0
    %5253 = vmatprep.subr.bf16.mxu0 0
    %5254 = vmatpush1.bf16.msra.mxu0 0
    %5255 = vmatprep.subr.bf16.mxu0 0
    %5256 = vmatpush1.bf16.msra.mxu0 0
    %5257 = vmatprep.subr.bf16.mxu0 0
    %5258 = vmatpush1.bf16.msra.mxu0 0
    %5259 = vmatprep.subr.bf16.mxu0 0
    %5260 = vmatpush1.bf16.msra.mxu0 0
    %5261 = vmatprep.subr.bf16.mxu0 0
    %5262 = vmatpush1.bf16.msra.mxu0 0
    %5263 = vmatprep.mubr.bf16.mxu0 0
    %5264 = vmatmul.mubr.bf16.gmra.mrb[0].mxu0 %v5119
    %v5265 = vpop.f32.mrb[0].mxu0
    %v5266 = vadd.f32 0.0, %v5265
    %v5267 = vpop.f32.mrb[0].mxu0
    %v5268 = vadd.f32 0.0, %v5267
    %v5269 = vpop.f32.mrb[0].mxu0
    %v5270 = vadd.f32 0.0, %v5269
    %v5271 = vpop.f32.mrb[0].mxu0
    %v5272 = vadd.f32 0.0, %v5271
    %5273 = vmatprep.mubr.bf16.mxu0 0
    %5274 = vmatmul.mubr.bf16.gmra.mrb[0].mxu0 %v5120
    %v5275 = vpop.f32.mrb[0].mxu0
    %v5276 = vadd.f32 0.0, %v5275
    %v5277 = vpop.f32.mrb[0].mxu0
    %v5278 = vadd.f32 0.0, %v5277
    %v5279 = vpop.f32.mrb[0].mxu0
    %v5280 = vadd.f32 0.0, %v5279
    %v5281 = vpop.f32.mrb[0].mxu0
    %v5282 = vadd.f32 0.0, %v5281
    %5283 = vmatprep.mubr.bf16.mxu0 0
    %5284 = vmatmul.mubr.bf16.gmra.mrb[0].mxu0 %v5121
    %v5285 = vpop.f32.mrb[0].mxu0
    %v5286 = vadd.f32 0.0, %v5285
    %v5287 = vpop.f32.mrb[0].mxu0
    %v5288 = vadd.f32 0.0, %v5287
    %v5289 = vpop.f32.mrb[0].mxu0
    %v5290 = vadd.f32 0.0, %v5289
    %v5291 = vpop.f32.mrb[0].mxu0
    %v5292 = vadd.f32 0.0, %v5291
    %5293 = vmatprep.mubr.bf16.mxu0 0
    %5294 = vmatmul.mubr.bf16.gmra.mrb[0].mxu0 %v5122
    %v5295 = vpop.f32.mrb[0].mxu0
    %v5296 = vadd.f32 0.0, %v5295
    %v5297 = vpop.f32.mrb[0].mxu0
    %v5298 = vadd.f32 0.0, %v5297
    %v5299 = vpop.f32.mrb[0].mxu0
    %v5300 = vadd.f32 0.0, %v5299
    %v5301 = vpop.f32.mrb[0].mxu0
    %v5302 = vadd.f32 0.0, %v5301
    %5303 = vmatprep.mubr.bf16.mxu0 0
    %5304 = vmatmul.mubr.bf16.gmra.mrb[0].mxu0 %v5123
    %v5305 = vpop.f32.mrb[0].mxu0
    %v5306 = vadd.f32 0.0, %v5305
    %v5307 = vpop.f32.mrb[0].mxu0
    %v5308 = vadd.f32 0.0, %v5307
    %v5309 = vpop.f32.mrb[0].mxu0
    %v5310 = vadd.f32 0.0, %v5309
    %v5311 = vpop.f32.mrb[0].mxu0
    %v5312 = vadd.f32 0.0, %v5311
    %5313 = vmatprep.mubr.bf16.mxu0 0
    %5314 = vmatmul.mubr.bf16.gmra.mrb[0].mxu0 %v5124
    %v5315 = vpop.f32.mrb[0].mxu0
    %v5316 = vadd.f32 0.0, %v5315
    %v5317 = vpop.f32.mrb[0].mxu0
    %v5318 = vadd.f32 0.0, %v5317
    %v5319 = vpop.f32.mrb[0].mxu0
    %v5320 = vadd.f32 0.0, %v5319
    %v5321 = vpop.f32.mrb[0].mxu0
    %v5322 = vadd.f32 0.0, %v5321
    %5323 = vmatprep.mubr.bf16.mxu0 0
    %5324 = vmatmul.mubr.bf16.gmra.mrb[0].mxu0 %v5125
    %v5325 = vpop.f32.mrb[0].mxu0
    %v5326 = vadd.f32 0.0, %v5325
    %v5327 = vpop.f32.mrb[0].mxu0
    %v5328 = vadd.f32 0.0, %v5327
    %v5329 = vpop.f32.mrb[0].mxu0
    %v5330 = vadd.f32 0.0, %v5329
    %v5331 = vpop.f32.mrb[0].mxu0
    %v5332 = vadd.f32 0.0, %v5331
    %5333 = vmatprep.mubr.bf16.mxu0 0
    %5334 = vmatmul.mubr.bf16.gmra.mrb[0].mxu0 %v5126
    %v5335 = vpop.f32.mrb[0].mxu0
    %v5336 = vadd.f32 0.0, %v5335
    %v5337 = vpop.f32.mrb[0].mxu0
    %v5338 = vadd.f32 0.0, %v5337
    %v5339 = vpop.f32.mrb[0].mxu0
    %v5340 = vadd.f32 0.0, %v5339
    %v5341 = vpop.f32.mrb[0].mxu0
    %v5342 = vadd.f32 0.0, %v5341
    %5343 = vmatprep.mubr.bf16.mxu0 0
    %5344 = vmatmul.mubr.bf16.gmra.mrb[0].mxu0 %v5127
    %v5345 = vpop.f32.mrb[0].mxu0
    %v5346 = vadd.f32 0.0, %v5345
    %v5347 = vpop.f32.mrb[0].mxu0
    %v5348 = vadd.f32 0.0, %v5347
    %v5349 = vpop.f32.mrb[0].mxu0
    %v5350 = vadd.f32 0.0, %v5349
    %v5351 = vpop.f32.mrb[0].mxu0
    %v5352 = vadd.f32 0.0, %v5351
    %5353 = vmatprep.mubr.bf16.mxu0 0
    %5354 = vmatmul.mubr.bf16.gmra.mrb[0].mxu0 %v5128
    %v5355 = vpop.f32.mrb[0].mxu0
    %v5356 = vadd.f32 0.0, %v5355
    %v5357 = vpop.f32.mrb[0].mxu0
    %v5358 = vadd.f32 0.0, %v5357
    %v5359 = vpop.f32.mrb[0].mxu0
    %v5360 = vadd.f32 0.0, %v5359
    %v5361 = vpop.f32.mrb[0].mxu0
    %v5362 = vadd.f32 0.0, %v5361
    %5363 = vmatprep.mubr.bf16.mxu0 0
    %5364 = vmatmul.mubr.bf16.gmra.mrb[0].mxu0 %v5129
    %v5365 = vpop.f32.mrb[0].mxu0
    %v5366 = vadd.f32 0.0, %v5365
    %v5367 = vpop.f32.mrb[0].mxu0
    %v5368 = vadd.f32 0.0, %v5367
    %v5369 = vpop.f32.mrb[0].mxu0
    %v5370 = vadd.f32 0.0, %v5369
    %v5371 = vpop.f32.mrb[0].mxu0
    %v5372 = vadd.f32 0.0, %v5371
    %5373 = vmatprep.mubr.bf16.mxu0 0
    %5374 = vmatmul.mubr.bf16.gmra.mrb[0].mxu0 %v5130
    %v5375 = vpop.f32.mrb[0].mxu0
    %v5376 = vadd.f32 0.0, %v5375
    %v5377 = vpop.f32.mrb[0].mxu0
    %v5378 = vadd.f32 0.0, %v5377
    %v5379 = vpop.f32.mrb[0].mxu0
    %v5380 = vadd.f32 0.0, %v5379
    %v5381 = vpop.f32.mrb[0].mxu0
    %v5382 = vadd.f32 0.0, %v5381
    %5383 = vmatprep.mubr.bf16.mxu0 0
    %5384 = vmatmul.mubr.bf16.gmra.mrb[0].mxu0 %v5131
    %v5385 = vpop.f32.mrb[0].mxu0
    %v5386 = vadd.f32 0.0, %v5385
    %v5387 = vpop.f32.mrb[0].mxu0
    %v5388 = vadd.f32 0.0, %v5387
    %v5389 = vpop.f32.mrb[0].mxu0
    %v5390 = vadd.f32 0.0, %v5389
    %v5391 = vpop.f32.mrb[0].mxu0
    %v5392 = vadd.f32 0.0, %v5391
    %5393 = vmatprep.mubr.bf16.mxu0 0
    %5394 = vmatmul.mubr.bf16.gmra.mrb[0].mxu0 %v5132
    %v5395 = vpop.f32.mrb[0].mxu0
    %v5396 = vadd.f32 0.0, %v5395
    %v5397 = vpop.f32.mrb[0].mxu0
    %v5398 = vadd.f32 0.0, %v5397
    %v5399 = vpop.f32.mrb[0].mxu0
    %v5400 = vadd.f32 0.0, %v5399
    %v5401 = vpop.f32.mrb[0].mxu0
    %v5402 = vadd.f32 0.0, %v5401
    %5403 = vmatprep.mubr.bf16.mxu0 0
    %5404 = vmatmul.mubr.bf16.gmra.mrb[0].mxu0 %v5133
    %v5405 = vpop.f32.mrb[0].mxu0
    %v5406 = vadd.f32 0.0, %v5405
    %v5407 = vpop.f32.mrb[0].mxu0
    %v5408 = vadd.f32 0.0, %v5407
    %v5409 = vpop.f32.mrb[0].mxu0
    %v5410 = vadd.f32 0.0, %v5409
    %v5411 = vpop.f32.mrb[0].mxu0
    %v5412 = vadd.f32 0.0, %v5411
    %5413 = vmatprep.mubr.bf16.mxu0 0
    %5414 = vmatmul.mubr.bf16.gmra.mrb[0].mxu0 %v5134
    %v5415 = vpop.f32.mrb[0].mxu0
    %v5416 = vadd.f32 0.0, %v5415
    %v5417 = vpop.f32.mrb[0].mxu0
    %v5418 = vadd.f32 0.0, %v5417
    %v5419 = vpop.f32.mrb[0].mxu0
    %v5420 = vadd.f32 0.0, %v5419
    %v5421 = vpop.f32.mrb[0].mxu0
    %v5422 = vadd.f32 0.0, %v5421
    %5423 = vdwg.mxu0
    %v5440 = vunpack.c.l.b16 %v3311
    %v5441 = vunpack.c.h.b16 %v3311
    %v5442 = vunpack.c.l.b16 %v3312
    %v5443 = vunpack.c.h.b16 %v3312
    %v5444 = vunpack.c.l.b16 %v3313
    %v5445 = vunpack.c.h.b16 %v3313
    %v5446 = vunpack.c.l.b16 %v3314
    %v5447 = vunpack.c.h.b16 %v3314
    %v5448 = vunpack.c.l.b16 %v3315
    %v5449 = vunpack.c.h.b16 %v3315
    %v5450 = vunpack.c.l.b16 %v3316
    %v5451 = vunpack.c.h.b16 %v3316
    %v5452 = vunpack.c.l.b16 %v3317
    %v5453 = vunpack.c.h.b16 %v3317
    %v5454 = vunpack.c.l.b16 %v3318
    %v5455 = vunpack.c.h.b16 %v3318
    %v5456 = vunpack.c.l.b16 %v3319
    %v5457 = vunpack.c.h.b16 %v3319
    %v5458 = vunpack.c.l.b16 %v3320
    %v5459 = vunpack.c.h.b16 %v3320
    %v5460 = vunpack.c.l.b16 %v3321
    %v5461 = vunpack.c.h.b16 %v3321
    %v5462 = vunpack.c.l.b16 %v3322
    %v5463 = vunpack.c.h.b16 %v3322
    %v5464 = vunpack.c.l.b16 %v3323
    %v5465 = vunpack.c.h.b16 %v3323
    %v5466 = vunpack.c.l.b16 %v3324
    %v5467 = vunpack.c.h.b16 %v3324
    %v5468 = vunpack.c.l.b16 %v3325
    %v5469 = vunpack.c.h.b16 %v3325
    %v5470 = vunpack.c.l.b16 %v3326
    %v5471 = vunpack.c.h.b16 %v3326
    %v5472 = vpack.c.b16 %v5442, %v5440
    %v5473 = vpack.c.b16 %v5443, %v5441
    %v5474 = vpack.c.b16 %v5446, %v5444
    %v5475 = vpack.c.b16 %v5447, %v5445
    %v5476 = vpack.c.b16 %v5450, %v5448
    %v5477 = vpack.c.b16 %v5451, %v5449
    %v5478 = vpack.c.b16 %v5454, %v5452
    %v5479 = vpack.c.b16 %v5455, %v5453
    %v5480 = vpack.c.b16 %v5458, %v5456
    %v5481 = vpack.c.b16 %v5459, %v5457
    %v5482 = vpack.c.b16 %v5462, %v5460
    %v5483 = vpack.c.b16 %v5463, %v5461
    %v5484 = vpack.c.b16 %v5466, %v5464
    %v5485 = vpack.c.b16 %v5467, %v5465
    %v5486 = vpack.c.b16 %v5470, %v5468
    %v5487 = vpack.c.b16 %v5471, %v5469
    %5504 = vmatprep.subr.bf16.mxu0 %v5473
    %5505 = vmatpush1.bf16.msra.mxu0 %v5472
    %5506 = vmatprep.subr.bf16.mxu0 %v5475
    %5507 = vmatpush1.bf16.msra.mxu0 %v5474
    %5508 = vmatprep.subr.bf16.mxu0 %v5477
    %5509 = vmatpush1.bf16.msra.mxu0 %v5476
    %5510 = vmatprep.subr.bf16.mxu0 %v5479
    %5511 = vmatpush1.bf16.msra.mxu0 %v5478
    %5512 = vmatprep.subr.bf16.mxu0 %v5481
    %5513 = vmatpush1.bf16.msra.mxu0 %v5480
    %5514 = vmatprep.subr.bf16.mxu0 %v5483
    %5515 = vmatpush1.bf16.msra.mxu0 %v5482
    %5516 = vmatprep.subr.bf16.mxu0 %v5485
    %5517 = vmatpush1.bf16.msra.mxu0 %v5484
    %5518 = vmatprep.subr.bf16.mxu0 %v5487
    %5519 = vmatpush1.bf16.msra.mxu0 %v5486
    %5520 = vmatprep.subr.bf16.mxu0 0
    %5521 = vmatpush1.bf16.msra.mxu0 0
    %5522 = vmatprep.subr.bf16.mxu0 0
    %5523 = vmatpush1.bf16.msra.mxu0 0
    %5524 = vmatprep.subr.bf16.mxu0 0
    %5525 = vmatpush1.bf16.msra.mxu0 0
    %5526 = vmatprep.subr.bf16.mxu0 0
    %5527 = vmatpush1.bf16.msra.mxu0 0
    %5528 = vmatprep.subr.bf16.mxu0 0
    %5529 = vmatpush1.bf16.msra.mxu0 0
    %5530 = vmatprep.subr.bf16.mxu0 0
    %5531 = vmatpush1.bf16.msra.mxu0 0
    %5532 = vmatprep.subr.bf16.mxu0 0
    %5533 = vmatpush1.bf16.msra.mxu0 0
    %5534 = vmatprep.subr.bf16.mxu0 0
    %5535 = vmatpush1.bf16.msra.mxu0 0
    %5536 = vmatprep.mubr.bf16.mxu0 0
    %5537 = vmatmul.mubr.bf16.gmra.mrb[0].mxu0 %v3295
    %v5538 = vpop.f32.mrb[0].mxu0
    %v5539 = vadd.f32 %v5266, %v5538
    %v5540 = vpop.f32.mrb[0].mxu0
    %v5541 = vadd.f32 %v5268, %v5540
    %v5542 = vpop.f32.mrb[0].mxu0
    %v5543 = vadd.f32 %v5270, %v5542
    %v5544 = vpop.f32.mrb[0].mxu0
    %v5545 = vadd.f32 %v5272, %v5544
    %5546 = vmatprep.mubr.bf16.mxu0 0
    %5547 = vmatmul.mubr.bf16.gmra.mrb[0].mxu0 %v3296
    %v5548 = vpop.f32.mrb[0].mxu0
    %v5549 = vadd.f32 %v5276, %v5548
    %v5550 = vpop.f32.mrb[0].mxu0
    %v5551 = vadd.f32 %v5278, %v5550
    %v5552 = vpop.f32.mrb[0].mxu0
    %v5553 = vadd.f32 %v5280, %v5552
    %v5554 = vpop.f32.mrb[0].mxu0
    %v5555 = vadd.f32 %v5282, %v5554
    %5556 = vmatprep.mubr.bf16.mxu0 0
    %5557 = vmatmul.mubr.bf16.gmra.mrb[0].mxu0 %v3297
    %v5558 = vpop.f32.mrb[0].mxu0
    %v5559 = vadd.f32 %v5286, %v5558
    %v5560 = vpop.f32.mrb[0].mxu0
    %v5561 = vadd.f32 %v5288, %v5560
    %v5562 = vpop.f32.mrb[0].mxu0
    %v5563 = vadd.f32 %v5290, %v5562
    %v5564 = vpop.f32.mrb[0].mxu0
    %v5565 = vadd.f32 %v5292, %v5564
    %5566 = vmatprep.mubr.bf16.mxu0 0
    %5567 = vmatmul.mubr.bf16.gmra.mrb[0].mxu0 %v3298
    %v5568 = vpop.f32.mrb[0].mxu0
    %v5569 = vadd.f32 %v5296, %v5568
    %v5570 = vpop.f32.mrb[0].mxu0
    %v5571 = vadd.f32 %v5298, %v5570
    %v5572 = vpop.f32.mrb[0].mxu0
    %v5573 = vadd.f32 %v5300, %v5572
    %v5574 = vpop.f32.mrb[0].mxu0
    %v5575 = vadd.f32 %v5302, %v5574
    %5576 = vmatprep.mubr.bf16.mxu0 0
    %5577 = vmatmul.mubr.bf16.gmra.mrb[0].mxu0 %v3299
    %v5578 = vpop.f32.mrb[0].mxu0
    %v5579 = vadd.f32 %v5306, %v5578
    %v5580 = vpop.f32.mrb[0].mxu0
    %v5581 = vadd.f32 %v5308, %v5580
    %v5582 = vpop.f32.mrb[0].mxu0
    %v5583 = vadd.f32 %v5310, %v5582
    %v5584 = vpop.f32.mrb[0].mxu0
    %v5585 = vadd.f32 %v5312, %v5584
    %5586 = vmatprep.mubr.bf16.mxu0 0
    %5587 = vmatmul.mubr.bf16.gmra.mrb[0].mxu0 %v3300
    %v5588 = vpop.f32.mrb[0].mxu0
    %v5589 = vadd.f32 %v5316, %v5588
    %v5590 = vpop.f32.mrb[0].mxu0
    %v5591 = vadd.f32 %v5318, %v5590
    %v5592 = vpop.f32.mrb[0].mxu0
    %v5593 = vadd.f32 %v5320, %v5592
    %v5594 = vpop.f32.mrb[0].mxu0
    %v5595 = vadd.f32 %v5322, %v5594
    %5596 = vmatprep.mubr.bf16.mxu0 0
    %5597 = vmatmul.mubr.bf16.gmra.mrb[0].mxu0 %v3301
    %v5598 = vpop.f32.mrb[0].mxu0
    %v5599 = vadd.f32 %v5326, %v5598
    %v5600 = vpop.f32.mrb[0].mxu0
    %v5601 = vadd.f32 %v5328, %v5600
    %v5602 = vpop.f32.mrb[0].mxu0
    %v5603 = vadd.f32 %v5330, %v5602
    %v5604 = vpop.f32.mrb[0].mxu0
    %v5605 = vadd.f32 %v5332, %v5604
    %5606 = vmatprep.mubr.bf16.mxu0 0
    %5607 = vmatmul.mubr.bf16.gmra.mrb[0].mxu0 %v3302
    %v5608 = vpop.f32.mrb[0].mxu0
    %v5609 = vadd.f32 %v5336, %v5608
    %v5610 = vpop.f32.mrb[0].mxu0
    %v5611 = vadd.f32 %v5338, %v5610
    %v5612 = vpop.f32.mrb[0].mxu0
    %v5613 = vadd.f32 %v5340, %v5612
    %v5614 = vpop.f32.mrb[0].mxu0
    %v5615 = vadd.f32 %v5342, %v5614
    %5616 = vmatprep.mubr.bf16.mxu0 0
    %5617 = vmatmul.mubr.bf16.gmra.mrb[0].mxu0 %v3303
    %v5618 = vpop.f32.mrb[0].mxu0
    %v5619 = vadd.f32 %v5346, %v5618
    %v5620 = vpop.f32.mrb[0].mxu0
    %v5621 = vadd.f32 %v5348, %v5620
    %v5622 = vpop.f32.mrb[0].mxu0
    %v5623 = vadd.f32 %v5350, %v5622
    %v5624 = vpop.f32.mrb[0].mxu0
    %v5625 = vadd.f32 %v5352, %v5624
    %5626 = vmatprep.mubr.bf16.mxu0 0
    %5627 = vmatmul.mubr.bf16.gmra.mrb[0].mxu0 %v3304
    %v5628 = vpop.f32.mrb[0].mxu0
    %v5629 = vadd.f32 %v5356, %v5628
    %v5630 = vpop.f32.mrb[0].mxu0
    %v5631 = vadd.f32 %v5358, %v5630
    %v5632 = vpop.f32.mrb[0].mxu0
    %v5633 = vadd.f32 %v5360, %v5632
    %v5634 = vpop.f32.mrb[0].mxu0
    %v5635 = vadd.f32 %v5362, %v5634
    %5636 = vmatprep.mubr.bf16.mxu0 0
    %5637 = vmatmul.mubr.bf16.gmra.mrb[0].mxu0 %v3305
    %v5638 = vpop.f32.mrb[0].mxu0
    %v5639 = vadd.f32 %v5366, %v5638
    %v5640 = vpop.f32.mrb[0].mxu0
    %v5641 = vadd.f32 %v5368, %v5640
    %v5642 = vpop.f32.mrb[0].mxu0
    %v5643 = vadd.f32 %v5370, %v5642
    %v5644 = vpop.f32.mrb[0].mxu0
    %v5645 = vadd.f32 %v5372, %v5644
    %5646 = vmatprep.mubr.bf16.mxu0 0
    %5647 = vmatmul.mubr.bf16.gmra.mrb[0].mxu0 %v3306
    %v5648 = vpop.f32.mrb[0].mxu0
    %v5649 = vadd.f32 %v5376, %v5648
    %v5650 = vpop.f32.mrb[0].mxu0
    %v5651 = vadd.f32 %v5378, %v5650
    %v5652 = vpop.f32.mrb[0].mxu0
    %v5653 = vadd.f32 %v5380, %v5652
    %v5654 = vpop.f32.mrb[0].mxu0
    %v5655 = vadd.f32 %v5382, %v5654
    %5656 = vmatprep.mubr.bf16.mxu0 0
    %5657 = vmatmul.mubr.bf16.gmra.mrb[0].mxu0 %v3307
    %v5658 = vpop.f32.mrb[0].mxu0
    %v5659 = vadd.f32 %v5386, %v5658
    %v5660 = vpop.f32.mrb[0].mxu0
    %v5661 = vadd.f32 %v5388, %v5660
    %v5662 = vpop.f32.mrb[0].mxu0
    %v5663 = vadd.f32 %v5390, %v5662
    %v5664 = vpop.f32.mrb[0].mxu0
    %v5665 = vadd.f32 %v5392, %v5664
    %5666 = vmatprep.mubr.bf16.mxu0 0
    %5667 = vmatmul.mubr.bf16.gmra.mrb[0].mxu0 %v3308
    %v5668 = vpop.f32.mrb[0].mxu0
    %v5669 = vadd.f32 %v5396, %v5668
    %v5670 = vpop.f32.mrb[0].mxu0
    %v5671 = vadd.f32 %v5398, %v5670
    %v5672 = vpop.f32.mrb[0].mxu0
    %v5673 = vadd.f32 %v5400, %v5672
    %v5674 = vpop.f32.mrb[0].mxu0
    %v5675 = vadd.f32 %v5402, %v5674
    %5676 = vmatprep.mubr.bf16.mxu0 0
    %5677 = vmatmul.mubr.bf16.gmra.mrb[0].mxu0 %v3309
    %v5678 = vpop.f32.mrb[0].mxu0
    %v5679 = vadd.f32 %v5406, %v5678
    %v5680 = vpop.f32.mrb[0].mxu0
    %v5681 = vadd.f32 %v5408, %v5680
    %v5682 = vpop.f32.mrb[0].mxu0
    %v5683 = vadd.f32 %v5410, %v5682
    %v5684 = vpop.f32.mrb[0].mxu0
    %v5685 = vadd.f32 %v5412, %v5684
    %5686 = vmatprep.mubr.bf16.mxu0 0
    %5687 = vmatmul.mubr.bf16.gmra.mrb[0].mxu0 %v3310
    %v5688 = vpop.f32.mrb[0].mxu0
    %v5689 = vadd.f32 %v5416, %v5688
    %v5690 = vpop.f32.mrb[0].mxu0
    %v5691 = vadd.f32 %v5418, %v5690
    %v5692 = vpop.f32.mrb[0].mxu0
    %v5693 = vadd.f32 %v5420, %v5692
    %v5694 = vpop.f32.mrb[0].mxu0
    %v5695 = vadd.f32 %v5422, %v5694
    %5696 = vdwg.mxu0
    %v5698 = vlaneseq
    %v5699 = vshrl.u32 %v5698, 7
    %v5700 = vsub.s32 0, %v5699
    %v5701 = vrot.slane %v1497, %v5700
    %v5702 = vlaneseq
    %v5703 = vshrl.u32 %v5702, 7
    %v5704 = vsub.s32 1, %v5703
    %v5705 = vrot.slane %v1497, %v5704
    %v5708 = vadd.f32 %v5539, %v5701
    %v5709 = vadd.f32 %v5541, %v5705
    %v5710 = vadd.f32 %v5543, %v5701
    %v5711 = vadd.f32 %v5545, %v5705
    %v5712 = vadd.f32 %v5549, %v5701
    %v5713 = vadd.f32 %v5551, %v5705
    %v5714 = vadd.f32 %v5553, %v5701
    %v5715 = vadd.f32 %v5555, %v5705
    %v5716 = vadd.f32 %v5559, %v5701
    %v5717 = vadd.f32 %v5561, %v5705
    %v5718 = vadd.f32 %v5563, %v5701
    %v5719 = vadd.f32 %v5565, %v5705
    %v5720 = vadd.f32 %v5569, %v5701
    %v5721 = vadd.f32 %v5571, %v5705
    %v5722 = vadd.f32 %v5573, %v5701
    %v5723 = vadd.f32 %v5575, %v5705
    %v5724 = vadd.f32 %v5579, %v5701
    %v5725 = vadd.f32 %v5581, %v5705
    %v5726 = vadd.f32 %v5583, %v5701
    %v5727 = vadd.f32 %v5585, %v5705
    %v5728 = vadd.f32 %v5589, %v5701
    %v5729 = vadd.f32 %v5591, %v5705
    %v5730 = vadd.f32 %v5593, %v5701
    %v5731 = vadd.f32 %v5595, %v5705
    %v5732 = vadd.f32 %v5599, %v5701
    %v5733 = vadd.f32 %v5601, %v5705
    %v5734 = vadd.f32 %v5603, %v5701
    %v5735 = vadd.f32 %v5605, %v5705
    %v5736 = vadd.f32 %v5609, %v5701
    %v5737 = vadd.f32 %v5611, %v5705
    %v5738 = vadd.f32 %v5613, %v5701
    %v5739 = vadd.f32 %v5615, %v5705
    %v5740 = vadd.f32 %v5619, %v5701
    %v5741 = vadd.f32 %v5621, %v5705
    %v5742 = vadd.f32 %v5623, %v5701
    %v5743 = vadd.f32 %v5625, %v5705
    %v5744 = vadd.f32 %v5629, %v5701
    %v5745 = vadd.f32 %v5631, %v5705
    %v5746 = vadd.f32 %v5633, %v5701
    %v5747 = vadd.f32 %v5635, %v5705
    %v5748 = vadd.f32 %v5639, %v5701
    %v5749 = vadd.f32 %v5641, %v5705
    %v5750 = vadd.f32 %v5643, %v5701
    %v5751 = vadd.f32 %v5645, %v5705
    %v5752 = vadd.f32 %v5649, %v5701
    %v5753 = vadd.f32 %v5651, %v5705
    %v5754 = vadd.f32 %v5653, %v5701
    %v5755 = vadd.f32 %v5655, %v5705
    %v5756 = vadd.f32 %v5659, %v5701
    %v5757 = vadd.f32 %v5661, %v5705
    %v5758 = vadd.f32 %v5663, %v5701
    %v5759 = vadd.f32 %v5665, %v5705
    %v5760 = vadd.f32 %v5669, %v5701
    %v5761 = vadd.f32 %v5671, %v5705
    %v5762 = vadd.f32 %v5673, %v5701
    %v5763 = vadd.f32 %v5675, %v5705
    %v5764 = vadd.f32 %v5679, %v5701
    %v5765 = vadd.f32 %v5681, %v5705
    %v5766 = vadd.f32 %v5683, %v5701
    %v5767 = vadd.f32 %v5685, %v5705
    %v5768 = vadd.f32 %v5689, %v5701
    %v5769 = vadd.f32 %v5691, %v5705
    %v5770 = vadd.f32 %v5693, %v5701
    %v5771 = vadd.f32 %v5695, %v5705
    %v5772 = vadd.f32 %v111, %v5708
    %v5773 = vadd.f32 %v112, %v5709
    %v5774 = vadd.f32 %v113, %v5710
    %v5775 = vadd.f32 %v114, %v5711
    %v5776 = vadd.f32 %v115, %v5712
    %v5777 = vadd.f32 %v116, %v5713
    %v5778 = vadd.f32 %v117, %v5714
    %v5779 = vadd.f32 %v118, %v5715
    %v5780 = vadd.f32 %v119, %v5716
    %v5781 = vadd.f32 %v120, %v5717
    %v5782 = vadd.f32 %v121, %v5718
    %v5783 = vadd.f32 %v122, %v5719
    %v5784 = vadd.f32 %v123, %v5720
    %v5785 = vadd.f32 %v124, %v5721
    %v5786 = vadd.f32 %v125, %v5722
    %v5787 = vadd.f32 %v126, %v5723
    %v5788 = vadd.f32 %v127, %v5724
    %v5789 = vadd.f32 %v128, %v5725
    %v5790 = vadd.f32 %v129, %v5726
    %v5791 = vadd.f32 %v130, %v5727
    %v5792 = vadd.f32 %v131, %v5728
    %v5793 = vadd.f32 %v132, %v5729
    %v5794 = vadd.f32 %v133, %v5730
    %v5795 = vadd.f32 %v134, %v5731
    %v5796 = vadd.f32 %v135, %v5732
    %v5797 = vadd.f32 %v136, %v5733
    %v5798 = vadd.f32 %v137, %v5734
    %v5799 = vadd.f32 %v138, %v5735
    %v5800 = vadd.f32 %v139, %v5736
    %v5801 = vadd.f32 %v140, %v5737
    %v5802 = vadd.f32 %v141, %v5738
    %v5803 = vadd.f32 %v142, %v5739
    %v5804 = vadd.f32 %v143, %v5740
    %v5805 = vadd.f32 %v144, %v5741
    %v5806 = vadd.f32 %v145, %v5742
    %v5807 = vadd.f32 %v146, %v5743
    %v5808 = vadd.f32 %v147, %v5744
    %v5809 = vadd.f32 %v148, %v5745
    %v5810 = vadd.f32 %v149, %v5746
    %v5811 = vadd.f32 %v150, %v5747
    %v5812 = vadd.f32 %v151, %v5748
    %v5813 = vadd.f32 %v152, %v5749
    %v5814 = vadd.f32 %v153, %v5750
    %v5815 = vadd.f32 %v154, %v5751
    %v5816 = vadd.f32 %v155, %v5752
    %v5817 = vadd.f32 %v156, %v5753
    %v5818 = vadd.f32 %v157, %v5754
    %v5819 = vadd.f32 %v158, %v5755
    %v5820 = vadd.f32 %v159, %v5756
    %v5821 = vadd.f32 %v160, %v5757
    %v5822 = vadd.f32 %v161, %v5758
    %v5823 = vadd.f32 %v162, %v5759
    %v5824 = vadd.f32 %v163, %v5760
    %v5825 = vadd.f32 %v164, %v5761
    %v5826 = vadd.f32 %v165, %v5762
    %v5827 = vadd.f32 %v166, %v5763
    %v5828 = vadd.f32 %v167, %v5764
    %v5829 = vadd.f32 %v168, %v5765
    %v5830 = vadd.f32 %v169, %v5766
    %v5831 = vadd.f32 %v170, %v5767
    %v5832 = vadd.f32 %v171, %v5768
    %v5833 = vadd.f32 %v172, %v5769
    %v5834 = vadd.f32 %v173, %v5770
    %v5835 = vadd.f32 %v174, %v5771
    %s5836 = scalar_lea.vmem %s7, 2
    %v5837 = vld [vmem:[%s5836] ss:$8 sm:$0x3]
    %s5838 = scalar_lea.vmem %s7, 3
    %v5839 = vld [vmem:[%s5838] ss:$8 sm:$0x3]
    %v5840 = vadd.f32 %v5772, %v5773
    %5841 = vadd.xlane.f32.xlu0 %v5840
    %v5842 = vpop.xlane.xlu0 %5841
    %v5843 = vadd.f32 %v5774, %v5775
    %5844 = vadd.xlane.f32.xlu0 %v5843
    %v5845 = vpop.xlane.xlu0 %5844
    %v5846 = vadd.f32 %v5776, %v5777
    %5847 = vadd.xlane.f32.xlu0 %v5846
    %v5848 = vpop.xlane.xlu0 %5847
    %v5849 = vadd.f32 %v5778, %v5779
    %5850 = vadd.xlane.f32.xlu0 %v5849
    %v5851 = vpop.xlane.xlu0 %5850
    %v5852 = vadd.f32 %v5780, %v5781
    %5853 = vadd.xlane.f32.xlu0 %v5852
    %v5854 = vpop.xlane.xlu0 %5853
    %v5855 = vadd.f32 %v5782, %v5783
    %5856 = vadd.xlane.f32.xlu0 %v5855
    %v5857 = vpop.xlane.xlu0 %5856
    %v5858 = vadd.f32 %v5784, %v5785
    %5859 = vadd.xlane.f32.xlu0 %v5858
    %v5860 = vpop.xlane.xlu0 %5859
    %v5861 = vadd.f32 %v5786, %v5787
    %5862 = vadd.xlane.f32.xlu0 %v5861
    %v5863 = vpop.xlane.xlu0 %5862
    %v5864 = vadd.f32 %v5788, %v5789
    %5865 = vadd.xlane.f32.xlu0 %v5864
    %v5866 = vpop.xlane.xlu0 %5865
    %v5867 = vadd.f32 %v5790, %v5791
    %5868 = vadd.xlane.f32.xlu0 %v5867
    %v5869 = vpop.xlane.xlu0 %5868
    %v5870 = vadd.f32 %v5792, %v5793
    %5871 = vadd.xlane.f32.xlu0 %v5870
    %v5872 = vpop.xlane.xlu0 %5871
    %v5873 = vadd.f32 %v5794, %v5795
    %5874 = vadd.xlane.f32.xlu0 %v5873
    %v5875 = vpop.xlane.xlu0 %5874
    %v5876 = vadd.f32 %v5796, %v5797
    %5877 = vadd.xlane.f32.xlu0 %v5876
    %v5878 = vpop.xlane.xlu0 %5877
    %v5879 = vadd.f32 %v5798, %v5799
    %5880 = vadd.xlane.f32.xlu0 %v5879
    %v5881 = vpop.xlane.xlu0 %5880
    %v5882 = vadd.f32 %v5800, %v5801
    %5883 = vadd.xlane.f32.xlu0 %v5882
    %v5884 = vpop.xlane.xlu0 %5883
    %v5885 = vadd.f32 %v5802, %v5803
    %5886 = vadd.xlane.f32.xlu0 %v5885
    %v5887 = vpop.xlane.xlu0 %5886
    %v5888 = vadd.f32 %v5804, %v5805
    %5889 = vadd.xlane.f32.xlu0 %v5888
    %v5890 = vpop.xlane.xlu0 %5889
    %v5891 = vadd.f32 %v5806, %v5807
    %5892 = vadd.xlane.f32.xlu0 %v5891
    %v5893 = vpop.xlane.xlu0 %5892
    %v5894 = vadd.f32 %v5808, %v5809
    %5895 = vadd.xlane.f32.xlu0 %v5894
    %v5896 = vpop.xlane.xlu0 %5895
    %v5897 = vadd.f32 %v5810, %v5811
    %5898 = vadd.xlane.f32.xlu0 %v5897
    %v5899 = vpop.xlane.xlu0 %5898
    %v5900 = vadd.f32 %v5812, %v5813
    %5901 = vadd.xlane.f32.xlu0 %v5900
    %v5902 = vpop.xlane.xlu0 %5901
    %v5903 = vadd.f32 %v5814, %v5815
    %5904 = vadd.xlane.f32.xlu0 %v5903
    %v5905 = vpop.xlane.xlu0 %5904
    %v5906 = vadd.f32 %v5816, %v5817
    %5907 = vadd.xlane.f32.xlu0 %v5906
    %v5908 = vpop.xlane.xlu0 %5907
    %v5909 = vadd.f32 %v5818, %v5819
    %5910 = vadd.xlane.f32.xlu0 %v5909
    %v5911 = vpop.xlane.xlu0 %5910
    %v5912 = vadd.f32 %v5820, %v5821
    %5913 = vadd.xlane.f32.xlu0 %v5912
    %v5914 = vpop.xlane.xlu0 %5913
    %v5915 = vadd.f32 %v5822, %v5823
    %5916 = vadd.xlane.f32.xlu0 %v5915
    %v5917 = vpop.xlane.xlu0 %5916
    %v5918 = vadd.f32 %v5824, %v5825
    %5919 = vadd.xlane.f32.xlu0 %v5918
    %v5920 = vpop.xlane.xlu0 %5919
    %v5921 = vadd.f32 %v5826, %v5827
    %5922 = vadd.xlane.f32.xlu0 %v5921
    %v5923 = vpop.xlane.xlu0 %5922
    %v5924 = vadd.f32 %v5828, %v5829
    %5925 = vadd.xlane.f32.xlu0 %v5924
    %v5926 = vpop.xlane.xlu0 %5925
    %v5927 = vadd.f32 %v5830, %v5831
    %5928 = vadd.xlane.f32.xlu0 %v5927
    %v5929 = vpop.xlane.xlu0 %5928
    %v5930 = vadd.f32 %v5832, %v5833
    %5931 = vadd.xlane.f32.xlu0 %v5930
    %v5932 = vpop.xlane.xlu0 %5931
    %v5933 = vadd.f32 %v5834, %v5835
    %5934 = vadd.xlane.f32.xlu0 %v5933
    %v5935 = vpop.xlane.xlu0 %5934
    %v5936 = vrcp.pop 256.0
    %v5937 = vmul.f32 %v5842, %v5936
    %v5938 = vmul.f32 %v5845, %v5936
    %v5939 = vmul.f32 %v5848, %v5936
    %v5940 = vmul.f32 %v5851, %v5936
    %v5941 = vmul.f32 %v5854, %v5936
    %v5942 = vmul.f32 %v5857, %v5936
    %v5943 = vmul.f32 %v5860, %v5936
    %v5944 = vmul.f32 %v5863, %v5936
    %v5945 = vmul.f32 %v5866, %v5936
    %v5946 = vmul.f32 %v5869, %v5936
    %v5947 = vmul.f32 %v5872, %v5936
    %v5948 = vmul.f32 %v5875, %v5936
    %v5949 = vmul.f32 %v5878, %v5936
    %v5950 = vmul.f32 %v5881, %v5936
    %v5951 = vmul.f32 %v5884, %v5936
    %v5952 = vmul.f32 %v5887, %v5936
    %v5953 = vmul.f32 %v5890, %v5936
    %v5954 = vmul.f32 %v5893, %v5936
    %v5955 = vmul.f32 %v5896, %v5936
    %v5956 = vmul.f32 %v5899, %v5936
    %v5957 = vmul.f32 %v5902, %v5936
    %v5958 = vmul.f32 %v5905, %v5936
    %v5959 = vmul.f32 %v5908, %v5936
    %v5960 = vmul.f32 %v5911, %v5936
    %v5961 = vmul.f32 %v5914, %v5936
    %v5962 = vmul.f32 %v5917, %v5936
    %v5963 = vmul.f32 %v5920, %v5936
    %v5964 = vmul.f32 %v5923, %v5936
    %v5965 = vmul.f32 %v5926, %v5936
    %v5966 = vmul.f32 %v5929, %v5936
    %v5967 = vmul.f32 %v5932, %v5936
    %v5968 = vmul.f32 %v5935, %v5936
    %v5969 = vsub.f32 %v5772, %v5937
    %v5970 = vsub.f32 %v5773, %v5937
    %v5971 = vsub.f32 %v5774, %v5938
    %v5972 = vsub.f32 %v5775, %v5938
    %v5973 = vsub.f32 %v5776, %v5939
    %v5974 = vsub.f32 %v5777, %v5939
    %v5975 = vsub.f32 %v5778, %v5940
    %v5976 = vsub.f32 %v5779, %v5940
    %v5977 = vsub.f32 %v5780, %v5941
    %v5978 = vsub.f32 %v5781, %v5941
    %v5979 = vsub.f32 %v5782, %v5942
    %v5980 = vsub.f32 %v5783, %v5942
    %v5981 = vsub.f32 %v5784, %v5943
    %v5982 = vsub.f32 %v5785, %v5943
    %v5983 = vsub.f32 %v5786, %v5944
    %v5984 = vsub.f32 %v5787, %v5944
    %v5985 = vsub.f32 %v5788, %v5945
    %v5986 = vsub.f32 %v5789, %v5945
    %v5987 = vsub.f32 %v5790, %v5946
    %v5988 = vsub.f32 %v5791, %v5946
    %v5989 = vsub.f32 %v5792, %v5947
    %v5990 = vsub.f32 %v5793, %v5947
    %v5991 = vsub.f32 %v5794, %v5948
    %v5992 = vsub.f32 %v5795, %v5948
    %v5993 = vsub.f32 %v5796, %v5949
    %v5994 = vsub.f32 %v5797, %v5949
    %v5995 = vsub.f32 %v5798, %v5950
    %v5996 = vsub.f32 %v5799, %v5950
    %v5997 = vsub.f32 %v5800, %v5951
    %v5998 = vsub.f32 %v5801, %v5951
    %v5999 = vsub.f32 %v5802, %v5952
    %v6000 = vsub.f32 %v5803, %v5952
    %v6001 = vsub.f32 %v5804, %v5953
    %v6002 = vsub.f32 %v5805, %v5953
    %v6003 = vsub.f32 %v5806, %v5954
    %v6004 = vsub.f32 %v5807, %v5954
    %v6005 = vsub.f32 %v5808, %v5955
    %v6006 = vsub.f32 %v5809, %v5955
    %v6007 = vsub.f32 %v5810, %v5956
    %v6008 = vsub.f32 %v5811, %v5956
    %v6009 = vsub.f32 %v5812, %v5957
    %v6010 = vsub.f32 %v5813, %v5957
    %v6011 = vsub.f32 %v5814, %v5958
    %v6012 = vsub.f32 %v5815, %v5958
    %v6013 = vsub.f32 %v5816, %v5959
    %v6014 = vsub.f32 %v5817, %v5959
    %v6015 = vsub.f32 %v5818, %v5960
    %v6016 = vsub.f32 %v5819, %v5960
    %v6017 = vsub.f32 %v5820, %v5961
    %v6018 = vsub.f32 %v5821, %v5961
    %v6019 = vsub.f32 %v5822, %v5962
    %v6020 = vsub.f32 %v5823, %v5962
    %v6021 = vsub.f32 %v5824, %v5963
    %v6022 = vsub.f32 %v5825, %v5963
    %v6023 = vsub.f32 %v5826, %v5964
    %v6024 = vsub.f32 %v5827, %v5964
    %v6025 = vsub.f32 %v5828, %v5965
    %v6026 = vsub.f32 %v5829, %v5965
    %v6027 = vsub.f32 %v5830, %v5966
    %v6028 = vsub.f32 %v5831, %v5966
    %v6029 = vsub.f32 %v5832, %v5967
    %v6030 = vsub.f32 %v5833, %v5967
    %v6031 = vsub.f32 %v5834, %v5968
    %v6032 = vsub.f32 %v5835, %v5968
    %v6033 = vmul.f32 %v5969, %v5969
    %v6034 = vmul.f32 %v5970, %v5970
    %v6035 = vmul.f32 %v5971, %v5971
    %v6036 = vmul.f32 %v5972, %v5972
    %v6037 = vmul.f32 %v5973, %v5973
    %v6038 = vmul.f32 %v5974, %v5974
    %v6039 = vmul.f32 %v5975, %v5975
    %v6040 = vmul.f32 %v5976, %v5976
    %v6041 = vmul.f32 %v5977, %v5977
    %v6042 = vmul.f32 %v5978, %v5978
    %v6043 = vmul.f32 %v5979, %v5979
    %v6044 = vmul.f32 %v5980, %v5980
    %v6045 = vmul.f32 %v5981, %v5981
    %v6046 = vmul.f32 %v5982, %v5982
    %v6047 = vmul.f32 %v5983, %v5983
    %v6048 = vmul.f32 %v5984, %v5984
    %v6049 = vmul.f32 %v5985, %v5985
    %v6050 = vmul.f32 %v5986, %v5986
    %v6051 = vmul.f32 %v5987, %v5987
    %v6052 = vmul.f32 %v5988, %v5988
    %v6053 = vmul.f32 %v5989, %v5989
    %v6054 = vmul.f32 %v5990, %v5990
    %v6055 = vmul.f32 %v5991, %v5991
    %v6056 = vmul.f32 %v5992, %v5992
    %v6057 = vmul.f32 %v5993, %v5993
    %v6058 = vmul.f32 %v5994, %v5994
    %v6059 = vmul.f32 %v5995, %v5995
    %v6060 = vmul.f32 %v5996, %v5996
    %v6061 = vmul.f32 %v5997, %v5997
    %v6062 = vmul.f32 %v5998, %v5998
    %v6063 = vmul.f32 %v5999, %v5999
    %v6064 = vmul.f32 %v6000, %v6000
    %v6065 = vmul.f32 %v6001, %v6001
    %v6066 = vmul.f32 %v6002, %v6002
    %v6067 = vmul.f32 %v6003, %v6003
    %v6068 = vmul.f32 %v6004, %v6004
    %v6069 = vmul.f32 %v6005, %v6005
    %v6070 = vmul.f32 %v6006, %v6006
    %v6071 = vmul.f32 %v6007, %v6007
    %v6072 = vmul.f32 %v6008, %v6008
    %v6073 = vmul.f32 %v6009, %v6009
    %v6074 = vmul.f32 %v6010, %v6010
    %v6075 = vmul.f32 %v6011, %v6011
    %v6076 = vmul.f32 %v6012, %v6012
    %v6077 = vmul.f32 %v6013, %v6013
    %v6078 = vmul.f32 %v6014, %v6014
    %v6079 = vmul.f32 %v6015, %v6015
    %v6080 = vmul.f32 %v6016, %v6016
    %v6081 = vmul.f32 %v6017, %v6017
    %v6082 = vmul.f32 %v6018, %v6018
    %v6083 = vmul.f32 %v6019, %v6019
    %v6084 = vmul.f32 %v6020, %v6020
    %v6085 = vmul.f32 %v6021, %v6021
    %v6086 = vmul.f32 %v6022, %v6022
    %v6087 = vmul.f32 %v6023, %v6023
    %v6088 = vmul.f32 %v6024, %v6024
    %v6089 = vmul.f32 %v6025, %v6025
    %v6090 = vmul.f32 %v6026, %v6026
    %v6091 = vmul.f32 %v6027, %v6027
    %v6092 = vmul.f32 %v6028, %v6028
    %v6093 = vmul.f32 %v6029, %v6029
    %v6094 = vmul.f32 %v6030, %v6030
    %v6095 = vmul.f32 %v6031, %v6031
    %v6096 = vmul.f32 %v6032, %v6032
    %v6097 = vadd.f32 %v6033, %v6034
    %6098 = vadd.xlane.f32.xlu0 %v6097
    %v6099 = vpop.xlane.xlu0 %6098
    %v6100 = vadd.f32 %v6035, %v6036
    %6101 = vadd.xlane.f32.xlu0 %v6100
    %v6102 = vpop.xlane.xlu0 %6101
    %v6103 = vadd.f32 %v6037, %v6038
    %6104 = vadd.xlane.f32.xlu0 %v6103
    %v6105 = vpop.xlane.xlu0 %6104
    %v6106 = vadd.f32 %v6039, %v6040
    %6107 = vadd.xlane.f32.xlu0 %v6106
    %v6108 = vpop.xlane.xlu0 %6107
    %v6109 = vadd.f32 %v6041, %v6042
    %6110 = vadd.xlane.f32.xlu0 %v6109
    %v6111 = vpop.xlane.xlu0 %6110
    %v6112 = vadd.f32 %v6043, %v6044
    %6113 = vadd.xlane.f32.xlu0 %v6112
    %v6114 = vpop.xlane.xlu0 %6113
    %v6115 = vadd.f32 %v6045, %v6046
    %6116 = vadd.xlane.f32.xlu0 %v6115
    %v6117 = vpop.xlane.xlu0 %6116
    %v6118 = vadd.f32 %v6047, %v6048
    %6119 = vadd.xlane.f32.xlu0 %v6118
    %v6120 = vpop.xlane.xlu0 %6119
    %v6121 = vadd.f32 %v6049, %v6050
    %6122 = vadd.xlane.f32.xlu0 %v6121
    %v6123 = vpop.xlane.xlu0 %6122
    %v6124 = vadd.f32 %v6051, %v6052
    %6125 = vadd.xlane.f32.xlu0 %v6124
    %v6126 = vpop.xlane.xlu0 %6125
    %v6127 = vadd.f32 %v6053, %v6054
    %6128 = vadd.xlane.f32.xlu0 %v6127
    %v6129 = vpop.xlane.xlu0 %6128
    %v6130 = vadd.f32 %v6055, %v6056
    %6131 = vadd.xlane.f32.xlu0 %v6130
    %v6132 = vpop.xlane.xlu0 %6131
    %v6133 = vadd.f32 %v6057, %v6058
    %6134 = vadd.xlane.f32.xlu0 %v6133
    %v6135 = vpop.xlane.xlu0 %6134
    %v6136 = vadd.f32 %v6059, %v6060
    %6137 = vadd.xlane.f32.xlu0 %v6136
    %v6138 = vpop.xlane.xlu0 %6137
    %v6139 = vadd.f32 %v6061, %v6062
    %6140 = vadd.xlane.f32.xlu0 %v6139
    %v6141 = vpop.xlane.xlu0 %6140
    %v6142 = vadd.f32 %v6063, %v6064
    %6143 = vadd.xlane.f32.xlu0 %v6142
    %v6144 = vpop.xlane.xlu0 %6143
    %v6145 = vadd.f32 %v6065, %v6066
    %6146 = vadd.xlane.f32.xlu0 %v6145
    %v6147 = vpop.xlane.xlu0 %6146
    %v6148 = vadd.f32 %v6067, %v6068
    %6149 = vadd.xlane.f32.xlu0 %v6148
    %v6150 = vpop.xlane.xlu0 %6149
    %v6151 = vadd.f32 %v6069, %v6070
    %6152 = vadd.xlane.f32.xlu0 %v6151
    %v6153 = vpop.xlane.xlu0 %6152
    %v6154 = vadd.f32 %v6071, %v6072
    %6155 = vadd.xlane.f32.xlu0 %v6154
    %v6156 = vpop.xlane.xlu0 %6155
    %v6157 = vadd.f32 %v6073, %v6074
    %6158 = vadd.xlane.f32.xlu0 %v6157
    %v6159 = vpop.xlane.xlu0 %6158
    %v6160 = vadd.f32 %v6075, %v6076
    %6161 = vadd.xlane.f32.xlu0 %v6160
    %v6162 = vpop.xlane.xlu0 %6161
    %v6163 = vadd.f32 %v6077, %v6078
    %6164 = vadd.xlane.f32.xlu0 %v6163
    %v6165 = vpop.xlane.xlu0 %6164
    %v6166 = vadd.f32 %v6079, %v6080
    %6167 = vadd.xlane.f32.xlu0 %v6166
    %v6168 = vpop.xlane.xlu0 %6167
    %v6169 = vadd.f32 %v6081, %v6082
    %6170 = vadd.xlane.f32.xlu0 %v6169
    %v6171 = vpop.xlane.xlu0 %6170
    %v6172 = vadd.f32 %v6083, %v6084
    %6173 = vadd.xlane.f32.xlu0 %v6172
    %v6174 = vpop.xlane.xlu0 %6173
    %v6175 = vadd.f32 %v6085, %v6086
    %6176 = vadd.xlane.f32.xlu0 %v6175
    %v6177 = vpop.xlane.xlu0 %6176
    %v6178 = vadd.f32 %v6087, %v6088
    %6179 = vadd.xlane.f32.xlu0 %v6178
    %v6180 = vpop.xlane.xlu0 %6179
    %v6181 = vadd.f32 %v6089, %v6090
    %6182 = vadd.xlane.f32.xlu0 %v6181
    %v6183 = vpop.xlane.xlu0 %6182
    %v6184 = vadd.f32 %v6091, %v6092
    %6185 = vadd.xlane.f32.xlu0 %v6184
    %v6186 = vpop.xlane.xlu0 %6185
    %v6187 = vadd.f32 %v6093, %v6094
    %6188 = vadd.xlane.f32.xlu0 %v6187
    %v6189 = vpop.xlane.xlu0 %6188
    %v6190 = vadd.f32 %v6095, %v6096
    %6191 = vadd.xlane.f32.xlu0 %v6190
    %v6192 = vpop.xlane.xlu0 %6191
    %v6193 = vmul.f32 %v6099, %v5936
    %v6194 = vmul.f32 %v6102, %v5936
    %v6195 = vmul.f32 %v6105, %v5936
    %v6196 = vmul.f32 %v6108, %v5936
    %v6197 = vmul.f32 %v6111, %v5936
    %v6198 = vmul.f32 %v6114, %v5936
    %v6199 = vmul.f32 %v6117, %v5936
    %v6200 = vmul.f32 %v6120, %v5936
    %v6201 = vmul.f32 %v6123, %v5936
    %v6202 = vmul.f32 %v6126, %v5936
    %v6203 = vmul.f32 %v6129, %v5936
    %v6204 = vmul.f32 %v6132, %v5936
    %v6205 = vmul.f32 %v6135, %v5936
    %v6206 = vmul.f32 %v6138, %v5936
    %v6207 = vmul.f32 %v6141, %v5936
    %v6208 = vmul.f32 %v6144, %v5936
    %v6209 = vmul.f32 %v6147, %v5936
    %v6210 = vmul.f32 %v6150, %v5936
    %v6211 = vmul.f32 %v6153, %v5936
    %v6212 = vmul.f32 %v6156, %v5936
    %v6213 = vmul.f32 %v6159, %v5936
    %v6214 = vmul.f32 %v6162, %v5936
    %v6215 = vmul.f32 %v6165, %v5936
    %v6216 = vmul.f32 %v6168, %v5936
    %v6217 = vmul.f32 %v6171, %v5936
    %v6218 = vmul.f32 %v6174, %v5936
    %v6219 = vmul.f32 %v6177, %v5936
    %v6220 = vmul.f32 %v6180, %v5936
    %v6221 = vmul.f32 %v6183, %v5936
    %v6222 = vmul.f32 %v6186, %v5936
    %v6223 = vmul.f32 %v6189, %v5936
    %v6224 = vmul.f32 %v6192, %v5936
    %v6225 = vadd.f32 %v6193, 1e-05
    %v6226 = vadd.f32 %v6194, 1e-05
    %v6227 = vadd.f32 %v6195, 1e-05
    %v6228 = vadd.f32 %v6196, 1e-05
    %v6229 = vadd.f32 %v6197, 1e-05
    %v6230 = vadd.f32 %v6198, 1e-05
    %v6231 = vadd.f32 %v6199, 1e-05
    %v6232 = vadd.f32 %v6200, 1e-05
    %v6233 = vadd.f32 %v6201, 1e-05
    %v6234 = vadd.f32 %v6202, 1e-05
    %v6235 = vadd.f32 %v6203, 1e-05
    %v6236 = vadd.f32 %v6204, 1e-05
    %v6237 = vadd.f32 %v6205, 1e-05
    %v6238 = vadd.f32 %v6206, 1e-05
    %v6239 = vadd.f32 %v6207, 1e-05
    %v6240 = vadd.f32 %v6208, 1e-05
    %v6241 = vadd.f32 %v6209, 1e-05
    %v6242 = vadd.f32 %v6210, 1e-05
    %v6243 = vadd.f32 %v6211, 1e-05
    %v6244 = vadd.f32 %v6212, 1e-05
    %v6245 = vadd.f32 %v6213, 1e-05
    %v6246 = vadd.f32 %v6214, 1e-05
    %v6247 = vadd.f32 %v6215, 1e-05
    %v6248 = vadd.f32 %v6216, 1e-05
    %v6249 = vadd.f32 %v6217, 1e-05
    %v6250 = vadd.f32 %v6218, 1e-05
    %v6251 = vadd.f32 %v6219, 1e-05
    %v6252 = vadd.f32 %v6220, 1e-05
    %v6253 = vadd.f32 %v6221, 1e-05
    %v6254 = vadd.f32 %v6222, 1e-05
    %v6255 = vadd.f32 %v6223, 1e-05
    %v6256 = vadd.f32 %v6224, 1e-05
    %v6257 = vrsqrt.pop %v6225
    %v6258 = vrsqrt.pop %v6226
    %v6259 = vrsqrt.pop %v6227
    %v6260 = vrsqrt.pop %v6228
    %v6261 = vrsqrt.pop %v6229
    %v6262 = vrsqrt.pop %v6230
    %v6263 = vrsqrt.pop %v6231
    %v6264 = vrsqrt.pop %v6232
    %v6265 = vrsqrt.pop %v6233
    %v6266 = vrsqrt.pop %v6234
    %v6267 = vrsqrt.pop %v6235
    %v6268 = vrsqrt.pop %v6236
    %v6269 = vrsqrt.pop %v6237
    %v6270 = vrsqrt.pop %v6238
    %v6271 = vrsqrt.pop %v6239
    %v6272 = vrsqrt.pop %v6240
    %v6273 = vrsqrt.pop %v6241
    %v6274 = vrsqrt.pop %v6242
    %v6275 = vrsqrt.pop %v6243
    %v6276 = vrsqrt.pop %v6244
    %v6277 = vrsqrt.pop %v6245
    %v6278 = vrsqrt.pop %v6246
    %v6279 = vrsqrt.pop %v6247
    %v6280 = vrsqrt.pop %v6248
    %v6281 = vrsqrt.pop %v6249
    %v6282 = vrsqrt.pop %v6250
    %v6283 = vrsqrt.pop %v6251
    %v6284 = vrsqrt.pop %v6252
    %v6285 = vrsqrt.pop %v6253
    %v6286 = vrsqrt.pop %v6254
    %v6287 = vrsqrt.pop %v6255
    %v6288 = vrsqrt.pop %v6256
    %v6289 = vmul.f32 %v5969, %v6257
    %v6290 = vmul.f32 %v5970, %v6257
    %v6291 = vmul.f32 %v5971, %v6258
    %v6292 = vmul.f32 %v5972, %v6258
    %v6293 = vmul.f32 %v5973, %v6259
    %v6294 = vmul.f32 %v5974, %v6259
    %v6295 = vmul.f32 %v5975, %v6260
    %v6296 = vmul.f32 %v5976, %v6260
    %v6297 = vmul.f32 %v5977, %v6261
    %v6298 = vmul.f32 %v5978, %v6261
    %v6299 = vmul.f32 %v5979, %v6262
    %v6300 = vmul.f32 %v5980, %v6262
    %v6301 = vmul.f32 %v5981, %v6263
    %v6302 = vmul.f32 %v5982, %v6263
    %v6303 = vmul.f32 %v5983, %v6264
    %v6304 = vmul.f32 %v5984, %v6264
    %v6305 = vmul.f32 %v5985, %v6265
    %v6306 = vmul.f32 %v5986, %v6265
    %v6307 = vmul.f32 %v5987, %v6266
    %v6308 = vmul.f32 %v5988, %v6266
    %v6309 = vmul.f32 %v5989, %v6267
    %v6310 = vmul.f32 %v5990, %v6267
    %v6311 = vmul.f32 %v5991, %v6268
    %v6312 = vmul.f32 %v5992, %v6268
    %v6313 = vmul.f32 %v5993, %v6269
    %v6314 = vmul.f32 %v5994, %v6269
    %v6315 = vmul.f32 %v5995, %v6270
    %v6316 = vmul.f32 %v5996, %v6270
    %v6317 = vmul.f32 %v5997, %v6271
    %v6318 = vmul.f32 %v5998, %v6271
    %v6319 = vmul.f32 %v5999, %v6272
    %v6320 = vmul.f32 %v6000, %v6272
    %v6321 = vmul.f32 %v6001, %v6273
    %v6322 = vmul.f32 %v6002, %v6273
    %v6323 = vmul.f32 %v6003, %v6274
    %v6324 = vmul.f32 %v6004, %v6274
    %v6325 = vmul.f32 %v6005, %v6275
    %v6326 = vmul.f32 %v6006, %v6275
    %v6327 = vmul.f32 %v6007, %v6276
    %v6328 = vmul.f32 %v6008, %v6276
    %v6329 = vmul.f32 %v6009, %v6277
    %v6330 = vmul.f32 %v6010, %v6277
    %v6331 = vmul.f32 %v6011, %v6278
    %v6332 = vmul.f32 %v6012, %v6278
    %v6333 = vmul.f32 %v6013, %v6279
    %v6334 = vmul.f32 %v6014, %v6279
    %v6335 = vmul.f32 %v6015, %v6280
    %v6336 = vmul.f32 %v6016, %v6280
    %v6337 = vmul.f32 %v6017, %v6281
    %v6338 = vmul.f32 %v6018, %v6281
    %v6339 = vmul.f32 %v6019, %v6282
    %v6340 = vmul.f32 %v6020, %v6282
    %v6341 = vmul.f32 %v6021, %v6283
    %v6342 = vmul.f32 %v6022, %v6283
    %v6343 = vmul.f32 %v6023, %v6284
    %v6344 = vmul.f32 %v6024, %v6284
    %v6345 = vmul.f32 %v6025, %v6285
    %v6346 = vmul.f32 %v6026, %v6285
    %v6347 = vmul.f32 %v6027, %v6286
    %v6348 = vmul.f32 %v6028, %v6286
    %v6349 = vmul.f32 %v6029, %v6287
    %v6350 = vmul.f32 %v6030, %v6287
    %v6351 = vmul.f32 %v6031, %v6288
    %v6352 = vmul.f32 %v6032, %v6288
    %v6354 = vlaneseq
    %v6355 = vshrl.u32 %v6354, 7
    %v6356 = vsub.s32 0, %v6355
    %v6357 = vrot.slane %v5837, %v6356
    %v6358 = vlaneseq
    %v6359 = vshrl.u32 %v6358, 7
    %v6360 = vsub.s32 1, %v6359
    %v6361 = vrot.slane %v5837, %v6360
    %v6364 = vmul.f32 %v6289, %v6357
    %v6365 = vmul.f32 %v6290, %v6361
    %v6366 = vmul.f32 %v6291, %v6357
    %v6367 = vmul.f32 %v6292, %v6361
    %v6368 = vmul.f32 %v6293, %v6357
    %v6369 = vmul.f32 %v6294, %v6361
    %v6370 = vmul.f32 %v6295, %v6357
    %v6371 = vmul.f32 %v6296, %v6361
    %v6372 = vmul.f32 %v6297, %v6357
    %v6373 = vmul.f32 %v6298, %v6361
    %v6374 = vmul.f32 %v6299, %v6357
    %v6375 = vmul.f32 %v6300, %v6361
    %v6376 = vmul.f32 %v6301, %v6357
    %v6377 = vmul.f32 %v6302, %v6361
    %v6378 = vmul.f32 %v6303, %v6357
    %v6379 = vmul.f32 %v6304, %v6361
    %v6380 = vmul.f32 %v6305, %v6357
    %v6381 = vmul.f32 %v6306, %v6361
    %v6382 = vmul.f32 %v6307, %v6357
    %v6383 = vmul.f32 %v6308, %v6361
    %v6384 = vmul.f32 %v6309, %v6357
    %v6385 = vmul.f32 %v6310, %v6361
    %v6386 = vmul.f32 %v6311, %v6357
    %v6387 = vmul.f32 %v6312, %v6361
    %v6388 = vmul.f32 %v6313, %v6357
    %v6389 = vmul.f32 %v6314, %v6361
    %v6390 = vmul.f32 %v6315, %v6357
    %v6391 = vmul.f32 %v6316, %v6361
    %v6392 = vmul.f32 %v6317, %v6357
    %v6393 = vmul.f32 %v6318, %v6361
    %v6394 = vmul.f32 %v6319, %v6357
    %v6395 = vmul.f32 %v6320, %v6361
    %v6396 = vmul.f32 %v6321, %v6357
    %v6397 = vmul.f32 %v6322, %v6361
    %v6398 = vmul.f32 %v6323, %v6357
    %v6399 = vmul.f32 %v6324, %v6361
    %v6400 = vmul.f32 %v6325, %v6357
    %v6401 = vmul.f32 %v6326, %v6361
    %v6402 = vmul.f32 %v6327, %v6357
    %v6403 = vmul.f32 %v6328, %v6361
    %v6404 = vmul.f32 %v6329, %v6357
    %v6405 = vmul.f32 %v6330, %v6361
    %v6406 = vmul.f32 %v6331, %v6357
    %v6407 = vmul.f32 %v6332, %v6361
    %v6408 = vmul.f32 %v6333, %v6357
    %v6409 = vmul.f32 %v6334, %v6361
    %v6410 = vmul.f32 %v6335, %v6357
    %v6411 = vmul.f32 %v6336, %v6361
    %v6412 = vmul.f32 %v6337, %v6357
    %v6413 = vmul.f32 %v6338, %v6361
    %v6414 = vmul.f32 %v6339, %v6357
    %v6415 = vmul.f32 %v6340, %v6361
    %v6416 = vmul.f32 %v6341, %v6357
    %v6417 = vmul.f32 %v6342, %v6361
    %v6418 = vmul.f32 %v6343, %v6357
    %v6419 = vmul.f32 %v6344, %v6361
    %v6420 = vmul.f32 %v6345, %v6357
    %v6421 = vmul.f32 %v6346, %v6361
    %v6422 = vmul.f32 %v6347, %v6357
    %v6423 = vmul.f32 %v6348, %v6361
    %v6424 = vmul.f32 %v6349, %v6357
    %v6425 = vmul.f32 %v6350, %v6361
    %v6426 = vmul.f32 %v6351, %v6357
    %v6427 = vmul.f32 %v6352, %v6361
    %v6429 = vlaneseq
    %v6430 = vshrl.u32 %v6429, 7
    %v6431 = vsub.s32 0, %v6430
    %v6432 = vrot.slane %v5839, %v6431
    %v6433 = vlaneseq
    %v6434 = vshrl.u32 %v6433, 7
    %v6435 = vsub.s32 1, %v6434
    %v6436 = vrot.slane %v5839, %v6435
    %v6439 = vadd.f32 %v6364, %v6432
    %v6440 = vadd.f32 %v6365, %v6436
    %v6441 = vadd.f32 %v6366, %v6432
    %v6442 = vadd.f32 %v6367, %v6436
    %v6443 = vadd.f32 %v6368, %v6432
    %v6444 = vadd.f32 %v6369, %v6436
    %v6445 = vadd.f32 %v6370, %v6432
    %v6446 = vadd.f32 %v6371, %v6436
    %v6447 = vadd.f32 %v6372, %v6432
    %v6448 = vadd.f32 %v6373, %v6436
    %v6449 = vadd.f32 %v6374, %v6432
    %v6450 = vadd.f32 %v6375, %v6436
    %v6451 = vadd.f32 %v6376, %v6432
    %v6452 = vadd.f32 %v6377, %v6436
    %v6453 = vadd.f32 %v6378, %v6432
    %v6454 = vadd.f32 %v6379, %v6436
    %v6455 = vadd.f32 %v6380, %v6432
    %v6456 = vadd.f32 %v6381, %v6436
    %v6457 = vadd.f32 %v6382, %v6432
    %v6458 = vadd.f32 %v6383, %v6436
    %v6459 = vadd.f32 %v6384, %v6432
    %v6460 = vadd.f32 %v6385, %v6436
    %v6461 = vadd.f32 %v6386, %v6432
    %v6462 = vadd.f32 %v6387, %v6436
    %v6463 = vadd.f32 %v6388, %v6432
    %v6464 = vadd.f32 %v6389, %v6436
    %v6465 = vadd.f32 %v6390, %v6432
    %v6466 = vadd.f32 %v6391, %v6436
    %v6467 = vadd.f32 %v6392, %v6432
    %v6468 = vadd.f32 %v6393, %v6436
    %v6469 = vadd.f32 %v6394, %v6432
    %v6470 = vadd.f32 %v6395, %v6436
    %v6471 = vadd.f32 %v6396, %v6432
    %v6472 = vadd.f32 %v6397, %v6436
    %v6473 = vadd.f32 %v6398, %v6432
    %v6474 = vadd.f32 %v6399, %v6436
    %v6475 = vadd.f32 %v6400, %v6432
    %v6476 = vadd.f32 %v6401, %v6436
    %v6477 = vadd.f32 %v6402, %v6432
    %v6478 = vadd.f32 %v6403, %v6436
    %v6479 = vadd.f32 %v6404, %v6432
    %v6480 = vadd.f32 %v6405, %v6436
    %v6481 = vadd.f32 %v6406, %v6432
    %v6482 = vadd.f32 %v6407, %v6436
    %v6483 = vadd.f32 %v6408, %v6432
    %v6484 = vadd.f32 %v6409, %v6436
    %v6485 = vadd.f32 %v6410, %v6432
    %v6486 = vadd.f32 %v6411, %v6436
    %v6487 = vadd.f32 %v6412, %v6432
    %v6488 = vadd.f32 %v6413, %v6436
    %v6489 = vadd.f32 %v6414, %v6432
    %v6490 = vadd.f32 %v6415, %v6436
    %v6491 = vadd.f32 %v6416, %v6432
    %v6492 = vadd.f32 %v6417, %v6436
    %v6493 = vadd.f32 %v6418, %v6432
    %v6494 = vadd.f32 %v6419, %v6436
    %v6495 = vadd.f32 %v6420, %v6432
    %v6496 = vadd.f32 %v6421, %v6436
    %v6497 = vadd.f32 %v6422, %v6432
    %v6498 = vadd.f32 %v6423, %v6436
    %v6499 = vadd.f32 %v6424, %v6432
    %v6500 = vadd.f32 %v6425, %v6436
    %v6501 = vadd.f32 %v6426, %v6432
    %v6502 = vadd.f32 %v6427, %v6436
    %v6503 = vpack.c.bf16 %v6441, %v6439
    %v6504 = vpack.c.bf16 %v6442, %v6440
    %v6505 = vpack.c.bf16 %v6445, %v6443
    %v6506 = vpack.c.bf16 %v6446, %v6444
    %v6507 = vpack.c.bf16 %v6449, %v6447
    %v6508 = vpack.c.bf16 %v6450, %v6448
    %v6509 = vpack.c.bf16 %v6453, %v6451
    %v6510 = vpack.c.bf16 %v6454, %v6452
    %v6511 = vpack.c.bf16 %v6457, %v6455
    %v6512 = vpack.c.bf16 %v6458, %v6456
    %v6513 = vpack.c.bf16 %v6461, %v6459
    %v6514 = vpack.c.bf16 %v6462, %v6460
    %v6515 = vpack.c.bf16 %v6465, %v6463
    %v6516 = vpack.c.bf16 %v6466, %v6464
    %v6517 = vpack.c.bf16 %v6469, %v6467
    %v6518 = vpack.c.bf16 %v6470, %v6468
    %v6519 = vpack.c.bf16 %v6473, %v6471
    %v6520 = vpack.c.bf16 %v6474, %v6472
    %v6521 = vpack.c.bf16 %v6477, %v6475
    %v6522 = vpack.c.bf16 %v6478, %v6476
    %v6523 = vpack.c.bf16 %v6481, %v6479
    %v6524 = vpack.c.bf16 %v6482, %v6480
    %v6525 = vpack.c.bf16 %v6485, %v6483
    %v6526 = vpack.c.bf16 %v6486, %v6484
    %v6527 = vpack.c.bf16 %v6489, %v6487
    %v6528 = vpack.c.bf16 %v6490, %v6488
    %v6529 = vpack.c.bf16 %v6493, %v6491
    %v6530 = vpack.c.bf16 %v6494, %v6492
    %v6531 = vpack.c.bf16 %v6497, %v6495
    %v6532 = vpack.c.bf16 %v6498, %v6496
    %v6533 = vpack.c.bf16 %v6501, %v6499
    %v6534 = vpack.c.bf16 %v6502, %v6500
    %v6535 = vld [vmem:[#allocation10] sm:$0xff]
    %v6536 = vld [vmem:[#allocation10 + $0x8] sm:$0xff]
    %v6537 = vld [vmem:[#allocation10 + $0x10] sm:$0xff]
    %v6538 = vld [vmem:[#allocation10 + $0x18] sm:$0xff]
    %v6539 = vld [vmem:[#allocation10 + $0x20] sm:$0xff]
    %v6540 = vld [vmem:[#allocation10 + $0x28] sm:$0xff]
    %v6541 = vld [vmem:[#allocation10 + $0x30] sm:$0xff]
    %v6542 = vld [vmem:[#allocation10 + $0x38] sm:$0xff]
    %v6543 = vld [vmem:[#allocation10 + $0x40] sm:$0xff]
    %v6544 = vld [vmem:[#allocation10 + $0x48] sm:$0xff]
    %v6545 = vld [vmem:[#allocation10 + $0x50] sm:$0xff]
    %v6546 = vld [vmem:[#allocation10 + $0x58] sm:$0xff]
    %v6547 = vld [vmem:[#allocation10 + $0x60] sm:$0xff]
    %v6548 = vld [vmem:[#allocation10 + $0x68] sm:$0xff]
    %v6549 = vld [vmem:[#allocation10 + $0x70] sm:$0xff]
    %v6550 = vld [vmem:[#allocation10 + $0x78] sm:$0xff]
    %v6551 = vld [vmem:[#allocation10 + $0x80] sm:$0xff]
    %v6552 = vld [vmem:[#allocation10 + $0x88] sm:$0xff]
    %v6553 = vld [vmem:[#allocation10 + $0x90] sm:$0xff]
    %v6554 = vld [vmem:[#allocation10 + $0x98] sm:$0xff]
    %v6555 = vld [vmem:[#allocation10 + $0xa0] sm:$0xff]
    %v6556 = vld [vmem:[#allocation10 + $0xa8] sm:$0xff]
    %v6557 = vld [vmem:[#allocation10 + $0xb0] sm:$0xff]
    %v6558 = vld [vmem:[#allocation10 + $0xb8] sm:$0xff]
    %v6559 = vld [vmem:[#allocation10 + $0xc0] sm:$0xff]
    %v6560 = vld [vmem:[#allocation10 + $0xc8] sm:$0xff]
    %v6561 = vld [vmem:[#allocation10 + $0xd0] sm:$0xff]
    %v6562 = vld [vmem:[#allocation10 + $0xd8] sm:$0xff]
    %v6563 = vld [vmem:[#allocation10 + $0xe0] sm:$0xff]
    %v6564 = vld [vmem:[#allocation10 + $0xe8] sm:$0xff]
    %v6565 = vld [vmem:[#allocation10 + $0xf0] sm:$0xff]
    %v6566 = vld [vmem:[#allocation10 + $0xf8] sm:$0xff]
    %v6567 = vld [vmem:[#allocation10 + $0x100] sm:$0xff]
    %v6568 = vld [vmem:[#allocation10 + $0x108] sm:$0xff]
    %v6569 = vld [vmem:[#allocation10 + $0x110] sm:$0xff]
    %v6570 = vld [vmem:[#allocation10 + $0x118] sm:$0xff]
    %v6571 = vld [vmem:[#allocation10 + $0x120] sm:$0xff]
    %v6572 = vld [vmem:[#allocation10 + $0x128] sm:$0xff]
    %v6573 = vld [vmem:[#allocation10 + $0x130] sm:$0xff]
    %v6574 = vld [vmem:[#allocation10 + $0x138] sm:$0xff]
    %v6575 = vld [vmem:[#allocation10 + $0x140] sm:$0xff]
    %v6576 = vld [vmem:[#allocation10 + $0x148] sm:$0xff]
    %v6577 = vld [vmem:[#allocation10 + $0x150] sm:$0xff]
    %v6578 = vld [vmem:[#allocation10 + $0x158] sm:$0xff]
    %v6579 = vld [vmem:[#allocation10 + $0x160] sm:$0xff]
    %v6580 = vld [vmem:[#allocation10 + $0x168] sm:$0xff]
    %v6581 = vld [vmem:[#allocation10 + $0x170] sm:$0xff]
    %v6582 = vld [vmem:[#allocation10 + $0x178] sm:$0xff]
    %v6583 = vld [vmem:[#allocation10 + $0x180] sm:$0xff]
    %v6584 = vld [vmem:[#allocation10 + $0x188] sm:$0xff]
    %v6585 = vld [vmem:[#allocation10 + $0x190] sm:$0xff]
    %v6586 = vld [vmem:[#allocation10 + $0x198] sm:$0xff]
    %v6587 = vld [vmem:[#allocation10 + $0x1a0] sm:$0xff]
    %v6588 = vld [vmem:[#allocation10 + $0x1a8] sm:$0xff]
    %v6589 = vld [vmem:[#allocation10 + $0x1b0] sm:$0xff]
    %v6590 = vld [vmem:[#allocation10 + $0x1b8] sm:$0xff]
    %v6591 = vld [vmem:[#allocation10 + $0x1c0] sm:$0xff]
    %v6592 = vld [vmem:[#allocation10 + $0x1c8] sm:$0xff]
    %v6593 = vld [vmem:[#allocation10 + $0x1d0] sm:$0xff]
    %v6594 = vld [vmem:[#allocation10 + $0x1d8] sm:$0xff]
    %v6595 = vld [vmem:[#allocation10 + $0x1e0] sm:$0xff]
    %v6596 = vld [vmem:[#allocation10 + $0x1e8] sm:$0xff]
    %v6597 = vld [vmem:[#allocation10 + $0x1f0] sm:$0xff]
    %v6598 = vld [vmem:[#allocation10 + $0x1f8] sm:$0xff]
    %v6599 = vld [vmem:[#allocation10 + $0x200] sm:$0xff]
    %v6600 = vld [vmem:[#allocation10 + $0x208] sm:$0xff]
    %v6601 = vld [vmem:[#allocation10 + $0x210] sm:$0xff]
    %v6602 = vld [vmem:[#allocation10 + $0x218] sm:$0xff]
    %v6603 = vld [vmem:[#allocation10 + $0x220] sm:$0xff]
    %v6604 = vld [vmem:[#allocation10 + $0x228] sm:$0xff]
    %v6605 = vld [vmem:[#allocation10 + $0x230] sm:$0xff]
    %v6606 = vld [vmem:[#allocation10 + $0x238] sm:$0xff]
    %v6607 = vld [vmem:[#allocation10 + $0x240] sm:$0xff]
    %v6608 = vld [vmem:[#allocation10 + $0x248] sm:$0xff]
    %v6609 = vld [vmem:[#allocation10 + $0x250] sm:$0xff]
    %v6610 = vld [vmem:[#allocation10 + $0x258] sm:$0xff]
    %v6611 = vld [vmem:[#allocation10 + $0x260] sm:$0xff]
    %v6612 = vld [vmem:[#allocation10 + $0x268] sm:$0xff]
    %v6613 = vld [vmem:[#allocation10 + $0x270] sm:$0xff]
    %v6614 = vld [vmem:[#allocation10 + $0x278] sm:$0xff]
    %v6615 = vld [vmem:[#allocation10 + $0x280] sm:$0xff]
    %v6616 = vld [vmem:[#allocation10 + $0x288] sm:$0xff]
    %v6617 = vld [vmem:[#allocation10 + $0x290] sm:$0xff]
    %v6618 = vld [vmem:[#allocation10 + $0x298] sm:$0xff]
    %v6619 = vld [vmem:[#allocation10 + $0x2a0] sm:$0xff]
    %v6620 = vld [vmem:[#allocation10 + $0x2a8] sm:$0xff]
    %v6621 = vld [vmem:[#allocation10 + $0x2b0] sm:$0xff]
    %v6622 = vld [vmem:[#allocation10 + $0x2b8] sm:$0xff]
    %v6623 = vld [vmem:[#allocation10 + $0x2c0] sm:$0xff]
    %v6624 = vld [vmem:[#allocation10 + $0x2c8] sm:$0xff]
    %v6625 = vld [vmem:[#allocation10 + $0x2d0] sm:$0xff]
    %v6626 = vld [vmem:[#allocation10 + $0x2d8] sm:$0xff]
    %v6627 = vld [vmem:[#allocation10 + $0x2e0] sm:$0xff]
    %v6628 = vld [vmem:[#allocation10 + $0x2e8] sm:$0xff]
    %v6629 = vld [vmem:[#allocation10 + $0x2f0] sm:$0xff]
    %v6630 = vld [vmem:[#allocation10 + $0x2f8] sm:$0xff]
    %v6631 = vld [vmem:[#allocation10 + $0x300] sm:$0xff]
    %v6632 = vld [vmem:[#allocation10 + $0x308] sm:$0xff]
    %v6633 = vld [vmem:[#allocation10 + $0x310] sm:$0xff]
    %v6634 = vld [vmem:[#allocation10 + $0x318] sm:$0xff]
    %v6635 = vld [vmem:[#allocation10 + $0x320] sm:$0xff]
    %v6636 = vld [vmem:[#allocation10 + $0x328] sm:$0xff]
    %v6637 = vld [vmem:[#allocation10 + $0x330] sm:$0xff]
    %v6638 = vld [vmem:[#allocation10 + $0x338] sm:$0xff]
    %v6639 = vld [vmem:[#allocation10 + $0x340] sm:$0xff]
    %v6640 = vld [vmem:[#allocation10 + $0x348] sm:$0xff]
    %v6641 = vld [vmem:[#allocation10 + $0x350] sm:$0xff]
    %v6642 = vld [vmem:[#allocation10 + $0x358] sm:$0xff]
    %v6643 = vld [vmem:[#allocation10 + $0x360] sm:$0xff]
    %v6644 = vld [vmem:[#allocation10 + $0x368] sm:$0xff]
    %v6645 = vld [vmem:[#allocation10 + $0x370] sm:$0xff]
    %v6646 = vld [vmem:[#allocation10 + $0x378] sm:$0xff]
    %v6647 = vld [vmem:[#allocation10 + $0x380] sm:$0xff]
    %v6648 = vld [vmem:[#allocation10 + $0x388] sm:$0xff]
    %v6649 = vld [vmem:[#allocation10 + $0x390] sm:$0xff]
    %v6650 = vld [vmem:[#allocation10 + $0x398] sm:$0xff]
    %v6651 = vld [vmem:[#allocation10 + $0x3a0] sm:$0xff]
    %v6652 = vld [vmem:[#allocation10 + $0x3a8] sm:$0xff]
    %v6653 = vld [vmem:[#allocation10 + $0x3b0] sm:$0xff]
    %v6654 = vld [vmem:[#allocation10 + $0x3b8] sm:$0xff]
    %v6655 = vld [vmem:[#allocation10 + $0x3c0] sm:$0xff]
    %v6656 = vld [vmem:[#allocation10 + $0x3c8] sm:$0xff]
    %v6657 = vld [vmem:[#allocation10 + $0x3d0] sm:$0xff]
    %v6658 = vld [vmem:[#allocation10 + $0x3d8] sm:$0xff]
    %v6659 = vld [vmem:[#allocation10 + $0x3e0] sm:$0xff]
    %v6660 = vld [vmem:[#allocation10 + $0x3e8] sm:$0xff]
    %v6661 = vld [vmem:[#allocation10 + $0x3f0] sm:$0xff]
    %v6662 = vld [vmem:[#allocation10 + $0x3f8] sm:$0xff]
    %v6663 = vld [vmem:[%s5] sm:$0xff]
    %v6665 = vlaneseq
    %v6666 = vshrl.u32 %v6665, 7
    %v6667 = vsub.s32 0, %v6666
    %v6668 = vrot.slane %v6663, %v6667
    %v6669 = vlaneseq
    %v6670 = vshrl.u32 %v6669, 7
    %v6671 = vsub.s32 1, %v6670
    %v6672 = vrot.slane %v6663, %v6671
    %v6673 = vlaneseq
    %v6674 = vshrl.u32 %v6673, 7
    %v6675 = vsub.s32 2, %v6674
    %v6676 = vrot.slane %v6663, %v6675
    %v6677 = vlaneseq
    %v6678 = vshrl.u32 %v6677, 7
    %v6679 = vsub.s32 3, %v6678
    %v6680 = vrot.slane %v6663, %v6679
    %v6681 = vlaneseq
    %v6682 = vshrl.u32 %v6681, 7
    %v6683 = vsub.s32 4, %v6682
    %v6684 = vrot.slane %v6663, %v6683
    %v6685 = vlaneseq
    %v6686 = vshrl.u32 %v6685, 7
    %v6687 = vsub.s32 5, %v6686
    %v6688 = vrot.slane %v6663, %v6687
    %v6689 = vlaneseq
    %v6690 = vshrl.u32 %v6689, 7
    %v6691 = vsub.s32 6, %v6690
    %v6692 = vrot.slane %v6663, %v6691
    %v6693 = vlaneseq
    %v6694 = vshrl.u32 %v6693, 7
    %v6695 = vsub.s32 7, %v6694
    %v6696 = vrot.slane %v6663, %v6695
    %v6833 = vunpack.c.l.b16 %v6535
    %v6834 = vunpack.c.h.b16 %v6535
    %v6835 = vunpack.c.l.b16 %v6536
    %v6836 = vunpack.c.h.b16 %v6536
    %v6837 = vunpack.c.l.b16 %v6537
    %v6838 = vunpack.c.h.b16 %v6537
    %v6839 = vunpack.c.l.b16 %v6538
    %v6840 = vunpack.c.h.b16 %v6538
    %v6841 = vunpack.c.l.b16 %v6539
    %v6842 = vunpack.c.h.b16 %v6539
    %v6843 = vunpack.c.l.b16 %v6540
    %v6844 = vunpack.c.h.b16 %v6540
    %v6845 = vunpack.c.l.b16 %v6541
    %v6846 = vunpack.c.h.b16 %v6541
    %v6847 = vunpack.c.l.b16 %v6542
    %v6848 = vunpack.c.h.b16 %v6542
    %v6849 = vunpack.c.l.b16 %v6543
    %v6850 = vunpack.c.h.b16 %v6543
    %v6851 = vunpack.c.l.b16 %v6544
    %v6852 = vunpack.c.h.b16 %v6544
    %v6853 = vunpack.c.l.b16 %v6545
    %v6854 = vunpack.c.h.b16 %v6545
    %v6855 = vunpack.c.l.b16 %v6546
    %v6856 = vunpack.c.h.b16 %v6546
    %v6857 = vunpack.c.l.b16 %v6547
    %v6858 = vunpack.c.h.b16 %v6547
    %v6859 = vunpack.c.l.b16 %v6548
    %v6860 = vunpack.c.h.b16 %v6548
    %v6861 = vunpack.c.l.b16 %v6549
    %v6862 = vunpack.c.h.b16 %v6549
    %v6863 = vunpack.c.l.b16 %v6550
    %v6864 = vunpack.c.h.b16 %v6550
    %v6865 = vunpack.c.l.b16 %v6551
    %v6866 = vunpack.c.h.b16 %v6551
    %v6867 = vunpack.c.l.b16 %v6552
    %v6868 = vunpack.c.h.b16 %v6552
    %v6869 = vunpack.c.l.b16 %v6553
    %v6870 = vunpack.c.h.b16 %v6553
    %v6871 = vunpack.c.l.b16 %v6554
    %v6872 = vunpack.c.h.b16 %v6554
    %v6873 = vunpack.c.l.b16 %v6555
    %v6874 = vunpack.c.h.b16 %v6555
    %v6875 = vunpack.c.l.b16 %v6556
    %v6876 = vunpack.c.h.b16 %v6556
    %v6877 = vunpack.c.l.b16 %v6557
    %v6878 = vunpack.c.h.b16 %v6557
    %v6879 = vunpack.c.l.b16 %v6558
    %v6880 = vunpack.c.h.b16 %v6558
    %v6881 = vunpack.c.l.b16 %v6559
    %v6882 = vunpack.c.h.b16 %v6559
    %v6883 = vunpack.c.l.b16 %v6560
    %v6884 = vunpack.c.h.b16 %v6560
    %v6885 = vunpack.c.l.b16 %v6561
    %v6886 = vunpack.c.h.b16 %v6561
    %v6887 = vunpack.c.l.b16 %v6562
    %v6888 = vunpack.c.h.b16 %v6562
    %v6889 = vunpack.c.l.b16 %v6563
    %v6890 = vunpack.c.h.b16 %v6563
    %v6891 = vunpack.c.l.b16 %v6564
    %v6892 = vunpack.c.h.b16 %v6564
    %v6893 = vunpack.c.l.b16 %v6565
    %v6894 = vunpack.c.h.b16 %v6565
    %v6895 = vunpack.c.l.b16 %v6566
    %v6896 = vunpack.c.h.b16 %v6566
    %v6897 = vunpack.c.l.b16 %v6567
    %v6898 = vunpack.c.h.b16 %v6567
    %v6899 = vunpack.c.l.b16 %v6568
    %v6900 = vunpack.c.h.b16 %v6568
    %v6901 = vunpack.c.l.b16 %v6569
    %v6902 = vunpack.c.h.b16 %v6569
    %v6903 = vunpack.c.l.b16 %v6570
    %v6904 = vunpack.c.h.b16 %v6570
    %v6905 = vunpack.c.l.b16 %v6571
    %v6906 = vunpack.c.h.b16 %v6571
    %v6907 = vunpack.c.l.b16 %v6572
    %v6908 = vunpack.c.h.b16 %v6572
    %v6909 = vunpack.c.l.b16 %v6573
    %v6910 = vunpack.c.h.b16 %v6573
    %v6911 = vunpack.c.l.b16 %v6574
    %v6912 = vunpack.c.h.b16 %v6574
    %v6913 = vunpack.c.l.b16 %v6575
    %v6914 = vunpack.c.h.b16 %v6575
    %v6915 = vunpack.c.l.b16 %v6576
    %v6916 = vunpack.c.h.b16 %v6576
    %v6917 = vunpack.c.l.b16 %v6577
    %v6918 = vunpack.c.h.b16 %v6577
    %v6919 = vunpack.c.l.b16 %v6578
    %v6920 = vunpack.c.h.b16 %v6578
    %v6921 = vunpack.c.l.b16 %v6579
    %v6922 = vunpack.c.h.b16 %v6579
    %v6923 = vunpack.c.l.b16 %v6580
    %v6924 = vunpack.c.h.b16 %v6580
    %v6925 = vunpack.c.l.b16 %v6581
    %v6926 = vunpack.c.h.b16 %v6581
    %v6927 = vunpack.c.l.b16 %v6582
    %v6928 = vunpack.c.h.b16 %v6582
    %v6929 = vunpack.c.l.b16 %v6583
    %v6930 = vunpack.c.h.b16 %v6583
    %v6931 = vunpack.c.l.b16 %v6584
    %v6932 = vunpack.c.h.b16 %v6584
    %v6933 = vunpack.c.l.b16 %v6585
    %v6934 = vunpack.c.h.b16 %v6585
    %v6935 = vunpack.c.l.b16 %v6586
    %v6936 = vunpack.c.h.b16 %v6586
    %v6937 = vunpack.c.l.b16 %v6587
    %v6938 = vunpack.c.h.b16 %v6587
    %v6939 = vunpack.c.l.b16 %v6588
    %v6940 = vunpack.c.h.b16 %v6588
    %v6941 = vunpack.c.l.b16 %v6589
    %v6942 = vunpack.c.h.b16 %v6589
    %v6943 = vunpack.c.l.b16 %v6590
    %v6944 = vunpack.c.h.b16 %v6590
    %v6945 = vunpack.c.l.b16 %v6591
    %v6946 = vunpack.c.h.b16 %v6591
    %v6947 = vunpack.c.l.b16 %v6592
    %v6948 = vunpack.c.h.b16 %v6592
    %v6949 = vunpack.c.l.b16 %v6593
    %v6950 = vunpack.c.h.b16 %v6593
    %v6951 = vunpack.c.l.b16 %v6594
    %v6952 = vunpack.c.h.b16 %v6594
    %v6953 = vunpack.c.l.b16 %v6595
    %v6954 = vunpack.c.h.b16 %v6595
    %v6955 = vunpack.c.l.b16 %v6596
    %v6956 = vunpack.c.h.b16 %v6596
    %v6957 = vunpack.c.l.b16 %v6597
    %v6958 = vunpack.c.h.b16 %v6597
    %v6959 = vunpack.c.l.b16 %v6598
    %v6960 = vunpack.c.h.b16 %v6598
    %v6961 = vunpack.c.l.b16 %v6599
    %v6962 = vunpack.c.h.b16 %v6599
    %v6963 = vunpack.c.l.b16 %v6600
    %v6964 = vunpack.c.h.b16 %v6600
    %v6965 = vunpack.c.l.b16 %v6601
    %v6966 = vunpack.c.h.b16 %v6601
    %v6967 = vunpack.c.l.b16 %v6602
    %v6968 = vunpack.c.h.b16 %v6602
    %v6969 = vunpack.c.l.b16 %v6603
    %v6970 = vunpack.c.h.b16 %v6603
    %v6971 = vunpack.c.l.b16 %v6604
    %v6972 = vunpack.c.h.b16 %v6604
    %v6973 = vunpack.c.l.b16 %v6605
    %v6974 = vunpack.c.h.b16 %v6605
    %v6975 = vunpack.c.l.b16 %v6606
    %v6976 = vunpack.c.h.b16 %v6606
    %v6977 = vunpack.c.l.b16 %v6607
    %v6978 = vunpack.c.h.b16 %v6607
    %v6979 = vunpack.c.l.b16 %v6608
    %v6980 = vunpack.c.h.b16 %v6608
    %v6981 = vunpack.c.l.b16 %v6609
    %v6982 = vunpack.c.h.b16 %v6609
    %v6983 = vunpack.c.l.b16 %v6610
    %v6984 = vunpack.c.h.b16 %v6610
    %v6985 = vunpack.c.l.b16 %v6611
    %v6986 = vunpack.c.h.b16 %v6611
    %v6987 = vunpack.c.l.b16 %v6612
    %v6988 = vunpack.c.h.b16 %v6612
    %v6989 = vunpack.c.l.b16 %v6613
    %v6990 = vunpack.c.h.b16 %v6613
    %v6991 = vunpack.c.l.b16 %v6614
    %v6992 = vunpack.c.h.b16 %v6614
    %v6993 = vunpack.c.l.b16 %v6615
    %v6994 = vunpack.c.h.b16 %v6615
    %v6995 = vunpack.c.l.b16 %v6616
    %v6996 = vunpack.c.h.b16 %v6616
    %v6997 = vunpack.c.l.b16 %v6617
    %v6998 = vunpack.c.h.b16 %v6617
    %v6999 = vunpack.c.l.b16 %v6618
    %v7000 = vunpack.c.h.b16 %v6618
    %v7001 = vunpack.c.l.b16 %v6619
    %v7002 = vunpack.c.h.b16 %v6619
    %v7003 = vunpack.c.l.b16 %v6620
    %v7004 = vunpack.c.h.b16 %v6620
    %v7005 = vunpack.c.l.b16 %v6621
    %v7006 = vunpack.c.h.b16 %v6621
    %v7007 = vunpack.c.l.b16 %v6622
    %v7008 = vunpack.c.h.b16 %v6622
    %v7009 = vunpack.c.l.b16 %v6623
    %v7010 = vunpack.c.h.b16 %v6623
    %v7011 = vunpack.c.l.b16 %v6624
    %v7012 = vunpack.c.h.b16 %v6624
    %v7013 = vunpack.c.l.b16 %v6625
    %v7014 = vunpack.c.h.b16 %v6625
    %v7015 = vunpack.c.l.b16 %v6626
    %v7016 = vunpack.c.h.b16 %v6626
    %v7017 = vunpack.c.l.b16 %v6627
    %v7018 = vunpack.c.h.b16 %v6627
    %v7019 = vunpack.c.l.b16 %v6628
    %v7020 = vunpack.c.h.b16 %v6628
    %v7021 = vunpack.c.l.b16 %v6629
    %v7022 = vunpack.c.h.b16 %v6629
    %v7023 = vunpack.c.l.b16 %v6630
    %v7024 = vunpack.c.h.b16 %v6630
    %v7025 = vunpack.c.l.b16 %v6631
    %v7026 = vunpack.c.h.b16 %v6631
    %v7027 = vunpack.c.l.b16 %v6632
    %v7028 = vunpack.c.h.b16 %v6632
    %v7029 = vunpack.c.l.b16 %v6633
    %v7030 = vunpack.c.h.b16 %v6633
    %v7031 = vunpack.c.l.b16 %v6634
    %v7032 = vunpack.c.h.b16 %v6634
    %v7033 = vunpack.c.l.b16 %v6635
    %v7034 = vunpack.c.h.b16 %v6635
    %v7035 = vunpack.c.l.b16 %v6636
    %v7036 = vunpack.c.h.b16 %v6636
    %v7037 = vunpack.c.l.b16 %v6637
    %v7038 = vunpack.c.h.b16 %v6637
    %v7039 = vunpack.c.l.b16 %v6638
    %v7040 = vunpack.c.h.b16 %v6638
    %v7041 = vunpack.c.l.b16 %v6639
    %v7042 = vunpack.c.h.b16 %v6639
    %v7043 = vunpack.c.l.b16 %v6640
    %v7044 = vunpack.c.h.b16 %v6640
    %v7045 = vunpack.c.l.b16 %v6641
    %v7046 = vunpack.c.h.b16 %v6641
    %v7047 = vunpack.c.l.b16 %v6642
    %v7048 = vunpack.c.h.b16 %v6642
    %v7049 = vunpack.c.l.b16 %v6643
    %v7050 = vunpack.c.h.b16 %v6643
    %v7051 = vunpack.c.l.b16 %v6644
    %v7052 = vunpack.c.h.b16 %v6644
    %v7053 = vunpack.c.l.b16 %v6645
    %v7054 = vunpack.c.h.b16 %v6645
    %v7055 = vunpack.c.l.b16 %v6646
    %v7056 = vunpack.c.h.b16 %v6646
    %v7057 = vunpack.c.l.b16 %v6647
    %v7058 = vunpack.c.h.b16 %v6647
    %v7059 = vunpack.c.l.b16 %v6648
    %v7060 = vunpack.c.h.b16 %v6648
    %v7061 = vunpack.c.l.b16 %v6649
    %v7062 = vunpack.c.h.b16 %v6649
    %v7063 = vunpack.c.l.b16 %v6650
    %v7064 = vunpack.c.h.b16 %v6650
    %v7065 = vunpack.c.l.b16 %v6651
    %v7066 = vunpack.c.h.b16 %v6651
    %v7067 = vunpack.c.l.b16 %v6652
    %v7068 = vunpack.c.h.b16 %v6652
    %v7069 = vunpack.c.l.b16 %v6653
    %v7070 = vunpack.c.h.b16 %v6653
    %v7071 = vunpack.c.l.b16 %v6654
    %v7072 = vunpack.c.h.b16 %v6654
    %v7073 = vunpack.c.l.b16 %v6655
    %v7074 = vunpack.c.h.b16 %v6655
    %v7075 = vunpack.c.l.b16 %v6656
    %v7076 = vunpack.c.h.b16 %v6656
    %v7077 = vunpack.c.l.b16 %v6657
    %v7078 = vunpack.c.h.b16 %v6657
    %v7079 = vunpack.c.l.b16 %v6658
    %v7080 = vunpack.c.h.b16 %v6658
    %v7081 = vunpack.c.l.b16 %v6659
    %v7082 = vunpack.c.h.b16 %v6659
    %v7083 = vunpack.c.l.b16 %v6660
    %v7084 = vunpack.c.h.b16 %v6660
    %v7085 = vunpack.c.l.b16 %v6661
    %v7086 = vunpack.c.h.b16 %v6661
    %v7087 = vunpack.c.l.b16 %v6662
    %v7088 = vunpack.c.h.b16 %v6662
    %v7089 = vpack.c.b16 %v6841, %v6833
    %v7090 = vpack.c.b16 %v6842, %v6834
    %v7091 = vpack.c.b16 %v6843, %v6835
    %v7092 = vpack.c.b16 %v6844, %v6836
    %v7093 = vpack.c.b16 %v6845, %v6837
    %v7094 = vpack.c.b16 %v6846, %v6838
    %v7095 = vpack.c.b16 %v6847, %v6839
    %v7096 = vpack.c.b16 %v6848, %v6840
    %v7097 = vpack.c.b16 %v6857, %v6849
    %v7098 = vpack.c.b16 %v6858, %v6850
    %v7099 = vpack.c.b16 %v6859, %v6851
    %v7100 = vpack.c.b16 %v6860, %v6852
    %v7101 = vpack.c.b16 %v6861, %v6853
    %v7102 = vpack.c.b16 %v6862, %v6854
    %v7103 = vpack.c.b16 %v6863, %v6855
    %v7104 = vpack.c.b16 %v6864, %v6856
    %v7105 = vpack.c.b16 %v6873, %v6865
    %v7106 = vpack.c.b16 %v6874, %v6866
    %v7107 = vpack.c.b16 %v6875, %v6867
    %v7108 = vpack.c.b16 %v6876, %v6868
    %v7109 = vpack.c.b16 %v6877, %v6869
    %v7110 = vpack.c.b16 %v6878, %v6870
    %v7111 = vpack.c.b16 %v6879, %v6871
    %v7112 = vpack.c.b16 %v6880, %v6872
    %v7113 = vpack.c.b16 %v6889, %v6881
    %v7114 = vpack.c.b16 %v6890, %v6882
    %v7115 = vpack.c.b16 %v6891, %v6883
    %v7116 = vpack.c.b16 %v6892, %v6884
    %v7117 = vpack.c.b16 %v6893, %v6885
    %v7118 = vpack.c.b16 %v6894, %v6886
    %v7119 = vpack.c.b16 %v6895, %v6887
    %v7120 = vpack.c.b16 %v6896, %v6888
    %v7121 = vpack.c.b16 %v6905, %v6897
    %v7122 = vpack.c.b16 %v6906, %v6898
    %v7123 = vpack.c.b16 %v6907, %v6899
    %v7124 = vpack.c.b16 %v6908, %v6900
    %v7125 = vpack.c.b16 %v6909, %v6901
    %v7126 = vpack.c.b16 %v6910, %v6902
    %v7127 = vpack.c.b16 %v6911, %v6903
    %v7128 = vpack.c.b16 %v6912, %v6904
    %v7129 = vpack.c.b16 %v6921, %v6913
    %v7130 = vpack.c.b16 %v6922, %v6914
    %v7131 = vpack.c.b16 %v6923, %v6915
    %v7132 = vpack.c.b16 %v6924, %v6916
    %v7133 = vpack.c.b16 %v6925, %v6917
    %v7134 = vpack.c.b16 %v6926, %v6918
    %v7135 = vpack.c.b16 %v6927, %v6919
    %v7136 = vpack.c.b16 %v6928, %v6920
    %v7137 = vpack.c.b16 %v6937, %v6929
    %v7138 = vpack.c.b16 %v6938, %v6930
    %v7139 = vpack.c.b16 %v6939, %v6931
    %v7140 = vpack.c.b16 %v6940, %v6932
    %v7141 = vpack.c.b16 %v6941, %v6933
    %v7142 = vpack.c.b16 %v6942, %v6934
    %v7143 = vpack.c.b16 %v6943, %v6935
    %v7144 = vpack.c.b16 %v6944, %v6936
    %v7145 = vpack.c.b16 %v6953, %v6945
    %v7146 = vpack.c.b16 %v6954, %v6946
    %v7147 = vpack.c.b16 %v6955, %v6947
    %v7148 = vpack.c.b16 %v6956, %v6948
    %v7149 = vpack.c.b16 %v6957, %v6949
    %v7150 = vpack.c.b16 %v6958, %v6950
    %v7151 = vpack.c.b16 %v6959, %v6951
    %v7152 = vpack.c.b16 %v6960, %v6952
    %v7153 = vpack.c.b16 %v6969, %v6961
    %v7154 = vpack.c.b16 %v6970, %v6962
    %v7155 = vpack.c.b16 %v6971, %v6963
    %v7156 = vpack.c.b16 %v6972, %v6964
    %v7157 = vpack.c.b16 %v6973, %v6965
    %v7158 = vpack.c.b16 %v6974, %v6966
    %v7159 = vpack.c.b16 %v6975, %v6967
    %v7160 = vpack.c.b16 %v6976, %v6968
    %v7161 = vpack.c.b16 %v6985, %v6977
    %v7162 = vpack.c.b16 %v6986, %v6978
    %v7163 = vpack.c.b16 %v6987, %v6979
    %v7164 = vpack.c.b16 %v6988, %v6980
    %v7165 = vpack.c.b16 %v6989, %v6981
    %v7166 = vpack.c.b16 %v6990, %v6982
    %v7167 = vpack.c.b16 %v6991, %v6983
    %v7168 = vpack.c.b16 %v6992, %v6984
    %v7169 = vpack.c.b16 %v7001, %v6993
    %v7170 = vpack.c.b16 %v7002, %v6994
    %v7171 = vpack.c.b16 %v7003, %v6995
    %v7172 = vpack.c.b16 %v7004, %v6996
    %v7173 = vpack.c.b16 %v7005, %v6997
    %v7174 = vpack.c.b16 %v7006, %v6998
    %v7175 = vpack.c.b16 %v7007, %v6999
    %v7176 = vpack.c.b16 %v7008, %v7000
    %v7177 = vpack.c.b16 %v7017, %v7009
    %v7178 = vpack.c.b16 %v7018, %v7010
    %v7179 = vpack.c.b16 %v7019, %v7011
    %v7180 = vpack.c.b16 %v7020, %v7012
    %v7181 = vpack.c.b16 %v7021, %v7013
    %v7182 = vpack.c.b16 %v7022, %v7014
    %v7183 = vpack.c.b16 %v7023, %v7015
    %v7184 = vpack.c.b16 %v7024, %v7016
    %v7185 = vpack.c.b16 %v7033, %v7025
    %v7186 = vpack.c.b16 %v7034, %v7026
    %v7187 = vpack.c.b16 %v7035, %v7027
    %v7188 = vpack.c.b16 %v7036, %v7028
    %v7189 = vpack.c.b16 %v7037, %v7029
    %v7190 = vpack.c.b16 %v7038, %v7030
    %v7191 = vpack.c.b16 %v7039, %v7031
    %v7192 = vpack.c.b16 %v7040, %v7032
    %v7193 = vpack.c.b16 %v7049, %v7041
    %v7194 = vpack.c.b16 %v7050, %v7042
    %v7195 = vpack.c.b16 %v7051, %v7043
    %v7196 = vpack.c.b16 %v7052, %v7044
    %v7197 = vpack.c.b16 %v7053, %v7045
    %v7198 = vpack.c.b16 %v7054, %v7046
    %v7199 = vpack.c.b16 %v7055, %v7047
    %v7200 = vpack.c.b16 %v7056, %v7048
    %v7201 = vpack.c.b16 %v7065, %v7057
    %v7202 = vpack.c.b16 %v7066, %v7058
    %v7203 = vpack.c.b16 %v7067, %v7059
    %v7204 = vpack.c.b16 %v7068, %v7060
    %v7205 = vpack.c.b16 %v7069, %v7061
    %v7206 = vpack.c.b16 %v7070, %v7062
    %v7207 = vpack.c.b16 %v7071, %v7063
    %v7208 = vpack.c.b16 %v7072, %v7064
    %v7209 = vpack.c.b16 %v7081, %v7073
    %v7210 = vpack.c.b16 %v7082, %v7074
    %v7211 = vpack.c.b16 %v7083, %v7075
    %v7212 = vpack.c.b16 %v7084, %v7076
    %v7213 = vpack.c.b16 %v7085, %v7077
    %v7214 = vpack.c.b16 %v7086, %v7078
    %v7215 = vpack.c.b16 %v7087, %v7079
    %v7216 = vpack.c.b16 %v7088, %v7080
    %7345 = vmatprep.subr.bf16.mxu0 %v7090
    %7346 = vmatpush1.bf16.msra.mxu0 %v7089
    %7347 = vmatprep.subr.bf16.mxu0 %v7098
    %7348 = vmatpush1.bf16.msra.mxu0 %v7097
    %7349 = vmatprep.subr.bf16.mxu0 %v7106
    %7350 = vmatpush1.bf16.msra.mxu0 %v7105
    %7351 = vmatprep.subr.bf16.mxu0 %v7114
    %7352 = vmatpush1.bf16.msra.mxu0 %v7113
    %7353 = vmatprep.subr.bf16.mxu0 %v7122
    %7354 = vmatpush1.bf16.msra.mxu0 %v7121
    %7355 = vmatprep.subr.bf16.mxu0 %v7130
    %7356 = vmatpush1.bf16.msra.mxu0 %v7129
    %7357 = vmatprep.subr.bf16.mxu0 %v7138
    %7358 = vmatpush1.bf16.msra.mxu0 %v7137
    %7359 = vmatprep.subr.bf16.mxu0 %v7146
    %7360 = vmatpush1.bf16.msra.mxu0 %v7145
    %7361 = vmatprep.subr.bf16.mxu0 %v7154
    %7362 = vmatpush1.bf16.msra.mxu0 %v7153
    %7363 = vmatprep.subr.bf16.mxu0 %v7162
    %7364 = vmatpush1.bf16.msra.mxu0 %v7161
    %7365 = vmatprep.subr.bf16.mxu0 %v7170
    %7366 = vmatpush1.bf16.msra.mxu0 %v7169
    %7367 = vmatprep.subr.bf16.mxu0 %v7178
    %7368 = vmatpush1.bf16.msra.mxu0 %v7177
    %7369 = vmatprep.subr.bf16.mxu0 %v7186
    %7370 = vmatpush1.bf16.msra.mxu0 %v7185
    %7371 = vmatprep.subr.bf16.mxu0 %v7194
    %7372 = vmatpush1.bf16.msra.mxu0 %v7193
    %7373 = vmatprep.subr.bf16.mxu0 %v7202
    %7374 = vmatpush1.bf16.msra.mxu0 %v7201
    %7375 = vmatprep.subr.bf16.mxu0 %v7210
    %7376 = vmatpush1.bf16.msra.mxu0 %v7209
    %7377 = vmatprep.mubr.bf16.mxu0 %v6504
    %7378 = vmatmul.mubr.bf16.gmra.mrb[0].mxu0 %v6503
    %v7379 = vpop.f32.mrb[0].mxu0
    %v7380 = vadd.f32 %v6668, %v7379
    %v7381 = vpop.f32.mrb[0].mxu0
    %v7382 = vadd.f32 %v6672, %v7381
    %v7383 = vpop.f32.mrb[0].mxu0
    %v7384 = vadd.f32 %v6668, %v7383
    %v7385 = vpop.f32.mrb[0].mxu0
    %v7386 = vadd.f32 %v6672, %v7385
    %7387 = vmatprep.mubr.bf16.mxu0 %v6506
    %7388 = vmatmul.mubr.bf16.gmra.mrb[0].mxu0 %v6505
    %v7389 = vpop.f32.mrb[0].mxu0
    %v7390 = vadd.f32 %v6668, %v7389
    %v7391 = vpop.f32.mrb[0].mxu0
    %v7392 = vadd.f32 %v6672, %v7391
    %v7393 = vpop.f32.mrb[0].mxu0
    %v7394 = vadd.f32 %v6668, %v7393
    %v7395 = vpop.f32.mrb[0].mxu0
    %v7396 = vadd.f32 %v6672, %v7395
    %7397 = vmatprep.mubr.bf16.mxu0 %v6508
    %7398 = vmatmul.mubr.bf16.gmra.mrb[0].mxu0 %v6507
    %v7399 = vpop.f32.mrb[0].mxu0
    %v7400 = vadd.f32 %v6668, %v7399
    %v7401 = vpop.f32.mrb[0].mxu0
    %v7402 = vadd.f32 %v6672, %v7401
    %v7403 = vpop.f32.mrb[0].mxu0
    %v7404 = vadd.f32 %v6668, %v7403
    %v7405 = vpop.f32.mrb[0].mxu0
    %v7406 = vadd.f32 %v6672, %v7405
    %7407 = vmatprep.mubr.bf16.mxu0 %v6510
    %7408 = vmatmul.mubr.bf16.gmra.mrb[0].mxu0 %v6509
    %v7409 = vpop.f32.mrb[0].mxu0
    %v7410 = vadd.f32 %v6668, %v7409
    %v7411 = vpop.f32.mrb[0].mxu0
    %v7412 = vadd.f32 %v6672, %v7411
    %v7413 = vpop.f32.mrb[0].mxu0
    %v7414 = vadd.f32 %v6668, %v7413
    %v7415 = vpop.f32.mrb[0].mxu0
    %v7416 = vadd.f32 %v6672, %v7415
    %7417 = vmatprep.mubr.bf16.mxu0 %v6512
    %7418 = vmatmul.mubr.bf16.gmra.mrb[0].mxu0 %v6511
    %v7419 = vpop.f32.mrb[0].mxu0
    %v7420 = vadd.f32 %v6668, %v7419
    %v7421 = vpop.f32.mrb[0].mxu0
    %v7422 = vadd.f32 %v6672, %v7421
    %v7423 = vpop.f32.mrb[0].mxu0
    %v7424 = vadd.f32 %v6668, %v7423
    %v7425 = vpop.f32.mrb[0].mxu0
    %v7426 = vadd.f32 %v6672, %v7425
    %7427 = vmatprep.mubr.bf16.mxu0 %v6514
    %7428 = vmatmul.mubr.bf16.gmra.mrb[0].mxu0 %v6513
    %v7429 = vpop.f32.mrb[0].mxu0
    %v7430 = vadd.f32 %v6668, %v7429
    %v7431 = vpop.f32.mrb[0].mxu0
    %v7432 = vadd.f32 %v6672, %v7431
    %v7433 = vpop.f32.mrb[0].mxu0
    %v7434 = vadd.f32 %v6668, %v7433
    %v7435 = vpop.f32.mrb[0].mxu0
    %v7436 = vadd.f32 %v6672, %v7435
    %7437 = vmatprep.mubr.bf16.mxu0 %v6516
    %7438 = vmatmul.mubr.bf16.gmra.mrb[0].mxu0 %v6515
    %v7439 = vpop.f32.mrb[0].mxu0
    %v7440 = vadd.f32 %v6668, %v7439
    %v7441 = vpop.f32.mrb[0].mxu0
    %v7442 = vadd.f32 %v6672, %v7441
    %v7443 = vpop.f32.mrb[0].mxu0
    %v7444 = vadd.f32 %v6668, %v7443
    %v7445 = vpop.f32.mrb[0].mxu0
    %v7446 = vadd.f32 %v6672, %v7445
    %7447 = vmatprep.mubr.bf16.mxu0 %v6518
    %7448 = vmatmul.mubr.bf16.gmra.mrb[0].mxu0 %v6517
    %v7449 = vpop.f32.mrb[0].mxu0
    %v7450 = vadd.f32 %v6668, %v7449
    %v7451 = vpop.f32.mrb[0].mxu0
    %v7452 = vadd.f32 %v6672, %v7451
    %v7453 = vpop.f32.mrb[0].mxu0
    %v7454 = vadd.f32 %v6668, %v7453
    %v7455 = vpop.f32.mrb[0].mxu0
    %v7456 = vadd.f32 %v6672, %v7455
    %7457 = vmatprep.mubr.bf16.mxu0 %v6520
    %7458 = vmatmul.mubr.bf16.gmra.mrb[0].mxu0 %v6519
    %v7459 = vpop.f32.mrb[0].mxu0
    %v7460 = vadd.f32 %v6668, %v7459
    %v7461 = vpop.f32.mrb[0].mxu0
    %v7462 = vadd.f32 %v6672, %v7461
    %v7463 = vpop.f32.mrb[0].mxu0
    %v7464 = vadd.f32 %v6668, %v7463
    %v7465 = vpop.f32.mrb[0].mxu0
    %v7466 = vadd.f32 %v6672, %v7465
    %7467 = vmatprep.mubr.bf16.mxu0 %v6522
    %7468 = vmatmul.mubr.bf16.gmra.mrb[0].mxu0 %v6521
    %v7469 = vpop.f32.mrb[0].mxu0
    %v7470 = vadd.f32 %v6668, %v7469
    %v7471 = vpop.f32.mrb[0].mxu0
    %v7472 = vadd.f32 %v6672, %v7471
    %v7473 = vpop.f32.mrb[0].mxu0
    %v7474 = vadd.f32 %v6668, %v7473
    %v7475 = vpop.f32.mrb[0].mxu0
    %v7476 = vadd.f32 %v6672, %v7475
    %7477 = vmatprep.mubr.bf16.mxu0 %v6524
    %7478 = vmatmul.mubr.bf16.gmra.mrb[0].mxu0 %v6523
    %v7479 = vpop.f32.mrb[0].mxu0
    %v7480 = vadd.f32 %v6668, %v7479
    %v7481 = vpop.f32.mrb[0].mxu0
    %v7482 = vadd.f32 %v6672, %v7481
    %v7483 = vpop.f32.mrb[0].mxu0
    %v7484 = vadd.f32 %v6668, %v7483
    %v7485 = vpop.f32.mrb[0].mxu0
    %v7486 = vadd.f32 %v6672, %v7485
    %7487 = vmatprep.mubr.bf16.mxu0 %v6526
    %7488 = vmatmul.mubr.bf16.gmra.mrb[0].mxu0 %v6525
    %v7489 = vpop.f32.mrb[0].mxu0
    %v7490 = vadd.f32 %v6668, %v7489
    %v7491 = vpop.f32.mrb[0].mxu0
    %v7492 = vadd.f32 %v6672, %v7491
    %v7493 = vpop.f32.mrb[0].mxu0
    %v7494 = vadd.f32 %v6668, %v7493
    %v7495 = vpop.f32.mrb[0].mxu0
    %v7496 = vadd.f32 %v6672, %v7495
    %7497 = vmatprep.mubr.bf16.mxu0 %v6528
    %7498 = vmatmul.mubr.bf16.gmra.mrb[0].mxu0 %v6527
    %v7499 = vpop.f32.mrb[0].mxu0
    %v7500 = vadd.f32 %v6668, %v7499
    %v7501 = vpop.f32.mrb[0].mxu0
    %v7502 = vadd.f32 %v6672, %v7501
    %v7503 = vpop.f32.mrb[0].mxu0
    %v7504 = vadd.f32 %v6668, %v7503
    %v7505 = vpop.f32.mrb[0].mxu0
    %v7506 = vadd.f32 %v6672, %v7505
    %7507 = vmatprep.mubr.bf16.mxu0 %v6530
    %7508 = vmatmul.mubr.bf16.gmra.mrb[0].mxu0 %v6529
    %v7509 = vpop.f32.mrb[0].mxu0
    %v7510 = vadd.f32 %v6668, %v7509
    %v7511 = vpop.f32.mrb[0].mxu0
    %v7512 = vadd.f32 %v6672, %v7511
    %v7513 = vpop.f32.mrb[0].mxu0
    %v7514 = vadd.f32 %v6668, %v7513
    %v7515 = vpop.f32.mrb[0].mxu0
    %v7516 = vadd.f32 %v6672, %v7515
    %7517 = vmatprep.mubr.bf16.mxu0 %v6532
    %7518 = vmatmul.mubr.bf16.gmra.mrb[0].mxu0 %v6531
    %v7519 = vpop.f32.mrb[0].mxu0
    %v7520 = vadd.f32 %v6668, %v7519
    %v7521 = vpop.f32.mrb[0].mxu0
    %v7522 = vadd.f32 %v6672, %v7521
    %v7523 = vpop.f32.mrb[0].mxu0
    %v7524 = vadd.f32 %v6668, %v7523
    %v7525 = vpop.f32.mrb[0].mxu0
    %v7526 = vadd.f32 %v6672, %v7525
    %7527 = vmatprep.mubr.bf16.mxu0 %v6534
    %7528 = vmatmul.mubr.bf16.gmra.mrb[0].mxu0 %v6533
    %v7529 = vpop.f32.mrb[0].mxu0
    %v7530 = vadd.f32 %v6668, %v7529
    %v7531 = vpop.f32.mrb[0].mxu0
    %v7532 = vadd.f32 %v6672, %v7531
    %v7533 = vpop.f32.mrb[0].mxu0
    %v7534 = vadd.f32 %v6668, %v7533
    %v7535 = vpop.f32.mrb[0].mxu0
    %v7536 = vadd.f32 %v6672, %v7535
    %7537 = vdwg.mxu0
    %7538 = vmatprep.subr.bf16.mxu0 %v7092
    %7539 = vmatpush1.bf16.msra.mxu0 %v7091
    %7540 = vmatprep.subr.bf16.mxu0 %v7100
    %7541 = vmatpush1.bf16.msra.mxu0 %v7099
    %7542 = vmatprep.subr.bf16.mxu0 %v7108
    %7543 = vmatpush1.bf16.msra.mxu0 %v7107
    %7544 = vmatprep.subr.bf16.mxu0 %v7116
    %7545 = vmatpush1.bf16.msra.mxu0 %v7115
    %7546 = vmatprep.subr.bf16.mxu0 %v7124
    %7547 = vmatpush1.bf16.msra.mxu0 %v7123
    %7548 = vmatprep.subr.bf16.mxu0 %v7132
    %7549 = vmatpush1.bf16.msra.mxu0 %v7131
    %7550 = vmatprep.subr.bf16.mxu0 %v7140
    %7551 = vmatpush1.bf16.msra.mxu0 %v7139
    %7552 = vmatprep.subr.bf16.mxu0 %v7148
    %7553 = vmatpush1.bf16.msra.mxu0 %v7147
    %7554 = vmatprep.subr.bf16.mxu0 %v7156
    %7555 = vmatpush1.bf16.msra.mxu0 %v7155
    %7556 = vmatprep.subr.bf16.mxu0 %v7164
    %7557 = vmatpush1.bf16.msra.mxu0 %v7163
    %7558 = vmatprep.subr.bf16.mxu0 %v7172
    %7559 = vmatpush1.bf16.msra.mxu0 %v7171
    %7560 = vmatprep.subr.bf16.mxu0 %v7180
    %7561 = vmatpush1.bf16.msra.mxu0 %v7179
    %7562 = vmatprep.subr.bf16.mxu0 %v7188
    %7563 = vmatpush1.bf16.msra.mxu0 %v7187
    %7564 = vmatprep.subr.bf16.mxu0 %v7196
    %7565 = vmatpush1.bf16.msra.mxu0 %v7195
    %7566 = vmatprep.subr.bf16.mxu0 %v7204
    %7567 = vmatpush1.bf16.msra.mxu0 %v7203
    %7568 = vmatprep.subr.bf16.mxu0 %v7212
    %7569 = vmatpush1.bf16.msra.mxu0 %v7211
    %7570 = vmatprep.mubr.bf16.mxu0 %v6504
    %7571 = vmatmul.mubr.bf16.gmra.mrb[0].mxu0 %v6503
    %v7572 = vpop.f32.mrb[0].mxu0
    %v7573 = vadd.f32 %v6676, %v7572
    %v7574 = vpop.f32.mrb[0].mxu0
    %v7575 = vadd.f32 %v6680, %v7574
    %v7576 = vpop.f32.mrb[0].mxu0
    %v7577 = vadd.f32 %v6676, %v7576
    %v7578 = vpop.f32.mrb[0].mxu0
    %v7579 = vadd.f32 %v6680, %v7578
    %7580 = vmatprep.mubr.bf16.mxu0 %v6506
    %7581 = vmatmul.mubr.bf16.gmra.mrb[0].mxu0 %v6505
    %v7582 = vpop.f32.mrb[0].mxu0
    %v7583 = vadd.f32 %v6676, %v7582
    %v7584 = vpop.f32.mrb[0].mxu0
    %v7585 = vadd.f32 %v6680, %v7584
    %v7586 = vpop.f32.mrb[0].mxu0
    %v7587 = vadd.f32 %v6676, %v7586
    %v7588 = vpop.f32.mrb[0].mxu0
    %v7589 = vadd.f32 %v6680, %v7588
    %7590 = vmatprep.mubr.bf16.mxu0 %v6508
    %7591 = vmatmul.mubr.bf16.gmra.mrb[0].mxu0 %v6507
    %v7592 = vpop.f32.mrb[0].mxu0
    %v7593 = vadd.f32 %v6676, %v7592
    %v7594 = vpop.f32.mrb[0].mxu0
    %v7595 = vadd.f32 %v6680, %v7594
    %v7596 = vpop.f32.mrb[0].mxu0
    %v7597 = vadd.f32 %v6676, %v7596
    %v7598 = vpop.f32.mrb[0].mxu0
    %v7599 = vadd.f32 %v6680, %v7598
    %7600 = vmatprep.mubr.bf16.mxu0 %v6510
    %7601 = vmatmul.mubr.bf16.gmra.mrb[0].mxu0 %v6509
    %v7602 = vpop.f32.mrb[0].mxu0
    %v7603 = vadd.f32 %v6676, %v7602
    %v7604 = vpop.f32.mrb[0].mxu0
    %v7605 = vadd.f32 %v6680, %v7604
    %v7606 = vpop.f32.mrb[0].mxu0
    %v7607 = vadd.f32 %v6676, %v7606
    %v7608 = vpop.f32.mrb[0].mxu0
    %v7609 = vadd.f32 %v6680, %v7608
    %7610 = vmatprep.mubr.bf16.mxu0 %v6512
    %7611 = vmatmul.mubr.bf16.gmra.mrb[0].mxu0 %v6511
    %v7612 = vpop.f32.mrb[0].mxu0
    %v7613 = vadd.f32 %v6676, %v7612
    %v7614 = vpop.f32.mrb[0].mxu0
    %v7615 = vadd.f32 %v6680, %v7614
    %v7616 = vpop.f32.mrb[0].mxu0
    %v7617 = vadd.f32 %v6676, %v7616
    %v7618 = vpop.f32.mrb[0].mxu0
    %v7619 = vadd.f32 %v6680, %v7618
    %7620 = vmatprep.mubr.bf16.mxu0 %v6514
    %7621 = vmatmul.mubr.bf16.gmra.mrb[0].mxu0 %v6513
    %v7622 = vpop.f32.mrb[0].mxu0
    %v7623 = vadd.f32 %v6676, %v7622
    %v7624 = vpop.f32.mrb[0].mxu0
    %v7625 = vadd.f32 %v6680, %v7624
    %v7626 = vpop.f32.mrb[0].mxu0
    %v7627 = vadd.f32 %v6676, %v7626
    %v7628 = vpop.f32.mrb[0].mxu0
    %v7629 = vadd.f32 %v6680, %v7628
    %7630 = vmatprep.mubr.bf16.mxu0 %v6516
    %7631 = vmatmul.mubr.bf16.gmra.mrb[0].mxu0 %v6515
    %v7632 = vpop.f32.mrb[0].mxu0
    %v7633 = vadd.f32 %v6676, %v7632
    %v7634 = vpop.f32.mrb[0].mxu0
    %v7635 = vadd.f32 %v6680, %v7634
    %v7636 = vpop.f32.mrb[0].mxu0
    %v7637 = vadd.f32 %v6676, %v7636
    %v7638 = vpop.f32.mrb[0].mxu0
    %v7639 = vadd.f32 %v6680, %v7638
    %7640 = vmatprep.mubr.bf16.mxu0 %v6518
    %7641 = vmatmul.mubr.bf16.gmra.mrb[0].mxu0 %v6517
    %v7642 = vpop.f32.mrb[0].mxu0
    %v7643 = vadd.f32 %v6676, %v7642
    %v7644 = vpop.f32.mrb[0].mxu0
    %v7645 = vadd.f32 %v6680, %v7644
    %v7646 = vpop.f32.mrb[0].mxu0
    %v7647 = vadd.f32 %v6676, %v7646
    %v7648 = vpop.f32.mrb[0].mxu0
    %v7649 = vadd.f32 %v6680, %v7648
    %7650 = vmatprep.mubr.bf16.mxu0 %v6520
    %7651 = vmatmul.mubr.bf16.gmra.mrb[0].mxu0 %v6519
    %v7652 = vpop.f32.mrb[0].mxu0
    %v7653 = vadd.f32 %v6676, %v7652
    %v7654 = vpop.f32.mrb[0].mxu0
    %v7655 = vadd.f32 %v6680, %v7654
    %v7656 = vpop.f32.mrb[0].mxu0
    %v7657 = vadd.f32 %v6676, %v7656
    %v7658 = vpop.f32.mrb[0].mxu0
    %v7659 = vadd.f32 %v6680, %v7658
    %7660 = vmatprep.mubr.bf16.mxu0 %v6522
    %7661 = vmatmul.mubr.bf16.gmra.mrb[0].mxu0 %v6521
    %v7662 = vpop.f32.mrb[0].mxu0
    %v7663 = vadd.f32 %v6676, %v7662
    %v7664 = vpop.f32.mrb[0].mxu0
    %v7665 = vadd.f32 %v6680, %v7664
    %v7666 = vpop.f32.mrb[0].mxu0
    %v7667 = vadd.f32 %v6676, %v7666
    %v7668 = vpop.f32.mrb[0].mxu0
    %v7669 = vadd.f32 %v6680, %v7668
    %7670 = vmatprep.mubr.bf16.mxu0 %v6524
    %7671 = vmatmul.mubr.bf16.gmra.mrb[0].mxu0 %v6523
    %v7672 = vpop.f32.mrb[0].mxu0
    %v7673 = vadd.f32 %v6676, %v7672
    %v7674 = vpop.f32.mrb[0].mxu0
    %v7675 = vadd.f32 %v6680, %v7674
    %v7676 = vpop.f32.mrb[0].mxu0
    %v7677 = vadd.f32 %v6676, %v7676
    %v7678 = vpop.f32.mrb[0].mxu0
    %v7679 = vadd.f32 %v6680, %v7678
    %7680 = vmatprep.mubr.bf16.mxu0 %v6526
    %7681 = vmatmul.mubr.bf16.gmra.mrb[0].mxu0 %v6525
    %v7682 = vpop.f32.mrb[0].mxu0
    %v7683 = vadd.f32 %v6676, %v7682
    %v7684 = vpop.f32.mrb[0].mxu0
    %v7685 = vadd.f32 %v6680, %v7684
    %v7686 = vpop.f32.mrb[0].mxu0
    %v7687 = vadd.f32 %v6676, %v7686
    %v7688 = vpop.f32.mrb[0].mxu0
    %v7689 = vadd.f32 %v6680, %v7688
    %7690 = vmatprep.mubr.bf16.mxu0 %v6528
    %7691 = vmatmul.mubr.bf16.gmra.mrb[0].mxu0 %v6527
    %v7692 = vpop.f32.mrb[0].mxu0
    %v7693 = vadd.f32 %v6676, %v7692
    %v7694 = vpop.f32.mrb[0].mxu0
    %v7695 = vadd.f32 %v6680, %v7694
    %v7696 = vpop.f32.mrb[0].mxu0
    %v7697 = vadd.f32 %v6676, %v7696
    %v7698 = vpop.f32.mrb[0].mxu0
    %v7699 = vadd.f32 %v6680, %v7698
    %7700 = vmatprep.mubr.bf16.mxu0 %v6530
    %7701 = vmatmul.mubr.bf16.gmra.mrb[0].mxu0 %v6529
    %v7702 = vpop.f32.mrb[0].mxu0
    %v7703 = vadd.f32 %v6676, %v7702
    %v7704 = vpop.f32.mrb[0].mxu0
    %v7705 = vadd.f32 %v6680, %v7704
    %v7706 = vpop.f32.mrb[0].mxu0
    %v7707 = vadd.f32 %v6676, %v7706
    %v7708 = vpop.f32.mrb[0].mxu0
    %v7709 = vadd.f32 %v6680, %v7708
    %7710 = vmatprep.mubr.bf16.mxu0 %v6532
    %7711 = vmatmul.mubr.bf16.gmra.mrb[0].mxu0 %v6531
    %v7712 = vpop.f32.mrb[0].mxu0
    %v7713 = vadd.f32 %v6676, %v7712
    %v7714 = vpop.f32.mrb[0].mxu0
    %v7715 = vadd.f32 %v6680, %v7714
    %v7716 = vpop.f32.mrb[0].mxu0
    %v7717 = vadd.f32 %v6676, %v7716
    %v7718 = vpop.f32.mrb[0].mxu0
    %v7719 = vadd.f32 %v6680, %v7718
    %7720 = vmatprep.mubr.bf16.mxu0 %v6534
    %7721 = vmatmul.mubr.bf16.gmra.mrb[0].mxu0 %v6533
    %v7722 = vpop.f32.mrb[0].mxu0
    %v7723 = vadd.f32 %v6676, %v7722
    %v7724 = vpop.f32.mrb[0].mxu0
    %v7725 = vadd.f32 %v6680, %v7724
    %v7726 = vpop.f32.mrb[0].mxu0
    %v7727 = vadd.f32 %v6676, %v7726
    %v7728 = vpop.f32.mrb[0].mxu0
    %v7729 = vadd.f32 %v6680, %v7728
    %7730 = vdwg.mxu0
    %7731 = vmatprep.subr.bf16.mxu0 %v7094
    %7732 = vmatpush1.bf16.msra.mxu0 %v7093
    %7733 = vmatprep.subr.bf16.mxu0 %v7102
    %7734 = vmatpush1.bf16.msra.mxu0 %v7101
    %7735 = vmatprep.subr.bf16.mxu0 %v7110
    %7736 = vmatpush1.bf16.msra.mxu0 %v7109
    %7737 = vmatprep.subr.bf16.mxu0 %v7118
    %7738 = vmatpush1.bf16.msra.mxu0 %v7117
    %7739 = vmatprep.subr.bf16.mxu0 %v7126
    %7740 = vmatpush1.bf16.msra.mxu0 %v7125
    %7741 = vmatprep.subr.bf16.mxu0 %v7134
    %7742 = vmatpush1.bf16.msra.mxu0 %v7133
    %7743 = vmatprep.subr.bf16.mxu0 %v7142
    %7744 = vmatpush1.bf16.msra.mxu0 %v7141
    %7745 = vmatprep.subr.bf16.mxu0 %v7150
    %7746 = vmatpush1.bf16.msra.mxu0 %v7149
    %7747 = vmatprep.subr.bf16.mxu0 %v7158
    %7748 = vmatpush1.bf16.msra.mxu0 %v7157
    %7749 = vmatprep.subr.bf16.mxu0 %v7166
    %7750 = vmatpush1.bf16.msra.mxu0 %v7165
    %7751 = vmatprep.subr.bf16.mxu0 %v7174
    %7752 = vmatpush1.bf16.msra.mxu0 %v7173
    %7753 = vmatprep.subr.bf16.mxu0 %v7182
    %7754 = vmatpush1.bf16.msra.mxu0 %v7181
    %7755 = vmatprep.subr.bf16.mxu0 %v7190
    %7756 = vmatpush1.bf16.msra.mxu0 %v7189
    %7757 = vmatprep.subr.bf16.mxu0 %v7198
    %7758 = vmatpush1.bf16.msra.mxu0 %v7197
    %7759 = vmatprep.subr.bf16.mxu0 %v7206
    %7760 = vmatpush1.bf16.msra.mxu0 %v7205
    %7761 = vmatprep.subr.bf16.mxu0 %v7214
    %7762 = vmatpush1.bf16.msra.mxu0 %v7213
    %7763 = vmatprep.mubr.bf16.mxu0 %v6504
    %7764 = vmatmul.mubr.bf16.gmra.mrb[0].mxu0 %v6503
    %v7765 = vpop.f32.mrb[0].mxu0
    %v7766 = vadd.f32 %v6684, %v7765
    %v7767 = vpop.f32.mrb[0].mxu0
    %v7768 = vadd.f32 %v6688, %v7767
    %v7769 = vpop.f32.mrb[0].mxu0
    %v7770 = vadd.f32 %v6684, %v7769
    %v7771 = vpop.f32.mrb[0].mxu0
    %v7772 = vadd.f32 %v6688, %v7771
    %7773 = vmatprep.mubr.bf16.mxu0 %v6506
    %7774 = vmatmul.mubr.bf16.gmra.mrb[0].mxu0 %v6505
    %v7775 = vpop.f32.mrb[0].mxu0
    %v7776 = vadd.f32 %v6684, %v7775
    %v7777 = vpop.f32.mrb[0].mxu0
    %v7778 = vadd.f32 %v6688, %v7777
    %v7779 = vpop.f32.mrb[0].mxu0
    %v7780 = vadd.f32 %v6684, %v7779
    %v7781 = vpop.f32.mrb[0].mxu0
    %v7782 = vadd.f32 %v6688, %v7781
    %7783 = vmatprep.mubr.bf16.mxu0 %v6508
    %7784 = vmatmul.mubr.bf16.gmra.mrb[0].mxu0 %v6507
    %v7785 = vpop.f32.mrb[0].mxu0
    %v7786 = vadd.f32 %v6684, %v7785
    %v7787 = vpop.f32.mrb[0].mxu0
    %v7788 = vadd.f32 %v6688, %v7787
    %v7789 = vpop.f32.mrb[0].mxu0
    %v7790 = vadd.f32 %v6684, %v7789
    %v7791 = vpop.f32.mrb[0].mxu0
    %v7792 = vadd.f32 %v6688, %v7791
    %7793 = vmatprep.mubr.bf16.mxu0 %v6510
    %7794 = vmatmul.mubr.bf16.gmra.mrb[0].mxu0 %v6509
    %v7795 = vpop.f32.mrb[0].mxu0
    %v7796 = vadd.f32 %v6684, %v7795
    %v7797 = vpop.f32.mrb[0].mxu0
    %v7798 = vadd.f32 %v6688, %v7797
    %v7799 = vpop.f32.mrb[0].mxu0
    %v7800 = vadd.f32 %v6684, %v7799
    %v7801 = vpop.f32.mrb[0].mxu0
    %v7802 = vadd.f32 %v6688, %v7801
    %7803 = vmatprep.mubr.bf16.mxu0 %v6512
    %7804 = vmatmul.mubr.bf16.gmra.mrb[0].mxu0 %v6511
    %v7805 = vpop.f32.mrb[0].mxu0
    %v7806 = vadd.f32 %v6684, %v7805
    %v7807 = vpop.f32.mrb[0].mxu0
    %v7808 = vadd.f32 %v6688, %v7807
    %v7809 = vpop.f32.mrb[0].mxu0
    %v7810 = vadd.f32 %v6684, %v7809
    %v7811 = vpop.f32.mrb[0].mxu0
    %v7812 = vadd.f32 %v6688, %v7811
    %7813 = vmatprep.mubr.bf16.mxu0 %v6514
    %7814 = vmatmul.mubr.bf16.gmra.mrb[0].mxu0 %v6513
    %v7815 = vpop.f32.mrb[0].mxu0
    %v7816 = vadd.f32 %v6684, %v7815
    %v7817 = vpop.f32.mrb[0].mxu0
    %v7818 = vadd.f32 %v6688, %v7817
    %v7819 = vpop.f32.mrb[0].mxu0
    %v7820 = vadd.f32 %v6684, %v7819
    %v7821 = vpop.f32.mrb[0].mxu0
    %v7822 = vadd.f32 %v6688, %v7821
    %7823 = vmatprep.mubr.bf16.mxu0 %v6516
    %7824 = vmatmul.mubr.bf16.gmra.mrb[0].mxu0 %v6515
    %v7825 = vpop.f32.mrb[0].mxu0
    %v7826 = vadd.f32 %v6684, %v7825
    %v7827 = vpop.f32.mrb[0].mxu0
    %v7828 = vadd.f32 %v6688, %v7827
    %v7829 = vpop.f32.mrb[0].mxu0
    %v7830 = vadd.f32 %v6684, %v7829
    %v7831 = vpop.f32.mrb[0].mxu0
    %v7832 = vadd.f32 %v6688, %v7831
    %7833 = vmatprep.mubr.bf16.mxu0 %v6518
    %7834 = vmatmul.mubr.bf16.gmra.mrb[0].mxu0 %v6517
    %v7835 = vpop.f32.mrb[0].mxu0
    %v7836 = vadd.f32 %v6684, %v7835
    %v7837 = vpop.f32.mrb[0].mxu0
    %v7838 = vadd.f32 %v6688, %v7837
    %v7839 = vpop.f32.mrb[0].mxu0
    %v7840 = vadd.f32 %v6684, %v7839
    %v7841 = vpop.f32.mrb[0].mxu0
    %v7842 = vadd.f32 %v6688, %v7841
    %7843 = vmatprep.mubr.bf16.mxu0 %v6520
    %7844 = vmatmul.mubr.bf16.gmra.mrb[0].mxu0 %v6519
    %v7845 = vpop.f32.mrb[0].mxu0
    %v7846 = vadd.f32 %v6684, %v7845
    %v7847 = vpop.f32.mrb[0].mxu0
    %v7848 = vadd.f32 %v6688, %v7847
    %v7849 = vpop.f32.mrb[0].mxu0
    %v7850 = vadd.f32 %v6684, %v7849
    %v7851 = vpop.f32.mrb[0].mxu0
    %v7852 = vadd.f32 %v6688, %v7851
    %7853 = vmatprep.mubr.bf16.mxu0 %v6522
    %7854 = vmatmul.mubr.bf16.gmra.mrb[0].mxu0 %v6521
    %v7855 = vpop.f32.mrb[0].mxu0
    %v7856 = vadd.f32 %v6684, %v7855
    %v7857 = vpop.f32.mrb[0].mxu0
    %v7858 = vadd.f32 %v6688, %v7857
    %v7859 = vpop.f32.mrb[0].mxu0
    %v7860 = vadd.f32 %v6684, %v7859
    %v7861 = vpop.f32.mrb[0].mxu0
    %v7862 = vadd.f32 %v6688, %v7861
    %7863 = vmatprep.mubr.bf16.mxu0 %v6524
    %7864 = vmatmul.mubr.bf16.gmra.mrb[0].mxu0 %v6523
    %v7865 = vpop.f32.mrb[0].mxu0
    %v7866 = vadd.f32 %v6684, %v7865
    %v7867 = vpop.f32.mrb[0].mxu0
    %v7868 = vadd.f32 %v6688, %v7867
    %v7869 = vpop.f32.mrb[0].mxu0
    %v7870 = vadd.f32 %v6684, %v7869
    %v7871 = vpop.f32.mrb[0].mxu0
    %v7872 = vadd.f32 %v6688, %v7871
    %7873 = vmatprep.mubr.bf16.mxu0 %v6526
    %7874 = vmatmul.mubr.bf16.gmra.mrb[0].mxu0 %v6525
    %v7875 = vpop.f32.mrb[0].mxu0
    %v7876 = vadd.f32 %v6684, %v7875
    %v7877 = vpop.f32.mrb[0].mxu0
    %v7878 = vadd.f32 %v6688, %v7877
    %v7879 = vpop.f32.mrb[0].mxu0
    %v7880 = vadd.f32 %v6684, %v7879
    %v7881 = vpop.f32.mrb[0].mxu0
    %v7882 = vadd.f32 %v6688, %v7881
    %7883 = vmatprep.mubr.bf16.mxu0 %v6528
    %7884 = vmatmul.mubr.bf16.gmra.mrb[0].mxu0 %v6527
    %v7885 = vpop.f32.mrb[0].mxu0
    %v7886 = vadd.f32 %v6684, %v7885
    %v7887 = vpop.f32.mrb[0].mxu0
    %v7888 = vadd.f32 %v6688, %v7887
    %v7889 = vpop.f32.mrb[0].mxu0
    %v7890 = vadd.f32 %v6684, %v7889
    %v7891 = vpop.f32.mrb[0].mxu0
    %v7892 = vadd.f32 %v6688, %v7891
    %7893 = vmatprep.mubr.bf16.mxu0 %v6530
    %7894 = vmatmul.mubr.bf16.gmra.mrb[0].mxu0 %v6529
    %v7895 = vpop.f32.mrb[0].mxu0
    %v7896 = vadd.f32 %v6684, %v7895
    %v7897 = vpop.f32.mrb[0].mxu0
    %v7898 = vadd.f32 %v6688, %v7897
    %v7899 = vpop.f32.mrb[0].mxu0
    %v7900 = vadd.f32 %v6684, %v7899
    %v7901 = vpop.f32.mrb[0].mxu0
    %v7902 = vadd.f32 %v6688, %v7901
    %7903 = vmatprep.mubr.bf16.mxu0 %v6532
    %7904 = vmatmul.mubr.bf16.gmra.mrb[0].mxu0 %v6531
    %v7905 = vpop.f32.mrb[0].mxu0
    %v7906 = vadd.f32 %v6684, %v7905
    %v7907 = vpop.f32.mrb[0].mxu0
    %v7908 = vadd.f32 %v6688, %v7907
    %v7909 = vpop.f32.mrb[0].mxu0
    %v7910 = vadd.f32 %v6684, %v7909
    %v7911 = vpop.f32.mrb[0].mxu0
    %v7912 = vadd.f32 %v6688, %v7911
    %7913 = vmatprep.mubr.bf16.mxu0 %v6534
    %7914 = vmatmul.mubr.bf16.gmra.mrb[0].mxu0 %v6533
    %v7915 = vpop.f32.mrb[0].mxu0
    %v7916 = vadd.f32 %v6684, %v7915
    %v7917 = vpop.f32.mrb[0].mxu0
    %v7918 = vadd.f32 %v6688, %v7917
    %v7919 = vpop.f32.mrb[0].mxu0
    %v7920 = vadd.f32 %v6684, %v7919
    %v7921 = vpop.f32.mrb[0].mxu0
    %v7922 = vadd.f32 %v6688, %v7921
    %7923 = vdwg.mxu0
    %7924 = vmatprep.subr.bf16.mxu0 %v7096
    %7925 = vmatpush1.bf16.msra.mxu0 %v7095
    %7926 = vmatprep.subr.bf16.mxu0 %v7104
    %7927 = vmatpush1.bf16.msra.mxu0 %v7103
    %7928 = vmatprep.subr.bf16.mxu0 %v7112
    %7929 = vmatpush1.bf16.msra.mxu0 %v7111
    %7930 = vmatprep.subr.bf16.mxu0 %v7120
    %7931 = vmatpush1.bf16.msra.mxu0 %v7119
    %7932 = vmatprep.subr.bf16.mxu0 %v7128
    %7933 = vmatpush1.bf16.msra.mxu0 %v7127
    %7934 = vmatprep.subr.bf16.mxu0 %v7136
    %7935 = vmatpush1.bf16.msra.mxu0 %v7135
    %7936 = vmatprep.subr.bf16.mxu0 %v7144
    %7937 = vmatpush1.bf16.msra.mxu0 %v7143
    %7938 = vmatprep.subr.bf16.mxu0 %v7152
    %7939 = vmatpush1.bf16.msra.mxu0 %v7151
    %7940 = vmatprep.subr.bf16.mxu0 %v7160
    %7941 = vmatpush1.bf16.msra.mxu0 %v7159
    %7942 = vmatprep.subr.bf16.mxu0 %v7168
    %7943 = vmatpush1.bf16.msra.mxu0 %v7167
    %7944 = vmatprep.subr.bf16.mxu0 %v7176
    %7945 = vmatpush1.bf16.msra.mxu0 %v7175
    %7946 = vmatprep.subr.bf16.mxu0 %v7184
    %7947 = vmatpush1.bf16.msra.mxu0 %v7183
    %7948 = vmatprep.subr.bf16.mxu0 %v7192
    %7949 = vmatpush1.bf16.msra.mxu0 %v7191
    %7950 = vmatprep.subr.bf16.mxu0 %v7200
    %7951 = vmatpush1.bf16.msra.mxu0 %v7199
    %7952 = vmatprep.subr.bf16.mxu0 %v7208
    %7953 = vmatpush1.bf16.msra.mxu0 %v7207
    %7954 = vmatprep.subr.bf16.mxu0 %v7216
    %7955 = vmatpush1.bf16.msra.mxu0 %v7215
    %7956 = vmatprep.mubr.bf16.mxu0 %v6504
    %7957 = vmatmul.mubr.bf16.gmra.mrb[0].mxu0 %v6503
    %v7958 = vpop.f32.mrb[0].mxu0
    %v7959 = vadd.f32 %v6692, %v7958
    %v7960 = vpop.f32.mrb[0].mxu0
    %v7961 = vadd.f32 %v6696, %v7960
    %v7962 = vpop.f32.mrb[0].mxu0
    %v7963 = vadd.f32 %v6692, %v7962
    %v7964 = vpop.f32.mrb[0].mxu0
    %v7965 = vadd.f32 %v6696, %v7964
    %7966 = vmatprep.mubr.bf16.mxu0 %v6506
    %7967 = vmatmul.mubr.bf16.gmra.mrb[0].mxu0 %v6505
    %v7968 = vpop.f32.mrb[0].mxu0
    %v7969 = vadd.f32 %v6692, %v7968
    %v7970 = vpop.f32.mrb[0].mxu0
    %v7971 = vadd.f32 %v6696, %v7970
    %v7972 = vpop.f32.mrb[0].mxu0
    %v7973 = vadd.f32 %v6692, %v7972
    %v7974 = vpop.f32.mrb[0].mxu0
    %v7975 = vadd.f32 %v6696, %v7974
    %7976 = vmatprep.mubr.bf16.mxu0 %v6508
    %7977 = vmatmul.mubr.bf16.gmra.mrb[0].mxu0 %v6507
    %v7978 = vpop.f32.mrb[0].mxu0
    %v7979 = vadd.f32 %v6692, %v7978
    %v7980 = vpop.f32.mrb[0].mxu0
    %v7981 = vadd.f32 %v6696, %v7980
    %v7982 = vpop.f32.mrb[0].mxu0
    %v7983 = vadd.f32 %v6692, %v7982
    %v7984 = vpop.f32.mrb[0].mxu0
    %v7985 = vadd.f32 %v6696, %v7984
    %7986 = vmatprep.mubr.bf16.mxu0 %v6510
    %7987 = vmatmul.mubr.bf16.gmra.mrb[0].mxu0 %v6509
    %v7988 = vpop.f32.mrb[0].mxu0
    %v7989 = vadd.f32 %v6692, %v7988
    %v7990 = vpop.f32.mrb[0].mxu0
    %v7991 = vadd.f32 %v6696, %v7990
    %v7992 = vpop.f32.mrb[0].mxu0
    %v7993 = vadd.f32 %v6692, %v7992
    %v7994 = vpop.f32.mrb[0].mxu0
    %v7995 = vadd.f32 %v6696, %v7994
    %7996 = vmatprep.mubr.bf16.mxu0 %v6512
    %7997 = vmatmul.mubr.bf16.gmra.mrb[0].mxu0 %v6511
    %v7998 = vpop.f32.mrb[0].mxu0
    %v7999 = vadd.f32 %v6692, %v7998
    %v8000 = vpop.f32.mrb[0].mxu0
    %v8001 = vadd.f32 %v6696, %v8000
    %v8002 = vpop.f32.mrb[0].mxu0
    %v8003 = vadd.f32 %v6692, %v8002
    %v8004 = vpop.f32.mrb[0].mxu0
    %v8005 = vadd.f32 %v6696, %v8004
    %8006 = vmatprep.mubr.bf16.mxu0 %v6514
    %8007 = vmatmul.mubr.bf16.gmra.mrb[0].mxu0 %v6513
    %v8008 = vpop.f32.mrb[0].mxu0
    %v8009 = vadd.f32 %v6692, %v8008
    %v8010 = vpop.f32.mrb[0].mxu0
    %v8011 = vadd.f32 %v6696, %v8010
    %v8012 = vpop.f32.mrb[0].mxu0
    %v8013 = vadd.f32 %v6692, %v8012
    %v8014 = vpop.f32.mrb[0].mxu0
    %v8015 = vadd.f32 %v6696, %v8014
    %8016 = vmatprep.mubr.bf16.mxu0 %v6516
    %8017 = vmatmul.mubr.bf16.gmra.mrb[0].mxu0 %v6515
    %v8018 = vpop.f32.mrb[0].mxu0
    %v8019 = vadd.f32 %v6692, %v8018
    %v8020 = vpop.f32.mrb[0].mxu0
    %v8021 = vadd.f32 %v6696, %v8020
    %v8022 = vpop.f32.mrb[0].mxu0
    %v8023 = vadd.f32 %v6692, %v8022
    %v8024 = vpop.f32.mrb[0].mxu0
    %v8025 = vadd.f32 %v6696, %v8024
    %8026 = vmatprep.mubr.bf16.mxu0 %v6518
    %8027 = vmatmul.mubr.bf16.gmra.mrb[0].mxu0 %v6517
    %v8028 = vpop.f32.mrb[0].mxu0
    %v8029 = vadd.f32 %v6692, %v8028
    %v8030 = vpop.f32.mrb[0].mxu0
    %v8031 = vadd.f32 %v6696, %v8030
    %v8032 = vpop.f32.mrb[0].mxu0
    %v8033 = vadd.f32 %v6692, %v8032
    %v8034 = vpop.f32.mrb[0].mxu0
    %v8035 = vadd.f32 %v6696, %v8034
    %8036 = vmatprep.mubr.bf16.mxu0 %v6520
    %8037 = vmatmul.mubr.bf16.gmra.mrb[0].mxu0 %v6519
    %v8038 = vpop.f32.mrb[0].mxu0
    %v8039 = vadd.f32 %v6692, %v8038
    %v8040 = vpop.f32.mrb[0].mxu0
    %v8041 = vadd.f32 %v6696, %v8040
    %v8042 = vpop.f32.mrb[0].mxu0
    %v8043 = vadd.f32 %v6692, %v8042
    %v8044 = vpop.f32.mrb[0].mxu0
    %v8045 = vadd.f32 %v6696, %v8044
    %8046 = vmatprep.mubr.bf16.mxu0 %v6522
    %8047 = vmatmul.mubr.bf16.gmra.mrb[0].mxu0 %v6521
    %v8048 = vpop.f32.mrb[0].mxu0
    %v8049 = vadd.f32 %v6692, %v8048
    %v8050 = vpop.f32.mrb[0].mxu0
    %v8051 = vadd.f32 %v6696, %v8050
    %v8052 = vpop.f32.mrb[0].mxu0
    %v8053 = vadd.f32 %v6692, %v8052
    %v8054 = vpop.f32.mrb[0].mxu0
    %v8055 = vadd.f32 %v6696, %v8054
    %8056 = vmatprep.mubr.bf16.mxu0 %v6524
    %8057 = vmatmul.mubr.bf16.gmra.mrb[0].mxu0 %v6523
    %v8058 = vpop.f32.mrb[0].mxu0
    %v8059 = vadd.f32 %v6692, %v8058
    %v8060 = vpop.f32.mrb[0].mxu0
    %v8061 = vadd.f32 %v6696, %v8060
    %v8062 = vpop.f32.mrb[0].mxu0
    %v8063 = vadd.f32 %v6692, %v8062
    %v8064 = vpop.f32.mrb[0].mxu0
    %v8065 = vadd.f32 %v6696, %v8064
    %8066 = vmatprep.mubr.bf16.mxu0 %v6526
    %8067 = vmatmul.mubr.bf16.gmra.mrb[0].mxu0 %v6525
    %v8068 = vpop.f32.mrb[0].mxu0
    %v8069 = vadd.f32 %v6692, %v8068
    %v8070 = vpop.f32.mrb[0].mxu0
    %v8071 = vadd.f32 %v6696, %v8070
    %v8072 = vpop.f32.mrb[0].mxu0
    %v8073 = vadd.f32 %v6692, %v8072
    %v8074 = vpop.f32.mrb[0].mxu0
    %v8075 = vadd.f32 %v6696, %v8074
    %8076 = vmatprep.mubr.bf16.mxu0 %v6528
    %8077 = vmatmul.mubr.bf16.gmra.mrb[0].mxu0 %v6527
    %v8078 = vpop.f32.mrb[0].mxu0
    %v8079 = vadd.f32 %v6692, %v8078
    %v8080 = vpop.f32.mrb[0].mxu0
    %v8081 = vadd.f32 %v6696, %v8080
    %v8082 = vpop.f32.mrb[0].mxu0
    %v8083 = vadd.f32 %v6692, %v8082
    %v8084 = vpop.f32.mrb[0].mxu0
    %v8085 = vadd.f32 %v6696, %v8084
    %8086 = vmatprep.mubr.bf16.mxu0 %v6530
    %8087 = vmatmul.mubr.bf16.gmra.mrb[0].mxu0 %v6529
    %v8088 = vpop.f32.mrb[0].mxu0
    %v8089 = vadd.f32 %v6692, %v8088
    %v8090 = vpop.f32.mrb[0].mxu0
    %v8091 = vadd.f32 %v6696, %v8090
    %v8092 = vpop.f32.mrb[0].mxu0
    %v8093 = vadd.f32 %v6692, %v8092
    %v8094 = vpop.f32.mrb[0].mxu0
    %v8095 = vadd.f32 %v6696, %v8094
    %8096 = vmatprep.mubr.bf16.mxu0 %v6532
    %8097 = vmatmul.mubr.bf16.gmra.mrb[0].mxu0 %v6531
    %v8098 = vpop.f32.mrb[0].mxu0
    %v8099 = vadd.f32 %v6692, %v8098
    %v8100 = vpop.f32.mrb[0].mxu0
    %v8101 = vadd.f32 %v6696, %v8100
    %v8102 = vpop.f32.mrb[0].mxu0
    %v8103 = vadd.f32 %v6692, %v8102
    %v8104 = vpop.f32.mrb[0].mxu0
    %v8105 = vadd.f32 %v6696, %v8104
    %8106 = vmatprep.mubr.bf16.mxu0 %v6534
    %8107 = vmatmul.mubr.bf16.gmra.mrb[0].mxu0 %v6533
    %v8108 = vpop.f32.mrb[0].mxu0
    %v8109 = vadd.f32 %v6692, %v8108
    %v8110 = vpop.f32.mrb[0].mxu0
    %v8111 = vadd.f32 %v6696, %v8110
    %v8112 = vpop.f32.mrb[0].mxu0
    %v8113 = vadd.f32 %v6692, %v8112
    %v8114 = vpop.f32.mrb[0].mxu0
    %v8115 = vadd.f32 %v6696, %v8114
    %8116 = vdwg.mxu0
    %v8117 = vmul.f32 %v7380, 0.5
    %v8118 = vmul.f32 %v7382, 0.5
    %v8119 = vmul.f32 %v7573, 0.5
    %v8120 = vmul.f32 %v7575, 0.5
    %v8121 = vmul.f32 %v7766, 0.5
    %v8122 = vmul.f32 %v7768, 0.5
    %v8123 = vmul.f32 %v7959, 0.5
    %v8124 = vmul.f32 %v7961, 0.5
    %v8125 = vmul.f32 %v7384, 0.5
    %v8126 = vmul.f32 %v7386, 0.5
    %v8127 = vmul.f32 %v7577, 0.5
    %v8128 = vmul.f32 %v7579, 0.5
    %v8129 = vmul.f32 %v7770, 0.5
    %v8130 = vmul.f32 %v7772, 0.5
    %v8131 = vmul.f32 %v7963, 0.5
    %v8132 = vmul.f32 %v7965, 0.5
    %v8133 = vmul.f32 %v7390, 0.5
    %v8134 = vmul.f32 %v7392, 0.5
    %v8135 = vmul.f32 %v7583, 0.5
    %v8136 = vmul.f32 %v7585, 0.5
    %v8137 = vmul.f32 %v7776, 0.5
    %v8138 = vmul.f32 %v7778, 0.5
    %v8139 = vmul.f32 %v7969, 0.5
    %v8140 = vmul.f32 %v7971, 0.5
    %v8141 = vmul.f32 %v7394, 0.5
    %v8142 = vmul.f32 %v7396, 0.5
    %v8143 = vmul.f32 %v7587, 0.5
    %v8144 = vmul.f32 %v7589, 0.5
    %v8145 = vmul.f32 %v7780, 0.5
    %v8146 = vmul.f32 %v7782, 0.5
    %v8147 = vmul.f32 %v7973, 0.5
    %v8148 = vmul.f32 %v7975, 0.5
    %v8149 = vmul.f32 %v7400, 0.5
    %v8150 = vmul.f32 %v7402, 0.5
    %v8151 = vmul.f32 %v7593, 0.5
    %v8152 = vmul.f32 %v7595, 0.5
    %v8153 = vmul.f32 %v7786, 0.5
    %v8154 = vmul.f32 %v7788, 0.5
    %v8155 = vmul.f32 %v7979, 0.5
    %v8156 = vmul.f32 %v7981, 0.5
    %v8157 = vmul.f32 %v7404, 0.5
    %v8158 = vmul.f32 %v7406, 0.5
    %v8159 = vmul.f32 %v7597, 0.5
    %v8160 = vmul.f32 %v7599, 0.5
    %v8161 = vmul.f32 %v7790, 0.5
    %v8162 = vmul.f32 %v7792, 0.5
    %v8163 = vmul.f32 %v7983, 0.5
    %v8164 = vmul.f32 %v7985, 0.5
    %v8165 = vmul.f32 %v7410, 0.5
    %v8166 = vmul.f32 %v7412, 0.5
    %v8167 = vmul.f32 %v7603, 0.5
    %v8168 = vmul.f32 %v7605, 0.5
    %v8169 = vmul.f32 %v7796, 0.5
    %v8170 = vmul.f32 %v7798, 0.5
    %v8171 = vmul.f32 %v7989, 0.5
    %v8172 = vmul.f32 %v7991, 0.5
    %v8173 = vmul.f32 %v7414, 0.5
    %v8174 = vmul.f32 %v7416, 0.5
    %v8175 = vmul.f32 %v7607, 0.5
    %v8176 = vmul.f32 %v7609, 0.5
    %v8177 = vmul.f32 %v7800, 0.5
    %v8178 = vmul.f32 %v7802, 0.5
    %v8179 = vmul.f32 %v7993, 0.5
    %v8180 = vmul.f32 %v7995, 0.5
    %v8181 = vmul.f32 %v7420, 0.5
    %v8182 = vmul.f32 %v7422, 0.5
    %v8183 = vmul.f32 %v7613, 0.5
    %v8184 = vmul.f32 %v7615, 0.5
    %v8185 = vmul.f32 %v7806, 0.5
    %v8186 = vmul.f32 %v7808, 0.5
    %v8187 = vmul.f32 %v7999, 0.5
    %v8188 = vmul.f32 %v8001, 0.5
    %v8189 = vmul.f32 %v7424, 0.5
    %v8190 = vmul.f32 %v7426, 0.5
    %v8191 = vmul.f32 %v7617, 0.5
    %v8192 = vmul.f32 %v7619, 0.5
    %v8193 = vmul.f32 %v7810, 0.5
    %v8194 = vmul.f32 %v7812, 0.5
    %v8195 = vmul.f32 %v8003, 0.5
    %v8196 = vmul.f32 %v8005, 0.5
    %v8197 = vmul.f32 %v7430, 0.5
    %v8198 = vmul.f32 %v7432, 0.5
    %v8199 = vmul.f32 %v7623, 0.5
    %v8200 = vmul.f32 %v7625, 0.5
    %v8201 = vmul.f32 %v7816, 0.5
    %v8202 = vmul.f32 %v7818, 0.5
    %v8203 = vmul.f32 %v8009, 0.5
    %v8204 = vmul.f32 %v8011, 0.5
    %v8205 = vmul.f32 %v7434, 0.5
    %v8206 = vmul.f32 %v7436, 0.5
    %v8207 = vmul.f32 %v7627, 0.5
    %v8208 = vmul.f32 %v7629, 0.5
    %v8209 = vmul.f32 %v7820, 0.5
    %v8210 = vmul.f32 %v7822, 0.5
    %v8211 = vmul.f32 %v8013, 0.5
    %v8212 = vmul.f32 %v8015, 0.5
    %v8213 = vmul.f32 %v7440, 0.5
    %v8214 = vmul.f32 %v7442, 0.5
    %v8215 = vmul.f32 %v7633, 0.5
    %v8216 = vmul.f32 %v7635, 0.5
    %v8217 = vmul.f32 %v7826, 0.5
    %v8218 = vmul.f32 %v7828, 0.5
    %v8219 = vmul.f32 %v8019, 0.5
    %v8220 = vmul.f32 %v8021, 0.5
    %v8221 = vmul.f32 %v7444, 0.5
    %v8222 = vmul.f32 %v7446, 0.5
    %v8223 = vmul.f32 %v7637, 0.5
    %v8224 = vmul.f32 %v7639, 0.5
    %v8225 = vmul.f32 %v7830, 0.5
    %v8226 = vmul.f32 %v7832, 0.5
    %v8227 = vmul.f32 %v8023, 0.5
    %v8228 = vmul.f32 %v8025, 0.5
    %v8229 = vmul.f32 %v7450, 0.5
    %v8230 = vmul.f32 %v7452, 0.5
    %v8231 = vmul.f32 %v7643, 0.5
    %v8232 = vmul.f32 %v7645, 0.5
    %v8233 = vmul.f32 %v7836, 0.5
    %v8234 = vmul.f32 %v7838, 0.5
    %v8235 = vmul.f32 %v8029, 0.5
    %v8236 = vmul.f32 %v8031, 0.5
    %v8237 = vmul.f32 %v7454, 0.5
    %v8238 = vmul.f32 %v7456, 0.5
    %v8239 = vmul.f32 %v7647, 0.5
    %v8240 = vmul.f32 %v7649, 0.5
    %v8241 = vmul.f32 %v7840, 0.5
    %v8242 = vmul.f32 %v7842, 0.5
    %v8243 = vmul.f32 %v8033, 0.5
    %v8244 = vmul.f32 %v8035, 0.5
    %v8245 = vmul.f32 %v7460, 0.5
    %v8246 = vmul.f32 %v7462, 0.5
    %v8247 = vmul.f32 %v7653, 0.5
    %v8248 = vmul.f32 %v7655, 0.5
    %v8249 = vmul.f32 %v7846, 0.5
    %v8250 = vmul.f32 %v7848, 0.5
    %v8251 = vmul.f32 %v8039, 0.5
    %v8252 = vmul.f32 %v8041, 0.5
    %v8253 = vmul.f32 %v7464, 0.5
    %v8254 = vmul.f32 %v7466, 0.5
    %v8255 = vmul.f32 %v7657, 0.5
    %v8256 = vmul.f32 %v7659, 0.5
    %v8257 = vmul.f32 %v7850, 0.5
    %v8258 = vmul.f32 %v7852, 0.5
    %v8259 = vmul.f32 %v8043, 0.5
    %v8260 = vmul.f32 %v8045, 0.5
    %v8261 = vmul.f32 %v7470, 0.5
    %v8262 = vmul.f32 %v7472, 0.5
    %v8263 = vmul.f32 %v7663, 0.5
    %v8264 = vmul.f32 %v7665, 0.5
    %v8265 = vmul.f32 %v7856, 0.5
    %v8266 = vmul.f32 %v7858, 0.5
    %v8267 = vmul.f32 %v8049, 0.5
    %v8268 = vmul.f32 %v8051, 0.5
    %v8269 = vmul.f32 %v7474, 0.5
    %v8270 = vmul.f32 %v7476, 0.5
    %v8271 = vmul.f32 %v7667, 0.5
    %v8272 = vmul.f32 %v7669, 0.5
    %v8273 = vmul.f32 %v7860, 0.5
    %v8274 = vmul.f32 %v7862, 0.5
    %v8275 = vmul.f32 %v8053, 0.5
    %v8276 = vmul.f32 %v8055, 0.5
    %v8277 = vmul.f32 %v7480, 0.5
    %v8278 = vmul.f32 %v7482, 0.5
    %v8279 = vmul.f32 %v7673, 0.5
    %v8280 = vmul.f32 %v7675, 0.5
    %v8281 = vmul.f32 %v7866, 0.5
    %v8282 = vmul.f32 %v7868, 0.5
    %v8283 = vmul.f32 %v8059, 0.5
    %v8284 = vmul.f32 %v8061, 0.5
    %v8285 = vmul.f32 %v7484, 0.5
    %v8286 = vmul.f32 %v7486, 0.5
    %v8287 = vmul.f32 %v7677, 0.5
    %v8288 = vmul.f32 %v7679, 0.5
    %v8289 = vmul.f32 %v7870, 0.5
    %v8290 = vmul.f32 %v7872, 0.5
    %v8291 = vmul.f32 %v8063, 0.5
    %v8292 = vmul.f32 %v8065, 0.5
    %v8293 = vmul.f32 %v7490, 0.5
    %v8294 = vmul.f32 %v7492, 0.5
    %v8295 = vmul.f32 %v7683, 0.5
    %v8296 = vmul.f32 %v7685, 0.5
    %v8297 = vmul.f32 %v7876, 0.5
    %v8298 = vmul.f32 %v7878, 0.5
    %v8299 = vmul.f32 %v8069, 0.5
    %v8300 = vmul.f32 %v8071, 0.5
    %v8301 = vmul.f32 %v7494, 0.5
    %v8302 = vmul.f32 %v7496, 0.5
    %v8303 = vmul.f32 %v7687, 0.5
    %v8304 = vmul.f32 %v7689, 0.5
    %v8305 = vmul.f32 %v7880, 0.5
    %v8306 = vmul.f32 %v7882, 0.5
    %v8307 = vmul.f32 %v8073, 0.5
    %v8308 = vmul.f32 %v8075, 0.5
    %v8309 = vmul.f32 %v7500, 0.5
    %v8310 = vmul.f32 %v7502, 0.5
    %v8311 = vmul.f32 %v7693, 0.5
    %v8312 = vmul.f32 %v7695, 0.5
    %v8313 = vmul.f32 %v7886, 0.5
    %v8314 = vmul.f32 %v7888, 0.5
    %v8315 = vmul.f32 %v8079, 0.5
    %v8316 = vmul.f32 %v8081, 0.5
    %v8317 = vmul.f32 %v7504, 0.5
    %v8318 = vmul.f32 %v7506, 0.5
    %v8319 = vmul.f32 %v7697, 0.5
    %v8320 = vmul.f32 %v7699, 0.5
    %v8321 = vmul.f32 %v7890, 0.5
    %v8322 = vmul.f32 %v7892, 0.5
    %v8323 = vmul.f32 %v8083, 0.5
    %v8324 = vmul.f32 %v8085, 0.5
    %v8325 = vmul.f32 %v7510, 0.5
    %v8326 = vmul.f32 %v7512, 0.5
    %v8327 = vmul.f32 %v7703, 0.5
    %v8328 = vmul.f32 %v7705, 0.5
    %v8329 = vmul.f32 %v7896, 0.5
    %v8330 = vmul.f32 %v7898, 0.5
    %v8331 = vmul.f32 %v8089, 0.5
    %v8332 = vmul.f32 %v8091, 0.5
    %v8333 = vmul.f32 %v7514, 0.5
    %v8334 = vmul.f32 %v7516, 0.5
    %v8335 = vmul.f32 %v7707, 0.5
    %v8336 = vmul.f32 %v7709, 0.5
    %v8337 = vmul.f32 %v7900, 0.5
    %v8338 = vmul.f32 %v7902, 0.5
    %v8339 = vmul.f32 %v8093, 0.5
    %v8340 = vmul.f32 %v8095, 0.5
    %v8341 = vmul.f32 %v7520, 0.5
    %v8342 = vmul.f32 %v7522, 0.5
    %v8343 = vmul.f32 %v7713, 0.5
    %v8344 = vmul.f32 %v7715, 0.5
    %v8345 = vmul.f32 %v7906, 0.5
    %v8346 = vmul.f32 %v7908, 0.5
    %v8347 = vmul.f32 %v8099, 0.5
    %v8348 = vmul.f32 %v8101, 0.5
    %v8349 = vmul.f32 %v7524, 0.5
    %v8350 = vmul.f32 %v7526, 0.5
    %v8351 = vmul.f32 %v7717, 0.5
    %v8352 = vmul.f32 %v7719, 0.5
    %v8353 = vmul.f32 %v7910, 0.5
    %v8354 = vmul.f32 %v7912, 0.5
    %v8355 = vmul.f32 %v8103, 0.5
    %v8356 = vmul.f32 %v8105, 0.5
    %v8357 = vmul.f32 %v7530, 0.5
    %v8358 = vmul.f32 %v7532, 0.5
    %v8359 = vmul.f32 %v7723, 0.5
    %v8360 = vmul.f32 %v7725, 0.5
    %v8361 = vmul.f32 %v7916, 0.5
    %v8362 = vmul.f32 %v7918, 0.5
    %v8363 = vmul.f32 %v8109, 0.5
    %v8364 = vmul.f32 %v8111, 0.5
    %v8365 = vmul.f32 %v7534, 0.5
    %v8366 = vmul.f32 %v7536, 0.5
    %v8367 = vmul.f32 %v7727, 0.5
    %v8368 = vmul.f32 %v7729, 0.5
    %v8369 = vmul.f32 %v7920, 0.5
    %v8370 = vmul.f32 %v7922, 0.5
    %v8371 = vmul.f32 %v8113, 0.5
    %v8372 = vmul.f32 %v8115, 0.5
    %v8373 = vmul.f32 %v7380, 0.70710677
    %v8374 = vmul.f32 %v7382, 0.70710677
    %v8375 = vmul.f32 %v7573, 0.70710677
    %v8376 = vmul.f32 %v7575, 0.70710677
    %v8377 = vmul.f32 %v7766, 0.70710677
    %v8378 = vmul.f32 %v7768, 0.70710677
    %v8379 = vmul.f32 %v7959, 0.70710677
    %v8380 = vmul.f32 %v7961, 0.70710677
    %v8381 = vmul.f32 %v7384, 0.70710677
    %v8382 = vmul.f32 %v7386, 0.70710677
    %v8383 = vmul.f32 %v7577, 0.70710677
    %v8384 = vmul.f32 %v7579, 0.70710677
    %v8385 = vmul.f32 %v7770, 0.70710677
    %v8386 = vmul.f32 %v7772, 0.70710677
    %v8387 = vmul.f32 %v7963, 0.70710677
    %v8388 = vmul.f32 %v7965, 0.70710677
    %v8389 = vmul.f32 %v7390, 0.70710677
    %v8390 = vmul.f32 %v7392, 0.70710677
    %v8391 = vmul.f32 %v7583, 0.70710677
    %v8392 = vmul.f32 %v7585, 0.70710677
    %v8393 = vmul.f32 %v7776, 0.70710677
    %v8394 = vmul.f32 %v7778, 0.70710677
    %v8395 = vmul.f32 %v7969, 0.70710677
    %v8396 = vmul.f32 %v7971, 0.70710677
    %v8397 = vmul.f32 %v7394, 0.70710677
    %v8398 = vmul.f32 %v7396, 0.70710677
    %v8399 = vmul.f32 %v7587, 0.70710677
    %v8400 = vmul.f32 %v7589, 0.70710677
    %v8401 = vmul.f32 %v7780, 0.70710677
    %v8402 = vmul.f32 %v7782, 0.70710677
    %v8403 = vmul.f32 %v7973, 0.70710677
    %v8404 = vmul.f32 %v7975, 0.70710677
    %v8405 = vmul.f32 %v7400, 0.70710677
    %v8406 = vmul.f32 %v7402, 0.70710677
    %v8407 = vmul.f32 %v7593, 0.70710677
    %v8408 = vmul.f32 %v7595, 0.70710677
    %v8409 = vmul.f32 %v7786, 0.70710677
    %v8410 = vmul.f32 %v7788, 0.70710677
    %v8411 = vmul.f32 %v7979, 0.70710677
    %v8412 = vmul.f32 %v7981, 0.70710677
    %v8413 = vmul.f32 %v7404, 0.70710677
    %v8414 = vmul.f32 %v7406, 0.70710677
    %v8415 = vmul.f32 %v7597, 0.70710677
    %v8416 = vmul.f32 %v7599, 0.70710677
    %v8417 = vmul.f32 %v7790, 0.70710677
    %v8418 = vmul.f32 %v7792, 0.70710677
    %v8419 = vmul.f32 %v7983, 0.70710677
    %v8420 = vmul.f32 %v7985, 0.70710677
    %v8421 = vmul.f32 %v7410, 0.70710677
    %v8422 = vmul.f32 %v7412, 0.70710677
    %v8423 = vmul.f32 %v7603, 0.70710677
    %v8424 = vmul.f32 %v7605, 0.70710677
    %v8425 = vmul.f32 %v7796, 0.70710677
    %v8426 = vmul.f32 %v7798, 0.70710677
    %v8427 = vmul.f32 %v7989, 0.70710677
    %v8428 = vmul.f32 %v7991, 0.70710677
    %v8429 = vmul.f32 %v7414, 0.70710677
    %v8430 = vmul.f32 %v7416, 0.70710677
    %v8431 = vmul.f32 %v7607, 0.70710677
    %v8432 = vmul.f32 %v7609, 0.70710677
    %v8433 = vmul.f32 %v7800, 0.70710677
    %v8434 = vmul.f32 %v7802, 0.70710677
    %v8435 = vmul.f32 %v7993, 0.70710677
    %v8436 = vmul.f32 %v7995, 0.70710677
    %v8437 = vmul.f32 %v7420, 0.70710677
    %v8438 = vmul.f32 %v7422, 0.70710677
    %v8439 = vmul.f32 %v7613, 0.70710677
    %v8440 = vmul.f32 %v7615, 0.70710677
    %v8441 = vmul.f32 %v7806, 0.70710677
    %v8442 = vmul.f32 %v7808, 0.70710677
    %v8443 = vmul.f32 %v7999, 0.70710677
    %v8444 = vmul.f32 %v8001, 0.70710677
    %v8445 = vmul.f32 %v7424, 0.70710677
    %v8446 = vmul.f32 %v7426, 0.70710677
    %v8447 = vmul.f32 %v7617, 0.70710677
    %v8448 = vmul.f32 %v7619, 0.70710677
    %v8449 = vmul.f32 %v7810, 0.70710677
    %v8450 = vmul.f32 %v7812, 0.70710677
    %v8451 = vmul.f32 %v8003, 0.70710677
    %v8452 = vmul.f32 %v8005, 0.70710677
    %v8453 = vmul.f32 %v7430, 0.70710677
    %v8454 = vmul.f32 %v7432, 0.70710677
    %v8455 = vmul.f32 %v7623, 0.70710677
    %v8456 = vmul.f32 %v7625, 0.70710677
    %v8457 = vmul.f32 %v7816, 0.70710677
    %v8458 = vmul.f32 %v7818, 0.70710677
    %v8459 = vmul.f32 %v8009, 0.70710677
    %v8460 = vmul.f32 %v8011, 0.70710677
    %v8461 = vmul.f32 %v7434, 0.70710677
    %v8462 = vmul.f32 %v7436, 0.70710677
    %v8463 = vmul.f32 %v7627, 0.70710677
    %v8464 = vmul.f32 %v7629, 0.70710677
    %v8465 = vmul.f32 %v7820, 0.70710677
    %v8466 = vmul.f32 %v7822, 0.70710677
    %v8467 = vmul.f32 %v8013, 0.70710677
    %v8468 = vmul.f32 %v8015, 0.70710677
    %v8469 = vmul.f32 %v7440, 0.70710677
    %v8470 = vmul.f32 %v7442, 0.70710677
    %v8471 = vmul.f32 %v7633, 0.70710677
    %v8472 = vmul.f32 %v7635, 0.70710677
    %v8473 = vmul.f32 %v7826, 0.70710677
    %v8474 = vmul.f32 %v7828, 0.70710677
    %v8475 = vmul.f32 %v8019, 0.70710677
    %v8476 = vmul.f32 %v8021, 0.70710677
    %v8477 = vmul.f32 %v7444, 0.70710677
    %v8478 = vmul.f32 %v7446, 0.70710677
    %v8479 = vmul.f32 %v7637, 0.70710677
    %v8480 = vmul.f32 %v7639, 0.70710677
    %v8481 = vmul.f32 %v7830, 0.70710677
    %v8482 = vmul.f32 %v7832, 0.70710677
    %v8483 = vmul.f32 %v8023, 0.70710677
    %v8484 = vmul.f32 %v8025, 0.70710677
    %v8485 = vmul.f32 %v7450, 0.70710677
    %v8486 = vmul.f32 %v7452, 0.70710677
    %v8487 = vmul.f32 %v7643, 0.70710677
    %v8488 = vmul.f32 %v7645, 0.70710677
    %v8489 = vmul.f32 %v7836, 0.70710677
    %v8490 = vmul.f32 %v7838, 0.70710677
    %v8491 = vmul.f32 %v8029, 0.70710677
    %v8492 = vmul.f32 %v8031, 0.70710677
    %v8493 = vmul.f32 %v7454, 0.70710677
    %v8494 = vmul.f32 %v7456, 0.70710677
    %v8495 = vmul.f32 %v7647, 0.70710677
    %v8496 = vmul.f32 %v7649, 0.70710677
    %v8497 = vmul.f32 %v7840, 0.70710677
    %v8498 = vmul.f32 %v7842, 0.70710677
    %v8499 = vmul.f32 %v8033, 0.70710677
    %v8500 = vmul.f32 %v8035, 0.70710677
    %v8501 = vmul.f32 %v7460, 0.70710677
    %v8502 = vmul.f32 %v7462, 0.70710677
    %v8503 = vmul.f32 %v7653, 0.70710677
    %v8504 = vmul.f32 %v7655, 0.70710677
    %v8505 = vmul.f32 %v7846, 0.70710677
    %v8506 = vmul.f32 %v7848, 0.70710677
    %v8507 = vmul.f32 %v8039, 0.70710677
    %v8508 = vmul.f32 %v8041, 0.70710677
    %v8509 = vmul.f32 %v7464, 0.70710677
    %v8510 = vmul.f32 %v7466, 0.70710677
    %v8511 = vmul.f32 %v7657, 0.70710677
    %v8512 = vmul.f32 %v7659, 0.70710677
    %v8513 = vmul.f32 %v7850, 0.70710677
    %v8514 = vmul.f32 %v7852, 0.70710677
    %v8515 = vmul.f32 %v8043, 0.70710677
    %v8516 = vmul.f32 %v8045, 0.70710677
    %v8517 = vmul.f32 %v7470, 0.70710677
    %v8518 = vmul.f32 %v7472, 0.70710677
    %v8519 = vmul.f32 %v7663, 0.70710677
    %v8520 = vmul.f32 %v7665, 0.70710677
    %v8521 = vmul.f32 %v7856, 0.70710677
    %v8522 = vmul.f32 %v7858, 0.70710677
    %v8523 = vmul.f32 %v8049, 0.70710677
    %v8524 = vmul.f32 %v8051, 0.70710677
    %v8525 = vmul.f32 %v7474, 0.70710677
    %v8526 = vmul.f32 %v7476, 0.70710677
    %v8527 = vmul.f32 %v7667, 0.70710677
    %v8528 = vmul.f32 %v7669, 0.70710677
    %v8529 = vmul.f32 %v7860, 0.70710677
    %v8530 = vmul.f32 %v7862, 0.70710677
    %v8531 = vmul.f32 %v8053, 0.70710677
    %v8532 = vmul.f32 %v8055, 0.70710677
    %v8533 = vmul.f32 %v7480, 0.70710677
    %v8534 = vmul.f32 %v7482, 0.70710677
    %v8535 = vmul.f32 %v7673, 0.70710677
    %v8536 = vmul.f32 %v7675, 0.70710677
    %v8537 = vmul.f32 %v7866, 0.70710677
    %v8538 = vmul.f32 %v7868, 0.70710677
    %v8539 = vmul.f32 %v8059, 0.70710677
    %v8540 = vmul.f32 %v8061, 0.70710677
    %v8541 = vmul.f32 %v7484, 0.70710677
    %v8542 = vmul.f32 %v7486, 0.70710677
    %v8543 = vmul.f32 %v7677, 0.70710677
    %v8544 = vmul.f32 %v7679, 0.70710677
    %v8545 = vmul.f32 %v7870, 0.70710677
    %v8546 = vmul.f32 %v7872, 0.70710677
    %v8547 = vmul.f32 %v8063, 0.70710677
    %v8548 = vmul.f32 %v8065, 0.70710677
    %v8549 = vmul.f32 %v7490, 0.70710677
    %v8550 = vmul.f32 %v7492, 0.70710677
    %v8551 = vmul.f32 %v7683, 0.70710677
    %v8552 = vmul.f32 %v7685, 0.70710677
    %v8553 = vmul.f32 %v7876, 0.70710677
    %v8554 = vmul.f32 %v7878, 0.70710677
    %v8555 = vmul.f32 %v8069, 0.70710677
    %v8556 = vmul.f32 %v8071, 0.70710677
    %v8557 = vmul.f32 %v7494, 0.70710677
    %v8558 = vmul.f32 %v7496, 0.70710677
    %v8559 = vmul.f32 %v7687, 0.70710677
    %v8560 = vmul.f32 %v7689, 0.70710677
    %v8561 = vmul.f32 %v7880, 0.70710677
    %v8562 = vmul.f32 %v7882, 0.70710677
    %v8563 = vmul.f32 %v8073, 0.70710677
    %v8564 = vmul.f32 %v8075, 0.70710677
    %v8565 = vmul.f32 %v7500, 0.70710677
    %v8566 = vmul.f32 %v7502, 0.70710677
    %v8567 = vmul.f32 %v7693, 0.70710677
    %v8568 = vmul.f32 %v7695, 0.70710677
    %v8569 = vmul.f32 %v7886, 0.70710677
    %v8570 = vmul.f32 %v7888, 0.70710677
    %v8571 = vmul.f32 %v8079, 0.70710677
    %v8572 = vmul.f32 %v8081, 0.70710677
    %v8573 = vmul.f32 %v7504, 0.70710677
    %v8574 = vmul.f32 %v7506, 0.70710677
    %v8575 = vmul.f32 %v7697, 0.70710677
    %v8576 = vmul.f32 %v7699, 0.70710677
    %v8577 = vmul.f32 %v7890, 0.70710677
    %v8578 = vmul.f32 %v7892, 0.70710677
    %v8579 = vmul.f32 %v8083, 0.70710677
    %v8580 = vmul.f32 %v8085, 0.70710677
    %v8581 = vmul.f32 %v7510, 0.70710677
    %v8582 = vmul.f32 %v7512, 0.70710677
    %v8583 = vmul.f32 %v7703, 0.70710677
    %v8584 = vmul.f32 %v7705, 0.70710677
    %v8585 = vmul.f32 %v7896, 0.70710677
    %v8586 = vmul.f32 %v7898, 0.70710677
    %v8587 = vmul.f32 %v8089, 0.70710677
    %v8588 = vmul.f32 %v8091, 0.70710677
    %v8589 = vmul.f32 %v7514, 0.70710677
    %v8590 = vmul.f32 %v7516, 0.70710677
    %v8591 = vmul.f32 %v7707, 0.70710677
    %v8592 = vmul.f32 %v7709, 0.70710677
    %v8593 = vmul.f32 %v7900, 0.70710677
    %v8594 = vmul.f32 %v7902, 0.70710677
    %v8595 = vmul.f32 %v8093, 0.70710677
    %v8596 = vmul.f32 %v8095, 0.70710677
    %v8597 = vmul.f32 %v7520, 0.70710677
    %v8598 = vmul.f32 %v7522, 0.70710677
    %v8599 = vmul.f32 %v7713, 0.70710677
    %v8600 = vmul.f32 %v7715, 0.70710677
    %v8601 = vmul.f32 %v7906, 0.70710677
    %v8602 = vmul.f32 %v7908, 0.70710677
    %v8603 = vmul.f32 %v8099, 0.70710677
    %v8604 = vmul.f32 %v8101, 0.70710677
    %v8605 = vmul.f32 %v7524, 0.70710677
    %v8606 = vmul.f32 %v7526, 0.70710677
    %v8607 = vmul.f32 %v7717, 0.70710677
    %v8608 = vmul.f32 %v7719, 0.70710677
    %v8609 = vmul.f32 %v7910, 0.70710677
    %v8610 = vmul.f32 %v7912, 0.70710677
    %v8611 = vmul.f32 %v8103, 0.70710677
    %v8612 = vmul.f32 %v8105, 0.70710677
    %v8613 = vmul.f32 %v7530, 0.70710677
    %v8614 = vmul.f32 %v7532, 0.70710677
    %v8615 = vmul.f32 %v7723, 0.70710677
    %v8616 = vmul.f32 %v7725, 0.70710677
    %v8617 = vmul.f32 %v7916, 0.70710677
    %v8618 = vmul.f32 %v7918, 0.70710677
    %v8619 = vmul.f32 %v8109, 0.70710677
    %v8620 = vmul.f32 %v8111, 0.70710677
    %v8621 = vmul.f32 %v7534, 0.70710677
    %v8622 = vmul.f32 %v7536, 0.70710677
    %v8623 = vmul.f32 %v7727, 0.70710677
    %v8624 = vmul.f32 %v7729, 0.70710677
    %v8625 = vmul.f32 %v7920, 0.70710677
    %v8626 = vmul.f32 %v7922, 0.70710677
    %v8627 = vmul.f32 %v8113, 0.70710677
    %v8628 = vmul.f32 %v8115, 0.70710677
    %v8629 = verf.f32.pop %v8373
    %v8630 = verf.f32.pop %v8374
    %v8631 = verf.f32.pop %v8375
    %v8632 = verf.f32.pop %v8376
    %v8633 = verf.f32.pop %v8377
    %v8634 = verf.f32.pop %v8378
    %v8635 = verf.f32.pop %v8379
    %v8636 = verf.f32.pop %v8380
    %v8637 = verf.f32.pop %v8381
    %v8638 = verf.f32.pop %v8382
    %v8639 = verf.f32.pop %v8383
    %v8640 = verf.f32.pop %v8384
    %v8641 = verf.f32.pop %v8385
    %v8642 = verf.f32.pop %v8386
    %v8643 = verf.f32.pop %v8387
    %v8644 = verf.f32.pop %v8388
    %v8645 = verf.f32.pop %v8389
    %v8646 = verf.f32.pop %v8390
    %v8647 = verf.f32.pop %v8391
    %v8648 = verf.f32.pop %v8392
    %v8649 = verf.f32.pop %v8393
    %v8650 = verf.f32.pop %v8394
    %v8651 = verf.f32.pop %v8395
    %v8652 = verf.f32.pop %v8396
    %v8653 = verf.f32.pop %v8397
    %v8654 = verf.f32.pop %v8398
    %v8655 = verf.f32.pop %v8399
    %v8656 = verf.f32.pop %v8400
    %v8657 = verf.f32.pop %v8401
    %v8658 = verf.f32.pop %v8402
    %v8659 = verf.f32.pop %v8403
    %v8660 = verf.f32.pop %v8404
    %v8661 = verf.f32.pop %v8405
    %v8662 = verf.f32.pop %v8406
    %v8663 = verf.f32.pop %v8407
    %v8664 = verf.f32.pop %v8408
    %v8665 = verf.f32.pop %v8409
    %v8666 = verf.f32.pop %v8410
    %v8667 = verf.f32.pop %v8411
    %v8668 = verf.f32.pop %v8412
    %v8669 = verf.f32.pop %v8413
    %v8670 = verf.f32.pop %v8414
    %v8671 = verf.f32.pop %v8415
    %v8672 = verf.f32.pop %v8416
    %v8673 = verf.f32.pop %v8417
    %v8674 = verf.f32.pop %v8418
    %v8675 = verf.f32.pop %v8419
    %v8676 = verf.f32.pop %v8420
    %v8677 = verf.f32.pop %v8421
    %v8678 = verf.f32.pop %v8422
    %v8679 = verf.f32.pop %v8423
    %v8680 = verf.f32.pop %v8424
    %v8681 = verf.f32.pop %v8425
    %v8682 = verf.f32.pop %v8426
    %v8683 = verf.f32.pop %v8427
    %v8684 = verf.f32.pop %v8428
    %v8685 = verf.f32.pop %v8429
    %v8686 = verf.f32.pop %v8430
    %v8687 = verf.f32.pop %v8431
    %v8688 = verf.f32.pop %v8432
    %v8689 = verf.f32.pop %v8433
    %v8690 = verf.f32.pop %v8434
    %v8691 = verf.f32.pop %v8435
    %v8692 = verf.f32.pop %v8436
    %v8693 = verf.f32.pop %v8437
    %v8694 = verf.f32.pop %v8438
    %v8695 = verf.f32.pop %v8439
    %v8696 = verf.f32.pop %v8440
    %v8697 = verf.f32.pop %v8441
    %v8698 = verf.f32.pop %v8442
    %v8699 = verf.f32.pop %v8443
    %v8700 = verf.f32.pop %v8444
    %v8701 = verf.f32.pop %v8445
    %v8702 = verf.f32.pop %v8446
    %v8703 = verf.f32.pop %v8447
    %v8704 = verf.f32.pop %v8448
    %v8705 = verf.f32.pop %v8449
    %v8706 = verf.f32.pop %v8450
    %v8707 = verf.f32.pop %v8451
    %v8708 = verf.f32.pop %v8452
    %v8709 = verf.f32.pop %v8453
    %v8710 = verf.f32.pop %v8454
    %v8711 = verf.f32.pop %v8455
    %v8712 = verf.f32.pop %v8456
    %v8713 = verf.f32.pop %v8457
    %v8714 = verf.f32.pop %v8458
    %v8715 = verf.f32.pop %v8459
    %v8716 = verf.f32.pop %v8460
    %v8717 = verf.f32.pop %v8461
    %v8718 = verf.f32.pop %v8462
    %v8719 = verf.f32.pop %v8463
    %v8720 = verf.f32.pop %v8464
    %v8721 = verf.f32.pop %v8465
    %v8722 = verf.f32.pop %v8466
    %v8723 = verf.f32.pop %v8467
    %v8724 = verf.f32.pop %v8468
    %v8725 = verf.f32.pop %v8469
    %v8726 = verf.f32.pop %v8470
    %v8727 = verf.f32.pop %v8471
    %v8728 = verf.f32.pop %v8472
    %v8729 = verf.f32.pop %v8473
    %v8730 = verf.f32.pop %v8474
    %v8731 = verf.f32.pop %v8475
    %v8732 = verf.f32.pop %v8476
    %v8733 = verf.f32.pop %v8477
    %v8734 = verf.f32.pop %v8478
    %v8735 = verf.f32.pop %v8479
    %v8736 = verf.f32.pop %v8480
    %v8737 = verf.f32.pop %v8481
    %v8738 = verf.f32.pop %v8482
    %v8739 = verf.f32.pop %v8483
    %v8740 = verf.f32.pop %v8484
    %v8741 = verf.f32.pop %v8485
    %v8742 = verf.f32.pop %v8486
    %v8743 = verf.f32.pop %v8487
    %v8744 = verf.f32.pop %v8488
    %v8745 = verf.f32.pop %v8489
    %v8746 = verf.f32.pop %v8490
    %v8747 = verf.f32.pop %v8491
    %v8748 = verf.f32.pop %v8492
    %v8749 = verf.f32.pop %v8493
    %v8750 = verf.f32.pop %v8494
    %v8751 = verf.f32.pop %v8495
    %v8752 = verf.f32.pop %v8496
    %v8753 = verf.f32.pop %v8497
    %v8754 = verf.f32.pop %v8498
    %v8755 = verf.f32.pop %v8499
    %v8756 = verf.f32.pop %v8500
    %v8757 = verf.f32.pop %v8501
    %v8758 = verf.f32.pop %v8502
    %v8759 = verf.f32.pop %v8503
    %v8760 = verf.f32.pop %v8504
    %v8761 = verf.f32.pop %v8505
    %v8762 = verf.f32.pop %v8506
    %v8763 = verf.f32.pop %v8507
    %v8764 = verf.f32.pop %v8508
    %v8765 = verf.f32.pop %v8509
    %v8766 = verf.f32.pop %v8510
    %v8767 = verf.f32.pop %v8511
    %v8768 = verf.f32.pop %v8512
    %v8769 = verf.f32.pop %v8513
    %v8770 = verf.f32.pop %v8514
    %v8771 = verf.f32.pop %v8515
    %v8772 = verf.f32.pop %v8516
    %v8773 = verf.f32.pop %v8517
    %v8774 = verf.f32.pop %v8518
    %v8775 = verf.f32.pop %v8519
    %v8776 = verf.f32.pop %v8520
    %v8777 = verf.f32.pop %v8521
    %v8778 = verf.f32.pop %v8522
    %v8779 = verf.f32.pop %v8523
    %v8780 = verf.f32.pop %v8524
    %v8781 = verf.f32.pop %v8525
    %v8782 = verf.f32.pop %v8526
    %v8783 = verf.f32.pop %v8527
    %v8784 = verf.f32.pop %v8528
    %v8785 = verf.f32.pop %v8529
    %v8786 = verf.f32.pop %v8530
    %v8787 = verf.f32.pop %v8531
    %v8788 = verf.f32.pop %v8532
    %v8789 = verf.f32.pop %v8533
    %v8790 = verf.f32.pop %v8534
    %v8791 = verf.f32.pop %v8535
    %v8792 = verf.f32.pop %v8536
    %v8793 = verf.f32.pop %v8537
    %v8794 = verf.f32.pop %v8538
    %v8795 = verf.f32.pop %v8539
    %v8796 = verf.f32.pop %v8540
    %v8797 = verf.f32.pop %v8541
    %v8798 = verf.f32.pop %v8542
    %v8799 = verf.f32.pop %v8543
    %v8800 = verf.f32.pop %v8544
    %v8801 = verf.f32.pop %v8545
    %v8802 = verf.f32.pop %v8546
    %v8803 = verf.f32.pop %v8547
    %v8804 = verf.f32.pop %v8548
    %v8805 = verf.f32.pop %v8549
    %v8806 = verf.f32.pop %v8550
    %v8807 = verf.f32.pop %v8551
    %v8808 = verf.f32.pop %v8552
    %v8809 = verf.f32.pop %v8553
    %v8810 = verf.f32.pop %v8554
    %v8811 = verf.f32.pop %v8555
    %v8812 = verf.f32.pop %v8556
    %v8813 = verf.f32.pop %v8557
    %v8814 = verf.f32.pop %v8558
    %v8815 = verf.f32.pop %v8559
    %v8816 = verf.f32.pop %v8560
    %v8817 = verf.f32.pop %v8561
    %v8818 = verf.f32.pop %v8562
    %v8819 = verf.f32.pop %v8563
    %v8820 = verf.f32.pop %v8564
    %v8821 = verf.f32.pop %v8565
    %v8822 = verf.f32.pop %v8566
    %v8823 = verf.f32.pop %v8567
    %v8824 = verf.f32.pop %v8568
    %v8825 = verf.f32.pop %v8569
    %v8826 = verf.f32.pop %v8570
    %v8827 = verf.f32.pop %v8571
    %v8828 = verf.f32.pop %v8572
    %v8829 = verf.f32.pop %v8573
    %v8830 = verf.f32.pop %v8574
    %v8831 = verf.f32.pop %v8575
    %v8832 = verf.f32.pop %v8576
    %v8833 = verf.f32.pop %v8577
    %v8834 = verf.f32.pop %v8578
    %v8835 = verf.f32.pop %v8579
    %v8836 = verf.f32.pop %v8580
    %v8837 = verf.f32.pop %v8581
    %v8838 = verf.f32.pop %v8582
    %v8839 = verf.f32.pop %v8583
    %v8840 = verf.f32.pop %v8584
    %v8841 = verf.f32.pop %v8585
    %v8842 = verf.f32.pop %v8586
    %v8843 = verf.f32.pop %v8587
    %v8844 = verf.f32.pop %v8588
    %v8845 = verf.f32.pop %v8589
    %v8846 = verf.f32.pop %v8590
    %v8847 = verf.f32.pop %v8591
    %v8848 = verf.f32.pop %v8592
    %v8849 = verf.f32.pop %v8593
    %v8850 = verf.f32.pop %v8594
    %v8851 = verf.f32.pop %v8595
    %v8852 = verf.f32.pop %v8596
    %v8853 = verf.f32.pop %v8597
    %v8854 = verf.f32.pop %v8598
    %v8855 = verf.f32.pop %v8599
    %v8856 = verf.f32.pop %v8600
    %v8857 = verf.f32.pop %v8601
    %v8858 = verf.f32.pop %v8602
    %v8859 = verf.f32.pop %v8603
    %v8860 = verf.f32.pop %v8604
    %v8861 = verf.f32.pop %v8605
    %v8862 = verf.f32.pop %v8606
    %v8863 = verf.f32.pop %v8607
    %v8864 = verf.f32.pop %v8608
    %v8865 = verf.f32.pop %v8609
    %v8866 = verf.f32.pop %v8610
    %v8867 = verf.f32.pop %v8611
    %v8868 = verf.f32.pop %v8612
    %v8869 = verf.f32.pop %v8613
    %v8870 = verf.f32.pop %v8614
    %v8871 = verf.f32.pop %v8615
    %v8872 = verf.f32.pop %v8616
    %v8873 = verf.f32.pop %v8617
    %v8874 = verf.f32.pop %v8618
    %v8875 = verf.f32.pop %v8619
    %v8876 = verf.f32.pop %v8620
    %v8877 = verf.f32.pop %v8621
    %v8878 = verf.f32.pop %v8622
    %v8879 = verf.f32.pop %v8623
    %v8880 = verf.f32.pop %v8624
    %v8881 = verf.f32.pop %v8625
    %v8882 = verf.f32.pop %v8626
    %v8883 = verf.f32.pop %v8627
    %v8884 = verf.f32.pop %v8628
    %v8885 = vadd.f32 %v8629, 1.0
    %v8886 = vadd.f32 %v8630, 1.0
    %v8887 = vadd.f32 %v8631, 1.0
    %v8888 = vadd.f32 %v8632, 1.0
    %v8889 = vadd.f32 %v8633, 1.0
    %v8890 = vadd.f32 %v8634, 1.0
    %v8891 = vadd.f32 %v8635, 1.0
    %v8892 = vadd.f32 %v8636, 1.0
    %v8893 = vadd.f32 %v8637, 1.0
    %v8894 = vadd.f32 %v8638, 1.0
    %v8895 = vadd.f32 %v8639, 1.0
    %v8896 = vadd.f32 %v8640, 1.0
    %v8897 = vadd.f32 %v8641, 1.0
    %v8898 = vadd.f32 %v8642, 1.0
    %v8899 = vadd.f32 %v8643, 1.0
    %v8900 = vadd.f32 %v8644, 1.0
    %v8901 = vadd.f32 %v8645, 1.0
    %v8902 = vadd.f32 %v8646, 1.0
    %v8903 = vadd.f32 %v8647, 1.0
    %v8904 = vadd.f32 %v8648, 1.0
    %v8905 = vadd.f32 %v8649, 1.0
    %v8906 = vadd.f32 %v8650, 1.0
    %v8907 = vadd.f32 %v8651, 1.0
    %v8908 = vadd.f32 %v8652, 1.0
    %v8909 = vadd.f32 %v8653, 1.0
    %v8910 = vadd.f32 %v8654, 1.0
    %v8911 = vadd.f32 %v8655, 1.0
    %v8912 = vadd.f32 %v8656, 1.0
    %v8913 = vadd.f32 %v8657, 1.0
    %v8914 = vadd.f32 %v8658, 1.0
    %v8915 = vadd.f32 %v8659, 1.0
    %v8916 = vadd.f32 %v8660, 1.0
    %v8917 = vadd.f32 %v8661, 1.0
    %v8918 = vadd.f32 %v8662, 1.0
    %v8919 = vadd.f32 %v8663, 1.0
    %v8920 = vadd.f32 %v8664, 1.0
    %v8921 = vadd.f32 %v8665, 1.0
    %v8922 = vadd.f32 %v8666, 1.0
    %v8923 = vadd.f32 %v8667, 1.0
    %v8924 = vadd.f32 %v8668, 1.0
    %v8925 = vadd.f32 %v8669, 1.0
    %v8926 = vadd.f32 %v8670, 1.0
    %v8927 = vadd.f32 %v8671, 1.0
    %v8928 = vadd.f32 %v8672, 1.0
    %v8929 = vadd.f32 %v8673, 1.0
    %v8930 = vadd.f32 %v8674, 1.0
    %v8931 = vadd.f32 %v8675, 1.0
    %v8932 = vadd.f32 %v8676, 1.0
    %v8933 = vadd.f32 %v8677, 1.0
    %v8934 = vadd.f32 %v8678, 1.0
    %v8935 = vadd.f32 %v8679, 1.0
    %v8936 = vadd.f32 %v8680, 1.0
    %v8937 = vadd.f32 %v8681, 1.0
    %v8938 = vadd.f32 %v8682, 1.0
    %v8939 = vadd.f32 %v8683, 1.0
    %v8940 = vadd.f32 %v8684, 1.0
    %v8941 = vadd.f32 %v8685, 1.0
    %v8942 = vadd.f32 %v8686, 1.0
    %v8943 = vadd.f32 %v8687, 1.0
    %v8944 = vadd.f32 %v8688, 1.0
    %v8945 = vadd.f32 %v8689, 1.0
    %v8946 = vadd.f32 %v8690, 1.0
    %v8947 = vadd.f32 %v8691, 1.0
    %v8948 = vadd.f32 %v8692, 1.0
    %v8949 = vadd.f32 %v8693, 1.0
    %v8950 = vadd.f32 %v8694, 1.0
    %v8951 = vadd.f32 %v8695, 1.0
    %v8952 = vadd.f32 %v8696, 1.0
    %v8953 = vadd.f32 %v8697, 1.0
    %v8954 = vadd.f32 %v8698, 1.0
    %v8955 = vadd.f32 %v8699, 1.0
    %v8956 = vadd.f32 %v8700, 1.0
    %v8957 = vadd.f32 %v8701, 1.0
    %v8958 = vadd.f32 %v8702, 1.0
    %v8959 = vadd.f32 %v8703, 1.0
    %v8960 = vadd.f32 %v8704, 1.0
    %v8961 = vadd.f32 %v8705, 1.0
    %v8962 = vadd.f32 %v8706, 1.0
    %v8963 = vadd.f32 %v8707, 1.0
    %v8964 = vadd.f32 %v8708, 1.0
    %v8965 = vadd.f32 %v8709, 1.0
    %v8966 = vadd.f32 %v8710, 1.0
    %v8967 = vadd.f32 %v8711, 1.0
    %v8968 = vadd.f32 %v8712, 1.0
    %v8969 = vadd.f32 %v8713, 1.0
    %v8970 = vadd.f32 %v8714, 1.0
    %v8971 = vadd.f32 %v8715, 1.0
    %v8972 = vadd.f32 %v8716, 1.0
    %v8973 = vadd.f32 %v8717, 1.0
    %v8974 = vadd.f32 %v8718, 1.0
    %v8975 = vadd.f32 %v8719, 1.0
    %v8976 = vadd.f32 %v8720, 1.0
    %v8977 = vadd.f32 %v8721, 1.0
    %v8978 = vadd.f32 %v8722, 1.0
    %v8979 = vadd.f32 %v8723, 1.0
    %v8980 = vadd.f32 %v8724, 1.0
    %v8981 = vadd.f32 %v8725, 1.0
    %v8982 = vadd.f32 %v8726, 1.0
    %v8983 = vadd.f32 %v8727, 1.0
    %v8984 = vadd.f32 %v8728, 1.0
    %v8985 = vadd.f32 %v8729, 1.0
    %v8986 = vadd.f32 %v8730, 1.0
    %v8987 = vadd.f32 %v8731, 1.0
    %v8988 = vadd.f32 %v8732, 1.0
    %v8989 = vadd.f32 %v8733, 1.0
    %v8990 = vadd.f32 %v8734, 1.0
    %v8991 = vadd.f32 %v8735, 1.0
    %v8992 = vadd.f32 %v8736, 1.0
    %v8993 = vadd.f32 %v8737, 1.0
    %v8994 = vadd.f32 %v8738, 1.0
    %v8995 = vadd.f32 %v8739, 1.0
    %v8996 = vadd.f32 %v8740, 1.0
    %v8997 = vadd.f32 %v8741, 1.0
    %v8998 = vadd.f32 %v8742, 1.0
    %v8999 = vadd.f32 %v8743, 1.0
    %v9000 = vadd.f32 %v8744, 1.0
    %v9001 = vadd.f32 %v8745, 1.0
    %v9002 = vadd.f32 %v8746, 1.0
    %v9003 = vadd.f32 %v8747, 1.0
    %v9004 = vadd.f32 %v8748, 1.0
    %v9005 = vadd.f32 %v8749, 1.0
    %v9006 = vadd.f32 %v8750, 1.0
    %v9007 = vadd.f32 %v8751, 1.0
    %v9008 = vadd.f32 %v8752, 1.0
    %v9009 = vadd.f32 %v8753, 1.0
    %v9010 = vadd.f32 %v8754, 1.0
    %v9011 = vadd.f32 %v8755, 1.0
    %v9012 = vadd.f32 %v8756, 1.0
    %v9013 = vadd.f32 %v8757, 1.0
    %v9014 = vadd.f32 %v8758, 1.0
    %v9015 = vadd.f32 %v8759, 1.0
    %v9016 = vadd.f32 %v8760, 1.0
    %v9017 = vadd.f32 %v8761, 1.0
    %v9018 = vadd.f32 %v8762, 1.0
    %v9019 = vadd.f32 %v8763, 1.0
    %v9020 = vadd.f32 %v8764, 1.0
    %v9021 = vadd.f32 %v8765, 1.0
    %v9022 = vadd.f32 %v8766, 1.0
    %v9023 = vadd.f32 %v8767, 1.0
    %v9024 = vadd.f32 %v8768, 1.0
    %v9025 = vadd.f32 %v8769, 1.0
    %v9026 = vadd.f32 %v8770, 1.0
    %v9027 = vadd.f32 %v8771, 1.0
    %v9028 = vadd.f32 %v8772, 1.0
    %v9029 = vadd.f32 %v8773, 1.0
    %v9030 = vadd.f32 %v8774, 1.0
    %v9031 = vadd.f32 %v8775, 1.0
    %v9032 = vadd.f32 %v8776, 1.0
    %v9033 = vadd.f32 %v8777, 1.0
    %v9034 = vadd.f32 %v8778, 1.0
    %v9035 = vadd.f32 %v8779, 1.0
    %v9036 = vadd.f32 %v8780, 1.0
    %v9037 = vadd.f32 %v8781, 1.0
    %v9038 = vadd.f32 %v8782, 1.0
    %v9039 = vadd.f32 %v8783, 1.0
    %v9040 = vadd.f32 %v8784, 1.0
    %v9041 = vadd.f32 %v8785, 1.0
    %v9042 = vadd.f32 %v8786, 1.0
    %v9043 = vadd.f32 %v8787, 1.0
    %v9044 = vadd.f32 %v8788, 1.0
    %v9045 = vadd.f32 %v8789, 1.0
    %v9046 = vadd.f32 %v8790, 1.0
    %v9047 = vadd.f32 %v8791, 1.0
    %v9048 = vadd.f32 %v8792, 1.0
    %v9049 = vadd.f32 %v8793, 1.0
    %v9050 = vadd.f32 %v8794, 1.0
    %v9051 = vadd.f32 %v8795, 1.0
    %v9052 = vadd.f32 %v8796, 1.0
    %v9053 = vadd.f32 %v8797, 1.0
    %v9054 = vadd.f32 %v8798, 1.0
    %v9055 = vadd.f32 %v8799, 1.0
    %v9056 = vadd.f32 %v8800, 1.0
    %v9057 = vadd.f32 %v8801, 1.0
    %v9058 = vadd.f32 %v8802, 1.0
    %v9059 = vadd.f32 %v8803, 1.0
    %v9060 = vadd.f32 %v8804, 1.0
    %v9061 = vadd.f32 %v8805, 1.0
    %v9062 = vadd.f32 %v8806, 1.0
    %v9063 = vadd.f32 %v8807, 1.0
    %v9064 = vadd.f32 %v8808, 1.0
    %v9065 = vadd.f32 %v8809, 1.0
    %v9066 = vadd.f32 %v8810, 1.0
    %v9067 = vadd.f32 %v8811, 1.0
    %v9068 = vadd.f32 %v8812, 1.0
    %v9069 = vadd.f32 %v8813, 1.0
    %v9070 = vadd.f32 %v8814, 1.0
    %v9071 = vadd.f32 %v8815, 1.0
    %v9072 = vadd.f32 %v8816, 1.0
    %v9073 = vadd.f32 %v8817, 1.0
    %v9074 = vadd.f32 %v8818, 1.0
    %v9075 = vadd.f32 %v8819, 1.0
    %v9076 = vadd.f32 %v8820, 1.0
    %v9077 = vadd.f32 %v8821, 1.0
    %v9078 = vadd.f32 %v8822, 1.0
    %v9079 = vadd.f32 %v8823, 1.0
    %v9080 = vadd.f32 %v8824, 1.0
    %v9081 = vadd.f32 %v8825, 1.0
    %v9082 = vadd.f32 %v8826, 1.0
    %v9083 = vadd.f32 %v8827, 1.0
    %v9084 = vadd.f32 %v8828, 1.0
    %v9085 = vadd.f32 %v8829, 1.0
    %v9086 = vadd.f32 %v8830, 1.0
    %v9087 = vadd.f32 %v8831, 1.0
    %v9088 = vadd.f32 %v8832, 1.0
    %v9089 = vadd.f32 %v8833, 1.0
    %v9090 = vadd.f32 %v8834, 1.0
    %v9091 = vadd.f32 %v8835, 1.0
    %v9092 = vadd.f32 %v8836, 1.0
    %v9093 = vadd.f32 %v8837, 1.0
    %v9094 = vadd.f32 %v8838, 1.0
    %v9095 = vadd.f32 %v8839, 1.0
    %v9096 = vadd.f32 %v8840, 1.0
    %v9097 = vadd.f32 %v8841, 1.0
    %v9098 = vadd.f32 %v8842, 1.0
    %v9099 = vadd.f32 %v8843, 1.0
    %v9100 = vadd.f32 %v8844, 1.0
    %v9101 = vadd.f32 %v8845, 1.0
    %v9102 = vadd.f32 %v8846, 1.0
    %v9103 = vadd.f32 %v8847, 1.0
    %v9104 = vadd.f32 %v8848, 1.0
    %v9105 = vadd.f32 %v8849, 1.0
    %v9106 = vadd.f32 %v8850, 1.0
    %v9107 = vadd.f32 %v8851, 1.0
    %v9108 = vadd.f32 %v8852, 1.0
    %v9109 = vadd.f32 %v8853, 1.0
    %v9110 = vadd.f32 %v8854, 1.0
    %v9111 = vadd.f32 %v8855, 1.0
    %v9112 = vadd.f32 %v8856, 1.0
    %v9113 = vadd.f32 %v8857, 1.0
    %v9114 = vadd.f32 %v8858, 1.0
    %v9115 = vadd.f32 %v8859, 1.0
    %v9116 = vadd.f32 %v8860, 1.0
    %v9117 = vadd.f32 %v8861, 1.0
    %v9118 = vadd.f32 %v8862, 1.0
    %v9119 = vadd.f32 %v8863, 1.0
    %v9120 = vadd.f32 %v8864, 1.0
    %v9121 = vadd.f32 %v8865, 1.0
    %v9122 = vadd.f32 %v8866, 1.0
    %v9123 = vadd.f32 %v8867, 1.0
    %v9124 = vadd.f32 %v8868, 1.0
    %v9125 = vadd.f32 %v8869, 1.0
    %v9126 = vadd.f32 %v8870, 1.0
    %v9127 = vadd.f32 %v8871, 1.0
    %v9128 = vadd.f32 %v8872, 1.0
    %v9129 = vadd.f32 %v8873, 1.0
    %v9130 = vadd.f32 %v8874, 1.0
    %v9131 = vadd.f32 %v8875, 1.0
    %v9132 = vadd.f32 %v8876, 1.0
    %v9133 = vadd.f32 %v8877, 1.0
    %v9134 = vadd.f32 %v8878, 1.0
    %v9135 = vadd.f32 %v8879, 1.0
    %v9136 = vadd.f32 %v8880, 1.0
    %v9137 = vadd.f32 %v8881, 1.0
    %v9138 = vadd.f32 %v8882, 1.0
    %v9139 = vadd.f32 %v8883, 1.0
    %v9140 = vadd.f32 %v8884, 1.0
    %v9141 = vmul.f32 %v8117, %v8885
    %v9142 = vmul.f32 %v8118, %v8886
    %v9143 = vmul.f32 %v8119, %v8887
    %v9144 = vmul.f32 %v8120, %v8888
    %v9145 = vmul.f32 %v8121, %v8889
    %v9146 = vmul.f32 %v8122, %v8890
    %v9147 = vmul.f32 %v8123, %v8891
    %v9148 = vmul.f32 %v8124, %v8892
    %v9149 = vmul.f32 %v8125, %v8893
    %v9150 = vmul.f32 %v8126, %v8894
    %v9151 = vmul.f32 %v8127, %v8895
    %v9152 = vmul.f32 %v8128, %v8896
    %v9153 = vmul.f32 %v8129, %v8897
    %v9154 = vmul.f32 %v8130, %v8898
    %v9155 = vmul.f32 %v8131, %v8899
    %v9156 = vmul.f32 %v8132, %v8900
    %v9157 = vmul.f32 %v8133, %v8901
    %v9158 = vmul.f32 %v8134, %v8902
    %v9159 = vmul.f32 %v8135, %v8903
    %v9160 = vmul.f32 %v8136, %v8904
    %v9161 = vmul.f32 %v8137, %v8905
    %v9162 = vmul.f32 %v8138, %v8906
    %v9163 = vmul.f32 %v8139, %v8907
    %v9164 = vmul.f32 %v8140, %v8908
    %v9165 = vmul.f32 %v8141, %v8909
    %v9166 = vmul.f32 %v8142, %v8910
    %v9167 = vmul.f32 %v8143, %v8911
    %v9168 = vmul.f32 %v8144, %v8912
    %v9169 = vmul.f32 %v8145, %v8913
    %v9170 = vmul.f32 %v8146, %v8914
    %v9171 = vmul.f32 %v8147, %v8915
    %v9172 = vmul.f32 %v8148, %v8916
    %v9173 = vmul.f32 %v8149, %v8917
    %v9174 = vmul.f32 %v8150, %v8918
    %v9175 = vmul.f32 %v8151, %v8919
    %v9176 = vmul.f32 %v8152, %v8920
    %v9177 = vmul.f32 %v8153, %v8921
    %v9178 = vmul.f32 %v8154, %v8922
    %v9179 = vmul.f32 %v8155, %v8923
    %v9180 = vmul.f32 %v8156, %v8924
    %v9181 = vmul.f32 %v8157, %v8925
    %v9182 = vmul.f32 %v8158, %v8926
    %v9183 = vmul.f32 %v8159, %v8927
    %v9184 = vmul.f32 %v8160, %v8928
    %v9185 = vmul.f32 %v8161, %v8929
    %v9186 = vmul.f32 %v8162, %v8930
    %v9187 = vmul.f32 %v8163, %v8931
    %v9188 = vmul.f32 %v8164, %v8932
    %v9189 = vmul.f32 %v8165, %v8933
    %v9190 = vmul.f32 %v8166, %v8934
    %v9191 = vmul.f32 %v8167, %v8935
    %v9192 = vmul.f32 %v8168, %v8936
    %v9193 = vmul.f32 %v8169, %v8937
    %v9194 = vmul.f32 %v8170, %v8938
    %v9195 = vmul.f32 %v8171, %v8939
    %v9196 = vmul.f32 %v8172, %v8940
    %v9197 = vmul.f32 %v8173, %v8941
    %v9198 = vmul.f32 %v8174, %v8942
    %v9199 = vmul.f32 %v8175, %v8943
    %v9200 = vmul.f32 %v8176, %v8944
    %v9201 = vmul.f32 %v8177, %v8945
    %v9202 = vmul.f32 %v8178, %v8946
    %v9203 = vmul.f32 %v8179, %v8947
    %v9204 = vmul.f32 %v8180, %v8948
    %v9205 = vmul.f32 %v8181, %v8949
    %v9206 = vmul.f32 %v8182, %v8950
    %v9207 = vmul.f32 %v8183, %v8951
    %v9208 = vmul.f32 %v8184, %v8952
    %v9209 = vmul.f32 %v8185, %v8953
    %v9210 = vmul.f32 %v8186, %v8954
    %v9211 = vmul.f32 %v8187, %v8955
    %v9212 = vmul.f32 %v8188, %v8956
    %v9213 = vmul.f32 %v8189, %v8957
    %v9214 = vmul.f32 %v8190, %v8958
    %v9215 = vmul.f32 %v8191, %v8959
    %v9216 = vmul.f32 %v8192, %v8960
    %v9217 = vmul.f32 %v8193, %v8961
    %v9218 = vmul.f32 %v8194, %v8962
    %v9219 = vmul.f32 %v8195, %v8963
    %v9220 = vmul.f32 %v8196, %v8964
    %v9221 = vmul.f32 %v8197, %v8965
    %v9222 = vmul.f32 %v8198, %v8966
    %v9223 = vmul.f32 %v8199, %v8967
    %v9224 = vmul.f32 %v8200, %v8968
    %v9225 = vmul.f32 %v8201, %v8969
    %v9226 = vmul.f32 %v8202, %v8970
    %v9227 = vmul.f32 %v8203, %v8971
    %v9228 = vmul.f32 %v8204, %v8972
    %v9229 = vmul.f32 %v8205, %v8973
    %v9230 = vmul.f32 %v8206, %v8974
    %v9231 = vmul.f32 %v8207, %v8975
    %v9232 = vmul.f32 %v8208, %v8976
    %v9233 = vmul.f32 %v8209, %v8977
    %v9234 = vmul.f32 %v8210, %v8978
    %v9235 = vmul.f32 %v8211, %v8979
    %v9236 = vmul.f32 %v8212, %v8980
    %v9237 = vmul.f32 %v8213, %v8981
    %v9238 = vmul.f32 %v8214, %v8982
    %v9239 = vmul.f32 %v8215, %v8983
    %v9240 = vmul.f32 %v8216, %v8984
    %v9241 = vmul.f32 %v8217, %v8985
    %v9242 = vmul.f32 %v8218, %v8986
    %v9243 = vmul.f32 %v8219, %v8987
    %v9244 = vmul.f32 %v8220, %v8988
    %v9245 = vmul.f32 %v8221, %v8989
    %v9246 = vmul.f32 %v8222, %v8990
    %v9247 = vmul.f32 %v8223, %v8991
    %v9248 = vmul.f32 %v8224, %v8992
    %v9249 = vmul.f32 %v8225, %v8993
    %v9250 = vmul.f32 %v8226, %v8994
    %v9251 = vmul.f32 %v8227, %v8995
    %v9252 = vmul.f32 %v8228, %v8996
    %v9253 = vmul.f32 %v8229, %v8997
    %v9254 = vmul.f32 %v8230, %v8998
    %v9255 = vmul.f32 %v8231, %v8999
    %v9256 = vmul.f32 %v8232, %v9000
    %v9257 = vmul.f32 %v8233, %v9001
    %v9258 = vmul.f32 %v8234, %v9002
    %v9259 = vmul.f32 %v8235, %v9003
    %v9260 = vmul.f32 %v8236, %v9004
    %v9261 = vmul.f32 %v8237, %v9005
    %v9262 = vmul.f32 %v8238, %v9006
    %v9263 = vmul.f32 %v8239, %v9007
    %v9264 = vmul.f32 %v8240, %v9008
    %v9265 = vmul.f32 %v8241, %v9009
    %v9266 = vmul.f32 %v8242, %v9010
    %v9267 = vmul.f32 %v8243, %v9011
    %v9268 = vmul.f32 %v8244, %v9012
    %v9269 = vmul.f32 %v8245, %v9013
    %v9270 = vmul.f32 %v8246, %v9014
    %v9271 = vmul.f32 %v8247, %v9015
    %v9272 = vmul.f32 %v8248, %v9016
    %v9273 = vmul.f32 %v8249, %v9017
    %v9274 = vmul.f32 %v8250, %v9018
    %v9275 = vmul.f32 %v8251, %v9019
    %v9276 = vmul.f32 %v8252, %v9020
    %v9277 = vmul.f32 %v8253, %v9021
    %v9278 = vmul.f32 %v8254, %v9022
    %v9279 = vmul.f32 %v8255, %v9023
    %v9280 = vmul.f32 %v8256, %v9024
    %v9281 = vmul.f32 %v8257, %v9025
    %v9282 = vmul.f32 %v8258, %v9026
    %v9283 = vmul.f32 %v8259, %v9027
    %v9284 = vmul.f32 %v8260, %v9028
    %v9285 = vmul.f32 %v8261, %v9029
    %v9286 = vmul.f32 %v8262, %v9030
    %v9287 = vmul.f32 %v8263, %v9031
    %v9288 = vmul.f32 %v8264, %v9032
    %v9289 = vmul.f32 %v8265, %v9033
    %v9290 = vmul.f32 %v8266, %v9034
    %v9291 = vmul.f32 %v8267, %v9035
    %v9292 = vmul.f32 %v8268, %v9036
    %v9293 = vmul.f32 %v8269, %v9037
    %v9294 = vmul.f32 %v8270, %v9038
    %v9295 = vmul.f32 %v8271, %v9039
    %v9296 = vmul.f32 %v8272, %v9040
    %v9297 = vmul.f32 %v8273, %v9041
    %v9298 = vmul.f32 %v8274, %v9042
    %v9299 = vmul.f32 %v8275, %v9043
    %v9300 = vmul.f32 %v8276, %v9044
    %v9301 = vmul.f32 %v8277, %v9045
    %v9302 = vmul.f32 %v8278, %v9046
    %v9303 = vmul.f32 %v8279, %v9047
    %v9304 = vmul.f32 %v8280, %v9048
    %v9305 = vmul.f32 %v8281, %v9049
    %v9306 = vmul.f32 %v8282, %v9050
    %v9307 = vmul.f32 %v8283, %v9051
    %v9308 = vmul.f32 %v8284, %v9052
    %v9309 = vmul.f32 %v8285, %v9053
    %v9310 = vmul.f32 %v8286, %v9054
    %v9311 = vmul.f32 %v8287, %v9055
    %v9312 = vmul.f32 %v8288, %v9056
    %v9313 = vmul.f32 %v8289, %v9057
    %v9314 = vmul.f32 %v8290, %v9058
    %v9315 = vmul.f32 %v8291, %v9059
    %v9316 = vmul.f32 %v8292, %v9060
    %v9317 = vmul.f32 %v8293, %v9061
    %v9318 = vmul.f32 %v8294, %v9062
    %v9319 = vmul.f32 %v8295, %v9063
    %v9320 = vmul.f32 %v8296, %v9064
    %v9321 = vmul.f32 %v8297, %v9065
    %v9322 = vmul.f32 %v8298, %v9066
    %v9323 = vmul.f32 %v8299, %v9067
    %v9324 = vmul.f32 %v8300, %v9068
    %v9325 = vmul.f32 %v8301, %v9069
    %v9326 = vmul.f32 %v8302, %v9070
    %v9327 = vmul.f32 %v8303, %v9071
    %v9328 = vmul.f32 %v8304, %v9072
    %v9329 = vmul.f32 %v8305, %v9073
    %v9330 = vmul.f32 %v8306, %v9074
    %v9331 = vmul.f32 %v8307, %v9075
    %v9332 = vmul.f32 %v8308, %v9076
    %v9333 = vmul.f32 %v8309, %v9077
    %v9334 = vmul.f32 %v8310, %v9078
    %v9335 = vmul.f32 %v8311, %v9079
    %v9336 = vmul.f32 %v8312, %v9080
    %v9337 = vmul.f32 %v8313, %v9081
    %v9338 = vmul.f32 %v8314, %v9082
    %v9339 = vmul.f32 %v8315, %v9083
    %v9340 = vmul.f32 %v8316, %v9084
    %v9341 = vmul.f32 %v8317, %v9085
    %v9342 = vmul.f32 %v8318, %v9086
    %v9343 = vmul.f32 %v8319, %v9087
    %v9344 = vmul.f32 %v8320, %v9088
    %v9345 = vmul.f32 %v8321, %v9089
    %v9346 = vmul.f32 %v8322, %v9090
    %v9347 = vmul.f32 %v8323, %v9091
    %v9348 = vmul.f32 %v8324, %v9092
    %v9349 = vmul.f32 %v8325, %v9093
    %v9350 = vmul.f32 %v8326, %v9094
    %v9351 = vmul.f32 %v8327, %v9095
    %v9352 = vmul.f32 %v8328, %v9096
    %v9353 = vmul.f32 %v8329, %v9097
    %v9354 = vmul.f32 %v8330, %v9098
    %v9355 = vmul.f32 %v8331, %v9099
    %v9356 = vmul.f32 %v8332, %v9100
    %v9357 = vmul.f32 %v8333, %v9101
    %v9358 = vmul.f32 %v8334, %v9102
    %v9359 = vmul.f32 %v8335, %v9103
    %v9360 = vmul.f32 %v8336, %v9104
    %v9361 = vmul.f32 %v8337, %v9105
    %v9362 = vmul.f32 %v8338, %v9106
    %v9363 = vmul.f32 %v8339, %v9107
    %v9364 = vmul.f32 %v8340, %v9108
    %v9365 = vmul.f32 %v8341, %v9109
    %v9366 = vmul.f32 %v8342, %v9110
    %v9367 = vmul.f32 %v8343, %v9111
    %v9368 = vmul.f32 %v8344, %v9112
    %v9369 = vmul.f32 %v8345, %v9113
    %v9370 = vmul.f32 %v8346, %v9114
    %v9371 = vmul.f32 %v8347, %v9115
    %v9372 = vmul.f32 %v8348, %v9116
    %v9373 = vmul.f32 %v8349, %v9117
    %v9374 = vmul.f32 %v8350, %v9118
    %v9375 = vmul.f32 %v8351, %v9119
    %v9376 = vmul.f32 %v8352, %v9120
    %v9377 = vmul.f32 %v8353, %v9121
    %v9378 = vmul.f32 %v8354, %v9122
    %v9379 = vmul.f32 %v8355, %v9123
    %v9380 = vmul.f32 %v8356, %v9124
    %v9381 = vmul.f32 %v8357, %v9125
    %v9382 = vmul.f32 %v8358, %v9126
    %v9383 = vmul.f32 %v8359, %v9127
    %v9384 = vmul.f32 %v8360, %v9128
    %v9385 = vmul.f32 %v8361, %v9129
    %v9386 = vmul.f32 %v8362, %v9130
    %v9387 = vmul.f32 %v8363, %v9131
    %v9388 = vmul.f32 %v8364, %v9132
    %v9389 = vmul.f32 %v8365, %v9133
    %v9390 = vmul.f32 %v8366, %v9134
    %v9391 = vmul.f32 %v8367, %v9135
    %v9392 = vmul.f32 %v8368, %v9136
    %v9393 = vmul.f32 %v8369, %v9137
    %v9394 = vmul.f32 %v8370, %v9138
    %v9395 = vmul.f32 %v8371, %v9139
    %v9396 = vmul.f32 %v8372, %v9140
    %v9397 = vpack.c.bf16 %v9149, %v9141
    %v9398 = vpack.c.bf16 %v9150, %v9142
    %v9399 = vpack.c.bf16 %v9151, %v9143
    %v9400 = vpack.c.bf16 %v9152, %v9144
    %v9401 = vpack.c.bf16 %v9153, %v9145
    %v9402 = vpack.c.bf16 %v9154, %v9146
    %v9403 = vpack.c.bf16 %v9155, %v9147
    %v9404 = vpack.c.bf16 %v9156, %v9148
    %v9405 = vpack.c.bf16 %v9165, %v9157
    %v9406 = vpack.c.bf16 %v9166, %v9158
    %v9407 = vpack.c.bf16 %v9167, %v9159
    %v9408 = vpack.c.bf16 %v9168, %v9160
    %v9409 = vpack.c.bf16 %v9169, %v9161
    %v9410 = vpack.c.bf16 %v9170, %v9162
    %v9411 = vpack.c.bf16 %v9171, %v9163
    %v9412 = vpack.c.bf16 %v9172, %v9164
    %v9413 = vpack.c.bf16 %v9181, %v9173
    %v9414 = vpack.c.bf16 %v9182, %v9174
    %v9415 = vpack.c.bf16 %v9183, %v9175
    %v9416 = vpack.c.bf16 %v9184, %v9176
    %v9417 = vpack.c.bf16 %v9185, %v9177
    %v9418 = vpack.c.bf16 %v9186, %v9178
    %v9419 = vpack.c.bf16 %v9187, %v9179
    %v9420 = vpack.c.bf16 %v9188, %v9180
    %v9421 = vpack.c.bf16 %v9197, %v9189
    %v9422 = vpack.c.bf16 %v9198, %v9190
    %v9423 = vpack.c.bf16 %v9199, %v9191
    %v9424 = vpack.c.bf16 %v9200, %v9192
    %v9425 = vpack.c.bf16 %v9201, %v9193
    %v9426 = vpack.c.bf16 %v9202, %v9194
    %v9427 = vpack.c.bf16 %v9203, %v9195
    %v9428 = vpack.c.bf16 %v9204, %v9196
    %v9429 = vpack.c.bf16 %v9213, %v9205
    %v9430 = vpack.c.bf16 %v9214, %v9206
    %v9431 = vpack.c.bf16 %v9215, %v9207
    %v9432 = vpack.c.bf16 %v9216, %v9208
    %v9433 = vpack.c.bf16 %v9217, %v9209
    %v9434 = vpack.c.bf16 %v9218, %v9210
    %v9435 = vpack.c.bf16 %v9219, %v9211
    %v9436 = vpack.c.bf16 %v9220, %v9212
    %v9437 = vpack.c.bf16 %v9229, %v9221
    %v9438 = vpack.c.bf16 %v9230, %v9222
    %v9439 = vpack.c.bf16 %v9231, %v9223
    %v9440 = vpack.c.bf16 %v9232, %v9224
    %v9441 = vpack.c.bf16 %v9233, %v9225
    %v9442 = vpack.c.bf16 %v9234, %v9226
    %v9443 = vpack.c.bf16 %v9235, %v9227
    %v9444 = vpack.c.bf16 %v9236, %v9228
    %v9445 = vpack.c.bf16 %v9245, %v9237
    %v9446 = vpack.c.bf16 %v9246, %v9238
    %v9447 = vpack.c.bf16 %v9247, %v9239
    %v9448 = vpack.c.bf16 %v9248, %v9240
    %v9449 = vpack.c.bf16 %v9249, %v9241
    %v9450 = vpack.c.bf16 %v9250, %v9242
    %v9451 = vpack.c.bf16 %v9251, %v9243
    %v9452 = vpack.c.bf16 %v9252, %v9244
    %v9453 = vpack.c.bf16 %v9261, %v9253
    %v9454 = vpack.c.bf16 %v9262, %v9254
    %v9455 = vpack.c.bf16 %v9263, %v9255
    %v9456 = vpack.c.bf16 %v9264, %v9256
    %v9457 = vpack.c.bf16 %v9265, %v9257
    %v9458 = vpack.c.bf16 %v9266, %v9258
    %v9459 = vpack.c.bf16 %v9267, %v9259
    %v9460 = vpack.c.bf16 %v9268, %v9260
    %v9461 = vpack.c.bf16 %v9277, %v9269
    %v9462 = vpack.c.bf16 %v9278, %v9270
    %v9463 = vpack.c.bf16 %v9279, %v9271
    %v9464 = vpack.c.bf16 %v9280, %v9272
    %v9465 = vpack.c.bf16 %v9281, %v9273
    %v9466 = vpack.c.bf16 %v9282, %v9274
    %v9467 = vpack.c.bf16 %v9283, %v9275
    %v9468 = vpack.c.bf16 %v9284, %v9276
    %v9469 = vpack.c.bf16 %v9293, %v9285
    %v9470 = vpack.c.bf16 %v9294, %v9286
    %v9471 = vpack.c.bf16 %v9295, %v9287
    %v9472 = vpack.c.bf16 %v9296, %v9288
    %v9473 = vpack.c.bf16 %v9297, %v9289
    %v9474 = vpack.c.bf16 %v9298, %v9290
    %v9475 = vpack.c.bf16 %v9299, %v9291
    %v9476 = vpack.c.bf16 %v9300, %v9292
    %v9477 = vpack.c.bf16 %v9309, %v9301
    %v9478 = vpack.c.bf16 %v9310, %v9302
    %v9479 = vpack.c.bf16 %v9311, %v9303
    %v9480 = vpack.c.bf16 %v9312, %v9304
    %v9481 = vpack.c.bf16 %v9313, %v9305
    %v9482 = vpack.c.bf16 %v9314, %v9306
    %v9483 = vpack.c.bf16 %v9315, %v9307
    %v9484 = vpack.c.bf16 %v9316, %v9308
    %v9485 = vpack.c.bf16 %v9325, %v9317
    %v9486 = vpack.c.bf16 %v9326, %v9318
    %v9487 = vpack.c.bf16 %v9327, %v9319
    %v9488 = vpack.c.bf16 %v9328, %v9320
    %v9489 = vpack.c.bf16 %v9329, %v9321
    %v9490 = vpack.c.bf16 %v9330, %v9322
    %v9491 = vpack.c.bf16 %v9331, %v9323
    %v9492 = vpack.c.bf16 %v9332, %v9324
    %v9493 = vpack.c.bf16 %v9341, %v9333
    %v9494 = vpack.c.bf16 %v9342, %v9334
    %v9495 = vpack.c.bf16 %v9343, %v9335
    %v9496 = vpack.c.bf16 %v9344, %v9336
    %v9497 = vpack.c.bf16 %v9345, %v9337
    %v9498 = vpack.c.bf16 %v9346, %v9338
    %v9499 = vpack.c.bf16 %v9347, %v9339
    %v9500 = vpack.c.bf16 %v9348, %v9340
    %v9501 = vpack.c.bf16 %v9357, %v9349
    %v9502 = vpack.c.bf16 %v9358, %v9350
    %v9503 = vpack.c.bf16 %v9359, %v9351
    %v9504 = vpack.c.bf16 %v9360, %v9352
    %v9505 = vpack.c.bf16 %v9361, %v9353
    %v9506 = vpack.c.bf16 %v9362, %v9354
    %v9507 = vpack.c.bf16 %v9363, %v9355
    %v9508 = vpack.c.bf16 %v9364, %v9356
    %v9509 = vpack.c.bf16 %v9373, %v9365
    %v9510 = vpack.c.bf16 %v9374, %v9366
    %v9511 = vpack.c.bf16 %v9375, %v9367
    %v9512 = vpack.c.bf16 %v9376, %v9368
    %v9513 = vpack.c.bf16 %v9377, %v9369
    %v9514 = vpack.c.bf16 %v9378, %v9370
    %v9515 = vpack.c.bf16 %v9379, %v9371
    %v9516 = vpack.c.bf16 %v9380, %v9372
    %v9517 = vpack.c.bf16 %v9389, %v9381
    %v9518 = vpack.c.bf16 %v9390, %v9382
    %v9519 = vpack.c.bf16 %v9391, %v9383
    %v9520 = vpack.c.bf16 %v9392, %v9384
    %v9521 = vpack.c.bf16 %v9393, %v9385
    %v9522 = vpack.c.bf16 %v9394, %v9386
    %v9523 = vpack.c.bf16 %v9395, %v9387
    %v9524 = vpack.c.bf16 %v9396, %v9388
    %v9525 = vld [vmem:[#allocation11] sm:$0xff]
    %v9526 = vld [vmem:[#allocation11 + $0x8] sm:$0xff]
    %v9527 = vld [vmem:[#allocation11 + $0x10] sm:$0xff]
    %v9528 = vld [vmem:[#allocation11 + $0x18] sm:$0xff]
    %v9529 = vld [vmem:[#allocation11 + $0x20] sm:$0xff]
    %v9530 = vld [vmem:[#allocation11 + $0x28] sm:$0xff]
    %v9531 = vld [vmem:[#allocation11 + $0x30] sm:$0xff]
    %v9532 = vld [vmem:[#allocation11 + $0x38] sm:$0xff]
    %v9533 = vld [vmem:[#allocation11 + $0x40] sm:$0xff]
    %v9534 = vld [vmem:[#allocation11 + $0x48] sm:$0xff]
    %v9535 = vld [vmem:[#allocation11 + $0x50] sm:$0xff]
    %v9536 = vld [vmem:[#allocation11 + $0x58] sm:$0xff]
    %v9537 = vld [vmem:[#allocation11 + $0x60] sm:$0xff]
    %v9538 = vld [vmem:[#allocation11 + $0x68] sm:$0xff]
    %v9539 = vld [vmem:[#allocation11 + $0x70] sm:$0xff]
    %v9540 = vld [vmem:[#allocation11 + $0x78] sm:$0xff]
    %v9541 = vld [vmem:[#allocation11 + $0x80] sm:$0xff]
    %v9542 = vld [vmem:[#allocation11 + $0x88] sm:$0xff]
    %v9543 = vld [vmem:[#allocation11 + $0x90] sm:$0xff]
    %v9544 = vld [vmem:[#allocation11 + $0x98] sm:$0xff]
    %v9545 = vld [vmem:[#allocation11 + $0xa0] sm:$0xff]
    %v9546 = vld [vmem:[#allocation11 + $0xa8] sm:$0xff]
    %v9547 = vld [vmem:[#allocation11 + $0xb0] sm:$0xff]
    %v9548 = vld [vmem:[#allocation11 + $0xb8] sm:$0xff]
    %v9549 = vld [vmem:[#allocation11 + $0xc0] sm:$0xff]
    %v9550 = vld [vmem:[#allocation11 + $0xc8] sm:$0xff]
    %v9551 = vld [vmem:[#allocation11 + $0xd0] sm:$0xff]
    %v9552 = vld [vmem:[#allocation11 + $0xd8] sm:$0xff]
    %v9553 = vld [vmem:[#allocation11 + $0xe0] sm:$0xff]
    %v9554 = vld [vmem:[#allocation11 + $0xe8] sm:$0xff]
    %v9555 = vld [vmem:[#allocation11 + $0xf0] sm:$0xff]
    %v9556 = vld [vmem:[#allocation11 + $0xf8] sm:$0xff]
    %v9557 = vld [vmem:[#allocation11 + $0x100] sm:$0xff]
    %v9558 = vld [vmem:[#allocation11 + $0x108] sm:$0xff]
    %v9559 = vld [vmem:[#allocation11 + $0x110] sm:$0xff]
    %v9560 = vld [vmem:[#allocation11 + $0x118] sm:$0xff]
    %v9561 = vld [vmem:[#allocation11 + $0x120] sm:$0xff]
    %v9562 = vld [vmem:[#allocation11 + $0x128] sm:$0xff]
    %v9563 = vld [vmem:[#allocation11 + $0x130] sm:$0xff]
    %v9564 = vld [vmem:[#allocation11 + $0x138] sm:$0xff]
    %v9565 = vld [vmem:[#allocation11 + $0x140] sm:$0xff]
    %v9566 = vld [vmem:[#allocation11 + $0x148] sm:$0xff]
    %v9567 = vld [vmem:[#allocation11 + $0x150] sm:$0xff]
    %v9568 = vld [vmem:[#allocation11 + $0x158] sm:$0xff]
    %v9569 = vld [vmem:[#allocation11 + $0x160] sm:$0xff]
    %v9570 = vld [vmem:[#allocation11 + $0x168] sm:$0xff]
    %v9571 = vld [vmem:[#allocation11 + $0x170] sm:$0xff]
    %v9572 = vld [vmem:[#allocation11 + $0x178] sm:$0xff]
    %v9573 = vld [vmem:[#allocation11 + $0x180] sm:$0xff]
    %v9574 = vld [vmem:[#allocation11 + $0x188] sm:$0xff]
    %v9575 = vld [vmem:[#allocation11 + $0x190] sm:$0xff]
    %v9576 = vld [vmem:[#allocation11 + $0x198] sm:$0xff]
    %v9577 = vld [vmem:[#allocation11 + $0x1a0] sm:$0xff]
    %v9578 = vld [vmem:[#allocation11 + $0x1a8] sm:$0xff]
    %v9579 = vld [vmem:[#allocation11 + $0x1b0] sm:$0xff]
    %v9580 = vld [vmem:[#allocation11 + $0x1b8] sm:$0xff]
    %v9581 = vld [vmem:[#allocation11 + $0x1c0] sm:$0xff]
    %v9582 = vld [vmem:[#allocation11 + $0x1c8] sm:$0xff]
    %v9583 = vld [vmem:[#allocation11 + $0x1d0] sm:$0xff]
    %v9584 = vld [vmem:[#allocation11 + $0x1d8] sm:$0xff]
    %v9585 = vld [vmem:[#allocation11 + $0x1e0] sm:$0xff]
    %v9586 = vld [vmem:[#allocation11 + $0x1e8] sm:$0xff]
    %v9587 = vld [vmem:[#allocation11 + $0x1f0] sm:$0xff]
    %v9588 = vld [vmem:[#allocation11 + $0x1f8] sm:$0xff]
    %v9589 = vld [vmem:[#allocation11 + $0x200] sm:$0xff]
    %v9590 = vld [vmem:[#allocation11 + $0x208] sm:$0xff]
    %v9591 = vld [vmem:[#allocation11 + $0x210] sm:$0xff]
    %v9592 = vld [vmem:[#allocation11 + $0x218] sm:$0xff]
    %v9593 = vld [vmem:[#allocation11 + $0x220] sm:$0xff]
    %v9594 = vld [vmem:[#allocation11 + $0x228] sm:$0xff]
    %v9595 = vld [vmem:[#allocation11 + $0x230] sm:$0xff]
    %v9596 = vld [vmem:[#allocation11 + $0x238] sm:$0xff]
    %v9597 = vld [vmem:[#allocation11 + $0x240] sm:$0xff]
    %v9598 = vld [vmem:[#allocation11 + $0x248] sm:$0xff]
    %v9599 = vld [vmem:[#allocation11 + $0x250] sm:$0xff]
    %v9600 = vld [vmem:[#allocation11 + $0x258] sm:$0xff]
    %v9601 = vld [vmem:[#allocation11 + $0x260] sm:$0xff]
    %v9602 = vld [vmem:[#allocation11 + $0x268] sm:$0xff]
    %v9603 = vld [vmem:[#allocation11 + $0x270] sm:$0xff]
    %v9604 = vld [vmem:[#allocation11 + $0x278] sm:$0xff]
    %v9605 = vld [vmem:[#allocation11 + $0x280] sm:$0xff]
    %v9606 = vld [vmem:[#allocation11 + $0x288] sm:$0xff]
    %v9607 = vld [vmem:[#allocation11 + $0x290] sm:$0xff]
    %v9608 = vld [vmem:[#allocation11 + $0x298] sm:$0xff]
    %v9609 = vld [vmem:[#allocation11 + $0x2a0] sm:$0xff]
    %v9610 = vld [vmem:[#allocation11 + $0x2a8] sm:$0xff]
    %v9611 = vld [vmem:[#allocation11 + $0x2b0] sm:$0xff]
    %v9612 = vld [vmem:[#allocation11 + $0x2b8] sm:$0xff]
    %v9613 = vld [vmem:[#allocation11 + $0x2c0] sm:$0xff]
    %v9614 = vld [vmem:[#allocation11 + $0x2c8] sm:$0xff]
    %v9615 = vld [vmem:[#allocation11 + $0x2d0] sm:$0xff]
    %v9616 = vld [vmem:[#allocation11 + $0x2d8] sm:$0xff]
    %v9617 = vld [vmem:[#allocation11 + $0x2e0] sm:$0xff]
    %v9618 = vld [vmem:[#allocation11 + $0x2e8] sm:$0xff]
    %v9619 = vld [vmem:[#allocation11 + $0x2f0] sm:$0xff]
    %v9620 = vld [vmem:[#allocation11 + $0x2f8] sm:$0xff]
    %v9621 = vld [vmem:[#allocation11 + $0x300] sm:$0xff]
    %v9622 = vld [vmem:[#allocation11 + $0x308] sm:$0xff]
    %v9623 = vld [vmem:[#allocation11 + $0x310] sm:$0xff]
    %v9624 = vld [vmem:[#allocation11 + $0x318] sm:$0xff]
    %v9625 = vld [vmem:[#allocation11 + $0x320] sm:$0xff]
    %v9626 = vld [vmem:[#allocation11 + $0x328] sm:$0xff]
    %v9627 = vld [vmem:[#allocation11 + $0x330] sm:$0xff]
    %v9628 = vld [vmem:[#allocation11 + $0x338] sm:$0xff]
    %v9629 = vld [vmem:[#allocation11 + $0x340] sm:$0xff]
    %v9630 = vld [vmem:[#allocation11 + $0x348] sm:$0xff]
    %v9631 = vld [vmem:[#allocation11 + $0x350] sm:$0xff]
    %v9632 = vld [vmem:[#allocation11 + $0x358] sm:$0xff]
    %v9633 = vld [vmem:[#allocation11 + $0x360] sm:$0xff]
    %v9634 = vld [vmem:[#allocation11 + $0x368] sm:$0xff]
    %v9635 = vld [vmem:[#allocation11 + $0x370] sm:$0xff]
    %v9636 = vld [vmem:[#allocation11 + $0x378] sm:$0xff]
    %v9637 = vld [vmem:[#allocation11 + $0x380] sm:$0xff]
    %v9638 = vld [vmem:[#allocation11 + $0x388] sm:$0xff]
    %v9639 = vld [vmem:[#allocation11 + $0x390] sm:$0xff]
    %v9640 = vld [vmem:[#allocation11 + $0x398] sm:$0xff]
    %v9641 = vld [vmem:[#allocation11 + $0x3a0] sm:$0xff]
    %v9642 = vld [vmem:[#allocation11 + $0x3a8] sm:$0xff]
    %v9643 = vld [vmem:[#allocation11 + $0x3b0] sm:$0xff]
    %v9644 = vld [vmem:[#allocation11 + $0x3b8] sm:$0xff]
    %v9645 = vld [vmem:[#allocation11 + $0x3c0] sm:$0xff]
    %v9646 = vld [vmem:[#allocation11 + $0x3c8] sm:$0xff]
    %v9647 = vld [vmem:[#allocation11 + $0x3d0] sm:$0xff]
    %v9648 = vld [vmem:[#allocation11 + $0x3d8] sm:$0xff]
    %v9649 = vld [vmem:[#allocation11 + $0x3e0] sm:$0xff]
    %v9650 = vld [vmem:[#allocation11 + $0x3e8] sm:$0xff]
    %v9651 = vld [vmem:[#allocation11 + $0x3f0] sm:$0xff]
    %v9652 = vld [vmem:[#allocation11 + $0x3f8] sm:$0xff]
    %s9653 = scalar_lea.vmem %s7, 1
    %v9654 = vld [vmem:[%s9653] ss:$8 sm:$0x3]
    %v9656 = vlaneseq
    %v9657 = vshrl.u32 %v9656, 7
    %v9658 = vsub.s32 0, %v9657
    %v9659 = vrot.slane %v9654, %v9658
    %v9660 = vlaneseq
    %v9661 = vshrl.u32 %v9660, 7
    %v9662 = vsub.s32 1, %v9661
    %v9663 = vrot.slane %v9654, %v9662
    %v9794 = vunpack.c.l.b16 %v9525
    %v9795 = vunpack.c.h.b16 %v9525
    %v9796 = vunpack.c.l.b16 %v9526
    %v9797 = vunpack.c.h.b16 %v9526
    %v9798 = vunpack.c.l.b16 %v9527
    %v9799 = vunpack.c.h.b16 %v9527
    %v9800 = vunpack.c.l.b16 %v9528
    %v9801 = vunpack.c.h.b16 %v9528
    %v9802 = vunpack.c.l.b16 %v9529
    %v9803 = vunpack.c.h.b16 %v9529
    %v9804 = vunpack.c.l.b16 %v9530
    %v9805 = vunpack.c.h.b16 %v9530
    %v9806 = vunpack.c.l.b16 %v9531
    %v9807 = vunpack.c.h.b16 %v9531
    %v9808 = vunpack.c.l.b16 %v9532
    %v9809 = vunpack.c.h.b16 %v9532
    %v9810 = vunpack.c.l.b16 %v9533
    %v9811 = vunpack.c.h.b16 %v9533
    %v9812 = vunpack.c.l.b16 %v9534
    %v9813 = vunpack.c.h.b16 %v9534
    %v9814 = vunpack.c.l.b16 %v9535
    %v9815 = vunpack.c.h.b16 %v9535
    %v9816 = vunpack.c.l.b16 %v9536
    %v9817 = vunpack.c.h.b16 %v9536
    %v9818 = vunpack.c.l.b16 %v9537
    %v9819 = vunpack.c.h.b16 %v9537
    %v9820 = vunpack.c.l.b16 %v9538
    %v9821 = vunpack.c.h.b16 %v9538
    %v9822 = vunpack.c.l.b16 %v9539
    %v9823 = vunpack.c.h.b16 %v9539
    %v9824 = vunpack.c.l.b16 %v9540
    %v9825 = vunpack.c.h.b16 %v9540
    %v9826 = vunpack.c.l.b16 %v9541
    %v9827 = vunpack.c.h.b16 %v9541
    %v9828 = vunpack.c.l.b16 %v9542
    %v9829 = vunpack.c.h.b16 %v9542
    %v9830 = vunpack.c.l.b16 %v9543
    %v9831 = vunpack.c.h.b16 %v9543
    %v9832 = vunpack.c.l.b16 %v9544
    %v9833 = vunpack.c.h.b16 %v9544
    %v9834 = vunpack.c.l.b16 %v9545
    %v9835 = vunpack.c.h.b16 %v9545
    %v9836 = vunpack.c.l.b16 %v9546
    %v9837 = vunpack.c.h.b16 %v9546
    %v9838 = vunpack.c.l.b16 %v9547
    %v9839 = vunpack.c.h.b16 %v9547
    %v9840 = vunpack.c.l.b16 %v9548
    %v9841 = vunpack.c.h.b16 %v9548
    %v9842 = vunpack.c.l.b16 %v9549
    %v9843 = vunpack.c.h.b16 %v9549
    %v9844 = vunpack.c.l.b16 %v9550
    %v9845 = vunpack.c.h.b16 %v9550
    %v9846 = vunpack.c.l.b16 %v9551
    %v9847 = vunpack.c.h.b16 %v9551
    %v9848 = vunpack.c.l.b16 %v9552
    %v9849 = vunpack.c.h.b16 %v9552
    %v9850 = vunpack.c.l.b16 %v9553
    %v9851 = vunpack.c.h.b16 %v9553
    %v9852 = vunpack.c.l.b16 %v9554
    %v9853 = vunpack.c.h.b16 %v9554
    %v9854 = vunpack.c.l.b16 %v9555
    %v9855 = vunpack.c.h.b16 %v9555
    %v9856 = vunpack.c.l.b16 %v9556
    %v9857 = vunpack.c.h.b16 %v9556
    %v9858 = vunpack.c.l.b16 %v9557
    %v9859 = vunpack.c.h.b16 %v9557
    %v9860 = vunpack.c.l.b16 %v9558
    %v9861 = vunpack.c.h.b16 %v9558
    %v9862 = vunpack.c.l.b16 %v9559
    %v9863 = vunpack.c.h.b16 %v9559
    %v9864 = vunpack.c.l.b16 %v9560
    %v9865 = vunpack.c.h.b16 %v9560
    %v9866 = vunpack.c.l.b16 %v9561
    %v9867 = vunpack.c.h.b16 %v9561
    %v9868 = vunpack.c.l.b16 %v9562
    %v9869 = vunpack.c.h.b16 %v9562
    %v9870 = vunpack.c.l.b16 %v9563
    %v9871 = vunpack.c.h.b16 %v9563
    %v9872 = vunpack.c.l.b16 %v9564
    %v9873 = vunpack.c.h.b16 %v9564
    %v9874 = vunpack.c.l.b16 %v9565
    %v9875 = vunpack.c.h.b16 %v9565
    %v9876 = vunpack.c.l.b16 %v9566
    %v9877 = vunpack.c.h.b16 %v9566
    %v9878 = vunpack.c.l.b16 %v9567
    %v9879 = vunpack.c.h.b16 %v9567
    %v9880 = vunpack.c.l.b16 %v9568
    %v9881 = vunpack.c.h.b16 %v9568
    %v9882 = vunpack.c.l.b16 %v9569
    %v9883 = vunpack.c.h.b16 %v9569
    %v9884 = vunpack.c.l.b16 %v9570
    %v9885 = vunpack.c.h.b16 %v9570
    %v9886 = vunpack.c.l.b16 %v9571
    %v9887 = vunpack.c.h.b16 %v9571
    %v9888 = vunpack.c.l.b16 %v9572
    %v9889 = vunpack.c.h.b16 %v9572
    %v9890 = vunpack.c.l.b16 %v9573
    %v9891 = vunpack.c.h.b16 %v9573
    %v9892 = vunpack.c.l.b16 %v9574
    %v9893 = vunpack.c.h.b16 %v9574
    %v9894 = vunpack.c.l.b16 %v9575
    %v9895 = vunpack.c.h.b16 %v9575
    %v9896 = vunpack.c.l.b16 %v9576
    %v9897 = vunpack.c.h.b16 %v9576
    %v9898 = vunpack.c.l.b16 %v9577
    %v9899 = vunpack.c.h.b16 %v9577
    %v9900 = vunpack.c.l.b16 %v9578
    %v9901 = vunpack.c.h.b16 %v9578
    %v9902 = vunpack.c.l.b16 %v9579
    %v9903 = vunpack.c.h.b16 %v9579
    %v9904 = vunpack.c.l.b16 %v9580
    %v9905 = vunpack.c.h.b16 %v9580
    %v9906 = vunpack.c.l.b16 %v9581
    %v9907 = vunpack.c.h.b16 %v9581
    %v9908 = vunpack.c.l.b16 %v9582
    %v9909 = vunpack.c.h.b16 %v9582
    %v9910 = vunpack.c.l.b16 %v9583
    %v9911 = vunpack.c.h.b16 %v9583
    %v9912 = vunpack.c.l.b16 %v9584
    %v9913 = vunpack.c.h.b16 %v9584
    %v9914 = vunpack.c.l.b16 %v9585
    %v9915 = vunpack.c.h.b16 %v9585
    %v9916 = vunpack.c.l.b16 %v9586
    %v9917 = vunpack.c.h.b16 %v9586
    %v9918 = vunpack.c.l.b16 %v9587
    %v9919 = vunpack.c.h.b16 %v9587
    %v9920 = vunpack.c.l.b16 %v9588
    %v9921 = vunpack.c.h.b16 %v9588
    %v9922 = vunpack.c.l.b16 %v9589
    %v9923 = vunpack.c.h.b16 %v9589
    %v9924 = vunpack.c.l.b16 %v9590
    %v9925 = vunpack.c.h.b16 %v9590
    %v9926 = vunpack.c.l.b16 %v9591
    %v9927 = vunpack.c.h.b16 %v9591
    %v9928 = vunpack.c.l.b16 %v9592
    %v9929 = vunpack.c.h.b16 %v9592
    %v9930 = vunpack.c.l.b16 %v9593
    %v9931 = vunpack.c.h.b16 %v9593
    %v9932 = vunpack.c.l.b16 %v9594
    %v9933 = vunpack.c.h.b16 %v9594
    %v9934 = vunpack.c.l.b16 %v9595
    %v9935 = vunpack.c.h.b16 %v9595
    %v9936 = vunpack.c.l.b16 %v9596
    %v9937 = vunpack.c.h.b16 %v9596
    %v9938 = vunpack.c.l.b16 %v9597
    %v9939 = vunpack.c.h.b16 %v9597
    %v9940 = vunpack.c.l.b16 %v9598
    %v9941 = vunpack.c.h.b16 %v9598
    %v9942 = vunpack.c.l.b16 %v9599
    %v9943 = vunpack.c.h.b16 %v9599
    %v9944 = vunpack.c.l.b16 %v9600
    %v9945 = vunpack.c.h.b16 %v9600
    %v9946 = vunpack.c.l.b16 %v9601
    %v9947 = vunpack.c.h.b16 %v9601
    %v9948 = vunpack.c.l.b16 %v9602
    %v9949 = vunpack.c.h.b16 %v9602
    %v9950 = vunpack.c.l.b16 %v9603
    %v9951 = vunpack.c.h.b16 %v9603
    %v9952 = vunpack.c.l.b16 %v9604
    %v9953 = vunpack.c.h.b16 %v9604
    %v9954 = vunpack.c.l.b16 %v9605
    %v9955 = vunpack.c.h.b16 %v9605
    %v9956 = vunpack.c.l.b16 %v9606
    %v9957 = vunpack.c.h.b16 %v9606
    %v9958 = vunpack.c.l.b16 %v9607
    %v9959 = vunpack.c.h.b16 %v9607
    %v9960 = vunpack.c.l.b16 %v9608
    %v9961 = vunpack.c.h.b16 %v9608
    %v9962 = vunpack.c.l.b16 %v9609
    %v9963 = vunpack.c.h.b16 %v9609
    %v9964 = vunpack.c.l.b16 %v9610
    %v9965 = vunpack.c.h.b16 %v9610
    %v9966 = vunpack.c.l.b16 %v9611
    %v9967 = vunpack.c.h.b16 %v9611
    %v9968 = vunpack.c.l.b16 %v9612
    %v9969 = vunpack.c.h.b16 %v9612
    %v9970 = vunpack.c.l.b16 %v9613
    %v9971 = vunpack.c.h.b16 %v9613
    %v9972 = vunpack.c.l.b16 %v9614
    %v9973 = vunpack.c.h.b16 %v9614
    %v9974 = vunpack.c.l.b16 %v9615
    %v9975 = vunpack.c.h.b16 %v9615
    %v9976 = vunpack.c.l.b16 %v9616
    %v9977 = vunpack.c.h.b16 %v9616
    %v9978 = vunpack.c.l.b16 %v9617
    %v9979 = vunpack.c.h.b16 %v9617
    %v9980 = vunpack.c.l.b16 %v9618
    %v9981 = vunpack.c.h.b16 %v9618
    %v9982 = vunpack.c.l.b16 %v9619
    %v9983 = vunpack.c.h.b16 %v9619
    %v9984 = vunpack.c.l.b16 %v9620
    %v9985 = vunpack.c.h.b16 %v9620
    %v9986 = vunpack.c.l.b16 %v9621
    %v9987 = vunpack.c.h.b16 %v9621
    %v9988 = vunpack.c.l.b16 %v9622
    %v9989 = vunpack.c.h.b16 %v9622
    %v9990 = vunpack.c.l.b16 %v9623
    %v9991 = vunpack.c.h.b16 %v9623
    %v9992 = vunpack.c.l.b16 %v9624
    %v9993 = vunpack.c.h.b16 %v9624
    %v9994 = vunpack.c.l.b16 %v9625
    %v9995 = vunpack.c.h.b16 %v9625
    %v9996 = vunpack.c.l.b16 %v9626
    %v9997 = vunpack.c.h.b16 %v9626
    %v9998 = vunpack.c.l.b16 %v9627
    %v9999 = vunpack.c.h.b16 %v9627
    %v10000 = vunpack.c.l.b16 %v9628
    %v10001 = vunpack.c.h.b16 %v9628
    %v10002 = vunpack.c.l.b16 %v9629
    %v10003 = vunpack.c.h.b16 %v9629
    %v10004 = vunpack.c.l.b16 %v9630
    %v10005 = vunpack.c.h.b16 %v9630
    %v10006 = vunpack.c.l.b16 %v9631
    %v10007 = vunpack.c.h.b16 %v9631
    %v10008 = vunpack.c.l.b16 %v9632
    %v10009 = vunpack.c.h.b16 %v9632
    %v10010 = vunpack.c.l.b16 %v9633
    %v10011 = vunpack.c.h.b16 %v9633
    %v10012 = vunpack.c.l.b16 %v9634
    %v10013 = vunpack.c.h.b16 %v9634
    %v10014 = vunpack.c.l.b16 %v9635
    %v10015 = vunpack.c.h.b16 %v9635
    %v10016 = vunpack.c.l.b16 %v9636
    %v10017 = vunpack.c.h.b16 %v9636
    %v10018 = vunpack.c.l.b16 %v9637
    %v10019 = vunpack.c.h.b16 %v9637
    %v10020 = vunpack.c.l.b16 %v9638
    %v10021 = vunpack.c.h.b16 %v9638
    %v10022 = vunpack.c.l.b16 %v9639
    %v10023 = vunpack.c.h.b16 %v9639
    %v10024 = vunpack.c.l.b16 %v9640
    %v10025 = vunpack.c.h.b16 %v9640
    %v10026 = vunpack.c.l.b16 %v9641
    %v10027 = vunpack.c.h.b16 %v9641
    %v10028 = vunpack.c.l.b16 %v9642
    %v10029 = vunpack.c.h.b16 %v9642
    %v10030 = vunpack.c.l.b16 %v9643
    %v10031 = vunpack.c.h.b16 %v9643
    %v10032 = vunpack.c.l.b16 %v9644
    %v10033 = vunpack.c.h.b16 %v9644
    %v10034 = vunpack.c.l.b16 %v9645
    %v10035 = vunpack.c.h.b16 %v9645
    %v10036 = vunpack.c.l.b16 %v9646
    %v10037 = vunpack.c.h.b16 %v9646
    %v10038 = vunpack.c.l.b16 %v9647
    %v10039 = vunpack.c.h.b16 %v9647
    %v10040 = vunpack.c.l.b16 %v9648
    %v10041 = vunpack.c.h.b16 %v9648
    %v10042 = vunpack.c.l.b16 %v9649
    %v10043 = vunpack.c.h.b16 %v9649
    %v10044 = vunpack.c.l.b16 %v9650
    %v10045 = vunpack.c.h.b16 %v9650
    %v10046 = vunpack.c.l.b16 %v9651
    %v10047 = vunpack.c.h.b16 %v9651
    %v10048 = vunpack.c.l.b16 %v9652
    %v10049 = vunpack.c.h.b16 %v9652
    %v10050 = vpack.c.b16 %v9796, %v9794
    %v10051 = vpack.c.b16 %v9797, %v9795
    %v10052 = vpack.c.b16 %v9800, %v9798
    %v10053 = vpack.c.b16 %v9801, %v9799
    %v10054 = vpack.c.b16 %v9804, %v9802
    %v10055 = vpack.c.b16 %v9805, %v9803
    %v10056 = vpack.c.b16 %v9808, %v9806
    %v10057 = vpack.c.b16 %v9809, %v9807
    %v10058 = vpack.c.b16 %v9812, %v9810
    %v10059 = vpack.c.b16 %v9813, %v9811
    %v10060 = vpack.c.b16 %v9816, %v9814
    %v10061 = vpack.c.b16 %v9817, %v9815
    %v10062 = vpack.c.b16 %v9820, %v9818
    %v10063 = vpack.c.b16 %v9821, %v9819
    %v10064 = vpack.c.b16 %v9824, %v9822
    %v10065 = vpack.c.b16 %v9825, %v9823
    %v10066 = vpack.c.b16 %v9828, %v9826
    %v10067 = vpack.c.b16 %v9829, %v9827
    %v10068 = vpack.c.b16 %v9832, %v9830
    %v10069 = vpack.c.b16 %v9833, %v9831
    %v10070 = vpack.c.b16 %v9836, %v9834
    %v10071 = vpack.c.b16 %v9837, %v9835
    %v10072 = vpack.c.b16 %v9840, %v9838
    %v10073 = vpack.c.b16 %v9841, %v9839
    %v10074 = vpack.c.b16 %v9844, %v9842
    %v10075 = vpack.c.b16 %v9845, %v9843
    %v10076 = vpack.c.b16 %v9848, %v9846
    %v10077 = vpack.c.b16 %v9849, %v9847
    %v10078 = vpack.c.b16 %v9852, %v9850
    %v10079 = vpack.c.b16 %v9853, %v9851
    %v10080 = vpack.c.b16 %v9856, %v9854
    %v10081 = vpack.c.b16 %v9857, %v9855
    %v10082 = vpack.c.b16 %v9860, %v9858
    %v10083 = vpack.c.b16 %v9861, %v9859
    %v10084 = vpack.c.b16 %v9864, %v9862
    %v10085 = vpack.c.b16 %v9865, %v9863
    %v10086 = vpack.c.b16 %v9868, %v9866
    %v10087 = vpack.c.b16 %v9869, %v9867
    %v10088 = vpack.c.b16 %v9872, %v9870
    %v10089 = vpack.c.b16 %v9873, %v9871
    %v10090 = vpack.c.b16 %v9876, %v9874
    %v10091 = vpack.c.b16 %v9877, %v9875
    %v10092 = vpack.c.b16 %v9880, %v9878
    %v10093 = vpack.c.b16 %v9881, %v9879
    %v10094 = vpack.c.b16 %v9884, %v9882
    %v10095 = vpack.c.b16 %v9885, %v9883
    %v10096 = vpack.c.b16 %v9888, %v9886
    %v10097 = vpack.c.b16 %v9889, %v9887
    %v10098 = vpack.c.b16 %v9892, %v9890
    %v10099 = vpack.c.b16 %v9893, %v9891
    %v10100 = vpack.c.b16 %v9896, %v9894
    %v10101 = vpack.c.b16 %v9897, %v9895
    %v10102 = vpack.c.b16 %v9900, %v9898
    %v10103 = vpack.c.b16 %v9901, %v9899
    %v10104 = vpack.c.b16 %v9904, %v9902
    %v10105 = vpack.c.b16 %v9905, %v9903
    %v10106 = vpack.c.b16 %v9908, %v9906
    %v10107 = vpack.c.b16 %v9909, %v9907
    %v10108 = vpack.c.b16 %v9912, %v9910
    %v10109 = vpack.c.b16 %v9913, %v9911
    %v10110 = vpack.c.b16 %v9916, %v9914
    %v10111 = vpack.c.b16 %v9917, %v9915
    %v10112 = vpack.c.b16 %v9920, %v9918
    %v10113 = vpack.c.b16 %v9921, %v9919
    %v10114 = vpack.c.b16 %v9924, %v9922
    %v10115 = vpack.c.b16 %v9925, %v9923
    %v10116 = vpack.c.b16 %v9928, %v9926
    %v10117 = vpack.c.b16 %v9929, %v9927
    %v10118 = vpack.c.b16 %v9932, %v9930
    %v10119 = vpack.c.b16 %v9933, %v9931
    %v10120 = vpack.c.b16 %v9936, %v9934
    %v10121 = vpack.c.b16 %v9937, %v9935
    %v10122 = vpack.c.b16 %v9940, %v9938
    %v10123 = vpack.c.b16 %v9941, %v9939
    %v10124 = vpack.c.b16 %v9944, %v9942
    %v10125 = vpack.c.b16 %v9945, %v9943
    %v10126 = vpack.c.b16 %v9948, %v9946
    %v10127 = vpack.c.b16 %v9949, %v9947
    %v10128 = vpack.c.b16 %v9952, %v9950
    %v10129 = vpack.c.b16 %v9953, %v9951
    %v10130 = vpack.c.b16 %v9956, %v9954
    %v10131 = vpack.c.b16 %v9957, %v9955
    %v10132 = vpack.c.b16 %v9960, %v9958
    %v10133 = vpack.c.b16 %v9961, %v9959
    %v10134 = vpack.c.b16 %v9964, %v9962
    %v10135 = vpack.c.b16 %v9965, %v9963
    %v10136 = vpack.c.b16 %v9968, %v9966
    %v10137 = vpack.c.b16 %v9969, %v9967
    %v10138 = vpack.c.b16 %v9972, %v9970
    %v10139 = vpack.c.b16 %v9973, %v9971
    %v10140 = vpack.c.b16 %v9976, %v9974
    %v10141 = vpack.c.b16 %v9977, %v9975
    %v10142 = vpack.c.b16 %v9980, %v9978
    %v10143 = vpack.c.b16 %v9981, %v9979
    %v10144 = vpack.c.b16 %v9984, %v9982
    %v10145 = vpack.c.b16 %v9985, %v9983
    %v10146 = vpack.c.b16 %v9988, %v9986
    %v10147 = vpack.c.b16 %v9989, %v9987
    %v10148 = vpack.c.b16 %v9992, %v9990
    %v10149 = vpack.c.b16 %v9993, %v9991
    %v10150 = vpack.c.b16 %v9996, %v9994
    %v10151 = vpack.c.b16 %v9997, %v9995
    %v10152 = vpack.c.b16 %v10000, %v9998
    %v10153 = vpack.c.b16 %v10001, %v9999
    %v10154 = vpack.c.b16 %v10004, %v10002
    %v10155 = vpack.c.b16 %v10005, %v10003
    %v10156 = vpack.c.b16 %v10008, %v10006
    %v10157 = vpack.c.b16 %v10009, %v10007
    %v10158 = vpack.c.b16 %v10012, %v10010
    %v10159 = vpack.c.b16 %v10013, %v10011
    %v10160 = vpack.c.b16 %v10016, %v10014
    %v10161 = vpack.c.b16 %v10017, %v10015
    %v10162 = vpack.c.b16 %v10020, %v10018
    %v10163 = vpack.c.b16 %v10021, %v10019
    %v10164 = vpack.c.b16 %v10024, %v10022
    %v10165 = vpack.c.b16 %v10025, %v10023
    %v10166 = vpack.c.b16 %v10028, %v10026
    %v10167 = vpack.c.b16 %v10029, %v10027
    %v10168 = vpack.c.b16 %v10032, %v10030
    %v10169 = vpack.c.b16 %v10033, %v10031
    %v10170 = vpack.c.b16 %v10036, %v10034
    %v10171 = vpack.c.b16 %v10037, %v10035
    %v10172 = vpack.c.b16 %v10040, %v10038
    %v10173 = vpack.c.b16 %v10041, %v10039
    %v10174 = vpack.c.b16 %v10044, %v10042
    %v10175 = vpack.c.b16 %v10045, %v10043
    %v10176 = vpack.c.b16 %v10048, %v10046
    %v10177 = vpack.c.b16 %v10049, %v10047
    %10306 = vmatprep.subr.bf16.mxu0 %v10051
    %10307 = vmatpush1.bf16.msra.mxu0 %v10050
    %10308 = vmatprep.subr.bf16.mxu0 %v10053
    %10309 = vmatpush1.bf16.msra.mxu0 %v10052
    %10310 = vmatprep.subr.bf16.mxu0 %v10055
    %10311 = vmatpush1.bf16.msra.mxu0 %v10054
    %10312 = vmatprep.subr.bf16.mxu0 %v10057
    %10313 = vmatpush1.bf16.msra.mxu0 %v10056
    %10314 = vmatprep.subr.bf16.mxu0 %v10059
    %10315 = vmatpush1.bf16.msra.mxu0 %v10058
    %10316 = vmatprep.subr.bf16.mxu0 %v10061
    %10317 = vmatpush1.bf16.msra.mxu0 %v10060
    %10318 = vmatprep.subr.bf16.mxu0 %v10063
    %10319 = vmatpush1.bf16.msra.mxu0 %v10062
    %10320 = vmatprep.subr.bf16.mxu0 %v10065
    %10321 = vmatpush1.bf16.msra.mxu0 %v10064
    %10322 = vmatprep.subr.bf16.mxu0 %v10067
    %10323 = vmatpush1.bf16.msra.mxu0 %v10066
    %10324 = vmatprep.subr.bf16.mxu0 %v10069
    %10325 = vmatpush1.bf16.msra.mxu0 %v10068
    %10326 = vmatprep.subr.bf16.mxu0 %v10071
    %10327 = vmatpush1.bf16.msra.mxu0 %v10070
    %10328 = vmatprep.subr.bf16.mxu0 %v10073
    %10329 = vmatpush1.bf16.msra.mxu0 %v10072
    %10330 = vmatprep.subr.bf16.mxu0 %v10075
    %10331 = vmatpush1.bf16.msra.mxu0 %v10074
    %10332 = vmatprep.subr.bf16.mxu0 %v10077
    %10333 = vmatpush1.bf16.msra.mxu0 %v10076
    %10334 = vmatprep.subr.bf16.mxu0 %v10079
    %10335 = vmatpush1.bf16.msra.mxu0 %v10078
    %10336 = vmatprep.subr.bf16.mxu0 %v10081
    %10337 = vmatpush1.bf16.msra.mxu0 %v10080
    %10338 = vmatprep.mubr.bf16.mxu0 %v9398
    %10339 = vmatmul.mubr.bf16.gmra.mrb[0].mxu0 %v9397
    %v10340 = vpop.f32.mrb[0].mxu0
    %v10341 = vadd.f32 %v9659, %v10340
    %v10342 = vpop.f32.mrb[0].mxu0
    %v10343 = vadd.f32 %v9663, %v10342
    %v10344 = vpop.f32.mrb[0].mxu0
    %v10345 = vadd.f32 %v9659, %v10344
    %v10346 = vpop.f32.mrb[0].mxu0
    %v10347 = vadd.f32 %v9663, %v10346
    %10348 = vmatprep.mubr.bf16.mxu0 %v9406
    %10349 = vmatmul.mubr.bf16.gmra.mrb[0].mxu0 %v9405
    %v10350 = vpop.f32.mrb[0].mxu0
    %v10351 = vadd.f32 %v9659, %v10350
    %v10352 = vpop.f32.mrb[0].mxu0
    %v10353 = vadd.f32 %v9663, %v10352
    %v10354 = vpop.f32.mrb[0].mxu0
    %v10355 = vadd.f32 %v9659, %v10354
    %v10356 = vpop.f32.mrb[0].mxu0
    %v10357 = vadd.f32 %v9663, %v10356
    %10358 = vmatprep.mubr.bf16.mxu0 %v9414
    %10359 = vmatmul.mubr.bf16.gmra.mrb[0].mxu0 %v9413
    %v10360 = vpop.f32.mrb[0].mxu0
    %v10361 = vadd.f32 %v9659, %v10360
    %v10362 = vpop.f32.mrb[0].mxu0
    %v10363 = vadd.f32 %v9663, %v10362
    %v10364 = vpop.f32.mrb[0].mxu0
    %v10365 = vadd.f32 %v9659, %v10364
    %v10366 = vpop.f32.mrb[0].mxu0
    %v10367 = vadd.f32 %v9663, %v10366
    %10368 = vmatprep.mubr.bf16.mxu0 %v9422
    %10369 = vmatmul.mubr.bf16.gmra.mrb[0].mxu0 %v9421
    %v10370 = vpop.f32.mrb[0].mxu0
    %v10371 = vadd.f32 %v9659, %v10370
    %v10372 = vpop.f32.mrb[0].mxu0
    %v10373 = vadd.f32 %v9663, %v10372
    %v10374 = vpop.f32.mrb[0].mxu0
    %v10375 = vadd.f32 %v9659, %v10374
    %v10376 = vpop.f32.mrb[0].mxu0
    %v10377 = vadd.f32 %v9663, %v10376
    %10378 = vmatprep.mubr.bf16.mxu0 %v9430
    %10379 = vmatmul.mubr.bf16.gmra.mrb[0].mxu0 %v9429
    %v10380 = vpop.f32.mrb[0].mxu0
    %v10381 = vadd.f32 %v9659, %v10380
    %v10382 = vpop.f32.mrb[0].mxu0
    %v10383 = vadd.f32 %v9663, %v10382
    %v10384 = vpop.f32.mrb[0].mxu0
    %v10385 = vadd.f32 %v9659, %v10384
    %v10386 = vpop.f32.mrb[0].mxu0
    %v10387 = vadd.f32 %v9663, %v10386
    %10388 = vmatprep.mubr.bf16.mxu0 %v9438
    %10389 = vmatmul.mubr.bf16.gmra.mrb[0].mxu0 %v9437
    %v10390 = vpop.f32.mrb[0].mxu0
    %v10391 = vadd.f32 %v9659, %v10390
    %v10392 = vpop.f32.mrb[0].mxu0
    %v10393 = vadd.f32 %v9663, %v10392
    %v10394 = vpop.f32.mrb[0].mxu0
    %v10395 = vadd.f32 %v9659, %v10394
    %v10396 = vpop.f32.mrb[0].mxu0
    %v10397 = vadd.f32 %v9663, %v10396
    %10398 = vmatprep.mubr.bf16.mxu0 %v9446
    %10399 = vmatmul.mubr.bf16.gmra.mrb[0].mxu0 %v9445
    %v10400 = vpop.f32.mrb[0].mxu0
    %v10401 = vadd.f32 %v9659, %v10400
    %v10402 = vpop.f32.mrb[0].mxu0
    %v10403 = vadd.f32 %v9663, %v10402
    %v10404 = vpop.f32.mrb[0].mxu0
    %v10405 = vadd.f32 %v9659, %v10404
    %v10406 = vpop.f32.mrb[0].mxu0
    %v10407 = vadd.f32 %v9663, %v10406
    %10408 = vmatprep.mubr.bf16.mxu0 %v9454
    %10409 = vmatmul.mubr.bf16.gmra.mrb[0].mxu0 %v9453
    %v10410 = vpop.f32.mrb[0].mxu0
    %v10411 = vadd.f32 %v9659, %v10410
    %v10412 = vpop.f32.mrb[0].mxu0
    %v10413 = vadd.f32 %v9663, %v10412
    %v10414 = vpop.f32.mrb[0].mxu0
    %v10415 = vadd.f32 %v9659, %v10414
    %v10416 = vpop.f32.mrb[0].mxu0
    %v10417 = vadd.f32 %v9663, %v10416
    %10418 = vmatprep.mubr.bf16.mxu0 %v9462
    %10419 = vmatmul.mubr.bf16.gmra.mrb[0].mxu0 %v9461
    %v10420 = vpop.f32.mrb[0].mxu0
    %v10421 = vadd.f32 %v9659, %v10420
    %v10422 = vpop.f32.mrb[0].mxu0
    %v10423 = vadd.f32 %v9663, %v10422
    %v10424 = vpop.f32.mrb[0].mxu0
    %v10425 = vadd.f32 %v9659, %v10424
    %v10426 = vpop.f32.mrb[0].mxu0
    %v10427 = vadd.f32 %v9663, %v10426
    %10428 = vmatprep.mubr.bf16.mxu0 %v9470
    %10429 = vmatmul.mubr.bf16.gmra.mrb[0].mxu0 %v9469
    %v10430 = vpop.f32.mrb[0].mxu0
    %v10431 = vadd.f32 %v9659, %v10430
    %v10432 = vpop.f32.mrb[0].mxu0
    %v10433 = vadd.f32 %v9663, %v10432
    %v10434 = vpop.f32.mrb[0].mxu0
    %v10435 = vadd.f32 %v9659, %v10434
    %v10436 = vpop.f32.mrb[0].mxu0
    %v10437 = vadd.f32 %v9663, %v10436
    %10438 = vmatprep.mubr.bf16.mxu0 %v9478
    %10439 = vmatmul.mubr.bf16.gmra.mrb[0].mxu0 %v9477
    %v10440 = vpop.f32.mrb[0].mxu0
    %v10441 = vadd.f32 %v9659, %v10440
    %v10442 = vpop.f32.mrb[0].mxu0
    %v10443 = vadd.f32 %v9663, %v10442
    %v10444 = vpop.f32.mrb[0].mxu0
    %v10445 = vadd.f32 %v9659, %v10444
    %v10446 = vpop.f32.mrb[0].mxu0
    %v10447 = vadd.f32 %v9663, %v10446
    %10448 = vmatprep.mubr.bf16.mxu0 %v9486
    %10449 = vmatmul.mubr.bf16.gmra.mrb[0].mxu0 %v9485
    %v10450 = vpop.f32.mrb[0].mxu0
    %v10451 = vadd.f32 %v9659, %v10450
    %v10452 = vpop.f32.mrb[0].mxu0
    %v10453 = vadd.f32 %v9663, %v10452
    %v10454 = vpop.f32.mrb[0].mxu0
    %v10455 = vadd.f32 %v9659, %v10454
    %v10456 = vpop.f32.mrb[0].mxu0
    %v10457 = vadd.f32 %v9663, %v10456
    %10458 = vmatprep.mubr.bf16.mxu0 %v9494
    %10459 = vmatmul.mubr.bf16.gmra.mrb[0].mxu0 %v9493
    %v10460 = vpop.f32.mrb[0].mxu0
    %v10461 = vadd.f32 %v9659, %v10460
    %v10462 = vpop.f32.mrb[0].mxu0
    %v10463 = vadd.f32 %v9663, %v10462
    %v10464 = vpop.f32.mrb[0].mxu0
    %v10465 = vadd.f32 %v9659, %v10464
    %v10466 = vpop.f32.mrb[0].mxu0
    %v10467 = vadd.f32 %v9663, %v10466
    %10468 = vmatprep.mubr.bf16.mxu0 %v9502
    %10469 = vmatmul.mubr.bf16.gmra.mrb[0].mxu0 %v9501
    %v10470 = vpop.f32.mrb[0].mxu0
    %v10471 = vadd.f32 %v9659, %v10470
    %v10472 = vpop.f32.mrb[0].mxu0
    %v10473 = vadd.f32 %v9663, %v10472
    %v10474 = vpop.f32.mrb[0].mxu0
    %v10475 = vadd.f32 %v9659, %v10474
    %v10476 = vpop.f32.mrb[0].mxu0
    %v10477 = vadd.f32 %v9663, %v10476
    %10478 = vmatprep.mubr.bf16.mxu0 %v9510
    %10479 = vmatmul.mubr.bf16.gmra.mrb[0].mxu0 %v9509
    %v10480 = vpop.f32.mrb[0].mxu0
    %v10481 = vadd.f32 %v9659, %v10480
    %v10482 = vpop.f32.mrb[0].mxu0
    %v10483 = vadd.f32 %v9663, %v10482
    %v10484 = vpop.f32.mrb[0].mxu0
    %v10485 = vadd.f32 %v9659, %v10484
    %v10486 = vpop.f32.mrb[0].mxu0
    %v10487 = vadd.f32 %v9663, %v10486
    %10488 = vmatprep.mubr.bf16.mxu0 %v9518
    %10489 = vmatmul.mubr.bf16.gmra.mrb[0].mxu0 %v9517
    %v10490 = vpop.f32.mrb[0].mxu0
    %v10491 = vadd.f32 %v9659, %v10490
    %v10492 = vpop.f32.mrb[0].mxu0
    %v10493 = vadd.f32 %v9663, %v10492
    %v10494 = vpop.f32.mrb[0].mxu0
    %v10495 = vadd.f32 %v9659, %v10494
    %v10496 = vpop.f32.mrb[0].mxu0
    %v10497 = vadd.f32 %v9663, %v10496
    %10498 = vdwg.mxu0
    %10499 = vmatprep.subr.bf16.mxu0 %v10083
    %10500 = vmatpush1.bf16.msra.mxu0 %v10082
    %10501 = vmatprep.subr.bf16.mxu0 %v10085
    %10502 = vmatpush1.bf16.msra.mxu0 %v10084
    %10503 = vmatprep.subr.bf16.mxu0 %v10087
    %10504 = vmatpush1.bf16.msra.mxu0 %v10086
    %10505 = vmatprep.subr.bf16.mxu0 %v10089
    %10506 = vmatpush1.bf16.msra.mxu0 %v10088
    %10507 = vmatprep.subr.bf16.mxu0 %v10091
    %10508 = vmatpush1.bf16.msra.mxu0 %v10090
    %10509 = vmatprep.subr.bf16.mxu0 %v10093
    %10510 = vmatpush1.bf16.msra.mxu0 %v10092
    %10511 = vmatprep.subr.bf16.mxu0 %v10095
    %10512 = vmatpush1.bf16.msra.mxu0 %v10094
    %10513 = vmatprep.subr.bf16.mxu0 %v10097
    %10514 = vmatpush1.bf16.msra.mxu0 %v10096
    %10515 = vmatprep.subr.bf16.mxu0 %v10099
    %10516 = vmatpush1.bf16.msra.mxu0 %v10098
    %10517 = vmatprep.subr.bf16.mxu0 %v10101
    %10518 = vmatpush1.bf16.msra.mxu0 %v10100
    %10519 = vmatprep.subr.bf16.mxu0 %v10103
    %10520 = vmatpush1.bf16.msra.mxu0 %v10102
    %10521 = vmatprep.subr.bf16.mxu0 %v10105
    %10522 = vmatpush1.bf16.msra.mxu0 %v10104
    %10523 = vmatprep.subr.bf16.mxu0 %v10107
    %10524 = vmatpush1.bf16.msra.mxu0 %v10106
    %10525 = vmatprep.subr.bf16.mxu0 %v10109
    %10526 = vmatpush1.bf16.msra.mxu0 %v10108
    %10527 = vmatprep.subr.bf16.mxu0 %v10111
    %10528 = vmatpush1.bf16.msra.mxu0 %v10110
    %10529 = vmatprep.subr.bf16.mxu0 %v10113
    %10530 = vmatpush1.bf16.msra.mxu0 %v10112
    %10531 = vmatprep.mubr.bf16.mxu0 %v9400
    %10532 = vmatmul.mubr.bf16.gmra.mrb[0].mxu0 %v9399
    %v10533 = vpop.f32.mrb[0].mxu0
    %v10534 = vadd.f32 %v10341, %v10533
    %v10535 = vpop.f32.mrb[0].mxu0
    %v10536 = vadd.f32 %v10343, %v10535
    %v10537 = vpop.f32.mrb[0].mxu0
    %v10538 = vadd.f32 %v10345, %v10537
    %v10539 = vpop.f32.mrb[0].mxu0
    %v10540 = vadd.f32 %v10347, %v10539
    %10541 = vmatprep.mubr.bf16.mxu0 %v9408
    %10542 = vmatmul.mubr.bf16.gmra.mrb[0].mxu0 %v9407
    %v10543 = vpop.f32.mrb[0].mxu0
    %v10544 = vadd.f32 %v10351, %v10543
    %v10545 = vpop.f32.mrb[0].mxu0
    %v10546 = vadd.f32 %v10353, %v10545
    %v10547 = vpop.f32.mrb[0].mxu0
    %v10548 = vadd.f32 %v10355, %v10547
    %v10549 = vpop.f32.mrb[0].mxu0
    %v10550 = vadd.f32 %v10357, %v10549
    %10551 = vmatprep.mubr.bf16.mxu0 %v9416
    %10552 = vmatmul.mubr.bf16.gmra.mrb[0].mxu0 %v9415
    %v10553 = vpop.f32.mrb[0].mxu0
    %v10554 = vadd.f32 %v10361, %v10553
    %v10555 = vpop.f32.mrb[0].mxu0
    %v10556 = vadd.f32 %v10363, %v10555
    %v10557 = vpop.f32.mrb[0].mxu0
    %v10558 = vadd.f32 %v10365, %v10557
    %v10559 = vpop.f32.mrb[0].mxu0
    %v10560 = vadd.f32 %v10367, %v10559
    %10561 = vmatprep.mubr.bf16.mxu0 %v9424
    %10562 = vmatmul.mubr.bf16.gmra.mrb[0].mxu0 %v9423
    %v10563 = vpop.f32.mrb[0].mxu0
    %v10564 = vadd.f32 %v10371, %v10563
    %v10565 = vpop.f32.mrb[0].mxu0
    %v10566 = vadd.f32 %v10373, %v10565
    %v10567 = vpop.f32.mrb[0].mxu0
    %v10568 = vadd.f32 %v10375, %v10567
    %v10569 = vpop.f32.mrb[0].mxu0
    %v10570 = vadd.f32 %v10377, %v10569
    %10571 = vmatprep.mubr.bf16.mxu0 %v9432
    %10572 = vmatmul.mubr.bf16.gmra.mrb[0].mxu0 %v9431
    %v10573 = vpop.f32.mrb[0].mxu0
    %v10574 = vadd.f32 %v10381, %v10573
    %v10575 = vpop.f32.mrb[0].mxu0
    %v10576 = vadd.f32 %v10383, %v10575
    %v10577 = vpop.f32.mrb[0].mxu0
    %v10578 = vadd.f32 %v10385, %v10577
    %v10579 = vpop.f32.mrb[0].mxu0
    %v10580 = vadd.f32 %v10387, %v10579
    %10581 = vmatprep.mubr.bf16.mxu0 %v9440
    %10582 = vmatmul.mubr.bf16.gmra.mrb[0].mxu0 %v9439
    %v10583 = vpop.f32.mrb[0].mxu0
    %v10584 = vadd.f32 %v10391, %v10583
    %v10585 = vpop.f32.mrb[0].mxu0
    %v10586 = vadd.f32 %v10393, %v10585
    %v10587 = vpop.f32.mrb[0].mxu0
    %v10588 = vadd.f32 %v10395, %v10587
    %v10589 = vpop.f32.mrb[0].mxu0
    %v10590 = vadd.f32 %v10397, %v10589
    %10591 = vmatprep.mubr.bf16.mxu0 %v9448
    %10592 = vmatmul.mubr.bf16.gmra.mrb[0].mxu0 %v9447
    %v10593 = vpop.f32.mrb[0].mxu0
    %v10594 = vadd.f32 %v10401, %v10593
    %v10595 = vpop.f32.mrb[0].mxu0
    %v10596 = vadd.f32 %v10403, %v10595
    %v10597 = vpop.f32.mrb[0].mxu0
    %v10598 = vadd.f32 %v10405, %v10597
    %v10599 = vpop.f32.mrb[0].mxu0
    %v10600 = vadd.f32 %v10407, %v10599
    %10601 = vmatprep.mubr.bf16.mxu0 %v9456
    %10602 = vmatmul.mubr.bf16.gmra.mrb[0].mxu0 %v9455
    %v10603 = vpop.f32.mrb[0].mxu0
    %v10604 = vadd.f32 %v10411, %v10603
    %v10605 = vpop.f32.mrb[0].mxu0
    %v10606 = vadd.f32 %v10413, %v10605
    %v10607 = vpop.f32.mrb[0].mxu0
    %v10608 = vadd.f32 %v10415, %v10607
    %v10609 = vpop.f32.mrb[0].mxu0
    %v10610 = vadd.f32 %v10417, %v10609
    %10611 = vmatprep.mubr.bf16.mxu0 %v9464
    %10612 = vmatmul.mubr.bf16.gmra.mrb[0].mxu0 %v9463
    %v10613 = vpop.f32.mrb[0].mxu0
    %v10614 = vadd.f32 %v10421, %v10613
    %v10615 = vpop.f32.mrb[0].mxu0
    %v10616 = vadd.f32 %v10423, %v10615
    %v10617 = vpop.f32.mrb[0].mxu0
    %v10618 = vadd.f32 %v10425, %v10617
    %v10619 = vpop.f32.mrb[0].mxu0
    %v10620 = vadd.f32 %v10427, %v10619
    %10621 = vmatprep.mubr.bf16.mxu0 %v9472
    %10622 = vmatmul.mubr.bf16.gmra.mrb[0].mxu0 %v9471
    %v10623 = vpop.f32.mrb[0].mxu0
    %v10624 = vadd.f32 %v10431, %v10623
    %v10625 = vpop.f32.mrb[0].mxu0
    %v10626 = vadd.f32 %v10433, %v10625
    %v10627 = vpop.f32.mrb[0].mxu0
    %v10628 = vadd.f32 %v10435, %v10627
    %v10629 = vpop.f32.mrb[0].mxu0
    %v10630 = vadd.f32 %v10437, %v10629
    %10631 = vmatprep.mubr.bf16.mxu0 %v9480
    %10632 = vmatmul.mubr.bf16.gmra.mrb[0].mxu0 %v9479
    %v10633 = vpop.f32.mrb[0].mxu0
    %v10634 = vadd.f32 %v10441, %v10633
    %v10635 = vpop.f32.mrb[0].mxu0
    %v10636 = vadd.f32 %v10443, %v10635
    %v10637 = vpop.f32.mrb[0].mxu0
    %v10638 = vadd.f32 %v10445, %v10637
    %v10639 = vpop.f32.mrb[0].mxu0
    %v10640 = vadd.f32 %v10447, %v10639
    %10641 = vmatprep.mubr.bf16.mxu0 %v9488
    %10642 = vmatmul.mubr.bf16.gmra.mrb[0].mxu0 %v9487
    %v10643 = vpop.f32.mrb[0].mxu0
    %v10644 = vadd.f32 %v10451, %v10643
    %v10645 = vpop.f32.mrb[0].mxu0
    %v10646 = vadd.f32 %v10453, %v10645
    %v10647 = vpop.f32.mrb[0].mxu0
    %v10648 = vadd.f32 %v10455, %v10647
    %v10649 = vpop.f32.mrb[0].mxu0
    %v10650 = vadd.f32 %v10457, %v10649
    %10651 = vmatprep.mubr.bf16.mxu0 %v9496
    %10652 = vmatmul.mubr.bf16.gmra.mrb[0].mxu0 %v9495
    %v10653 = vpop.f32.mrb[0].mxu0
    %v10654 = vadd.f32 %v10461, %v10653
    %v10655 = vpop.f32.mrb[0].mxu0
    %v10656 = vadd.f32 %v10463, %v10655
    %v10657 = vpop.f32.mrb[0].mxu0
    %v10658 = vadd.f32 %v10465, %v10657
    %v10659 = vpop.f32.mrb[0].mxu0
    %v10660 = vadd.f32 %v10467, %v10659
    %10661 = vmatprep.mubr.bf16.mxu0 %v9504
    %10662 = vmatmul.mubr.bf16.gmra.mrb[0].mxu0 %v9503
    %v10663 = vpop.f32.mrb[0].mxu0
    %v10664 = vadd.f32 %v10471, %v10663
    %v10665 = vpop.f32.mrb[0].mxu0
    %v10666 = vadd.f32 %v10473, %v10665
    %v10667 = vpop.f32.mrb[0].mxu0
    %v10668 = vadd.f32 %v10475, %v10667
    %v10669 = vpop.f32.mrb[0].mxu0
    %v10670 = vadd.f32 %v10477, %v10669
    %10671 = vmatprep.mubr.bf16.mxu0 %v9512
    %10672 = vmatmul.mubr.bf16.gmra.mrb[0].mxu0 %v9511
    %v10673 = vpop.f32.mrb[0].mxu0
    %v10674 = vadd.f32 %v10481, %v10673
    %v10675 = vpop.f32.mrb[0].mxu0
    %v10676 = vadd.f32 %v10483, %v10675
    %v10677 = vpop.f32.mrb[0].mxu0
    %v10678 = vadd.f32 %v10485, %v10677
    %v10679 = vpop.f32.mrb[0].mxu0
    %v10680 = vadd.f32 %v10487, %v10679
    %10681 = vmatprep.mubr.bf16.mxu0 %v9520
    %10682 = vmatmul.mubr.bf16.gmra.mrb[0].mxu0 %v9519
    %v10683 = vpop.f32.mrb[0].mxu0
    %v10684 = vadd.f32 %v10491, %v10683
    %v10685 = vpop.f32.mrb[0].mxu0
    %v10686 = vadd.f32 %v10493, %v10685
    %v10687 = vpop.f32.mrb[0].mxu0
    %v10688 = vadd.f32 %v10495, %v10687
    %v10689 = vpop.f32.mrb[0].mxu0
    %v10690 = vadd.f32 %v10497, %v10689
    %10691 = vdwg.mxu0
    %10692 = vmatprep.subr.bf16.mxu0 %v10115
    %10693 = vmatpush1.bf16.msra.mxu0 %v10114
    %10694 = vmatprep.subr.bf16.mxu0 %v10117
    %10695 = vmatpush1.bf16.msra.mxu0 %v10116
    %10696 = vmatprep.subr.bf16.mxu0 %v10119
    %10697 = vmatpush1.bf16.msra.mxu0 %v10118
    %10698 = vmatprep.subr.bf16.mxu0 %v10121
    %10699 = vmatpush1.bf16.msra.mxu0 %v10120
    %10700 = vmatprep.subr.bf16.mxu0 %v10123
    %10701 = vmatpush1.bf16.msra.mxu0 %v10122
    %10702 = vmatprep.subr.bf16.mxu0 %v10125
    %10703 = vmatpush1.bf16.msra.mxu0 %v10124
    %10704 = vmatprep.subr.bf16.mxu0 %v10127
    %10705 = vmatpush1.bf16.msra.mxu0 %v10126
    %10706 = vmatprep.subr.bf16.mxu0 %v10129
    %10707 = vmatpush1.bf16.msra.mxu0 %v10128
    %10708 = vmatprep.subr.bf16.mxu0 %v10131
    %10709 = vmatpush1.bf16.msra.mxu0 %v10130
    %10710 = vmatprep.subr.bf16.mxu0 %v10133
    %10711 = vmatpush1.bf16.msra.mxu0 %v10132
    %10712 = vmatprep.subr.bf16.mxu0 %v10135
    %10713 = vmatpush1.bf16.msra.mxu0 %v10134
    %10714 = vmatprep.subr.bf16.mxu0 %v10137
    %10715 = vmatpush1.bf16.msra.mxu0 %v10136
    %10716 = vmatprep.subr.bf16.mxu0 %v10139
    %10717 = vmatpush1.bf16.msra.mxu0 %v10138
    %10718 = vmatprep.subr.bf16.mxu0 %v10141
    %10719 = vmatpush1.bf16.msra.mxu0 %v10140
    %10720 = vmatprep.subr.bf16.mxu0 %v10143
    %10721 = vmatpush1.bf16.msra.mxu0 %v10142
    %10722 = vmatprep.subr.bf16.mxu0 %v10145
    %10723 = vmatpush1.bf16.msra.mxu0 %v10144
    %10724 = vmatprep.mubr.bf16.mxu0 %v9402
    %10725 = vmatmul.mubr.bf16.gmra.mrb[0].mxu0 %v9401
    %v10726 = vpop.f32.mrb[0].mxu0
    %v10727 = vadd.f32 %v10534, %v10726
    %v10728 = vpop.f32.mrb[0].mxu0
    %v10729 = vadd.f32 %v10536, %v10728
    %v10730 = vpop.f32.mrb[0].mxu0
    %v10731 = vadd.f32 %v10538, %v10730
    %v10732 = vpop.f32.mrb[0].mxu0
    %v10733 = vadd.f32 %v10540, %v10732
    %10734 = vmatprep.mubr.bf16.mxu0 %v9410
    %10735 = vmatmul.mubr.bf16.gmra.mrb[0].mxu0 %v9409
    %v10736 = vpop.f32.mrb[0].mxu0
    %v10737 = vadd.f32 %v10544, %v10736
    %v10738 = vpop.f32.mrb[0].mxu0
    %v10739 = vadd.f32 %v10546, %v10738
    %v10740 = vpop.f32.mrb[0].mxu0
    %v10741 = vadd.f32 %v10548, %v10740
    %v10742 = vpop.f32.mrb[0].mxu0
    %v10743 = vadd.f32 %v10550, %v10742
    %10744 = vmatprep.mubr.bf16.mxu0 %v9418
    %10745 = vmatmul.mubr.bf16.gmra.mrb[0].mxu0 %v9417
    %v10746 = vpop.f32.mrb[0].mxu0
    %v10747 = vadd.f32 %v10554, %v10746
    %v10748 = vpop.f32.mrb[0].mxu0
    %v10749 = vadd.f32 %v10556, %v10748
    %v10750 = vpop.f32.mrb[0].mxu0
    %v10751 = vadd.f32 %v10558, %v10750
    %v10752 = vpop.f32.mrb[0].mxu0
    %v10753 = vadd.f32 %v10560, %v10752
    %10754 = vmatprep.mubr.bf16.mxu0 %v9426
    %10755 = vmatmul.mubr.bf16.gmra.mrb[0].mxu0 %v9425
    %v10756 = vpop.f32.mrb[0].mxu0
    %v10757 = vadd.f32 %v10564, %v10756
    %v10758 = vpop.f32.mrb[0].mxu0
    %v10759 = vadd.f32 %v10566, %v10758
    %v10760 = vpop.f32.mrb[0].mxu0
    %v10761 = vadd.f32 %v10568, %v10760
    %v10762 = vpop.f32.mrb[0].mxu0
    %v10763 = vadd.f32 %v10570, %v10762
    %10764 = vmatprep.mubr.bf16.mxu0 %v9434
    %10765 = vmatmul.mubr.bf16.gmra.mrb[0].mxu0 %v9433
    %v10766 = vpop.f32.mrb[0].mxu0
    %v10767 = vadd.f32 %v10574, %v10766
    %v10768 = vpop.f32.mrb[0].mxu0
    %v10769 = vadd.f32 %v10576, %v10768
    %v10770 = vpop.f32.mrb[0].mxu0
    %v10771 = vadd.f32 %v10578, %v10770
    %v10772 = vpop.f32.mrb[0].mxu0
    %v10773 = vadd.f32 %v10580, %v10772
    %10774 = vmatprep.mubr.bf16.mxu0 %v9442
    %10775 = vmatmul.mubr.bf16.gmra.mrb[0].mxu0 %v9441
    %v10776 = vpop.f32.mrb[0].mxu0
    %v10777 = vadd.f32 %v10584, %v10776
    %v10778 = vpop.f32.mrb[0].mxu0
    %v10779 = vadd.f32 %v10586, %v10778
    %v10780 = vpop.f32.mrb[0].mxu0
    %v10781 = vadd.f32 %v10588, %v10780
    %v10782 = vpop.f32.mrb[0].mxu0
    %v10783 = vadd.f32 %v10590, %v10782
    %10784 = vmatprep.mubr.bf16.mxu0 %v9450
    %10785 = vmatmul.mubr.bf16.gmra.mrb[0].mxu0 %v9449
    %v10786 = vpop.f32.mrb[0].mxu0
    %v10787 = vadd.f32 %v10594, %v10786
    %v10788 = vpop.f32.mrb[0].mxu0
    %v10789 = vadd.f32 %v10596, %v10788
    %v10790 = vpop.f32.mrb[0].mxu0
    %v10791 = vadd.f32 %v10598, %v10790
    %v10792 = vpop.f32.mrb[0].mxu0
    %v10793 = vadd.f32 %v10600, %v10792
    %10794 = vmatprep.mubr.bf16.mxu0 %v9458
    %10795 = vmatmul.mubr.bf16.gmra.mrb[0].mxu0 %v9457
    %v10796 = vpop.f32.mrb[0].mxu0
    %v10797 = vadd.f32 %v10604, %v10796
    %v10798 = vpop.f32.mrb[0].mxu0
    %v10799 = vadd.f32 %v10606, %v10798
    %v10800 = vpop.f32.mrb[0].mxu0
    %v10801 = vadd.f32 %v10608, %v10800
    %v10802 = vpop.f32.mrb[0].mxu0
    %v10803 = vadd.f32 %v10610, %v10802
    %10804 = vmatprep.mubr.bf16.mxu0 %v9466
    %10805 = vmatmul.mubr.bf16.gmra.mrb[0].mxu0 %v9465
    %v10806 = vpop.f32.mrb[0].mxu0
    %v10807 = vadd.f32 %v10614, %v10806
    %v10808 = vpop.f32.mrb[0].mxu0
    %v10809 = vadd.f32 %v10616, %v10808
    %v10810 = vpop.f32.mrb[0].mxu0
    %v10811 = vadd.f32 %v10618, %v10810
    %v10812 = vpop.f32.mrb[0].mxu0
    %v10813 = vadd.f32 %v10620, %v10812
    %10814 = vmatprep.mubr.bf16.mxu0 %v9474
    %10815 = vmatmul.mubr.bf16.gmra.mrb[0].mxu0 %v9473
    %v10816 = vpop.f32.mrb[0].mxu0
    %v10817 = vadd.f32 %v10624, %v10816
    %v10818 = vpop.f32.mrb[0].mxu0
    %v10819 = vadd.f32 %v10626, %v10818
    %v10820 = vpop.f32.mrb[0].mxu0
    %v10821 = vadd.f32 %v10628, %v10820
    %v10822 = vpop.f32.mrb[0].mxu0
    %v10823 = vadd.f32 %v10630, %v10822
    %10824 = vmatprep.mubr.bf16.mxu0 %v9482
    %10825 = vmatmul.mubr.bf16.gmra.mrb[0].mxu0 %v9481
    %v10826 = vpop.f32.mrb[0].mxu0
    %v10827 = vadd.f32 %v10634, %v10826
    %v10828 = vpop.f32.mrb[0].mxu0
    %v10829 = vadd.f32 %v10636, %v10828
    %v10830 = vpop.f32.mrb[0].mxu0
    %v10831 = vadd.f32 %v10638, %v10830
    %v10832 = vpop.f32.mrb[0].mxu0
    %v10833 = vadd.f32 %v10640, %v10832
    %10834 = vmatprep.mubr.bf16.mxu0 %v9490
    %10835 = vmatmul.mubr.bf16.gmra.mrb[0].mxu0 %v9489
    %v10836 = vpop.f32.mrb[0].mxu0
    %v10837 = vadd.f32 %v10644, %v10836
    %v10838 = vpop.f32.mrb[0].mxu0
    %v10839 = vadd.f32 %v10646, %v10838
    %v10840 = vpop.f32.mrb[0].mxu0
    %v10841 = vadd.f32 %v10648, %v10840
    %v10842 = vpop.f32.mrb[0].mxu0
    %v10843 = vadd.f32 %v10650, %v10842
    %10844 = vmatprep.mubr.bf16.mxu0 %v9498
    %10845 = vmatmul.mubr.bf16.gmra.mrb[0].mxu0 %v9497
    %v10846 = vpop.f32.mrb[0].mxu0
    %v10847 = vadd.f32 %v10654, %v10846
    %v10848 = vpop.f32.mrb[0].mxu0
    %v10849 = vadd.f32 %v10656, %v10848
    %v10850 = vpop.f32.mrb[0].mxu0
    %v10851 = vadd.f32 %v10658, %v10850
    %v10852 = vpop.f32.mrb[0].mxu0
    %v10853 = vadd.f32 %v10660, %v10852
    %10854 = vmatprep.mubr.bf16.mxu0 %v9506
    %10855 = vmatmul.mubr.bf16.gmra.mrb[0].mxu0 %v9505
    %v10856 = vpop.f32.mrb[0].mxu0
    %v10857 = vadd.f32 %v10664, %v10856
    %v10858 = vpop.f32.mrb[0].mxu0
    %v10859 = vadd.f32 %v10666, %v10858
    %v10860 = vpop.f32.mrb[0].mxu0
    %v10861 = vadd.f32 %v10668, %v10860
    %v10862 = vpop.f32.mrb[0].mxu0
    %v10863 = vadd.f32 %v10670, %v10862
    %10864 = vmatprep.mubr.bf16.mxu0 %v9514
    %10865 = vmatmul.mubr.bf16.gmra.mrb[0].mxu0 %v9513
    %v10866 = vpop.f32.mrb[0].mxu0
    %v10867 = vadd.f32 %v10674, %v10866
    %v10868 = vpop.f32.mrb[0].mxu0
    %v10869 = vadd.f32 %v10676, %v10868
    %v10870 = vpop.f32.mrb[0].mxu0
    %v10871 = vadd.f32 %v10678, %v10870
    %v10872 = vpop.f32.mrb[0].mxu0
    %v10873 = vadd.f32 %v10680, %v10872
    %10874 = vmatprep.mubr.bf16.mxu0 %v9522
    %10875 = vmatmul.mubr.bf16.gmra.mrb[0].mxu0 %v9521
    %v10876 = vpop.f32.mrb[0].mxu0
    %v10877 = vadd.f32 %v10684, %v10876
    %v10878 = vpop.f32.mrb[0].mxu0
    %v10879 = vadd.f32 %v10686, %v10878
    %v10880 = vpop.f32.mrb[0].mxu0
    %v10881 = vadd.f32 %v10688, %v10880
    %v10882 = vpop.f32.mrb[0].mxu0
    %v10883 = vadd.f32 %v10690, %v10882
    %10884 = vdwg.mxu0
    %10885 = vmatprep.subr.bf16.mxu0 %v10147
    %10886 = vmatpush1.bf16.msra.mxu0 %v10146
    %10887 = vmatprep.subr.bf16.mxu0 %v10149
    %10888 = vmatpush1.bf16.msra.mxu0 %v10148
    %10889 = vmatprep.subr.bf16.mxu0 %v10151
    %10890 = vmatpush1.bf16.msra.mxu0 %v10150
    %10891 = vmatprep.subr.bf16.mxu0 %v10153
    %10892 = vmatpush1.bf16.msra.mxu0 %v10152
    %10893 = vmatprep.subr.bf16.mxu0 %v10155
    %10894 = vmatpush1.bf16.msra.mxu0 %v10154
    %10895 = vmatprep.subr.bf16.mxu0 %v10157
    %10896 = vmatpush1.bf16.msra.mxu0 %v10156
    %10897 = vmatprep.subr.bf16.mxu0 %v10159
    %10898 = vmatpush1.bf16.msra.mxu0 %v10158
    %10899 = vmatprep.subr.bf16.mxu0 %v10161
    %10900 = vmatpush1.bf16.msra.mxu0 %v10160
    %10901 = vmatprep.subr.bf16.mxu0 %v10163
    %10902 = vmatpush1.bf16.msra.mxu0 %v10162
    %10903 = vmatprep.subr.bf16.mxu0 %v10165
    %10904 = vmatpush1.bf16.msra.mxu0 %v10164
    %10905 = vmatprep.subr.bf16.mxu0 %v10167
    %10906 = vmatpush1.bf16.msra.mxu0 %v10166
    %10907 = vmatprep.subr.bf16.mxu0 %v10169
    %10908 = vmatpush1.bf16.msra.mxu0 %v10168
    %10909 = vmatprep.subr.bf16.mxu0 %v10171
    %10910 = vmatpush1.bf16.msra.mxu0 %v10170
    %10911 = vmatprep.subr.bf16.mxu0 %v10173
    %10912 = vmatpush1.bf16.msra.mxu0 %v10172
    %10913 = vmatprep.subr.bf16.mxu0 %v10175
    %10914 = vmatpush1.bf16.msra.mxu0 %v10174
    %10915 = vmatprep.subr.bf16.mxu0 %v10177
    %10916 = vmatpush1.bf16.msra.mxu0 %v10176
    %10917 = vmatprep.mubr.bf16.mxu0 %v9404
    %10918 = vmatmul.mubr.bf16.gmra.mrb[0].mxu0 %v9403
    %v10919 = vpop.f32.mrb[0].mxu0
    %v10920 = vadd.f32 %v10727, %v10919
    %v10921 = vpop.f32.mrb[0].mxu0
    %v10922 = vadd.f32 %v10729, %v10921
    %v10923 = vpop.f32.mrb[0].mxu0
    %v10924 = vadd.f32 %v10731, %v10923
    %v10925 = vpop.f32.mrb[0].mxu0
    %v10926 = vadd.f32 %v10733, %v10925
    %10927 = vmatprep.mubr.bf16.mxu0 %v9412
    %10928 = vmatmul.mubr.bf16.gmra.mrb[0].mxu0 %v9411
    %v10929 = vpop.f32.mrb[0].mxu0
    %v10930 = vadd.f32 %v10737, %v10929
    %v10931 = vpop.f32.mrb[0].mxu0
    %v10932 = vadd.f32 %v10739, %v10931
    %v10933 = vpop.f32.mrb[0].mxu0
    %v10934 = vadd.f32 %v10741, %v10933
    %v10935 = vpop.f32.mrb[0].mxu0
    %v10936 = vadd.f32 %v10743, %v10935
    %10937 = vmatprep.mubr.bf16.mxu0 %v9420
    %10938 = vmatmul.mubr.bf16.gmra.mrb[0].mxu0 %v9419
    %v10939 = vpop.f32.mrb[0].mxu0
    %v10940 = vadd.f32 %v10747, %v10939
    %v10941 = vpop.f32.mrb[0].mxu0
    %v10942 = vadd.f32 %v10749, %v10941
    %v10943 = vpop.f32.mrb[0].mxu0
    %v10944 = vadd.f32 %v10751, %v10943
    %v10945 = vpop.f32.mrb[0].mxu0
    %v10946 = vadd.f32 %v10753, %v10945
    %10947 = vmatprep.mubr.bf16.mxu0 %v9428
    %10948 = vmatmul.mubr.bf16.gmra.mrb[0].mxu0 %v9427
    %v10949 = vpop.f32.mrb[0].mxu0
    %v10950 = vadd.f32 %v10757, %v10949
    %v10951 = vpop.f32.mrb[0].mxu0
    %v10952 = vadd.f32 %v10759, %v10951
    %v10953 = vpop.f32.mrb[0].mxu0
    %v10954 = vadd.f32 %v10761, %v10953
    %v10955 = vpop.f32.mrb[0].mxu0
    %v10956 = vadd.f32 %v10763, %v10955
    %10957 = vmatprep.mubr.bf16.mxu0 %v9436
    %10958 = vmatmul.mubr.bf16.gmra.mrb[0].mxu0 %v9435
    %v10959 = vpop.f32.mrb[0].mxu0
    %v10960 = vadd.f32 %v10767, %v10959
    %v10961 = vpop.f32.mrb[0].mxu0
    %v10962 = vadd.f32 %v10769, %v10961
    %v10963 = vpop.f32.mrb[0].mxu0
    %v10964 = vadd.f32 %v10771, %v10963
    %v10965 = vpop.f32.mrb[0].mxu0
    %v10966 = vadd.f32 %v10773, %v10965
    %10967 = vmatprep.mubr.bf16.mxu0 %v9444
    %10968 = vmatmul.mubr.bf16.gmra.mrb[0].mxu0 %v9443
    %v10969 = vpop.f32.mrb[0].mxu0
    %v10970 = vadd.f32 %v10777, %v10969
    %v10971 = vpop.f32.mrb[0].mxu0
    %v10972 = vadd.f32 %v10779, %v10971
    %v10973 = vpop.f32.mrb[0].mxu0
    %v10974 = vadd.f32 %v10781, %v10973
    %v10975 = vpop.f32.mrb[0].mxu0
    %v10976 = vadd.f32 %v10783, %v10975
    %10977 = vmatprep.mubr.bf16.mxu0 %v9452
    %10978 = vmatmul.mubr.bf16.gmra.mrb[0].mxu0 %v9451
    %v10979 = vpop.f32.mrb[0].mxu0
    %v10980 = vadd.f32 %v10787, %v10979
    %v10981 = vpop.f32.mrb[0].mxu0
    %v10982 = vadd.f32 %v10789, %v10981
    %v10983 = vpop.f32.mrb[0].mxu0
    %v10984 = vadd.f32 %v10791, %v10983
    %v10985 = vpop.f32.mrb[0].mxu0
    %v10986 = vadd.f32 %v10793, %v10985
    %10987 = vmatprep.mubr.bf16.mxu0 %v9460
    %10988 = vmatmul.mubr.bf16.gmra.mrb[0].mxu0 %v9459
    %v10989 = vpop.f32.mrb[0].mxu0
    %v10990 = vadd.f32 %v10797, %v10989
    %v10991 = vpop.f32.mrb[0].mxu0
    %v10992 = vadd.f32 %v10799, %v10991
    %v10993 = vpop.f32.mrb[0].mxu0
    %v10994 = vadd.f32 %v10801, %v10993
    %v10995 = vpop.f32.mrb[0].mxu0
    %v10996 = vadd.f32 %v10803, %v10995
    %10997 = vmatprep.mubr.bf16.mxu0 %v9468
    %10998 = vmatmul.mubr.bf16.gmra.mrb[0].mxu0 %v9467
    %v10999 = vpop.f32.mrb[0].mxu0
    %v11000 = vadd.f32 %v10807, %v10999
    %v11001 = vpop.f32.mrb[0].mxu0
    %v11002 = vadd.f32 %v10809, %v11001
    %v11003 = vpop.f32.mrb[0].mxu0
    %v11004 = vadd.f32 %v10811, %v11003
    %v11005 = vpop.f32.mrb[0].mxu0
    %v11006 = vadd.f32 %v10813, %v11005
    %11007 = vmatprep.mubr.bf16.mxu0 %v9476
    %11008 = vmatmul.mubr.bf16.gmra.mrb[0].mxu0 %v9475
    %v11009 = vpop.f32.mrb[0].mxu0
    %v11010 = vadd.f32 %v10817, %v11009
    %v11011 = vpop.f32.mrb[0].mxu0
    %v11012 = vadd.f32 %v10819, %v11011
    %v11013 = vpop.f32.mrb[0].mxu0
    %v11014 = vadd.f32 %v10821, %v11013
    %v11015 = vpop.f32.mrb[0].mxu0
    %v11016 = vadd.f32 %v10823, %v11015
    %11017 = vmatprep.mubr.bf16.mxu0 %v9484
    %11018 = vmatmul.mubr.bf16.gmra.mrb[0].mxu0 %v9483
    %v11019 = vpop.f32.mrb[0].mxu0
    %v11020 = vadd.f32 %v10827, %v11019
    %v11021 = vpop.f32.mrb[0].mxu0
    %v11022 = vadd.f32 %v10829, %v11021
    %v11023 = vpop.f32.mrb[0].mxu0
    %v11024 = vadd.f32 %v10831, %v11023
    %v11025 = vpop.f32.mrb[0].mxu0
    %v11026 = vadd.f32 %v10833, %v11025
    %11027 = vmatprep.mubr.bf16.mxu0 %v9492
    %11028 = vmatmul.mubr.bf16.gmra.mrb[0].mxu0 %v9491
    %v11029 = vpop.f32.mrb[0].mxu0
    %v11030 = vadd.f32 %v10837, %v11029
    %v11031 = vpop.f32.mrb[0].mxu0
    %v11032 = vadd.f32 %v10839, %v11031
    %v11033 = vpop.f32.mrb[0].mxu0
    %v11034 = vadd.f32 %v10841, %v11033
    %v11035 = vpop.f32.mrb[0].mxu0
    %v11036 = vadd.f32 %v10843, %v11035
    %11037 = vmatprep.mubr.bf16.mxu0 %v9500
    %11038 = vmatmul.mubr.bf16.gmra.mrb[0].mxu0 %v9499
    %v11039 = vpop.f32.mrb[0].mxu0
    %v11040 = vadd.f32 %v10847, %v11039
    %v11041 = vpop.f32.mrb[0].mxu0
    %v11042 = vadd.f32 %v10849, %v11041
    %v11043 = vpop.f32.mrb[0].mxu0
    %v11044 = vadd.f32 %v10851, %v11043
    %v11045 = vpop.f32.mrb[0].mxu0
    %v11046 = vadd.f32 %v10853, %v11045
    %11047 = vmatprep.mubr.bf16.mxu0 %v9508
    %11048 = vmatmul.mubr.bf16.gmra.mrb[0].mxu0 %v9507
    %v11049 = vpop.f32.mrb[0].mxu0
    %v11050 = vadd.f32 %v10857, %v11049
    %v11051 = vpop.f32.mrb[0].mxu0
    %v11052 = vadd.f32 %v10859, %v11051
    %v11053 = vpop.f32.mrb[0].mxu0
    %v11054 = vadd.f32 %v10861, %v11053
    %v11055 = vpop.f32.mrb[0].mxu0
    %v11056 = vadd.f32 %v10863, %v11055
    %11057 = vmatprep.mubr.bf16.mxu0 %v9516
    %11058 = vmatmul.mubr.bf16.gmra.mrb[0].mxu0 %v9515
    %v11059 = vpop.f32.mrb[0].mxu0
    %v11060 = vadd.f32 %v10867, %v11059
    %v11061 = vpop.f32.mrb[0].mxu0
    %v11062 = vadd.f32 %v10869, %v11061
    %v11063 = vpop.f32.mrb[0].mxu0
    %v11064 = vadd.f32 %v10871, %v11063
    %v11065 = vpop.f32.mrb[0].mxu0
    %v11066 = vadd.f32 %v10873, %v11065
    %11067 = vmatprep.mubr.bf16.mxu0 %v9524
    %11068 = vmatmul.mubr.bf16.gmra.mrb[0].mxu0 %v9523
    %v11069 = vpop.f32.mrb[0].mxu0
    %v11070 = vadd.f32 %v10877, %v11069
    %v11071 = vpop.f32.mrb[0].mxu0
    %v11072 = vadd.f32 %v10879, %v11071
    %v11073 = vpop.f32.mrb[0].mxu0
    %v11074 = vadd.f32 %v10881, %v11073
    %v11075 = vpop.f32.mrb[0].mxu0
    %v11076 = vadd.f32 %v10883, %v11075
    %11077 = vdwg.mxu0
    %v11078 = vadd.f32 %v6439, %v10920
    %v11079 = vadd.f32 %v6440, %v10922
    %v11080 = vadd.f32 %v6441, %v10924
    %v11081 = vadd.f32 %v6442, %v10926
    %v11082 = vadd.f32 %v6443, %v10930
    %v11083 = vadd.f32 %v6444, %v10932
    %v11084 = vadd.f32 %v6445, %v10934
    %v11085 = vadd.f32 %v6446, %v10936
    %v11086 = vadd.f32 %v6447, %v10940
    %v11087 = vadd.f32 %v6448, %v10942
    %v11088 = vadd.f32 %v6449, %v10944
    %v11089 = vadd.f32 %v6450, %v10946
    %v11090 = vadd.f32 %v6451, %v10950
    %v11091 = vadd.f32 %v6452, %v10952
    %v11092 = vadd.f32 %v6453, %v10954
    %v11093 = vadd.f32 %v6454, %v10956
    %v11094 = vadd.f32 %v6455, %v10960
    %v11095 = vadd.f32 %v6456, %v10962
    %v11096 = vadd.f32 %v6457, %v10964
    %v11097 = vadd.f32 %v6458, %v10966
    %v11098 = vadd.f32 %v6459, %v10970
    %v11099 = vadd.f32 %v6460, %v10972
    %v11100 = vadd.f32 %v6461, %v10974
    %v11101 = vadd.f32 %v6462, %v10976
    %v11102 = vadd.f32 %v6463, %v10980
    %v11103 = vadd.f32 %v6464, %v10982
    %v11104 = vadd.f32 %v6465, %v10984
    %v11105 = vadd.f32 %v6466, %v10986
    %v11106 = vadd.f32 %v6467, %v10990
    %v11107 = vadd.f32 %v6468, %v10992
    %v11108 = vadd.f32 %v6469, %v10994
    %v11109 = vadd.f32 %v6470, %v10996
    %v11110 = vadd.f32 %v6471, %v11000
    %v11111 = vadd.f32 %v6472, %v11002
    %v11112 = vadd.f32 %v6473, %v11004
    %v11113 = vadd.f32 %v6474, %v11006
    %v11114 = vadd.f32 %v6475, %v11010
    %v11115 = vadd.f32 %v6476, %v11012
    %v11116 = vadd.f32 %v6477, %v11014
    %v11117 = vadd.f32 %v6478, %v11016
    %v11118 = vadd.f32 %v6479, %v11020
    %v11119 = vadd.f32 %v6480, %v11022
    %v11120 = vadd.f32 %v6481, %v11024
    %v11121 = vadd.f32 %v6482, %v11026
    %v11122 = vadd.f32 %v6483, %v11030
    %v11123 = vadd.f32 %v6484, %v11032
    %v11124 = vadd.f32 %v6485, %v11034
    %v11125 = vadd.f32 %v6486, %v11036
    %v11126 = vadd.f32 %v6487, %v11040
    %v11127 = vadd.f32 %v6488, %v11042
    %v11128 = vadd.f32 %v6489, %v11044
    %v11129 = vadd.f32 %v6490, %v11046
    %v11130 = vadd.f32 %v6491, %v11050
    %v11131 = vadd.f32 %v6492, %v11052
    %v11132 = vadd.f32 %v6493, %v11054
    %v11133 = vadd.f32 %v6494, %v11056
    %v11134 = vadd.f32 %v6495, %v11060
    %v11135 = vadd.f32 %v6496, %v11062
    %v11136 = vadd.f32 %v6497, %v11064
    %v11137 = vadd.f32 %v6498, %v11066
    %v11138 = vadd.f32 %v6499, %v11070
    %v11139 = vadd.f32 %v6500, %v11072
    %v11140 = vadd.f32 %v6501, %v11074
    %v11141 = vadd.f32 %v6502, %v11076
    %s11142 = scalar_lea.vmem %s7, 4
    %v11143 = vld [vmem:[%s11142] ss:$8 sm:$0x3]
    %s11144 = scalar_lea.vmem %s7, 5
    %v11145 = vld [vmem:[%s11144] ss:$8 sm:$0x3]
    %v11146 = vadd.f32 %v11078, %v11079
    %11147 = vadd.xlane.f32.xlu0 %v11146
    %v11148 = vpop.xlane.xlu0 %11147
    %v11149 = vadd.f32 %v11080, %v11081
    %11150 = vadd.xlane.f32.xlu0 %v11149
    %v11151 = vpop.xlane.xlu0 %11150
    %v11152 = vadd.f32 %v11082, %v11083
    %11153 = vadd.xlane.f32.xlu0 %v11152
    %v11154 = vpop.xlane.xlu0 %11153
    %v11155 = vadd.f32 %v11084, %v11085
    %11156 = vadd.xlane.f32.xlu0 %v11155
    %v11157 = vpop.xlane.xlu0 %11156
    %v11158 = vadd.f32 %v11086, %v11087
    %11159 = vadd.xlane.f32.xlu0 %v11158
    %v11160 = vpop.xlane.xlu0 %11159
    %v11161 = vadd.f32 %v11088, %v11089
    %11162 = vadd.xlane.f32.xlu0 %v11161
    %v11163 = vpop.xlane.xlu0 %11162
    %v11164 = vadd.f32 %v11090, %v11091
    %11165 = vadd.xlane.f32.xlu0 %v11164
    %v11166 = vpop.xlane.xlu0 %11165
    %v11167 = vadd.f32 %v11092, %v11093
    %11168 = vadd.xlane.f32.xlu0 %v11167
    %v11169 = vpop.xlane.xlu0 %11168
    %v11170 = vadd.f32 %v11094, %v11095
    %11171 = vadd.xlane.f32.xlu0 %v11170
    %v11172 = vpop.xlane.xlu0 %11171
    %v11173 = vadd.f32 %v11096, %v11097
    %11174 = vadd.xlane.f32.xlu0 %v11173
    %v11175 = vpop.xlane.xlu0 %11174
    %v11176 = vadd.f32 %v11098, %v11099
    %11177 = vadd.xlane.f32.xlu0 %v11176
    %v11178 = vpop.xlane.xlu0 %11177
    %v11179 = vadd.f32 %v11100, %v11101
    %11180 = vadd.xlane.f32.xlu0 %v11179
    %v11181 = vpop.xlane.xlu0 %11180
    %v11182 = vadd.f32 %v11102, %v11103
    %11183 = vadd.xlane.f32.xlu0 %v11182
    %v11184 = vpop.xlane.xlu0 %11183
    %v11185 = vadd.f32 %v11104, %v11105
    %11186 = vadd.xlane.f32.xlu0 %v11185
    %v11187 = vpop.xlane.xlu0 %11186
    %v11188 = vadd.f32 %v11106, %v11107
    %11189 = vadd.xlane.f32.xlu0 %v11188
    %v11190 = vpop.xlane.xlu0 %11189
    %v11191 = vadd.f32 %v11108, %v11109
    %11192 = vadd.xlane.f32.xlu0 %v11191
    %v11193 = vpop.xlane.xlu0 %11192
    %v11194 = vadd.f32 %v11110, %v11111
    %11195 = vadd.xlane.f32.xlu0 %v11194
    %v11196 = vpop.xlane.xlu0 %11195
    %v11197 = vadd.f32 %v11112, %v11113
    %11198 = vadd.xlane.f32.xlu0 %v11197
    %v11199 = vpop.xlane.xlu0 %11198
    %v11200 = vadd.f32 %v11114, %v11115
    %11201 = vadd.xlane.f32.xlu0 %v11200
    %v11202 = vpop.xlane.xlu0 %11201
    %v11203 = vadd.f32 %v11116, %v11117
    %11204 = vadd.xlane.f32.xlu0 %v11203
    %v11205 = vpop.xlane.xlu0 %11204
    %v11206 = vadd.f32 %v11118, %v11119
    %11207 = vadd.xlane.f32.xlu0 %v11206
    %v11208 = vpop.xlane.xlu0 %11207
    %v11209 = vadd.f32 %v11120, %v11121
    %11210 = vadd.xlane.f32.xlu0 %v11209
    %v11211 = vpop.xlane.xlu0 %11210
    %v11212 = vadd.f32 %v11122, %v11123
    %11213 = vadd.xlane.f32.xlu0 %v11212
    %v11214 = vpop.xlane.xlu0 %11213
    %v11215 = vadd.f32 %v11124, %v11125
    %11216 = vadd.xlane.f32.xlu0 %v11215
    %v11217 = vpop.xlane.xlu0 %11216
    %v11218 = vadd.f32 %v11126, %v11127
    %11219 = vadd.xlane.f32.xlu0 %v11218
    %v11220 = vpop.xlane.xlu0 %11219
    %v11221 = vadd.f32 %v11128, %v11129
    %11222 = vadd.xlane.f32.xlu0 %v11221
    %v11223 = vpop.xlane.xlu0 %11222
    %v11224 = vadd.f32 %v11130, %v11131
    %11225 = vadd.xlane.f32.xlu0 %v11224
    %v11226 = vpop.xlane.xlu0 %11225
    %v11227 = vadd.f32 %v11132, %v11133
    %11228 = vadd.xlane.f32.xlu0 %v11227
    %v11229 = vpop.xlane.xlu0 %11228
    %v11230 = vadd.f32 %v11134, %v11135
    %11231 = vadd.xlane.f32.xlu0 %v11230
    %v11232 = vpop.xlane.xlu0 %11231
    %v11233 = vadd.f32 %v11136, %v11137
    %11234 = vadd.xlane.f32.xlu0 %v11233
    %v11235 = vpop.xlane.xlu0 %11234
    %v11236 = vadd.f32 %v11138, %v11139
    %11237 = vadd.xlane.f32.xlu0 %v11236
    %v11238 = vpop.xlane.xlu0 %11237
    %v11239 = vadd.f32 %v11140, %v11141
    %11240 = vadd.xlane.f32.xlu0 %v11239
    %v11241 = vpop.xlane.xlu0 %11240
    %v11242 = vmul.f32 %v11148, %v5936
    %v11243 = vmul.f32 %v11151, %v5936
    %v11244 = vmul.f32 %v11154, %v5936
    %v11245 = vmul.f32 %v11157, %v5936
    %v11246 = vmul.f32 %v11160, %v5936
    %v11247 = vmul.f32 %v11163, %v5936
    %v11248 = vmul.f32 %v11166, %v5936
    %v11249 = vmul.f32 %v11169, %v5936
    %v11250 = vmul.f32 %v11172, %v5936
    %v11251 = vmul.f32 %v11175, %v5936
    %v11252 = vmul.f32 %v11178, %v5936
    %v11253 = vmul.f32 %v11181, %v5936
    %v11254 = vmul.f32 %v11184, %v5936
    %v11255 = vmul.f32 %v11187, %v5936
    %v11256 = vmul.f32 %v11190, %v5936
    %v11257 = vmul.f32 %v11193, %v5936
    %v11258 = vmul.f32 %v11196, %v5936
    %v11259 = vmul.f32 %v11199, %v5936
    %v11260 = vmul.f32 %v11202, %v5936
    %v11261 = vmul.f32 %v11205, %v5936
    %v11262 = vmul.f32 %v11208, %v5936
    %v11263 = vmul.f32 %v11211, %v5936
    %v11264 = vmul.f32 %v11214, %v5936
    %v11265 = vmul.f32 %v11217, %v5936
    %v11266 = vmul.f32 %v11220, %v5936
    %v11267 = vmul.f32 %v11223, %v5936
    %v11268 = vmul.f32 %v11226, %v5936
    %v11269 = vmul.f32 %v11229, %v5936
    %v11270 = vmul.f32 %v11232, %v5936
    %v11271 = vmul.f32 %v11235, %v5936
    %v11272 = vmul.f32 %v11238, %v5936
    %v11273 = vmul.f32 %v11241, %v5936
    %v11274 = vsub.f32 %v11078, %v11242
    %v11275 = vsub.f32 %v11079, %v11242
    %v11276 = vsub.f32 %v11080, %v11243
    %v11277 = vsub.f32 %v11081, %v11243
    %v11278 = vsub.f32 %v11082, %v11244
    %v11279 = vsub.f32 %v11083, %v11244
    %v11280 = vsub.f32 %v11084, %v11245
    %v11281 = vsub.f32 %v11085, %v11245
    %v11282 = vsub.f32 %v11086, %v11246
    %v11283 = vsub.f32 %v11087, %v11246
    %v11284 = vsub.f32 %v11088, %v11247
    %v11285 = vsub.f32 %v11089, %v11247
    %v11286 = vsub.f32 %v11090, %v11248
    %v11287 = vsub.f32 %v11091, %v11248
    %v11288 = vsub.f32 %v11092, %v11249
    %v11289 = vsub.f32 %v11093, %v11249
    %v11290 = vsub.f32 %v11094, %v11250
    %v11291 = vsub.f32 %v11095, %v11250
    %v11292 = vsub.f32 %v11096, %v11251
    %v11293 = vsub.f32 %v11097, %v11251
    %v11294 = vsub.f32 %v11098, %v11252
    %v11295 = vsub.f32 %v11099, %v11252
    %v11296 = vsub.f32 %v11100, %v11253
    %v11297 = vsub.f32 %v11101, %v11253
    %v11298 = vsub.f32 %v11102, %v11254
    %v11299 = vsub.f32 %v11103, %v11254
    %v11300 = vsub.f32 %v11104, %v11255
    %v11301 = vsub.f32 %v11105, %v11255
    %v11302 = vsub.f32 %v11106, %v11256
    %v11303 = vsub.f32 %v11107, %v11256
    %v11304 = vsub.f32 %v11108, %v11257
    %v11305 = vsub.f32 %v11109, %v11257
    %v11306 = vsub.f32 %v11110, %v11258
    %v11307 = vsub.f32 %v11111, %v11258
    %v11308 = vsub.f32 %v11112, %v11259
    %v11309 = vsub.f32 %v11113, %v11259
    %v11310 = vsub.f32 %v11114, %v11260
    %v11311 = vsub.f32 %v11115, %v11260
    %v11312 = vsub.f32 %v11116, %v11261
    %v11313 = vsub.f32 %v11117, %v11261
    %v11314 = vsub.f32 %v11118, %v11262
    %v11315 = vsub.f32 %v11119, %v11262
    %v11316 = vsub.f32 %v11120, %v11263
    %v11317 = vsub.f32 %v11121, %v11263
    %v11318 = vsub.f32 %v11122, %v11264
    %v11319 = vsub.f32 %v11123, %v11264
    %v11320 = vsub.f32 %v11124, %v11265
    %v11321 = vsub.f32 %v11125, %v11265
    %v11322 = vsub.f32 %v11126, %v11266
    %v11323 = vsub.f32 %v11127, %v11266
    %v11324 = vsub.f32 %v11128, %v11267
    %v11325 = vsub.f32 %v11129, %v11267
    %v11326 = vsub.f32 %v11130, %v11268
    %v11327 = vsub.f32 %v11131, %v11268
    %v11328 = vsub.f32 %v11132, %v11269
    %v11329 = vsub.f32 %v11133, %v11269
    %v11330 = vsub.f32 %v11134, %v11270
    %v11331 = vsub.f32 %v11135, %v11270
    %v11332 = vsub.f32 %v11136, %v11271
    %v11333 = vsub.f32 %v11137, %v11271
    %v11334 = vsub.f32 %v11138, %v11272
    %v11335 = vsub.f32 %v11139, %v11272
    %v11336 = vsub.f32 %v11140, %v11273
    %v11337 = vsub.f32 %v11141, %v11273
    %v11338 = vmul.f32 %v11274, %v11274
    %v11339 = vmul.f32 %v11275, %v11275
    %v11340 = vmul.f32 %v11276, %v11276
    %v11341 = vmul.f32 %v11277, %v11277
    %v11342 = vmul.f32 %v11278, %v11278
    %v11343 = vmul.f32 %v11279, %v11279
    %v11344 = vmul.f32 %v11280, %v11280
    %v11345 = vmul.f32 %v11281, %v11281
    %v11346 = vmul.f32 %v11282, %v11282
    %v11347 = vmul.f32 %v11283, %v11283
    %v11348 = vmul.f32 %v11284, %v11284
    %v11349 = vmul.f32 %v11285, %v11285
    %v11350 = vmul.f32 %v11286, %v11286
    %v11351 = vmul.f32 %v11287, %v11287
    %v11352 = vmul.f32 %v11288, %v11288
    %v11353 = vmul.f32 %v11289, %v11289
    %v11354 = vmul.f32 %v11290, %v11290
    %v11355 = vmul.f32 %v11291, %v11291
    %v11356 = vmul.f32 %v11292, %v11292
    %v11357 = vmul.f32 %v11293, %v11293
    %v11358 = vmul.f32 %v11294, %v11294
    %v11359 = vmul.f32 %v11295, %v11295
    %v11360 = vmul.f32 %v11296, %v11296
    %v11361 = vmul.f32 %v11297, %v11297
    %v11362 = vmul.f32 %v11298, %v11298
    %v11363 = vmul.f32 %v11299, %v11299
    %v11364 = vmul.f32 %v11300, %v11300
    %v11365 = vmul.f32 %v11301, %v11301
    %v11366 = vmul.f32 %v11302, %v11302
    %v11367 = vmul.f32 %v11303, %v11303
    %v11368 = vmul.f32 %v11304, %v11304
    %v11369 = vmul.f32 %v11305, %v11305
    %v11370 = vmul.f32 %v11306, %v11306
    %v11371 = vmul.f32 %v11307, %v11307
    %v11372 = vmul.f32 %v11308, %v11308
    %v11373 = vmul.f32 %v11309, %v11309
    %v11374 = vmul.f32 %v11310, %v11310
    %v11375 = vmul.f32 %v11311, %v11311
    %v11376 = vmul.f32 %v11312, %v11312
    %v11377 = vmul.f32 %v11313, %v11313
    %v11378 = vmul.f32 %v11314, %v11314
    %v11379 = vmul.f32 %v11315, %v11315
    %v11380 = vmul.f32 %v11316, %v11316
    %v11381 = vmul.f32 %v11317, %v11317
    %v11382 = vmul.f32 %v11318, %v11318
    %v11383 = vmul.f32 %v11319, %v11319
    %v11384 = vmul.f32 %v11320, %v11320
    %v11385 = vmul.f32 %v11321, %v11321
    %v11386 = vmul.f32 %v11322, %v11322
    %v11387 = vmul.f32 %v11323, %v11323
    %v11388 = vmul.f32 %v11324, %v11324
    %v11389 = vmul.f32 %v11325, %v11325
    %v11390 = vmul.f32 %v11326, %v11326
    %v11391 = vmul.f32 %v11327, %v11327
    %v11392 = vmul.f32 %v11328, %v11328
    %v11393 = vmul.f32 %v11329, %v11329
    %v11394 = vmul.f32 %v11330, %v11330
    %v11395 = vmul.f32 %v11331, %v11331
    %v11396 = vmul.f32 %v11332, %v11332
    %v11397 = vmul.f32 %v11333, %v11333
    %v11398 = vmul.f32 %v11334, %v11334
    %v11399 = vmul.f32 %v11335, %v11335
    %v11400 = vmul.f32 %v11336, %v11336
    %v11401 = vmul.f32 %v11337, %v11337
    %v11402 = vadd.f32 %v11338, %v11339
    %11403 = vadd.xlane.f32.xlu0 %v11402
    %v11404 = vpop.xlane.xlu0 %11403
    %v11405 = vadd.f32 %v11340, %v11341
    %11406 = vadd.xlane.f32.xlu0 %v11405
    %v11407 = vpop.xlane.xlu0 %11406
    %v11408 = vadd.f32 %v11342, %v11343
    %11409 = vadd.xlane.f32.xlu0 %v11408
    %v11410 = vpop.xlane.xlu0 %11409
    %v11411 = vadd.f32 %v11344, %v11345
    %11412 = vadd.xlane.f32.xlu0 %v11411
    %v11413 = vpop.xlane.xlu0 %11412
    %v11414 = vadd.f32 %v11346, %v11347
    %11415 = vadd.xlane.f32.xlu0 %v11414
    %v11416 = vpop.xlane.xlu0 %11415
    %v11417 = vadd.f32 %v11348, %v11349
    %11418 = vadd.xlane.f32.xlu0 %v11417
    %v11419 = vpop.xlane.xlu0 %11418
    %v11420 = vadd.f32 %v11350, %v11351
    %11421 = vadd.xlane.f32.xlu0 %v11420
    %v11422 = vpop.xlane.xlu0 %11421
    %v11423 = vadd.f32 %v11352, %v11353
    %11424 = vadd.xlane.f32.xlu0 %v11423
    %v11425 = vpop.xlane.xlu0 %11424
    %v11426 = vadd.f32 %v11354, %v11355
    %11427 = vadd.xlane.f32.xlu0 %v11426
    %v11428 = vpop.xlane.xlu0 %11427
    %v11429 = vadd.f32 %v11356, %v11357
    %11430 = vadd.xlane.f32.xlu0 %v11429
    %v11431 = vpop.xlane.xlu0 %11430
    %v11432 = vadd.f32 %v11358, %v11359
    %11433 = vadd.xlane.f32.xlu0 %v11432
    %v11434 = vpop.xlane.xlu0 %11433
    %v11435 = vadd.f32 %v11360, %v11361
    %11436 = vadd.xlane.f32.xlu0 %v11435
    %v11437 = vpop.xlane.xlu0 %11436
    %v11438 = vadd.f32 %v11362, %v11363
    %11439 = vadd.xlane.f32.xlu0 %v11438
    %v11440 = vpop.xlane.xlu0 %11439
    %v11441 = vadd.f32 %v11364, %v11365
    %11442 = vadd.xlane.f32.xlu0 %v11441
    %v11443 = vpop.xlane.xlu0 %11442
    %v11444 = vadd.f32 %v11366, %v11367
    %11445 = vadd.xlane.f32.xlu0 %v11444
    %v11446 = vpop.xlane.xlu0 %11445
    %v11447 = vadd.f32 %v11368, %v11369
    %11448 = vadd.xlane.f32.xlu0 %v11447
    %v11449 = vpop.xlane.xlu0 %11448
    %v11450 = vadd.f32 %v11370, %v11371
    %11451 = vadd.xlane.f32.xlu0 %v11450
    %v11452 = vpop.xlane.xlu0 %11451
    %v11453 = vadd.f32 %v11372, %v11373
    %11454 = vadd.xlane.f32.xlu0 %v11453
    %v11455 = vpop.xlane.xlu0 %11454
    %v11456 = vadd.f32 %v11374, %v11375
    %11457 = vadd.xlane.f32.xlu0 %v11456
    %v11458 = vpop.xlane.xlu0 %11457
    %v11459 = vadd.f32 %v11376, %v11377
    %11460 = vadd.xlane.f32.xlu0 %v11459
    %v11461 = vpop.xlane.xlu0 %11460
    %v11462 = vadd.f32 %v11378, %v11379
    %11463 = vadd.xlane.f32.xlu0 %v11462
    %v11464 = vpop.xlane.xlu0 %11463
    %v11465 = vadd.f32 %v11380, %v11381
    %11466 = vadd.xlane.f32.xlu0 %v11465
    %v11467 = vpop.xlane.xlu0 %11466
    %v11468 = vadd.f32 %v11382, %v11383
    %11469 = vadd.xlane.f32.xlu0 %v11468
    %v11470 = vpop.xlane.xlu0 %11469
    %v11471 = vadd.f32 %v11384, %v11385
    %11472 = vadd.xlane.f32.xlu0 %v11471
    %v11473 = vpop.xlane.xlu0 %11472
    %v11474 = vadd.f32 %v11386, %v11387
    %11475 = vadd.xlane.f32.xlu0 %v11474
    %v11476 = vpop.xlane.xlu0 %11475
    %v11477 = vadd.f32 %v11388, %v11389
    %11478 = vadd.xlane.f32.xlu0 %v11477
    %v11479 = vpop.xlane.xlu0 %11478
    %v11480 = vadd.f32 %v11390, %v11391
    %11481 = vadd.xlane.f32.xlu0 %v11480
    %v11482 = vpop.xlane.xlu0 %11481
    %v11483 = vadd.f32 %v11392, %v11393
    %11484 = vadd.xlane.f32.xlu0 %v11483
    %v11485 = vpop.xlane.xlu0 %11484
    %v11486 = vadd.f32 %v11394, %v11395
    %11487 = vadd.xlane.f32.xlu0 %v11486
    %v11488 = vpop.xlane.xlu0 %11487
    %v11489 = vadd.f32 %v11396, %v11397
    %11490 = vadd.xlane.f32.xlu0 %v11489
    %v11491 = vpop.xlane.xlu0 %11490
    %v11492 = vadd.f32 %v11398, %v11399
    %11493 = vadd.xlane.f32.xlu0 %v11492
    %v11494 = vpop.xlane.xlu0 %11493
    %v11495 = vadd.f32 %v11400, %v11401
    %11496 = vadd.xlane.f32.xlu0 %v11495
    %v11497 = vpop.xlane.xlu0 %11496
    %v11498 = vmul.f32 %v11404, %v5936
    %v11499 = vmul.f32 %v11407, %v5936
    %v11500 = vmul.f32 %v11410, %v5936
    %v11501 = vmul.f32 %v11413, %v5936
    %v11502 = vmul.f32 %v11416, %v5936
    %v11503 = vmul.f32 %v11419, %v5936
    %v11504 = vmul.f32 %v11422, %v5936
    %v11505 = vmul.f32 %v11425, %v5936
    %v11506 = vmul.f32 %v11428, %v5936
    %v11507 = vmul.f32 %v11431, %v5936
    %v11508 = vmul.f32 %v11434, %v5936
    %v11509 = vmul.f32 %v11437, %v5936
    %v11510 = vmul.f32 %v11440, %v5936
    %v11511 = vmul.f32 %v11443, %v5936
    %v11512 = vmul.f32 %v11446, %v5936
    %v11513 = vmul.f32 %v11449, %v5936
    %v11514 = vmul.f32 %v11452, %v5936
    %v11515 = vmul.f32 %v11455, %v5936
    %v11516 = vmul.f32 %v11458, %v5936
    %v11517 = vmul.f32 %v11461, %v5936
    %v11518 = vmul.f32 %v11464, %v5936
    %v11519 = vmul.f32 %v11467, %v5936
    %v11520 = vmul.f32 %v11470, %v5936
    %v11521 = vmul.f32 %v11473, %v5936
    %v11522 = vmul.f32 %v11476, %v5936
    %v11523 = vmul.f32 %v11479, %v5936
    %v11524 = vmul.f32 %v11482, %v5936
    %v11525 = vmul.f32 %v11485, %v5936
    %v11526 = vmul.f32 %v11488, %v5936
    %v11527 = vmul.f32 %v11491, %v5936
    %v11528 = vmul.f32 %v11494, %v5936
    %v11529 = vmul.f32 %v11497, %v5936
    %v11530 = vadd.f32 %v11498, 1e-05
    %v11531 = vadd.f32 %v11499, 1e-05
    %v11532 = vadd.f32 %v11500, 1e-05
    %v11533 = vadd.f32 %v11501, 1e-05
    %v11534 = vadd.f32 %v11502, 1e-05
    %v11535 = vadd.f32 %v11503, 1e-05
    %v11536 = vadd.f32 %v11504, 1e-05
    %v11537 = vadd.f32 %v11505, 1e-05
    %v11538 = vadd.f32 %v11506, 1e-05
    %v11539 = vadd.f32 %v11507, 1e-05
    %v11540 = vadd.f32 %v11508, 1e-05
    %v11541 = vadd.f32 %v11509, 1e-05
    %v11542 = vadd.f32 %v11510, 1e-05
    %v11543 = vadd.f32 %v11511, 1e-05
    %v11544 = vadd.f32 %v11512, 1e-05
    %v11545 = vadd.f32 %v11513, 1e-05
    %v11546 = vadd.f32 %v11514, 1e-05
    %v11547 = vadd.f32 %v11515, 1e-05
    %v11548 = vadd.f32 %v11516, 1e-05
    %v11549 = vadd.f32 %v11517, 1e-05
    %v11550 = vadd.f32 %v11518, 1e-05
    %v11551 = vadd.f32 %v11519, 1e-05
    %v11552 = vadd.f32 %v11520, 1e-05
    %v11553 = vadd.f32 %v11521, 1e-05
    %v11554 = vadd.f32 %v11522, 1e-05
    %v11555 = vadd.f32 %v11523, 1e-05
    %v11556 = vadd.f32 %v11524, 1e-05
    %v11557 = vadd.f32 %v11525, 1e-05
    %v11558 = vadd.f32 %v11526, 1e-05
    %v11559 = vadd.f32 %v11527, 1e-05
    %v11560 = vadd.f32 %v11528, 1e-05
    %v11561 = vadd.f32 %v11529, 1e-05
    %v11562 = vrsqrt.pop %v11530
    %v11563 = vrsqrt.pop %v11531
    %v11564 = vrsqrt.pop %v11532
    %v11565 = vrsqrt.pop %v11533
    %v11566 = vrsqrt.pop %v11534
    %v11567 = vrsqrt.pop %v11535
    %v11568 = vrsqrt.pop %v11536
    %v11569 = vrsqrt.pop %v11537
    %v11570 = vrsqrt.pop %v11538
    %v11571 = vrsqrt.pop %v11539
    %v11572 = vrsqrt.pop %v11540
    %v11573 = vrsqrt.pop %v11541
    %v11574 = vrsqrt.pop %v11542
    %v11575 = vrsqrt.pop %v11543
    %v11576 = vrsqrt.pop %v11544
    %v11577 = vrsqrt.pop %v11545
    %v11578 = vrsqrt.pop %v11546
    %v11579 = vrsqrt.pop %v11547
    %v11580 = vrsqrt.pop %v11548
    %v11581 = vrsqrt.pop %v11549
    %v11582 = vrsqrt.pop %v11550
    %v11583 = vrsqrt.pop %v11551
    %v11584 = vrsqrt.pop %v11552
    %v11585 = vrsqrt.pop %v11553
    %v11586 = vrsqrt.pop %v11554
    %v11587 = vrsqrt.pop %v11555
    %v11588 = vrsqrt.pop %v11556
    %v11589 = vrsqrt.pop %v11557
    %v11590 = vrsqrt.pop %v11558
    %v11591 = vrsqrt.pop %v11559
    %v11592 = vrsqrt.pop %v11560
    %v11593 = vrsqrt.pop %v11561
    %v11594 = vmul.f32 %v11274, %v11562
    %v11595 = vmul.f32 %v11275, %v11562
    %v11596 = vmul.f32 %v11276, %v11563
    %v11597 = vmul.f32 %v11277, %v11563
    %v11598 = vmul.f32 %v11278, %v11564
    %v11599 = vmul.f32 %v11279, %v11564
    %v11600 = vmul.f32 %v11280, %v11565
    %v11601 = vmul.f32 %v11281, %v11565
    %v11602 = vmul.f32 %v11282, %v11566
    %v11603 = vmul.f32 %v11283, %v11566
    %v11604 = vmul.f32 %v11284, %v11567
    %v11605 = vmul.f32 %v11285, %v11567
    %v11606 = vmul.f32 %v11286, %v11568
    %v11607 = vmul.f32 %v11287, %v11568
    %v11608 = vmul.f32 %v11288, %v11569
    %v11609 = vmul.f32 %v11289, %v11569
    %v11610 = vmul.f32 %v11290, %v11570
    %v11611 = vmul.f32 %v11291, %v11570
    %v11612 = vmul.f32 %v11292, %v11571
    %v11613 = vmul.f32 %v11293, %v11571
    %v11614 = vmul.f32 %v11294, %v11572
    %v11615 = vmul.f32 %v11295, %v11572
    %v11616 = vmul.f32 %v11296, %v11573
    %v11617 = vmul.f32 %v11297, %v11573
    %v11618 = vmul.f32 %v11298, %v11574
    %v11619 = vmul.f32 %v11299, %v11574
    %v11620 = vmul.f32 %v11300, %v11575
    %v11621 = vmul.f32 %v11301, %v11575
    %v11622 = vmul.f32 %v11302, %v11576
    %v11623 = vmul.f32 %v11303, %v11576
    %v11624 = vmul.f32 %v11304, %v11577
    %v11625 = vmul.f32 %v11305, %v11577
    %v11626 = vmul.f32 %v11306, %v11578
    %v11627 = vmul.f32 %v11307, %v11578
    %v11628 = vmul.f32 %v11308, %v11579
    %v11629 = vmul.f32 %v11309, %v11579
    %v11630 = vmul.f32 %v11310, %v11580
    %v11631 = vmul.f32 %v11311, %v11580
    %v11632 = vmul.f32 %v11312, %v11581
    %v11633 = vmul.f32 %v11313, %v11581
    %v11634 = vmul.f32 %v11314, %v11582
    %v11635 = vmul.f32 %v11315, %v11582
    %v11636 = vmul.f32 %v11316, %v11583
    %v11637 = vmul.f32 %v11317, %v11583
    %v11638 = vmul.f32 %v11318, %v11584
    %v11639 = vmul.f32 %v11319, %v11584
    %v11640 = vmul.f32 %v11320, %v11585
    %v11641 = vmul.f32 %v11321, %v11585
    %v11642 = vmul.f32 %v11322, %v11586
    %v11643 = vmul.f32 %v11323, %v11586
    %v11644 = vmul.f32 %v11324, %v11587
    %v11645 = vmul.f32 %v11325, %v11587
    %v11646 = vmul.f32 %v11326, %v11588
    %v11647 = vmul.f32 %v11327, %v11588
    %v11648 = vmul.f32 %v11328, %v11589
    %v11649 = vmul.f32 %v11329, %v11589
    %v11650 = vmul.f32 %v11330, %v11590
    %v11651 = vmul.f32 %v11331, %v11590
    %v11652 = vmul.f32 %v11332, %v11591
    %v11653 = vmul.f32 %v11333, %v11591
    %v11654 = vmul.f32 %v11334, %v11592
    %v11655 = vmul.f32 %v11335, %v11592
    %v11656 = vmul.f32 %v11336, %v11593
    %v11657 = vmul.f32 %v11337, %v11593
    %v11659 = vlaneseq
    %v11660 = vshrl.u32 %v11659, 7
    %v11661 = vsub.s32 0, %v11660
    %v11662 = vrot.slane %v11143, %v11661
    %v11663 = vlaneseq
    %v11664 = vshrl.u32 %v11663, 7
    %v11665 = vsub.s32 1, %v11664
    %v11666 = vrot.slane %v11143, %v11665
    %v11669 = vmul.f32 %v11594, %v11662
    %v11670 = vmul.f32 %v11595, %v11666
    %v11671 = vmul.f32 %v11596, %v11662
    %v11672 = vmul.f32 %v11597, %v11666
    %v11673 = vmul.f32 %v11598, %v11662
    %v11674 = vmul.f32 %v11599, %v11666
    %v11675 = vmul.f32 %v11600, %v11662
    %v11676 = vmul.f32 %v11601, %v11666
    %v11677 = vmul.f32 %v11602, %v11662
    %v11678 = vmul.f32 %v11603, %v11666
    %v11679 = vmul.f32 %v11604, %v11662
    %v11680 = vmul.f32 %v11605, %v11666
    %v11681 = vmul.f32 %v11606, %v11662
    %v11682 = vmul.f32 %v11607, %v11666
    %v11683 = vmul.f32 %v11608, %v11662
    %v11684 = vmul.f32 %v11609, %v11666
    %v11685 = vmul.f32 %v11610, %v11662
    %v11686 = vmul.f32 %v11611, %v11666
    %v11687 = vmul.f32 %v11612, %v11662
    %v11688 = vmul.f32 %v11613, %v11666
    %v11689 = vmul.f32 %v11614, %v11662
    %v11690 = vmul.f32 %v11615, %v11666
    %v11691 = vmul.f32 %v11616, %v11662
    %v11692 = vmul.f32 %v11617, %v11666
    %v11693 = vmul.f32 %v11618, %v11662
    %v11694 = vmul.f32 %v11619, %v11666
    %v11695 = vmul.f32 %v11620, %v11662
    %v11696 = vmul.f32 %v11621, %v11666
    %v11697 = vmul.f32 %v11622, %v11662
    %v11698 = vmul.f32 %v11623, %v11666
    %v11699 = vmul.f32 %v11624, %v11662
    %v11700 = vmul.f32 %v11625, %v11666
    %v11701 = vmul.f32 %v11626, %v11662
    %v11702 = vmul.f32 %v11627, %v11666
    %v11703 = vmul.f32 %v11628, %v11662
    %v11704 = vmul.f32 %v11629, %v11666
    %v11705 = vmul.f32 %v11630, %v11662
    %v11706 = vmul.f32 %v11631, %v11666
    %v11707 = vmul.f32 %v11632, %v11662
    %v11708 = vmul.f32 %v11633, %v11666
    %v11709 = vmul.f32 %v11634, %v11662
    %v11710 = vmul.f32 %v11635, %v11666
    %v11711 = vmul.f32 %v11636, %v11662
    %v11712 = vmul.f32 %v11637, %v11666
    %v11713 = vmul.f32 %v11638, %v11662
    %v11714 = vmul.f32 %v11639, %v11666
    %v11715 = vmul.f32 %v11640, %v11662
    %v11716 = vmul.f32 %v11641, %v11666
    %v11717 = vmul.f32 %v11642, %v11662
    %v11718 = vmul.f32 %v11643, %v11666
    %v11719 = vmul.f32 %v11644, %v11662
    %v11720 = vmul.f32 %v11645, %v11666
    %v11721 = vmul.f32 %v11646, %v11662
    %v11722 = vmul.f32 %v11647, %v11666
    %v11723 = vmul.f32 %v11648, %v11662
    %v11724 = vmul.f32 %v11649, %v11666
    %v11725 = vmul.f32 %v11650, %v11662
    %v11726 = vmul.f32 %v11651, %v11666
    %v11727 = vmul.f32 %v11652, %v11662
    %v11728 = vmul.f32 %v11653, %v11666
    %v11729 = vmul.f32 %v11654, %v11662
    %v11730 = vmul.f32 %v11655, %v11666
    %v11731 = vmul.f32 %v11656, %v11662
    %v11732 = vmul.f32 %v11657, %v11666
    %v11734 = vlaneseq
    %v11735 = vshrl.u32 %v11734, 7
    %v11736 = vsub.s32 0, %v11735
    %v11737 = vrot.slane %v11145, %v11736
    %v11738 = vlaneseq
    %v11739 = vshrl.u32 %v11738, 7
    %v11740 = vsub.s32 1, %v11739
    %v11741 = vrot.slane %v11145, %v11740
    %v11744 = vadd.f32 %v11669, %v11737
    %v11745 = vadd.f32 %v11670, %v11741
    %v11746 = vadd.f32 %v11671, %v11737
    %v11747 = vadd.f32 %v11672, %v11741
    %v11748 = vadd.f32 %v11673, %v11737
    %v11749 = vadd.f32 %v11674, %v11741
    %v11750 = vadd.f32 %v11675, %v11737
    %v11751 = vadd.f32 %v11676, %v11741
    %v11752 = vadd.f32 %v11677, %v11737
    %v11753 = vadd.f32 %v11678, %v11741
    %v11754 = vadd.f32 %v11679, %v11737
    %v11755 = vadd.f32 %v11680, %v11741
    %v11756 = vadd.f32 %v11681, %v11737
    %v11757 = vadd.f32 %v11682, %v11741
    %v11758 = vadd.f32 %v11683, %v11737
    %v11759 = vadd.f32 %v11684, %v11741
    %v11760 = vadd.f32 %v11685, %v11737
    %v11761 = vadd.f32 %v11686, %v11741
    %v11762 = vadd.f32 %v11687, %v11737
    %v11763 = vadd.f32 %v11688, %v11741
    %v11764 = vadd.f32 %v11689, %v11737
    %v11765 = vadd.f32 %v11690, %v11741
    %v11766 = vadd.f32 %v11691, %v11737
    %v11767 = vadd.f32 %v11692, %v11741
    %v11768 = vadd.f32 %v11693, %v11737
    %v11769 = vadd.f32 %v11694, %v11741
    %v11770 = vadd.f32 %v11695, %v11737
    %v11771 = vadd.f32 %v11696, %v11741
    %v11772 = vadd.f32 %v11697, %v11737
    %v11773 = vadd.f32 %v11698, %v11741
    %v11774 = vadd.f32 %v11699, %v11737
    %v11775 = vadd.f32 %v11700, %v11741
    %v11776 = vadd.f32 %v11701, %v11737
    %v11777 = vadd.f32 %v11702, %v11741
    %v11778 = vadd.f32 %v11703, %v11737
    %v11779 = vadd.f32 %v11704, %v11741
    %v11780 = vadd.f32 %v11705, %v11737
    %v11781 = vadd.f32 %v11706, %v11741
    %v11782 = vadd.f32 %v11707, %v11737
    %v11783 = vadd.f32 %v11708, %v11741
    %v11784 = vadd.f32 %v11709, %v11737
    %v11785 = vadd.f32 %v11710, %v11741
    %v11786 = vadd.f32 %v11711, %v11737
    %v11787 = vadd.f32 %v11712, %v11741
    %v11788 = vadd.f32 %v11713, %v11737
    %v11789 = vadd.f32 %v11714, %v11741
    %v11790 = vadd.f32 %v11715, %v11737
    %v11791 = vadd.f32 %v11716, %v11741
    %v11792 = vadd.f32 %v11717, %v11737
    %v11793 = vadd.f32 %v11718, %v11741
    %v11794 = vadd.f32 %v11719, %v11737
    %v11795 = vadd.f32 %v11720, %v11741
    %v11796 = vadd.f32 %v11721, %v11737
    %v11797 = vadd.f32 %v11722, %v11741
    %v11798 = vadd.f32 %v11723, %v11737
    %v11799 = vadd.f32 %v11724, %v11741
    %v11800 = vadd.f32 %v11725, %v11737
    %v11801 = vadd.f32 %v11726, %v11741
    %v11802 = vadd.f32 %v11727, %v11737
    %v11803 = vadd.f32 %v11728, %v11741
    %v11804 = vadd.f32 %v11729, %v11737
    %v11805 = vadd.f32 %v11730, %v11741
    %v11806 = vadd.f32 %v11731, %v11737
    %v11807 = vadd.f32 %v11732, %v11741
    %11808 = vst [vmem:[#allocation13] sm:$0xff] %v11744
    %11809 = vst [vmem:[#allocation13 + $0x8] sm:$0xff] %v11745
    %11810 = vst [vmem:[#allocation13 + $0x10] sm:$0xff] %v11746
    %11811 = vst [vmem:[#allocation13 + $0x18] sm:$0xff] %v11747
    %11812 = vst [vmem:[#allocation13 + $0x20] sm:$0xff] %v11748
    %11813 = vst [vmem:[#allocation13 + $0x28] sm:$0xff] %v11749
    %11814 = vst [vmem:[#allocation13 + $0x30] sm:$0xff] %v11750
    %11815 = vst [vmem:[#allocation13 + $0x38] sm:$0xff] %v11751
    %11816 = vst [vmem:[#allocation13 + $0x40] sm:$0xff] %v11752
    %11817 = vst [vmem:[#allocation13 + $0x48] sm:$0xff] %v11753
    %11818 = vst [vmem:[#allocation13 + $0x50] sm:$0xff] %v11754
    %11819 = vst [vmem:[#allocation13 + $0x58] sm:$0xff] %v11755
    %11820 = vst [vmem:[#allocation13 + $0x60] sm:$0xff] %v11756
    %11821 = vst [vmem:[#allocation13 + $0x68] sm:$0xff] %v11757
    %11822 = vst [vmem:[#allocation13 + $0x70] sm:$0xff] %v11758
    %11823 = vst [vmem:[#allocation13 + $0x78] sm:$0xff] %v11759
    %11824 = vst [vmem:[#allocation13 + $0x80] sm:$0xff] %v11760
    %11825 = vst [vmem:[#allocation13 + $0x88] sm:$0xff] %v11761
    %11826 = vst [vmem:[#allocation13 + $0x90] sm:$0xff] %v11762
    %11827 = vst [vmem:[#allocation13 + $0x98] sm:$0xff] %v11763
    %11828 = vst [vmem:[#allocation13 + $0xa0] sm:$0xff] %v11764
    %11829 = vst [vmem:[#allocation13 + $0xa8] sm:$0xff] %v11765
    %11830 = vst [vmem:[#allocation13 + $0xb0] sm:$0xff] %v11766
    %11831 = vst [vmem:[#allocation13 + $0xb8] sm:$0xff] %v11767
    %11832 = vst [vmem:[#allocation13 + $0xc0] sm:$0xff] %v11768
    %11833 = vst [vmem:[#allocation13 + $0xc8] sm:$0xff] %v11769
    %11834 = vst [vmem:[#allocation13 + $0xd0] sm:$0xff] %v11770
    %11835 = vst [vmem:[#allocation13 + $0xd8] sm:$0xff] %v11771
    %11836 = vst [vmem:[#allocation13 + $0xe0] sm:$0xff] %v11772
    %11837 = vst [vmem:[#allocation13 + $0xe8] sm:$0xff] %v11773
    %11838 = vst [vmem:[#allocation13 + $0xf0] sm:$0xff] %v11774
    %11839 = vst [vmem:[#allocation13 + $0xf8] sm:$0xff] %v11775
    %11840 = vst [vmem:[#allocation13 + $0x100] sm:$0xff] %v11776
    %11841 = vst [vmem:[#allocation13 + $0x108] sm:$0xff] %v11777
    %11842 = vst [vmem:[#allocation13 + $0x110] sm:$0xff] %v11778
    %11843 = vst [vmem:[#allocation13 + $0x118] sm:$0xff] %v11779
    %11844 = vst [vmem:[#allocation13 + $0x120] sm:$0xff] %v11780
    %11845 = vst [vmem:[#allocation13 + $0x128] sm:$0xff] %v11781
    %11846 = vst [vmem:[#allocation13 + $0x130] sm:$0xff] %v11782
    %11847 = vst [vmem:[#allocation13 + $0x138] sm:$0xff] %v11783
    %11848 = vst [vmem:[#allocation13 + $0x140] sm:$0xff] %v11784
    %11849 = vst [vmem:[#allocation13 + $0x148] sm:$0xff] %v11785
    %11850 = vst [vmem:[#allocation13 + $0x150] sm:$0xff] %v11786
    %11851 = vst [vmem:[#allocation13 + $0x158] sm:$0xff] %v11787
    %11852 = vst [vmem:[#allocation13 + $0x160] sm:$0xff] %v11788
    %11853 = vst [vmem:[#allocation13 + $0x168] sm:$0xff] %v11789
    %11854 = vst [vmem:[#allocation13 + $0x170] sm:$0xff] %v11790
    %11855 = vst [vmem:[#allocation13 + $0x178] sm:$0xff] %v11791
    %11856 = vst [vmem:[#allocation13 + $0x180] sm:$0xff] %v11792
    %11857 = vst [vmem:[#allocation13 + $0x188] sm:$0xff] %v11793
    %11858 = vst [vmem:[#allocation13 + $0x190] sm:$0xff] %v11794
    %11859 = vst [vmem:[#allocation13 + $0x198] sm:$0xff] %v11795
    %11860 = vst [vmem:[#allocation13 + $0x1a0] sm:$0xff] %v11796
    %11861 = vst [vmem:[#allocation13 + $0x1a8] sm:$0xff] %v11797
    %11862 = vst [vmem:[#allocation13 + $0x1b0] sm:$0xff] %v11798
    %11863 = vst [vmem:[#allocation13 + $0x1b8] sm:$0xff] %v11799
    %11864 = vst [vmem:[#allocation13 + $0x1c0] sm:$0xff] %v11800
    %11865 = vst [vmem:[#allocation13 + $0x1c8] sm:$0xff] %v11801
    %11866 = vst [vmem:[#allocation13 + $0x1d0] sm:$0xff] %v11802
    %11867 = vst [vmem:[#allocation13 + $0x1d8] sm:$0xff] %v11803
    %11868 = vst [vmem:[#allocation13 + $0x1e0] sm:$0xff] %v11804
    %11869 = vst [vmem:[#allocation13 + $0x1e8] sm:$0xff] %v11805
    %11870 = vst [vmem:[#allocation13 + $0x1f0] sm:$0xff] %v11806
    %11871 = vst [vmem:[#allocation13 + $0x1f8] sm:$0xff] %v11807
    // Predicated region
    $region58: #{tpu_custom_call.1} parent=1 // pred_check
      _
    $region59: #{tpu_custom_call.1} parent=1 // pred_check_branch
      %11873 = sbr.rel (0) target = $region61
    $region60: #{tpu_custom_call.1} parent=1 // pred_region
      %s11875 = ssub.s32 8192, 8192
      %11876 = vsyncadd [#allocation4], %s11875
      %s11877 = sshll.u32 [#allocation13], 4
      %s11878 = int_to_ptr.vmem [resolvable:$true] %s11877
      %11883 = dma.vmem_to_hbm [thread:$0]  %s11878, 8192, %s8, [#allocation4], 256, 256, 16
    $region61: #{tpu_custom_call.1} parent=1 // pred_fallthru
      _
    // Predicated region
    $region62: #{tpu_custom_call.1} parent=1 // pred_check
      _
    $region63: #{tpu_custom_call.1} parent=1 // pred_check_branch
      %11885 = sbr.rel (0) target = $region65
    $region64: #{tpu_custom_call.1} parent=1 // pred_region
      %11886 = dma.done [#allocation4], 8192
    $region65: #{tpu_custom_call.1} parent=1 // pred_fallthru
      _
    %11887 = vsyncpa [#allocation3], 1
    %11888 = vsyncpa [#allocation6], 1
    %11889 = vsyncpa [#allocation9], 1
    %11890 = vsyncpa [#allocation12], 1
    %11891 = vsyncpa [#allocation4], 1

</llo_original>
